<compile_context>
chip_gen: v6e
topology: v6e:2x2x1
jax: 0.10.0
libtpu: 0.0.40
codegen_flags: <defaults>
</compile_context>

<pallas_src>
import functools

import jax
import jax.numpy as jnp
import numpy as np
from jax.experimental import pallas as pl
from jax.experimental.pallas import tpu as pltpu


# Layer config implied by the PyTorch module (fc expects 3*3*64 -> 1x28x28 input).
LAYERS = (
    dict(H=28, W=28, Cin=1, Cout=16, K=5, pad=2),
    dict(H=14, W=14, Cin=16, Cout=32, K=5, pad=2),
    dict(H=7, W=7, Cin=32, Cout=64, K=3, pad=1),
)


# ----------------------------------------------------------------------------
# Fused kernel: conv1 -> conv2 -> conv3 -> fc, one batch element per grid step.
# ----------------------------------------------------------------------------
def lenet_kernel(x_ref, *refs, layers):
  nl = len(layers)
  layer_refs = [refs[5 * i:5 * i + 5] for i in range(nl)]
  wfc_ref = refs[5 * nl]
  bfc_ref = refs[5 * nl + 1]
  o_ref = refs[5 * nl + 2]
  xp_refs = refs[5 * nl + 3:]

  def conv_bn_relu_pool(xp_ref, m_ref, s_ref, t_ref, ph_ref, pw_ref, cfg):
    H, C, KH = cfg["H"], cfg["Cout"], cfg["K"]
    WC = s_ref.shape[-1]                        # W * Cout (lane-dense: 448)
    # Convolution: KH big 2-D MXU matmuls (W taps and Cin folded into K).
    a = jnp.zeros((H, WC), jnp.float32)
    for kh in range(KH):
      a = a + jnp.dot(xp_ref[kh:kh + H, :], m_ref[kh],
                      preferred_element_type=jnp.float32)
    # Folded BatchNorm (inference) + ReLU.
    a = jnp.maximum(a * s_ref[...] + t_ref[...], 0.0)
    # MaxPool 2x2 stride 2 (floor mode, torch.nn.MaxPool2d defaults).
    mh = jnp.maximum(a[:H - 1, :], a[1:, :])                 # rows r vs r+1
    hp = jnp.dot(ph_ref[...], mh, preferred_element_type=jnp.float32)
    mw = jnp.maximum(hp[:, :WC - C], hp[:, C:])              # col-group g vs g+1
    return jnp.dot(mw, pw_ref[...], preferred_element_type=jnp.float32)

  # Layer chain; `act` has shape (H, W*C) and never leaves VMEM.
  act = x_ref[0]                                             # (28, 28*1)
  for li, cfg in enumerate(layers):
    xp = xp_refs[li]
    pad, H = cfg["pad"], cfg["H"]
    xp[...] = jnp.zeros_like(xp)        # zero rows for H padding (W pad is in band)
    xp[pad:pad + H, :] = act
    act = conv_bn_relu_pool(xp, *layer_refs[li], cfg)

  # Fully connected layer (weights pre-permuted to the (h, w*C+c) layout).
  out = bfc_ref[...]
  for h in range(act.shape[0]):
    out = out + jnp.dot(act[h:h + 1, :], wfc_ref[h],
                        preferred_element_type=jnp.float32)
  o_ref[0] = out


# ----------------------------------------------------------------------------
# One-time host-side parameter repacking (banded conv weights, pool selectors,
# tiled BN scale/shift, CHW->(h, w*C+c) permuted FC weight).
# ----------------------------------------------------------------------------
def _band_matrices(w_hwio, cfg):
  """Conv weights (KH,KW,Cin,Cout) -> (KH, W*Cin, W*Cout) banded matrices."""
  W, Cin, Cout, K, pad = cfg["W"], cfg["Cin"], cfg["Cout"], cfg["K"], cfg["pad"]
  wn = np.asarray(w_hwio, np.float32)
  band = np.zeros((K, W * Cin, W * Cout), np.float32)
  for kh in range(K):
    for wo in range(W):
      for kw in range(K):
        wi = wo + kw - pad
        if 0 <= wi < W:
          band[kh, wi * Cin:(wi + 1) * Cin, wo * Cout:(wo + 1) * Cout] = wn[kh, kw]
  return band


def _pool_selectors(cfg):
  H, W, C = cfg["H"], cfg["W"], cfg["Cout"]
  Ho, Wo = H // 2, W // 2
  ph = np.zeros((Ho, H - 1), np.float32)          # picks even rows of row-pair max
  ph[np.arange(Ho), 2 * np.arange(Ho)] = 1.0
  pw = np.zeros(((W - 1) * C, Wo * C), np.float32)  # picks even column groups
  eye = np.eye(C, dtype=np.float32)
  for v in range(Wo):
    pw[2 * v * C:2 * v * C + C, v * C:(v + 1) * C] = eye
  return ph, pw


def prepare_kernel_params(params, layers):
  *conv_params, (fcw, fcb) = params
  layer_ops = []
  for (w, scale, shift), cfg in zip(conv_params, layers):
    W, Cout = cfg["W"], cfg["Cout"]
    band = _band_matrices(w, cfg)
    srow = np.tile(np.asarray(scale, np.float32), W).reshape(1, W * Cout)
    trow = np.tile(np.asarray(shift, np.float32), W).reshape(1, W * Cout)
    ph, pw = _pool_selectors(cfg)
    layer_ops.append(tuple(jnp.asarray(a) for a in (band, srow, trow, ph, pw)))
  # FC weight: torch flatten order is (c, h, w); kernel layout is (h, w*C + c).
  cfg = layers[-1]
  Hf, Wf, Cf = cfg["H"] // 2, cfg["W"] // 2, cfg["Cout"]
  fcw_n = np.asarray(fcw, np.float32).reshape(Cf, Hf, Wf, -1)
  wfc_r = np.transpose(fcw_n, (1, 2, 0, 3)).reshape(Hf, Wf * Cf, -1)
  bfc_r = np.asarray(fcb, np.float32).reshape(1, -1)
  return (tuple(layer_ops), jnp.asarray(wfc_r), jnp.asarray(bfc_r))


# ----------------------------------------------------------------------------
# Forward pass (single fused pallas_call)
# ----------------------------------------------------------------------------
def _lenet_forward_impl(x_nchw, kparams, *, layers):
  layer_ops, wfc_r, bfc_r = kparams
  B = x_nchw.shape[0]
  c0 = layers[0]
  x3 = x_nchw.reshape(B, c0["H"], c0["W"] * c0["Cin"])
  num_classes = bfc_r.shape[-1]

  operands = [x3]
  in_specs = [pl.BlockSpec((1, c0["H"], c0["W"] * c0["Cin"]),
                           lambda b: (b, 0, 0))]

  def const_spec(arr):
    nd = arr.ndim
    return pl.BlockSpec(arr.shape, lambda b, nd=nd: (0,) * nd)

  for ops in layer_ops:
    for a in ops:
      operands.append(a)
      in_specs.append(const_spec(a))
  for a in (wfc_r, bfc_r):
    operands.append(a)
    in_specs.append(const_spec(a))

  scratch_shapes = [
      pltpu.VMEM((cfg["H"] + 2 * cfg["pad"], cfg["W"] * cfg["Cin"]), jnp.float32)
      for cfg in layers
  ]

  out = pl.pallas_call(
      functools.partial(lenet_kernel, layers=layers),
      out_shape=jax.ShapeDtypeStruct((B, 1, num_classes), jnp.float32),
      grid=(B,),
      in_specs=in_specs,
      out_specs=pl.BlockSpec((1, 1, num_classes), lambda b: (b, 0, 0)),
      scratch_shapes=scratch_shapes,
      compiler_params=pltpu.CompilerParams(dimension_semantics=("parallel",)),
  )(*operands)
  return out.reshape(B, num_classes)


lenet_forward = jax.jit(functools.partial(_lenet_forward_impl, layers=LAYERS))


# ----------------------------------------------------------------------------
# Pure-XLA reference (independent of the kernel path) + deterministic init
# ----------------------------------------------------------------------------
def reference_forward(x_nchw, params):
  (w1, s1, t1), (w2, s2, t2), (w3, s3, t3), (fcw, fcb) = params

  def block(x, w, scale, shift, pad):
    y = jax.lax.conv_general_dilated(
        x, w, window_strides=(1, 1), padding=[(pad, pad), (pad, pad)],
        dimension_numbers=("NHWC", "HWIO", "NHWC"),
        precision=jax.lax.Precision.HIGHEST)
    y = y * scale[None, None, None, :] + shift[None, None, None, :]
    y = jnp.maximum(y, 0.0)
    return jax.lax.reduce_window(y, -jnp.inf, jax.lax.max,
                                 (1, 2, 2, 1), (1, 2, 2, 1), "VALID")

  x = jnp.transpose(x_nchw, (0, 2, 3, 1))
  y = block(x, w1, s1, t1, 2)
  y = block(y, w2, s2, t2, 2)
  y = block(y, w3, s3, t3, 1)
  flat = jnp.transpose(y, (0, 3, 1, 2)).reshape(y.shape[0], -1)
  return jnp.dot(flat, fcw, precision=jax.lax.Precision.HIGHEST) + fcb[None, :]


def init_conv_bn(key, KH, KW, Cin, Cout):
  k1, k2, k3, k4, k5, k6 = jax.random.split(key, 6)
  w = jax.random.normal(k1, (KH, KW, Cin, Cout), jnp.float32) * 0.1
  conv_bias = jax.random.normal(k2, (Cout,), jnp.float32) * 0.1
  gamma = 1.0 + 0.1 * jax.random.normal(k3, (Cout,), jnp.float32)
  beta = 0.1 * jax.random.normal(k4, (Cout,), jnp.float32)
  running_mean = 0.1 * jax.random.normal(k5, (Cout,), jnp.float32)
  running_var = jax.random.uniform(k6, (Cout,), jnp.float32, 0.5, 1.5)
  eps = 1e-5
  scale = gamma / jnp.sqrt(running_var + eps)
  shift = beta - running_mean * scale + conv_bias * scale  # fold conv bias + BN
  return w, scale, shift


if __name__ == "__main__":
  key = jax.random.PRNGKey(0)
  keys = jax.random.split(key, 6)
  B, num_classes = 2, 10

  # Input shape implied by the module: fc expects 3*3*64 features -> 1x28x28.
  x_nchw = jax.random.normal(keys[0], (B, 1, 28, 28), jnp.float32)

  params = (
      init_conv_bn(keys[1], 5, 5, 1, 16),
      init_conv_bn(keys[2], 5, 5, 16, 32),
      init_conv_bn(keys[3], 3, 3, 32, 64),
      (jax.random.normal(keys[4], (3 * 3 * 64, num_classes), jnp.float32) * 0.05,
       jax.random.normal(keys[5], (num_classes,), jnp.float32) * 0.05),
  )

  kparams = prepare_kernel_params(params, LAYERS)

  out = lenet_forward(x_nchw, kparams)
  out = jax.block_until_ready(out)
  assert out.shape == (B, num_classes), out.shape

  ref = reference_forward(x_nchw, params)
  assert jnp.allclose(out, ref, rtol=2e-3, atol=2e-3), (
      "mismatch vs reference", float(jnp.max(jnp.abs(out - ref))))

  print("KERNEL_OK")
</pallas_src>

<mosaic_0001>
module attributes {stable_mosaic.version = 11 : i64} {
  func.func @lenet_kernel(%arg0: i32, %arg1: memref<1x28x28xf32, #tpu.memory_space<vmem>>, %arg2: memref<5x28x448xf32, #tpu.memory_space<vmem>>, %arg3: memref<1x448xf32, #tpu.memory_space<vmem>>, %arg4: memref<1x448xf32, #tpu.memory_space<vmem>>, %arg5: memref<14x27xf32, #tpu.memory_space<vmem>>, %arg6: memref<432x224xf32, #tpu.memory_space<vmem>>, %arg7: memref<5x224x448xf32, #tpu.memory_space<vmem>>, %arg8: memref<1x448xf32, #tpu.memory_space<vmem>>, %arg9: memref<1x448xf32, #tpu.memory_space<vmem>>, %arg10: memref<7x13xf32, #tpu.memory_space<vmem>>, %arg11: memref<416x224xf32, #tpu.memory_space<vmem>>, %arg12: memref<3x224x448xf32, #tpu.memory_space<vmem>>, %arg13: memref<1x448xf32, #tpu.memory_space<vmem>>, %arg14: memref<1x448xf32, #tpu.memory_space<vmem>>, %arg15: memref<3x6xf32, #tpu.memory_space<vmem>>, %arg16: memref<384x192xf32, #tpu.memory_space<vmem>>, %arg17: memref<3x192x10xf32, #tpu.memory_space<vmem>>, %arg18: memref<1x10xf32, #tpu.memory_space<vmem>>, %arg19: memref<1x1x10xf32, #tpu.memory_space<vmem>>, %arg20: memref<32x28xf32, #tpu.memory_space<vmem>>, %arg21: memref<18x224xf32, #tpu.memory_space<vmem>>, %arg22: memref<9x224xf32, #tpu.memory_space<vmem>>) attributes {dimension_semantics = [#tpu.dimension_semantics<parallel>], iteration_bounds = array<i64: 2>, scalar_prefetch = 0 : i64, scratch_operands = 3 : i64, tpu.core_type = #tpu.core_type<tc>, window_params = [{transform_indices = @transform_0, window_bounds = array<i64: 1, 28, 28>}, {pipeline_mode = #tpu.pipeline_mode<synchronous>, transform_indices = @transform_1, window_bounds = array<i64: 5, 28, 448>}, {pipeline_mode = #tpu.pipeline_mode<synchronous>, transform_indices = @transform_2, window_bounds = array<i64: 1, 448>}, {pipeline_mode = #tpu.pipeline_mode<synchronous>, transform_indices = @transform_3, window_bounds = array<i64: 1, 448>}, {pipeline_mode = #tpu.pipeline_mode<synchronous>, transform_indices = @transform_4, window_bounds = array<i64: 14, 27>}, {pipeline_mode = #tpu.pipeline_mode<synchronous>, transform_indices = @transform_5, window_bounds = array<i64: 432, 224>}, {pipeline_mode = #tpu.pipeline_mode<synchronous>, transform_indices = @transform_6, window_bounds = array<i64: 5, 224, 448>}, {pipeline_mode = #tpu.pipeline_mode<synchronous>, transform_indices = @transform_7, window_bounds = array<i64: 1, 448>}, {pipeline_mode = #tpu.pipeline_mode<synchronous>, transform_indices = @transform_8, window_bounds = array<i64: 1, 448>}, {pipeline_mode = #tpu.pipeline_mode<synchronous>, transform_indices = @transform_9, window_bounds = array<i64: 7, 13>}, {pipeline_mode = #tpu.pipeline_mode<synchronous>, transform_indices = @transform_10, window_bounds = array<i64: 416, 224>}, {pipeline_mode = #tpu.pipeline_mode<synchronous>, transform_indices = @transform_11, window_bounds = array<i64: 3, 224, 448>}, {pipeline_mode = #tpu.pipeline_mode<synchronous>, transform_indices = @transform_12, window_bounds = array<i64: 1, 448>}, {pipeline_mode = #tpu.pipeline_mode<synchronous>, transform_indices = @transform_13, window_bounds = array<i64: 1, 448>}, {pipeline_mode = #tpu.pipeline_mode<synchronous>, transform_indices = @transform_14, window_bounds = array<i64: 3, 6>}, {pipeline_mode = #tpu.pipeline_mode<synchronous>, transform_indices = @transform_15, window_bounds = array<i64: 384, 192>}, {pipeline_mode = #tpu.pipeline_mode<synchronous>, transform_indices = @transform_16, window_bounds = array<i64: 3, 192, 10>}, {pipeline_mode = #tpu.pipeline_mode<synchronous>, transform_indices = @transform_17, window_bounds = array<i64: 1, 10>}, {transform_indices = @transform_18, window_bounds = array<i64: 1, 1, 10>}]} {
    %c0 = arith.constant 0 : index
    %c0_0 = arith.constant 0 : index
    %c0_1 = arith.constant 0 : index
    %0 = vector.load %arg1[%c0, %c0_0, %c0_1] : memref<1x28x28xf32, #tpu.memory_space<vmem>>, vector<1x28x28xf32>
    %1 = vector.shape_cast %0 : vector<1x28x28xf32> to vector<28x28xf32>
    %cst = arith.constant 0.000000e+00 : f32
    %2 = vector.broadcast %cst : f32 to vector<32x28xf32>
    %c0_2 = arith.constant 0 : index
    %c0_3 = arith.constant 0 : index
    %3 = vector.load %arg20[%c0_2, %c0_3] : memref<32x28xf32, #tpu.memory_space<vmem>>, vector<32x28xf32>
    tpu.vector_store %arg20[%c0_2, %c0_3], %2 {strides = array<i32>} : memref<32x28xf32, #tpu.memory_space<vmem>>, vector<32x28xf32>,
    %c2 = arith.constant 2 : index
    %c0_4 = arith.constant 0 : index
    %4 = vector.load %arg20[%c2, %c0_4] : memref<32x28xf32, #tpu.memory_space<vmem>>, vector<28x28xf32>
    tpu.vector_store %arg20[%c2, %c0_4], %1 {strides = array<i32>} : memref<32x28xf32, #tpu.memory_space<vmem>>, vector<28x28xf32>,
    %cst_5 = arith.constant 0.000000e+00 : f32
    %5 = vector.broadcast %cst_5 : f32 to vector<28x448xf32>
    %c0_6 = arith.constant 0 : index
    %c0_7 = arith.constant 0 : index
    %6 = vector.load %arg20[%c0_6, %c0_7] : memref<32x28xf32, #tpu.memory_space<vmem>>, vector<28x28xf32>
    %c0_8 = arith.constant 0 : index
    %c0_9 = arith.constant 0 : index
    %c0_10 = arith.constant 0 : index
    %7 = vector.load %arg2[%c0_8, %c0_9, %c0_10] : memref<5x28x448xf32, #tpu.memory_space<vmem>>, vector<1x28x448xf32>
    %8 = vector.shape_cast %7 : vector<1x28x448xf32> to vector<28x448xf32>
    %cst_11 = arith.constant dense<0.000000e+00> : vector<28x448xf32>
    %9 = tpu.matmul %6, %8, %cst_11 {dimension_numbers = #tpu.dot_dimension_numbers<[1], [0], [0], [1], [0, 0, 1, 1], [], []>} : vector<28x28xf32>, vector<28x448xf32>, vector<28x448xf32> -> vector<28x448xf32>
    %10 = arith.addf %5, %9 : vector<28x448xf32>
    %c1 = arith.constant 1 : index
    %c0_12 = arith.constant 0 : index
    %11 = vector.load %arg20[%c1, %c0_12] : memref<32x28xf32, #tpu.memory_space<vmem>>, vector<28x28xf32>
    %c1_13 = arith.constant 1 : index
    %c0_14 = arith.constant 0 : index
    %c0_15 = arith.constant 0 : index
    %12 = vector.load %arg2[%c1_13, %c0_14, %c0_15] : memref<5x28x448xf32, #tpu.memory_space<vmem>>, vector<1x28x448xf32>
    %13 = vector.shape_cast %12 : vector<1x28x448xf32> to vector<28x448xf32>
    %cst_16 = arith.constant dense<0.000000e+00> : vector<28x448xf32>
    %14 = tpu.matmul %11, %13, %cst_16 {dimension_numbers = #tpu.dot_dimension_numbers<[1], [0], [0], [1], [0, 0, 1, 1], [], []>} : vector<28x28xf32>, vector<28x448xf32>, vector<28x448xf32> -> vector<28x448xf32>
    %15 = arith.addf %10, %14 : vector<28x448xf32>
    %c2_17 = arith.constant 2 : index
    %c0_18 = arith.constant 0 : index
    %16 = vector.load %arg20[%c2_17, %c0_18] : memref<32x28xf32, #tpu.memory_space<vmem>>, vector<28x28xf32>
    %c2_19 = arith.constant 2 : index
    %c0_20 = arith.constant 0 : index
    %c0_21 = arith.constant 0 : index
    %17 = vector.load %arg2[%c2_19, %c0_20, %c0_21] : memref<5x28x448xf32, #tpu.memory_space<vmem>>, vector<1x28x448xf32>
    %18 = vector.shape_cast %17 : vector<1x28x448xf32> to vector<28x448xf32>
    %cst_22 = arith.constant dense<0.000000e+00> : vector<28x448xf32>
    %19 = tpu.matmul %16, %18, %cst_22 {dimension_numbers = #tpu.dot_dimension_numbers<[1], [0], [0], [1], [0, 0, 1, 1], [], []>} : vector<28x28xf32>, vector<28x448xf32>, vector<28x448xf32> -> vector<28x448xf32>
    %20 = arith.addf %15, %19 : vector<28x448xf32>
    %c3 = arith.constant 3 : index
    %c0_23 = arith.constant 0 : index
    %21 = vector.load %arg20[%c3, %c0_23] : memref<32x28xf32, #tpu.memory_space<vmem>>, vector<28x28xf32>
    %c3_24 = arith.constant 3 : index
    %c0_25 = arith.constant 0 : index
    %c0_26 = arith.constant 0 : index
    %22 = vector.load %arg2[%c3_24, %c0_25, %c0_26] : memref<5x28x448xf32, #tpu.memory_space<vmem>>, vector<1x28x448xf32>
    %23 = vector.shape_cast %22 : vector<1x28x448xf32> to vector<28x448xf32>
    %cst_27 = arith.constant dense<0.000000e+00> : vector<28x448xf32>
    %24 = tpu.matmul %21, %23, %cst_27 {dimension_numbers = #tpu.dot_dimension_numbers<[1], [0], [0], [1], [0, 0, 1, 1], [], []>} : vector<28x28xf32>, vector<28x448xf32>, vector<28x448xf32> -> vector<28x448xf32>
    %25 = arith.addf %20, %24 : vector<28x448xf32>
    %c4 = arith.constant 4 : index
    %c0_28 = arith.constant 0 : index
    %26 = vector.load %arg20[%c4, %c0_28] : memref<32x28xf32, #tpu.memory_space<vmem>>, vector<28x28xf32>
    %c4_29 = arith.constant 4 : index
    %c0_30 = arith.constant 0 : index
    %c0_31 = arith.constant 0 : index
    %27 = vector.load %arg2[%c4_29, %c0_30, %c0_31] : memref<5x28x448xf32, #tpu.memory_space<vmem>>, vector<1x28x448xf32>
    %28 = vector.shape_cast %27 : vector<1x28x448xf32> to vector<28x448xf32>
    %cst_32 = arith.constant dense<0.000000e+00> : vector<28x448xf32>
    %29 = tpu.matmul %26, %28, %cst_32 {dimension_numbers = #tpu.dot_dimension_numbers<[1], [0], [0], [1], [0, 0, 1, 1], [], []>} : vector<28x28xf32>, vector<28x448xf32>, vector<28x448xf32> -> vector<28x448xf32>
    %30 = arith.addf %25, %29 : vector<28x448xf32>
    %c0_33 = arith.constant 0 : index
    %c0_34 = arith.constant 0 : index
    %31 = vector.load %arg3[%c0_33, %c0_34] : memref<1x448xf32, #tpu.memory_space<vmem>>, vector<1x448xf32>
    %32 = vector.broadcast %31 : vector<1x448xf32> to vector<28x448xf32>
    %33 = arith.mulf %30, %32 : vector<28x448xf32>
    %c0_35 = arith.constant 0 : index
    %c0_36 = arith.constant 0 : index
    %34 = vector.load %arg4[%c0_35, %c0_36] : memref<1x448xf32, #tpu.memory_space<vmem>>, vector<1x448xf32>
    %35 = vector.broadcast %34 : vector<1x448xf32> to vector<28x448xf32>
    %36 = arith.addf %33, %35 : vector<28x448xf32>
    %cst_37 = arith.constant 0.000000e+00 : f32
    %37 = vector.broadcast %cst_37 : f32 to vector<28x448xf32>
    %38 = arith.maximumf %36, %37 : vector<28x448xf32>
    %39 = vector.extract_strided_slice %38 {offsets = [0, 0], sizes = [27, 448], strides = [1, 1]} : vector<28x448xf32> to vector<27x448xf32>
    %40 = vector.extract_strided_slice %38 {offsets = [1, 0], sizes = [27, 448], strides = [1, 1]} : vector<28x448xf32> to vector<27x448xf32>
    %41 = arith.maximumf %39, %40 : vector<27x448xf32>
    %c0_38 = arith.constant 0 : index
    %c0_39 = arith.constant 0 : index
    %42 = vector.load %arg5[%c0_38, %c0_39] : memref<14x27xf32, #tpu.memory_space<vmem>>, vector<14x27xf32>
    %cst_40 = arith.constant dense<0.000000e+00> : vector<14x448xf32>
    %43 = tpu.matmul %42, %41, %cst_40 {dimension_numbers = #tpu.dot_dimension_numbers<[1], [0], [0], [1], [0, 0, 1, 1], [], []>} : vector<14x27xf32>, vector<27x448xf32>, vector<14x448xf32> -> vector<14x448xf32>
    %44 = vector.extract_strided_slice %43 {offsets = [0, 0], sizes = [14, 432], strides = [1, 1]} : vector<14x448xf32> to vector<14x432xf32>
    %45 = vector.extract_strided_slice %43 {offsets = [0, 16], sizes = [14, 432], strides = [1, 1]} : vector<14x448xf32> to vector<14x432xf32>
    %46 = arith.maximumf %44, %45 : vector<14x432xf32>
    %c0_41 = arith.constant 0 : index
    %c0_42 = arith.constant 0 : index
    %47 = vector.load %arg6[%c0_41, %c0_42] : memref<432x224xf32, #tpu.memory_space<vmem>>, vector<432x224xf32>
    %cst_43 = arith.constant dense<0.000000e+00> : vector<14x224xf32>
    %48 = tpu.matmul %46, %47, %cst_43 {dimension_numbers = #tpu.dot_dimension_numbers<[1], [0], [0], [1], [0, 0, 1, 1], [], []>} : vector<14x432xf32>, vector<432x224xf32>, vector<14x224xf32> -> vector<14x224xf32>
    %cst_44 = arith.constant 0.000000e+00 : f32
    %49 = vector.broadcast %cst_44 : f32 to vector<18x224xf32>
    %c0_45 = arith.constant 0 : index
    %c0_46 = arith.constant 0 : index
    %50 = vector.load %arg21[%c0_45, %c0_46] : memref<18x224xf32, #tpu.memory_space<vmem>>, vector<18x224xf32>
    tpu.vector_store %arg21[%c0_45, %c0_46], %49 {strides = array<i32>} : memref<18x224xf32, #tpu.memory_space<vmem>>, vector<18x224xf32>,
    %c2_47 = arith.constant 2 : index
    %c0_48 = arith.constant 0 : index
    %51 = vector.load %arg21[%c2_47, %c0_48] : memref<18x224xf32, #tpu.memory_space<vmem>>, vector<14x224xf32>
    tpu.vector_store %arg21[%c2_47, %c0_48], %48 {strides = array<i32>} : memref<18x224xf32, #tpu.memory_space<vmem>>, vector<14x224xf32>,
    %cst_49 = arith.constant 0.000000e+00 : f32
    %52 = vector.broadcast %cst_49 : f32 to vector<14x448xf32>
    %c0_50 = arith.constant 0 : index
    %c0_51 = arith.constant 0 : index
    %53 = vector.load %arg21[%c0_50, %c0_51] : memref<18x224xf32, #tpu.memory_space<vmem>>, vector<14x224xf32>
    %c0_52 = arith.constant 0 : index
    %c0_53 = arith.constant 0 : index
    %c0_54 = arith.constant 0 : index
    %54 = vector.load %arg7[%c0_52, %c0_53, %c0_54] : memref<5x224x448xf32, #tpu.memory_space<vmem>>, vector<1x224x448xf32>
    %55 = vector.shape_cast %54 : vector<1x224x448xf32> to vector<224x448xf32>
    %cst_55 = arith.constant dense<0.000000e+00> : vector<14x448xf32>
    %56 = tpu.matmul %53, %55, %cst_55 {dimension_numbers = #tpu.dot_dimension_numbers<[1], [0], [0], [1], [0, 0, 1, 1], [], []>} : vector<14x224xf32>, vector<224x448xf32>, vector<14x448xf32> -> vector<14x448xf32>
    %57 = arith.addf %52, %56 : vector<14x448xf32>
    %c1_56 = arith.constant 1 : index
    %c0_57 = arith.constant 0 : index
    %58 = vector.load %arg21[%c1_56, %c0_57] : memref<18x224xf32, #tpu.memory_space<vmem>>, vector<14x224xf32>
    %c1_58 = arith.constant 1 : index
    %c0_59 = arith.constant 0 : index
    %c0_60 = arith.constant 0 : index
    %59 = vector.load %arg7[%c1_58, %c0_59, %c0_60] : memref<5x224x448xf32, #tpu.memory_space<vmem>>, vector<1x224x448xf32>
    %60 = vector.shape_cast %59 : vector<1x224x448xf32> to vector<224x448xf32>
    %cst_61 = arith.constant dense<0.000000e+00> : vector<14x448xf32>
    %61 = tpu.matmul %58, %60, %cst_61 {dimension_numbers = #tpu.dot_dimension_numbers<[1], [0], [0], [1], [0, 0, 1, 1], [], []>} : vector<14x224xf32>, vector<224x448xf32>, vector<14x448xf32> -> vector<14x448xf32>
    %62 = arith.addf %57, %61 : vector<14x448xf32>
    %c2_62 = arith.constant 2 : index
    %c0_63 = arith.constant 0 : index
    %63 = vector.load %arg21[%c2_62, %c0_63] : memref<18x224xf32, #tpu.memory_space<vmem>>, vector<14x224xf32>
    %c2_64 = arith.constant 2 : index
    %c0_65 = arith.constant 0 : index
    %c0_66 = arith.constant 0 : index
    %64 = vector.load %arg7[%c2_64, %c0_65, %c0_66] : memref<5x224x448xf32, #tpu.memory_space<vmem>>, vector<1x224x448xf32>
    %65 = vector.shape_cast %64 : vector<1x224x448xf32> to vector<224x448xf32>
    %cst_67 = arith.constant dense<0.000000e+00> : vector<14x448xf32>
    %66 = tpu.matmul %63, %65, %cst_67 {dimension_numbers = #tpu.dot_dimension_numbers<[1], [0], [0], [1], [0, 0, 1, 1], [], []>} : vector<14x224xf32>, vector<224x448xf32>, vector<14x448xf32> -> vector<14x448xf32>
    %67 = arith.addf %62, %66 : vector<14x448xf32>
    %c3_68 = arith.constant 3 : index
    %c0_69 = arith.constant 0 : index
    %68 = vector.load %arg21[%c3_68, %c0_69] : memref<18x224xf32, #tpu.memory_space<vmem>>, vector<14x224xf32>
    %c3_70 = arith.constant 3 : index
    %c0_71 = arith.constant 0 : index
    %c0_72 = arith.constant 0 : index
    %69 = vector.load %arg7[%c3_70, %c0_71, %c0_72] : memref<5x224x448xf32, #tpu.memory_space<vmem>>, vector<1x224x448xf32>
    %70 = vector.shape_cast %69 : vector<1x224x448xf32> to vector<224x448xf32>
    %cst_73 = arith.constant dense<0.000000e+00> : vector<14x448xf32>
    %71 = tpu.matmul %68, %70, %cst_73 {dimension_numbers = #tpu.dot_dimension_numbers<[1], [0], [0], [1], [0, 0, 1, 1], [], []>} : vector<14x224xf32>, vector<224x448xf32>, vector<14x448xf32> -> vector<14x448xf32>
    %72 = arith.addf %67, %71 : vector<14x448xf32>
    %c4_74 = arith.constant 4 : index
    %c0_75 = arith.constant 0 : index
    %73 = vector.load %arg21[%c4_74, %c0_75] : memref<18x224xf32, #tpu.memory_space<vmem>>, vector<14x224xf32>
    %c4_76 = arith.constant 4 : index
    %c0_77 = arith.constant 0 : index
    %c0_78 = arith.constant 0 : index
    %74 = vector.load %arg7[%c4_76, %c0_77, %c0_78] : memref<5x224x448xf32, #tpu.memory_space<vmem>>, vector<1x224x448xf32>
    %75 = vector.shape_cast %74 : vector<1x224x448xf32> to vector<224x448xf32>
    %cst_79 = arith.constant dense<0.000000e+00> : vector<14x448xf32>
    %76 = tpu.matmul %73, %75, %cst_79 {dimension_numbers = #tpu.dot_dimension_numbers<[1], [0], [0], [1], [0, 0, 1, 1], [], []>} : vector<14x224xf32>, vector<224x448xf32>, vector<14x448xf32> -> vector<14x448xf32>
    %77 = arith.addf %72, %76 : vector<14x448xf32>
    %c0_80 = arith.constant 0 : index
    %c0_81 = arith.constant 0 : index
    %78 = vector.load %arg8[%c0_80, %c0_81] : memref<1x448xf32, #tpu.memory_space<vmem>>, vector<1x448xf32>
    %79 = vector.broadcast %78 : vector<1x448xf32> to vector<14x448xf32>
    %80 = arith.mulf %77, %79 : vector<14x448xf32>
    %c0_82 = arith.constant 0 : index
    %c0_83 = arith.constant 0 : index
    %81 = vector.load %arg9[%c0_82, %c0_83] : memref<1x448xf32, #tpu.memory_space<vmem>>, vector<1x448xf32>
    %82 = vector.broadcast %81 : vector<1x448xf32> to vector<14x448xf32>
    %83 = arith.addf %80, %82 : vector<14x448xf32>
    %cst_84 = arith.constant 0.000000e+00 : f32
    %84 = vector.broadcast %cst_84 : f32 to vector<14x448xf32>
    %85 = arith.maximumf %83, %84 : vector<14x448xf32>
    %86 = vector.extract_strided_slice %85 {offsets = [0, 0], sizes = [13, 448], strides = [1, 1]} : vector<14x448xf32> to vector<13x448xf32>
    %87 = vector.extract_strided_slice %85 {offsets = [1, 0], sizes = [13, 448], strides = [1, 1]} : vector<14x448xf32> to vector<13x448xf32>
    %88 = arith.maximumf %86, %87 : vector<13x448xf32>
    %c0_85 = arith.constant 0 : index
    %c0_86 = arith.constant 0 : index
    %89 = vector.load %arg10[%c0_85, %c0_86] : memref<7x13xf32, #tpu.memory_space<vmem>>, vector<7x13xf32>
    %cst_87 = arith.constant dense<0.000000e+00> : vector<7x448xf32>
    %90 = tpu.matmul %89, %88, %cst_87 {dimension_numbers = #tpu.dot_dimension_numbers<[1], [0], [0], [1], [0, 0, 1, 1], [], []>} : vector<7x13xf32>, vector<13x448xf32>, vector<7x448xf32> -> vector<7x448xf32>
    %91 = vector.extract_strided_slice %90 {offsets = [0, 0], sizes = [7, 416], strides = [1, 1]} : vector<7x448xf32> to vector<7x416xf32>
    %92 = vector.extract_strided_slice %90 {offsets = [0, 32], sizes = [7, 416], strides = [1, 1]} : vector<7x448xf32> to vector<7x416xf32>
    %93 = arith.maximumf %91, %92 : vector<7x416xf32>
    %c0_88 = arith.constant 0 : index
    %c0_89 = arith.constant 0 : index
    %94 = vector.load %arg11[%c0_88, %c0_89] : memref<416x224xf32, #tpu.memory_space<vmem>>, vector<416x224xf32>
    %cst_90 = arith.constant dense<0.000000e+00> : vector<7x224xf32>
    %95 = tpu.matmul %93, %94, %cst_90 {dimension_numbers = #tpu.dot_dimension_numbers<[1], [0], [0], [1], [0, 0, 1, 1], [], []>} : vector<7x416xf32>, vector<416x224xf32>, vector<7x224xf32> -> vector<7x224xf32>
    %cst_91 = arith.constant 0.000000e+00 : f32
    %96 = vector.broadcast %cst_91 : f32 to vector<9x224xf32>
    %c0_92 = arith.constant 0 : index
    %c0_93 = arith.constant 0 : index
    %97 = vector.load %arg22[%c0_92, %c0_93] : memref<9x224xf32, #tpu.memory_space<vmem>>, vector<9x224xf32>
    tpu.vector_store %arg22[%c0_92, %c0_93], %96 {strides = array<i32>} : memref<9x224xf32, #tpu.memory_space<vmem>>, vector<9x224xf32>,
    %c1_94 = arith.constant 1 : index
    %c0_95 = arith.constant 0 : index
    %98 = vector.load %arg22[%c1_94, %c0_95] : memref<9x224xf32, #tpu.memory_space<vmem>>, vector<7x224xf32>
    tpu.vector_store %arg22[%c1_94, %c0_95], %95 {strides = array<i32>} : memref<9x224xf32, #tpu.memory_space<vmem>>, vector<7x224xf32>,
    %cst_96 = arith.constant 0.000000e+00 : f32
    %99 = vector.broadcast %cst_96 : f32 to vector<7x448xf32>
    %c0_97 = arith.constant 0 : index
    %c0_98 = arith.constant 0 : index
    %100 = vector.load %arg22[%c0_97, %c0_98] : memref<9x224xf32, #tpu.memory_space<vmem>>, vector<7x224xf32>
    %c0_99 = arith.constant 0 : index
    %c0_100 = arith.constant 0 : index
    %c0_101 = arith.constant 0 : index
    %101 = vector.load %arg12[%c0_99, %c0_100, %c0_101] : memref<3x224x448xf32, #tpu.memory_space<vmem>>, vector<1x224x448xf32>
    %102 = vector.shape_cast %101 : vector<1x224x448xf32> to vector<224x448xf32>
    %cst_102 = arith.constant dense<0.000000e+00> : vector<7x448xf32>
    %103 = tpu.matmul %100, %102, %cst_102 {dimension_numbers = #tpu.dot_dimension_numbers<[1], [0], [0], [1], [0, 0, 1, 1], [], []>} : vector<7x224xf32>, vector<224x448xf32>, vector<7x448xf32> -> vector<7x448xf32>
    %104 = arith.addf %99, %103 : vector<7x448xf32>
    %c1_103 = arith.constant 1 : index
    %c0_104 = arith.constant 0 : index
    %105 = vector.load %arg22[%c1_103, %c0_104] : memref<9x224xf32, #tpu.memory_space<vmem>>, vector<7x224xf32>
    %c1_105 = arith.constant 1 : index
    %c0_106 = arith.constant 0 : index
    %c0_107 = arith.constant 0 : index
    %106 = vector.load %arg12[%c1_105, %c0_106, %c0_107] : memref<3x224x448xf32, #tpu.memory_space<vmem>>, vector<1x224x448xf32>
    %107 = vector.shape_cast %106 : vector<1x224x448xf32> to vector<224x448xf32>
    %cst_108 = arith.constant dense<0.000000e+00> : vector<7x448xf32>
    %108 = tpu.matmul %105, %107, %cst_108 {dimension_numbers = #tpu.dot_dimension_numbers<[1], [0], [0], [1], [0, 0, 1, 1], [], []>} : vector<7x224xf32>, vector<224x448xf32>, vector<7x448xf32> -> vector<7x448xf32>
    %109 = arith.addf %104, %108 : vector<7x448xf32>
    %c2_109 = arith.constant 2 : index
    %c0_110 = arith.constant 0 : index
    %110 = vector.load %arg22[%c2_109, %c0_110] : memref<9x224xf32, #tpu.memory_space<vmem>>, vector<7x224xf32>
    %c2_111 = arith.constant 2 : index
    %c0_112 = arith.constant 0 : index
    %c0_113 = arith.constant 0 : index
    %111 = vector.load %arg12[%c2_111, %c0_112, %c0_113] : memref<3x224x448xf32, #tpu.memory_space<vmem>>, vector<1x224x448xf32>
    %112 = vector.shape_cast %111 : vector<1x224x448xf32> to vector<224x448xf32>
    %cst_114 = arith.constant dense<0.000000e+00> : vector<7x448xf32>
    %113 = tpu.matmul %110, %112, %cst_114 {dimension_numbers = #tpu.dot_dimension_numbers<[1], [0], [0], [1], [0, 0, 1, 1], [], []>} : vector<7x224xf32>, vector<224x448xf32>, vector<7x448xf32> -> vector<7x448xf32>
    %114 = arith.addf %109, %113 : vector<7x448xf32>
    %c0_115 = arith.constant 0 : index
    %c0_116 = arith.constant 0 : index
    %115 = vector.load %arg13[%c0_115, %c0_116] : memref<1x448xf32, #tpu.memory_space<vmem>>, vector<1x448xf32>
    %116 = vector.broadcast %115 : vector<1x448xf32> to vector<7x448xf32>
    %117 = arith.mulf %114, %116 : vector<7x448xf32>
    %c0_117 = arith.constant 0 : index
    %c0_118 = arith.constant 0 : index
    %118 = vector.load %arg14[%c0_117, %c0_118] : memref<1x448xf32, #tpu.memory_space<vmem>>, vector<1x448xf32>
    %119 = vector.broadcast %118 : vector<1x448xf32> to vector<7x448xf32>
    %120 = arith.addf %117, %119 : vector<7x448xf32>
    %cst_119 = arith.constant 0.000000e+00 : f32
    %121 = vector.broadcast %cst_119 : f32 to vector<7x448xf32>
    %122 = arith.maximumf %120, %121 : vector<7x448xf32>
    %123 = vector.extract_strided_slice %122 {offsets = [0, 0], sizes = [6, 448], strides = [1, 1]} : vector<7x448xf32> to vector<6x448xf32>
    %124 = vector.extract_strided_slice %122 {offsets = [1, 0], sizes = [6, 448], strides = [1, 1]} : vector<7x448xf32> to vector<6x448xf32>
    %125 = arith.maximumf %123, %124 : vector<6x448xf32>
    %c0_120 = arith.constant 0 : index
    %c0_121 = arith.constant 0 : index
    %126 = vector.load %arg15[%c0_120, %c0_121] : memref<3x6xf32, #tpu.memory_space<vmem>>, vector<3x6xf32>
    %cst_122 = arith.constant dense<0.000000e+00> : vector<3x448xf32>
    %127 = tpu.matmul %126, %125, %cst_122 {dimension_numbers = #tpu.dot_dimension_numbers<[1], [0], [0], [1], [0, 0, 1, 1], [], []>} : vector<3x6xf32>, vector<6x448xf32>, vector<3x448xf32> -> vector<3x448xf32>
    %128 = vector.extract_strided_slice %127 {offsets = [0, 0], sizes = [3, 384], strides = [1, 1]} : vector<3x448xf32> to vector<3x384xf32>
    %129 = vector.extract_strided_slice %127 {offsets = [0, 64], sizes = [3, 384], strides = [1, 1]} : vector<3x448xf32> to vector<3x384xf32>
    %130 = arith.maximumf %128, %129 : vector<3x384xf32>
    %c0_123 = arith.constant 0 : index
    %c0_124 = arith.constant 0 : index
    %131 = vector.load %arg16[%c0_123, %c0_124] : memref<384x192xf32, #tpu.memory_space<vmem>>, vector<384x192xf32>
    %cst_125 = arith.constant dense<0.000000e+00> : vector<3x192xf32>
    %132 = tpu.matmul %130, %131, %cst_125 {dimension_numbers = #tpu.dot_dimension_numbers<[1], [0], [0], [1], [0, 0, 1, 1], [], []>} : vector<3x384xf32>, vector<384x192xf32>, vector<3x192xf32> -> vector<3x192xf32>
    %c0_126 = arith.constant 0 : index
    %c0_127 = arith.constant 0 : index
    %133 = vector.load %arg18[%c0_126, %c0_127] : memref<1x10xf32, #tpu.memory_space<vmem>>, vector<1x10xf32>
    %134 = vector.extract_strided_slice %132 {offsets = [0, 0], sizes = [1, 192], strides = [1, 1]} : vector<3x192xf32> to vector<1x192xf32>
    %c0_128 = arith.constant 0 : index
    %c0_129 = arith.constant 0 : index
    %c0_130 = arith.constant 0 : index
    %135 = vector.load %arg17[%c0_128, %c0_129, %c0_130] : memref<3x192x10xf32, #tpu.memory_space<vmem>>, vector<1x192x10xf32>
    %136 = vector.shape_cast %135 : vector<1x192x10xf32> to vector<192x10xf32>
    %cst_131 = arith.constant dense<0.000000e+00> : vector<1x10xf32>
    %137 = tpu.matmul %134, %136, %cst_131 {dimension_numbers = #tpu.dot_dimension_numbers<[1], [0], [0], [1], [0, 0, 1, 1], [], []>} : vector<1x192xf32>, vector<192x10xf32>, vector<1x10xf32> -> vector<1x10xf32>
    %138 = arith.addf %133, %137 : vector<1x10xf32>
    %139 = vector.extract_strided_slice %132 {offsets = [1, 0], sizes = [1, 192], strides = [1, 1]} : vector<3x192xf32> to vector<1x192xf32>
    %c1_132 = arith.constant 1 : index
    %c0_133 = arith.constant 0 : index
    %c0_134 = arith.constant 0 : index
    %140 = vector.load %arg17[%c1_132, %c0_133, %c0_134] : memref<3x192x10xf32, #tpu.memory_space<vmem>>, vector<1x192x10xf32>
    %141 = vector.shape_cast %140 : vector<1x192x10xf32> to vector<192x10xf32>
    %cst_135 = arith.constant dense<0.000000e+00> : vector<1x10xf32>
    %142 = tpu.matmul %139, %141, %cst_135 {dimension_numbers = #tpu.dot_dimension_numbers<[1], [0], [0], [1], [0, 0, 1, 1], [], []>} : vector<1x192xf32>, vector<192x10xf32>, vector<1x10xf32> -> vector<1x10xf32>
    %143 = arith.addf %138, %142 : vector<1x10xf32>
    %144 = vector.extract_strided_slice %132 {offsets = [2, 0], sizes = [1, 192], strides = [1, 1]} : vector<3x192xf32> to vector<1x192xf32>
    %c2_136 = arith.constant 2 : index
    %c0_137 = arith.constant 0 : index
    %c0_138 = arith.constant 0 : index
    %145 = vector.load %arg17[%c2_136, %c0_137, %c0_138] : memref<3x192x10xf32, #tpu.memory_space<vmem>>, vector<1x192x10xf32>
    %146 = vector.shape_cast %145 : vector<1x192x10xf32> to vector<192x10xf32>
    %cst_139 = arith.constant dense<0.000000e+00> : vector<1x10xf32>
    %147 = tpu.matmul %144, %146, %cst_139 {dimension_numbers = #tpu.dot_dimension_numbers<[1], [0], [0], [1], [0, 0, 1, 1], [], []>} : vector<1x192xf32>, vector<192x10xf32>, vector<1x10xf32> -> vector<1x10xf32>
    %148 = arith.addf %143, %147 : vector<1x10xf32>
    %c0_140 = arith.constant 0 : index
    %c0_141 = arith.constant 0 : index
    %c0_142 = arith.constant 0 : index
    %149 = vector.load %arg19[%c0_140, %c0_141, %c0_142] : memref<1x1x10xf32, #tpu.memory_space<vmem>>, vector<1x1x10xf32>
    %150 = vector.shape_cast %149 : vector<1x1x10xf32> to vector<1x10xf32>
    %151 = vector.shape_cast %148 : vector<1x10xf32> to vector<1x1x10xf32>
    tpu.vector_store %arg19[%c0_140, %c0_141, %c0_142], %151 {strides = array<i32>} : memref<1x1x10xf32, #tpu.memory_space<vmem>>, vector<1x1x10xf32>,
    return
  }
  func.func @transform_0(%arg0: i32) -> (i32, i32, i32) {
    %c0_i32 = arith.constant 0 : i32
    %c0_i32_0 = arith.constant 0 : i32
    %c0_i32_1 = arith.constant 0 : i32
    return %arg0, %c0_i32, %c0_i32_0 : i32, i32, i32
  }
  func.func @transform_1(%arg0: i32) -> (i32, i32, i32) {
    %c0_i32 = arith.constant 0 : i32
    %c0_i32_0 = arith.constant 0 : i32
    %c0_i32_1 = arith.constant 0 : i32
    %c0_i32_2 = arith.constant 0 : i32
    return %c0_i32, %c0_i32_0, %c0_i32_1 : i32, i32, i32
  }
  func.func @transform_2(%arg0: i32) -> (i32, i32) {
    %c0_i32 = arith.constant 0 : i32
    %c0_i32_0 = arith.constant 0 : i32
    %c0_i32_1 = arith.constant 0 : i32
    return %c0_i32, %c0_i32_0 : i32, i32
  }
  func.func @transform_3(%arg0: i32) -> (i32, i32) {
    %c0_i32 = arith.constant 0 : i32
    %c0_i32_0 = arith.constant 0 : i32
    %c0_i32_1 = arith.constant 0 : i32
    return %c0_i32, %c0_i32_0 : i32, i32
  }
  func.func @transform_4(%arg0: i32) -> (i32, i32) {
    %c0_i32 = arith.constant 0 : i32
    %c0_i32_0 = arith.constant 0 : i32
    %c0_i32_1 = arith.constant 0 : i32
    return %c0_i32, %c0_i32_0 : i32, i32
  }
  func.func @transform_5(%arg0: i32) -> (i32, i32) {
    %c0_i32 = arith.constant 0 : i32
    %c0_i32_0 = arith.constant 0 : i32
    %c0_i32_1 = arith.constant 0 : i32
    return %c0_i32, %c0_i32_0 : i32, i32
  }
  func.func @transform_6(%arg0: i32) -> (i32, i32, i32) {
    %c0_i32 = arith.constant 0 : i32
    %c0_i32_0 = arith.constant 0 : i32
    %c0_i32_1 = arith.constant 0 : i32
    %c0_i32_2 = arith.constant 0 : i32
    return %c0_i32, %c0_i32_0, %c0_i32_1 : i32, i32, i32
  }
  func.func @transform_7(%arg0: i32) -> (i32, i32) {
    %c0_i32 = arith.constant 0 : i32
    %c0_i32_0 = arith.constant 0 : i32
    %c0_i32_1 = arith.constant 0 : i32
    return %c0_i32, %c0_i32_0 : i32, i32
  }
  func.func @transform_8(%arg0: i32) -> (i32, i32) {
    %c0_i32 = arith.constant 0 : i32
    %c0_i32_0 = arith.constant 0 : i32
    %c0_i32_1 = arith.constant 0 : i32
    return %c0_i32, %c0_i32_0 : i32, i32
  }
  func.func @transform_9(%arg0: i32) -> (i32, i32) {
    %c0_i32 = arith.constant 0 : i32
    %c0_i32_0 = arith.constant 0 : i32
    %c0_i32_1 = arith.constant 0 : i32
    return %c0_i32, %c0_i32_0 : i32, i32
  }
  func.func @transform_10(%arg0: i32) -> (i32, i32) {
    %c0_i32 = arith.constant 0 : i32
    %c0_i32_0 = arith.constant 0 : i32
    %c0_i32_1 = arith.constant 0 : i32
    return %c0_i32, %c0_i32_0 : i32, i32
  }
  func.func @transform_11(%arg0: i32) -> (i32, i32, i32) {
    %c0_i32 = arith.constant 0 : i32
    %c0_i32_0 = arith.constant 0 : i32
    %c0_i32_1 = arith.constant 0 : i32
    %c0_i32_2 = arith.constant 0 : i32
    return %c0_i32, %c0_i32_0, %c0_i32_1 : i32, i32, i32
  }
  func.func @transform_12(%arg0: i32) -> (i32, i32) {
    %c0_i32 = arith.constant 0 : i32
    %c0_i32_0 = arith.constant 0 : i32
    %c0_i32_1 = arith.constant 0 : i32
    return %c0_i32, %c0_i32_0 : i32, i32
  }
  func.func @transform_13(%arg0: i32) -> (i32, i32) {
    %c0_i32 = arith.constant 0 : i32
    %c0_i32_0 = arith.constant 0 : i32
    %c0_i32_1 = arith.constant 0 : i32
    return %c0_i32, %c0_i32_0 : i32, i32
  }
  func.func @transform_14(%arg0: i32) -> (i32, i32) {
    %c0_i32 = arith.constant 0 : i32
    %c0_i32_0 = arith.constant 0 : i32
    %c0_i32_1 = arith.constant 0 : i32
    return %c0_i32, %c0_i32_0 : i32, i32
  }
  func.func @transform_15(%arg0: i32) -> (i32, i32) {
    %c0_i32 = arith.constant 0 : i32
    %c0_i32_0 = arith.constant 0 : i32
    %c0_i32_1 = arith.constant 0 : i32
    return %c0_i32, %c0_i32_0 : i32, i32
  }
  func.func @transform_16(%arg0: i32) -> (i32, i32, i32) {
    %c0_i32 = arith.constant 0 : i32
    %c0_i32_0 = arith.constant 0 : i32
    %c0_i32_1 = arith.constant 0 : i32
    %c0_i32_2 = arith.constant 0 : i32
    return %c0_i32, %c0_i32_0, %c0_i32_1 : i32, i32, i32
  }
  func.func @transform_17(%arg0: i32) -> (i32, i32) {
    %c0_i32 = arith.constant 0 : i32
    %c0_i32_0 = arith.constant 0 : i32
    %c0_i32_1 = arith.constant 0 : i32
    return %c0_i32, %c0_i32_0 : i32, i32
  }
  func.func @transform_18(%arg0: i32) -> (i32, i32, i32) {
    %c0_i32 = arith.constant 0 : i32
    %c0_i32_0 = arith.constant 0 : i32
    %c0_i32_1 = arith.constant 0 : i32
    return %arg0, %c0_i32, %c0_i32_0 : i32, i32, i32
  }
}

</mosaic_0001>

<llo_original>
// kernel: _lenet_forward_impl.1
$region0: #{_lenet_forward_impl.1}
  #allocation0 [shape = 'u32[]', space=smem, size = 0x4, offset = 0x4, fixed_abs, tag = 'smem constant byte address 0x4 - core index']
  #allocation1 [shape = 'u32[144,128]{1,0:T(1,128)}', space=vmem, size = 0x12000, scoped, tag = 'internal scratch']
  #allocation2 [shape = 'f32[32,28]{1,0:T(8,128)}', space=vmem, size = 0x4000, scoped, tag = 'scratch operand']
  #allocation3 [shape = 'f32[18,224]{1,0:T(8,128)}', space=vmem, size = 0x6000, scoped, tag = 'scratch operand']
  #allocation4 [shape = 'f32[9,224]{1,0:T(8,128)}', space=vmem, size = 0x4000, scoped, tag = 'scratch operand']
  %s0 = inlined_call_operand.vmem [shape: f32[2,28,28], index: 0, kind: input, shape index: {}]
  %s1 = inlined_call_operand.hbm [shape: f32[5,28,448], index: 1, kind: input, shape index: {}]
  %s2 = inlined_call_operand.hbm [shape: f32[1,448], index: 2, kind: input, shape index: {}]
  %s3 = inlined_call_operand.hbm [shape: f32[1,448], index: 3, kind: input, shape index: {}]
  %s4 = inlined_call_operand.hbm [shape: f32[14,27], index: 4, kind: input, shape index: {}]
  %s5 = inlined_call_operand.hbm [shape: f32[432,224], index: 5, kind: input, shape index: {}]
  %s6 = inlined_call_operand.hbm [shape: f32[5,224,448], index: 6, kind: input, shape index: {}]
  %s7 = inlined_call_operand.hbm [shape: f32[1,448], index: 7, kind: input, shape index: {}]
  %s8 = inlined_call_operand.hbm [shape: f32[1,448], index: 8, kind: input, shape index: {}]
  %s9 = inlined_call_operand.hbm [shape: f32[7,13], index: 9, kind: input, shape index: {}]
  %s10 = inlined_call_operand.hbm [shape: f32[416,224], index: 10, kind: input, shape index: {}]
  %s11 = inlined_call_operand.hbm [shape: f32[3,224,448], index: 11, kind: input, shape index: {}]
  %s12 = inlined_call_operand.hbm [shape: f32[1,448], index: 12, kind: input, shape index: {}]
  %s13 = inlined_call_operand.hbm [shape: f32[1,448], index: 13, kind: input, shape index: {}]
  %s14 = inlined_call_operand.hbm [shape: f32[3,6], index: 14, kind: input, shape index: {}]
  %s15 = inlined_call_operand.vmem [shape: f32[384,192], index: 15, kind: input, shape index: {}]
  %s16 = inlined_call_operand.vmem [shape: f32[3,192,10], index: 16, kind: input, shape index: {}]
  %s17 = inlined_call_operand.hbm [shape: f32[1,10], index: 17, kind: input, shape index: {}]
  %s18 = inlined_call_operand.hbm [shape: f32[2,1,10], index: 18, kind: output, shape index: {}]
  %s19 = sld [smem:[#allocation0]]
  $region165: #{_lenet_forward_impl.1} parent=0
    _
  %s21 = ssub.s32 1, %s19
  %s22 = scalar_select 0, %s21, %s19
  $region1: #{_lenet_forward_impl.1} parent=0
    #allocation5 [shape = 'u8[327680]{0}', space=vmem, size = 0x50000, scoped, tag = 'input window, operand 1, single buffered']
    #allocation6 [shape = 's32[2]{0}', space=sflag, size = 0x8, scoped, tag = 'scoped memory for _lenet_forward_impl.1']
    #allocation7 [shape = 's32[2]{0}', space=sflag, size = 0x8, scoped, tag = 'scoped memory for _lenet_forward_impl.1']
    #allocation8 [shape = 'u8[2048]{0}', space=vmem, size = 0x800, scoped, tag = 'input window, operand 2, single buffered']
    #allocation9 [shape = 's32[1]{0}', space=sflag, size = 0x4, scoped, tag = 'scoped memory for _lenet_forward_impl.1']
    #allocation10 [shape = 'u8[2048]{0}', space=vmem, size = 0x800, scoped, tag = 'input window, operand 3, single buffered']
    #allocation11 [shape = 'u8[8192]{0}', space=vmem, size = 0x2000, scoped, tag = 'input window, operand 4, single buffered']
    #allocation12 [shape = 's32[1]{0}', space=sflag, size = 0x4, scoped, tag = 'scoped memory for _lenet_forward_impl.1']
    #allocation13 [shape = 'u8[442368]{0}', space=vmem, size = 0x6c000, scoped, tag = 'input window, operand 5, single buffered']
    #allocation14 [shape = 'u8[2293760]{0}', space=vmem, size = 0x230000, scoped, tag = 'input window, operand 6, single buffered']
    #allocation15 [shape = 's32[1]{0}', space=sflag, size = 0x4, scoped, tag = 'scoped memory for _lenet_forward_impl.1']
    #allocation16 [shape = 'u8[2048]{0}', space=vmem, size = 0x800, scoped, tag = 'input window, operand 7, single buffered']
    #allocation17 [shape = 'u8[2048]{0}', space=vmem, size = 0x800, scoped, tag = 'input window, operand 8, single buffered']
    #allocation18 [shape = 's32[1]{0}', space=sflag, size = 0x4, scoped, tag = 'scoped memory for _lenet_forward_impl.1']
    #allocation19 [shape = 'u8[4096]{0}', space=vmem, size = 0x1000, scoped, tag = 'input window, operand 9, single buffered']
    #allocation20 [shape = 'u8[425984]{0}', space=vmem, size = 0x68000, scoped, tag = 'input window, operand 10, single buffered']
    #allocation21 [shape = 's32[1]{0}', space=sflag, size = 0x4, scoped, tag = 'scoped memory for _lenet_forward_impl.1']
    #allocation22 [shape = 'u8[1376256]{0}', space=vmem, size = 0x150000, scoped, tag = 'input window, operand 11, single buffered']
    #allocation23 [shape = 'u8[2048]{0}', space=vmem, size = 0x800, scoped, tag = 'input window, operand 12, single buffered']
    #allocation24 [shape = 's32[1]{0}', space=sflag, size = 0x4, scoped, tag = 'scoped memory for _lenet_forward_impl.1']
    #allocation25 [shape = 'u8[2048]{0}', space=vmem, size = 0x800, scoped, tag = 'input window, operand 13, single buffered']
    #allocation26 [shape = 'u8[2048]{0}', space=vmem, size = 0x800, scoped, tag = 'input window, operand 14, single buffered']
    #allocation27 [shape = 's32[1]{0}', space=sflag, size = 0x4, scoped, tag = 'scoped memory for _lenet_forward_impl.1']
    #allocation28 [shape = 'u8[512]{0}', space=vmem, size = 0x400, scoped, tag = 'input window, operand 17, single buffered']
    #allocation29 [shape = 'u8[1024]{0}', space=vmem, size = 0x400, scoped, tag = 'output window, operand 0']
    %23 = vsyncpa [#allocation6], 0
    %24 = vsyncpa [#allocation9], 0
    %25 = vsyncpa [#allocation12], 0
    %26 = vsyncpa [#allocation15], 0
    %27 = vsyncpa [#allocation18], 0
    %28 = vsyncpa [#allocation21], 0
    %29 = vsyncpa [#allocation24], 0
    %30 = vsyncpa [#allocation27], 0
    %31 = vsyncpa [#allocation7], 0
    %s32 = scalar_lea.sflag [#allocation7], 1
    %33 = vsyncpa %s32, 0
    loop: start=0, step=1, limit=4
    $region2: #{_lenet_forward_impl.1} parent=1 // loop_pre_header
      _
    $region3: #{_lenet_forward_impl.1} parent=1 // loop_header
      %s35 = sphi 0, %s39
      %p36 = scmp.ge.s32.totalorder %s35, 4
      %s45 = sphi 0, %s47
      %s48 = sphi 0, %s45
      %s49 = sphi 0, %s48
      %s65 = sphi 0, %s49
      %s69 = sphi 0, %s69
      %s71 = sphi 0, %s69
      %s72 = sphi 0, %s71
      %s86 = sphi 0, %s72
      %s90 = sphi 0, %s90
      %s92 = sphi 0, %s90
      %s93 = sphi 0, %s92
      %s107 = sphi 0, %s93
      %s111 = sphi 0, %s111
      %s113 = sphi 0, %s111
      %s114 = sphi 0, %s113
      %s128 = sphi 0, %s114
      %s132 = sphi 0, %s132
      %s134 = sphi 0, %s132
      %s135 = sphi 0, %s134
      %s149 = sphi 0, %s135
      %s153 = sphi 0, %s153
      %s155 = sphi 0, %s153
      %s156 = sphi 0, %s155
      %s170 = sphi 0, %s156
      %s174 = sphi 0, %s174
      %s176 = sphi 0, %s174
      %s177 = sphi 0, %s176
      %s191 = sphi 0, %s177
      %s195 = sphi 0, %s195
      %s197 = sphi 0, %s195
      %s198 = sphi 0, %s197
      %s212 = sphi 0, %s198
      %s216 = sphi 0, %s216
      %s218 = sphi 0, %s216
      %s219 = sphi 0, %s218
      %s233 = sphi 0, %s219
      %s237 = sphi 0, %s237
      %s239 = sphi 0, %s237
      %s240 = sphi 0, %s239
      %s254 = sphi 0, %s240
      %s258 = sphi 0, %s258
      %s260 = sphi 0, %s258
      %s261 = sphi 0, %s260
      %s275 = sphi 0, %s261
      %s279 = sphi 0, %s279
      %s281 = sphi 0, %s279
      %s282 = sphi 0, %s281
      %s296 = sphi 0, %s282
      %s300 = sphi 0, %s300
      %s302 = sphi 0, %s300
      %s303 = sphi 0, %s302
      %s317 = sphi 0, %s303
      %s321 = sphi 0, %s321
      %s323 = sphi 0, %s321
      %s324 = sphi 0, %s323
      %s338 = sphi 0, %s324
      %s342 = sphi 0, %s342
      %s344 = sphi 0, %s342
      %s345 = sphi 0, %s344
      %s359 = sphi 0, %s345
      %s363 = sphi 0, %s363
      %s365 = sphi 0, %s363
      %s366 = sphi 0, %s365
      %s380 = sphi 0, %s366
      %s384 = sphi 0, %s384
      %s386 = sphi 0, %s384
      %s387 = sphi 0, %s386
      %s401 = sphi 0, %s387
      %s405 = sphi 0, %s405
      %s407 = sphi 0, %s405
      %s408 = sphi 0, %s407
      %s422 = sphi 0, %s408
      %s428 = sphi 0, %s430
      %s431 = sphi 0, %s428
      %s432 = sphi 0, %s431
      %s448 = sphi 0, %s432
    $region4: #{_lenet_forward_impl.1} parent=1 // loop_header_branch
      %38 = sbr.rel (%p36) target = $region8
    $region5: #{_lenet_forward_impl.1} parent=1 // loop_body
      %s40 = ssub.s32 %s35, 1
      %s41 = ssub.s32 %s35, 2
      %s42 = sadd.s32 %s35, 1
      %s43 = ssub.s32 %s35, %s42
      %p44 = scmp.eq.s32.totalorder %s43, 0
      %s46 = sadd.s32 %s45, 1
      %s47 = scalar_select %p44, %s45, %s46
      %p50 = pneg %p44
      %p51 = scmp.eq.s32.totalorder %s35, 1
      %p52 = por %p50, %p51
      %p53 = scmp.ne.s32.totalorder %s45, %s48
      %p54 = scmp.eq.s32.totalorder %s35, 0
      %p55 = por %p53, %p54
      %p56 = scmp.ne.s32.totalorder %s45, %s48
      %p57 = scmp.eq.s32.totalorder %s40, 1
      %p58 = por %p56, %p57
      %p59 = scmp.ne.s32.totalorder %s48, %s49
      %p60 = scmp.eq.s32.totalorder %s40, 0
      %p61 = por %p59, %p60
      %p62 = scmp.ne.s32.totalorder %s48, %s49
      %p63 = scmp.eq.s32.totalorder %s41, 1
      %p64 = por %p62, %p63
      %p66 = scmp.ne.s32.totalorder %s49, %s65
      %p67 = scmp.eq.s32.totalorder %s41, 0
      %p68 = por %p66, %p67
      %s70 = sadd.s32 %s69, 1
      %p73 = scmp.eq.s32.totalorder %s35, 1
      %p74 = scmp.ne.s32.totalorder %s69, %s71
      %p75 = scmp.eq.s32.totalorder %s35, 0
      %p76 = por %p74, %p75
      %p77 = scmp.ne.s32.totalorder %s69, %s71
      %p78 = scmp.eq.s32.totalorder %s40, 1
      %p79 = por %p77, %p78
      %p80 = scmp.ne.s32.totalorder %s71, %s72
      %p81 = scmp.eq.s32.totalorder %s40, 0
      %p82 = por %p80, %p81
      %p83 = scmp.ne.s32.totalorder %s71, %s72
      %p84 = scmp.eq.s32.totalorder %s41, 1
      %p85 = por %p83, %p84
      %p87 = scmp.ne.s32.totalorder %s72, %s86
      %p88 = scmp.eq.s32.totalorder %s41, 0
      %p89 = por %p87, %p88
      %s91 = sadd.s32 %s90, 1
      %p94 = scmp.eq.s32.totalorder %s35, 1
      %p95 = scmp.ne.s32.totalorder %s90, %s92
      %p96 = scmp.eq.s32.totalorder %s35, 0
      %p97 = por %p95, %p96
      %p98 = scmp.ne.s32.totalorder %s90, %s92
      %p99 = scmp.eq.s32.totalorder %s40, 1
      %p100 = por %p98, %p99
      %p101 = scmp.ne.s32.totalorder %s92, %s93
      %p102 = scmp.eq.s32.totalorder %s40, 0
      %p103 = por %p101, %p102
      %p104 = scmp.ne.s32.totalorder %s92, %s93
      %p105 = scmp.eq.s32.totalorder %s41, 1
      %p106 = por %p104, %p105
      %p108 = scmp.ne.s32.totalorder %s93, %s107
      %p109 = scmp.eq.s32.totalorder %s41, 0
      %p110 = por %p108, %p109
      %s112 = sadd.s32 %s111, 1
      %p115 = scmp.eq.s32.totalorder %s35, 1
      %p116 = scmp.ne.s32.totalorder %s111, %s113
      %p117 = scmp.eq.s32.totalorder %s35, 0
      %p118 = por %p116, %p117
      %p119 = scmp.ne.s32.totalorder %s111, %s113
      %p120 = scmp.eq.s32.totalorder %s40, 1
      %p121 = por %p119, %p120
      %p122 = scmp.ne.s32.totalorder %s113, %s114
      %p123 = scmp.eq.s32.totalorder %s40, 0
      %p124 = por %p122, %p123
      %p125 = scmp.ne.s32.totalorder %s113, %s114
      %p126 = scmp.eq.s32.totalorder %s41, 1
      %p127 = por %p125, %p126
      %p129 = scmp.ne.s32.totalorder %s114, %s128
      %p130 = scmp.eq.s32.totalorder %s41, 0
      %p131 = por %p129, %p130
      %s133 = sadd.s32 %s132, 1
      %p136 = scmp.eq.s32.totalorder %s35, 1
      %p137 = scmp.ne.s32.totalorder %s132, %s134
      %p138 = scmp.eq.s32.totalorder %s35, 0
      %p139 = por %p137, %p138
      %p140 = scmp.ne.s32.totalorder %s132, %s134
      %p141 = scmp.eq.s32.totalorder %s40, 1
      %p142 = por %p140, %p141
      %p143 = scmp.ne.s32.totalorder %s134, %s135
      %p144 = scmp.eq.s32.totalorder %s40, 0
      %p145 = por %p143, %p144
      %p146 = scmp.ne.s32.totalorder %s134, %s135
      %p147 = scmp.eq.s32.totalorder %s41, 1
      %p148 = por %p146, %p147
      %p150 = scmp.ne.s32.totalorder %s135, %s149
      %p151 = scmp.eq.s32.totalorder %s41, 0
      %p152 = por %p150, %p151
      %s154 = sadd.s32 %s153, 1
      %p157 = scmp.eq.s32.totalorder %s35, 1
      %p158 = scmp.ne.s32.totalorder %s153, %s155
      %p159 = scmp.eq.s32.totalorder %s35, 0
      %p160 = por %p158, %p159
      %p161 = scmp.ne.s32.totalorder %s153, %s155
      %p162 = scmp.eq.s32.totalorder %s40, 1
      %p163 = por %p161, %p162
      %p164 = scmp.ne.s32.totalorder %s155, %s156
      %p165 = scmp.eq.s32.totalorder %s40, 0
      %p166 = por %p164, %p165
      %p167 = scmp.ne.s32.totalorder %s155, %s156
      %p168 = scmp.eq.s32.totalorder %s41, 1
      %p169 = por %p167, %p168
      %p171 = scmp.ne.s32.totalorder %s156, %s170
      %p172 = scmp.eq.s32.totalorder %s41, 0
      %p173 = por %p171, %p172
      %s175 = sadd.s32 %s174, 1
      %p178 = scmp.eq.s32.totalorder %s35, 1
      %p179 = scmp.ne.s32.totalorder %s174, %s176
      %p180 = scmp.eq.s32.totalorder %s35, 0
      %p181 = por %p179, %p180
      %p182 = scmp.ne.s32.totalorder %s174, %s176
      %p183 = scmp.eq.s32.totalorder %s40, 1
      %p184 = por %p182, %p183
      %p185 = scmp.ne.s32.totalorder %s176, %s177
      %p186 = scmp.eq.s32.totalorder %s40, 0
      %p187 = por %p185, %p186
      %p188 = scmp.ne.s32.totalorder %s176, %s177
      %p189 = scmp.eq.s32.totalorder %s41, 1
      %p190 = por %p188, %p189
      %p192 = scmp.ne.s32.totalorder %s177, %s191
      %p193 = scmp.eq.s32.totalorder %s41, 0
      %p194 = por %p192, %p193
      %s196 = sadd.s32 %s195, 1
      %p199 = scmp.eq.s32.totalorder %s35, 1
      %p200 = scmp.ne.s32.totalorder %s195, %s197
      %p201 = scmp.eq.s32.totalorder %s35, 0
      %p202 = por %p200, %p201
      %p203 = scmp.ne.s32.totalorder %s195, %s197
      %p204 = scmp.eq.s32.totalorder %s40, 1
      %p205 = por %p203, %p204
      %p206 = scmp.ne.s32.totalorder %s197, %s198
      %p207 = scmp.eq.s32.totalorder %s40, 0
      %p208 = por %p206, %p207
      %p209 = scmp.ne.s32.totalorder %s197, %s198
      %p210 = scmp.eq.s32.totalorder %s41, 1
      %p211 = por %p209, %p210
      %p213 = scmp.ne.s32.totalorder %s198, %s212
      %p214 = scmp.eq.s32.totalorder %s41, 0
      %p215 = por %p213, %p214
      %s217 = sadd.s32 %s216, 1
      %p220 = scmp.eq.s32.totalorder %s35, 1
      %p221 = scmp.ne.s32.totalorder %s216, %s218
      %p222 = scmp.eq.s32.totalorder %s35, 0
      %p223 = por %p221, %p222
      %p224 = scmp.ne.s32.totalorder %s216, %s218
      %p225 = scmp.eq.s32.totalorder %s40, 1
      %p226 = por %p224, %p225
      %p227 = scmp.ne.s32.totalorder %s218, %s219
      %p228 = scmp.eq.s32.totalorder %s40, 0
      %p229 = por %p227, %p228
      %p230 = scmp.ne.s32.totalorder %s218, %s219
      %p231 = scmp.eq.s32.totalorder %s41, 1
      %p232 = por %p230, %p231
      %p234 = scmp.ne.s32.totalorder %s219, %s233
      %p235 = scmp.eq.s32.totalorder %s41, 0
      %p236 = por %p234, %p235
      %s238 = sadd.s32 %s237, 1
      %p241 = scmp.eq.s32.totalorder %s35, 1
      %p242 = scmp.ne.s32.totalorder %s237, %s239
      %p243 = scmp.eq.s32.totalorder %s35, 0
      %p244 = por %p242, %p243
      %p245 = scmp.ne.s32.totalorder %s237, %s239
      %p246 = scmp.eq.s32.totalorder %s40, 1
      %p247 = por %p245, %p246
      %p248 = scmp.ne.s32.totalorder %s239, %s240
      %p249 = scmp.eq.s32.totalorder %s40, 0
      %p250 = por %p248, %p249
      %p251 = scmp.ne.s32.totalorder %s239, %s240
      %p252 = scmp.eq.s32.totalorder %s41, 1
      %p253 = por %p251, %p252
      %p255 = scmp.ne.s32.totalorder %s240, %s254
      %p256 = scmp.eq.s32.totalorder %s41, 0
      %p257 = por %p255, %p256
      %s259 = sadd.s32 %s258, 1
      %p262 = scmp.eq.s32.totalorder %s35, 1
      %p263 = scmp.ne.s32.totalorder %s258, %s260
      %p264 = scmp.eq.s32.totalorder %s35, 0
      %p265 = por %p263, %p264
      %p266 = scmp.ne.s32.totalorder %s258, %s260
      %p267 = scmp.eq.s32.totalorder %s40, 1
      %p268 = por %p266, %p267
      %p269 = scmp.ne.s32.totalorder %s260, %s261
      %p270 = scmp.eq.s32.totalorder %s40, 0
      %p271 = por %p269, %p270
      %p272 = scmp.ne.s32.totalorder %s260, %s261
      %p273 = scmp.eq.s32.totalorder %s41, 1
      %p274 = por %p272, %p273
      %p276 = scmp.ne.s32.totalorder %s261, %s275
      %p277 = scmp.eq.s32.totalorder %s41, 0
      %p278 = por %p276, %p277
      %s280 = sadd.s32 %s279, 1
      %p283 = scmp.eq.s32.totalorder %s35, 1
      %p284 = scmp.ne.s32.totalorder %s279, %s281
      %p285 = scmp.eq.s32.totalorder %s35, 0
      %p286 = por %p284, %p285
      %p287 = scmp.ne.s32.totalorder %s279, %s281
      %p288 = scmp.eq.s32.totalorder %s40, 1
      %p289 = por %p287, %p288
      %p290 = scmp.ne.s32.totalorder %s281, %s282
      %p291 = scmp.eq.s32.totalorder %s40, 0
      %p292 = por %p290, %p291
      %p293 = scmp.ne.s32.totalorder %s281, %s282
      %p294 = scmp.eq.s32.totalorder %s41, 1
      %p295 = por %p293, %p294
      %p297 = scmp.ne.s32.totalorder %s282, %s296
      %p298 = scmp.eq.s32.totalorder %s41, 0
      %p299 = por %p297, %p298
      %s301 = sadd.s32 %s300, 1
      %p304 = scmp.eq.s32.totalorder %s35, 1
      %p305 = scmp.ne.s32.totalorder %s300, %s302
      %p306 = scmp.eq.s32.totalorder %s35, 0
      %p307 = por %p305, %p306
      %p308 = scmp.ne.s32.totalorder %s300, %s302
      %p309 = scmp.eq.s32.totalorder %s40, 1
      %p310 = por %p308, %p309
      %p311 = scmp.ne.s32.totalorder %s302, %s303
      %p312 = scmp.eq.s32.totalorder %s40, 0
      %p313 = por %p311, %p312
      %p314 = scmp.ne.s32.totalorder %s302, %s303
      %p315 = scmp.eq.s32.totalorder %s41, 1
      %p316 = por %p314, %p315
      %p318 = scmp.ne.s32.totalorder %s303, %s317
      %p319 = scmp.eq.s32.totalorder %s41, 0
      %p320 = por %p318, %p319
      %s322 = sadd.s32 %s321, 1
      %p325 = scmp.eq.s32.totalorder %s35, 1
      %p326 = scmp.ne.s32.totalorder %s321, %s323
      %p327 = scmp.eq.s32.totalorder %s35, 0
      %p328 = por %p326, %p327
      %p329 = scmp.ne.s32.totalorder %s321, %s323
      %p330 = scmp.eq.s32.totalorder %s40, 1
      %p331 = por %p329, %p330
      %p332 = scmp.ne.s32.totalorder %s323, %s324
      %p333 = scmp.eq.s32.totalorder %s40, 0
      %p334 = por %p332, %p333
      %p335 = scmp.ne.s32.totalorder %s323, %s324
      %p336 = scmp.eq.s32.totalorder %s41, 1
      %p337 = por %p335, %p336
      %p339 = scmp.ne.s32.totalorder %s324, %s338
      %p340 = scmp.eq.s32.totalorder %s41, 0
      %p341 = por %p339, %p340
      %s343 = sadd.s32 %s342, 1
      %p346 = scmp.eq.s32.totalorder %s35, 1
      %p347 = scmp.ne.s32.totalorder %s342, %s344
      %p348 = scmp.eq.s32.totalorder %s35, 0
      %p349 = por %p347, %p348
      %p350 = scmp.ne.s32.totalorder %s342, %s344
      %p351 = scmp.eq.s32.totalorder %s40, 1
      %p352 = por %p350, %p351
      %p353 = scmp.ne.s32.totalorder %s344, %s345
      %p354 = scmp.eq.s32.totalorder %s40, 0
      %p355 = por %p353, %p354
      %p356 = scmp.ne.s32.totalorder %s344, %s345
      %p357 = scmp.eq.s32.totalorder %s41, 1
      %p358 = por %p356, %p357
      %p360 = scmp.ne.s32.totalorder %s345, %s359
      %p361 = scmp.eq.s32.totalorder %s41, 0
      %p362 = por %p360, %p361
      %s364 = sadd.s32 %s363, 1
      %p367 = scmp.eq.s32.totalorder %s35, 1
      %p368 = scmp.ne.s32.totalorder %s363, %s365
      %p369 = scmp.eq.s32.totalorder %s35, 0
      %p370 = por %p368, %p369
      %p371 = scmp.ne.s32.totalorder %s363, %s365
      %p372 = scmp.eq.s32.totalorder %s40, 1
      %p373 = por %p371, %p372
      %p374 = scmp.ne.s32.totalorder %s365, %s366
      %p375 = scmp.eq.s32.totalorder %s40, 0
      %p376 = por %p374, %p375
      %p377 = scmp.ne.s32.totalorder %s365, %s366
      %p378 = scmp.eq.s32.totalorder %s41, 1
      %p379 = por %p377, %p378
      %p381 = scmp.ne.s32.totalorder %s366, %s380
      %p382 = scmp.eq.s32.totalorder %s41, 0
      %p383 = por %p381, %p382
      %s385 = sadd.s32 %s384, 1
      %p388 = scmp.eq.s32.totalorder %s35, 1
      %p389 = scmp.ne.s32.totalorder %s384, %s386
      %p390 = scmp.eq.s32.totalorder %s35, 0
      %p391 = por %p389, %p390
      %p392 = scmp.ne.s32.totalorder %s384, %s386
      %p393 = scmp.eq.s32.totalorder %s40, 1
      %p394 = por %p392, %p393
      %p395 = scmp.ne.s32.totalorder %s386, %s387
      %p396 = scmp.eq.s32.totalorder %s40, 0
      %p397 = por %p395, %p396
      %p398 = scmp.ne.s32.totalorder %s386, %s387
      %p399 = scmp.eq.s32.totalorder %s41, 1
      %p400 = por %p398, %p399
      %p402 = scmp.ne.s32.totalorder %s387, %s401
      %p403 = scmp.eq.s32.totalorder %s41, 0
      %p404 = por %p402, %p403
      %s406 = sadd.s32 %s405, 1
      %p409 = scmp.eq.s32.totalorder %s35, 1
      %p410 = scmp.ne.s32.totalorder %s405, %s407
      %p411 = scmp.eq.s32.totalorder %s35, 0
      %p412 = por %p410, %p411
      %p413 = scmp.ne.s32.totalorder %s405, %s407
      %p414 = scmp.eq.s32.totalorder %s40, 1
      %p415 = por %p413, %p414
      %p416 = scmp.ne.s32.totalorder %s407, %s408
      %p417 = scmp.eq.s32.totalorder %s40, 0
      %p418 = por %p416, %p417
      %p419 = scmp.ne.s32.totalorder %s407, %s408
      %p420 = scmp.eq.s32.totalorder %s41, 1
      %p421 = por %p419, %p420
      %p423 = scmp.ne.s32.totalorder %s408, %s422
      %p424 = scmp.eq.s32.totalorder %s41, 0
      %p425 = por %p423, %p424
      %s426 = ssub.s32 %s35, %s42
      %p427 = scmp.eq.s32.totalorder %s426, 0
      %s429 = sadd.s32 %s428, 1
      %s430 = scalar_select %p427, %s428, %s429
      %p433 = pneg %p427
      %p434 = scmp.eq.s32.totalorder %s35, 1
      %p435 = por %p433, %p434
      %p436 = scmp.ne.s32.totalorder %s428, %s431
      %p437 = scmp.eq.s32.totalorder %s35, 0
      %p438 = por %p436, %p437
      %p439 = scmp.ne.s32.totalorder %s428, %s431
      %p440 = scmp.eq.s32.totalorder %s40, 1
      %p441 = por %p439, %p440
      %p442 = scmp.ne.s32.totalorder %s431, %s432
      %p443 = scmp.eq.s32.totalorder %s40, 0
      %p444 = por %p442, %p443
      %p445 = scmp.ne.s32.totalorder %s431, %s432
      %p446 = scmp.eq.s32.totalorder %s41, 1
      %p447 = por %p445, %p446
      %p449 = scmp.ne.s32.totalorder %s432, %s448
      %p450 = scmp.eq.s32.totalorder %s41, 0
      %p451 = por %p449, %p450
      %p452 = scmp.le.s32.totalorder 1, %s35
      %p453 = scmp.lt.s32.totalorder %s35, 3
      %p454 = pnand %p452, %p453
      %p455 = pneg %p454
      // Predicated region
      $region9: #{_lenet_forward_impl.1} parent=5 // pred_check
        _
      $region10: #{_lenet_forward_impl.1} parent=5 // pred_check_branch
        %457 = sbr.rel (%p454) target = $region12
      $region11: #{_lenet_forward_impl.1} parent=5 // pred_region
        %s458 = ssub.s32 %s35, 1
        // Predicated region
        $region13: #{_lenet_forward_impl.1} parent=11 // pred_check
          %p459 = pneg %p82
        $region14: #{_lenet_forward_impl.1} parent=11 // pred_check_branch
          %461 = sbr.rel (%p459) target = $region16
        $region15: #{_lenet_forward_impl.1} parent=11 // pred_region
          %s463 = ssub.s32 10240, 10240
          %464 = vsyncadd [#allocation6], %s463
          %s465 = sshll.u32 [#allocation5], 4
          %s466 = int_to_ptr.vmem [resolvable:$true] %s465
          %471 = dma.hbm_to_vmem [thread:$0]  %s1, 10240, %s466, [#allocation6], 512, 512, 32
        $region16: #{_lenet_forward_impl.1} parent=11 // pred_fallthru
          _
        // Predicated region
        $region17: #{_lenet_forward_impl.1} parent=11 // pred_check
          %p472 = pneg %p103
        $region18: #{_lenet_forward_impl.1} parent=11 // pred_check_branch
          %474 = sbr.rel (%p472) target = $region20
        $region19: #{_lenet_forward_impl.1} parent=11 // pred_region
          %s476 = ssub.s32 64, 64
          %477 = vsyncadd [#allocation9], %s476
          %s479 = sshll.u32 [#allocation8], 4
          %s480 = int_to_ptr.vmem [resolvable:$true] %s479
          %482 = dma.hbm_to_vmem [thread:$0]  %s2, 64, %s480, [#allocation9]
        $region20: #{_lenet_forward_impl.1} parent=11 // pred_fallthru
          _
        // Predicated region
        $region21: #{_lenet_forward_impl.1} parent=11 // pred_check
          %p483 = pneg %p124
        $region22: #{_lenet_forward_impl.1} parent=11 // pred_check_branch
          %485 = sbr.rel (%p483) target = $region24
        $region23: #{_lenet_forward_impl.1} parent=11 // pred_region
          %s487 = ssub.s32 64, 64
          %488 = vsyncadd [#allocation9], %s487
          %s490 = sshll.u32 [#allocation10], 4
          %s491 = int_to_ptr.vmem [resolvable:$true] %s490
          %493 = dma.hbm_to_vmem [thread:$0]  %s3, 64, %s491, [#allocation9]
        $region24: #{_lenet_forward_impl.1} parent=11 // pred_fallthru
          _
        // Predicated region
        $region25: #{_lenet_forward_impl.1} parent=11 // pred_check
          %p494 = pneg %p145
        $region26: #{_lenet_forward_impl.1} parent=11 // pred_check_branch
          %496 = sbr.rel (%p494) target = $region28
        $region27: #{_lenet_forward_impl.1} parent=11 // pred_region
          %s498 = ssub.s32 256, 256
          %499 = vsyncadd [#allocation12], %s498
          %s500 = sshll.u32 [#allocation11], 4
          %s501 = int_to_ptr.vmem [resolvable:$true] %s500
          %506 = dma.hbm_to_vmem [thread:$0]  %s4, 256, %s501, [#allocation12], 128, 128, 8
        $region28: #{_lenet_forward_impl.1} parent=11 // pred_fallthru
          _
        // Predicated region
        $region29: #{_lenet_forward_impl.1} parent=11 // pred_check
          %p507 = pneg %p166
        $region30: #{_lenet_forward_impl.1} parent=11 // pred_check_branch
          %509 = sbr.rel (%p507) target = $region32
        $region31: #{_lenet_forward_impl.1} parent=11 // pred_region
          %s511 = ssub.s32 13824, 13824
          %512 = vsyncadd [#allocation12], %s511
          %s513 = sshll.u32 [#allocation13], 4
          %s514 = int_to_ptr.vmem [resolvable:$true] %s513
          %519 = dma.hbm_to_vmem [thread:$0]  %s5, 13824, %s514, [#allocation12], 256, 256, 16
        $region32: #{_lenet_forward_impl.1} parent=11 // pred_fallthru
          _
        // Predicated region
        $region33: #{_lenet_forward_impl.1} parent=11 // pred_check
          %p520 = pneg %p187
        $region34: #{_lenet_forward_impl.1} parent=11 // pred_check_branch
          %522 = sbr.rel (%p520) target = $region36
        $region35: #{_lenet_forward_impl.1} parent=11 // pred_region
          %s524 = ssub.s32 71680, 71680
          %525 = vsyncadd [#allocation15], %s524
          %s526 = sshll.u32 [#allocation14], 4
          %s527 = int_to_ptr.vmem [resolvable:$true] %s526
          %532 = dma.hbm_to_vmem [thread:$0]  %s6, 71680, %s527, [#allocation15], 512, 512, 32
        $region36: #{_lenet_forward_impl.1} parent=11 // pred_fallthru
          _
        // Predicated region
        $region37: #{_lenet_forward_impl.1} parent=11 // pred_check
          %p533 = pneg %p208
        $region38: #{_lenet_forward_impl.1} parent=11 // pred_check_branch
          %535 = sbr.rel (%p533) target = $region40
        $region39: #{_lenet_forward_impl.1} parent=11 // pred_region
          %s537 = ssub.s32 64, 64
          %538 = vsyncadd [#allocation15], %s537
          %s540 = sshll.u32 [#allocation16], 4
          %s541 = int_to_ptr.vmem [resolvable:$true] %s540
          %543 = dma.hbm_to_vmem [thread:$0]  %s7, 64, %s541, [#allocation15]
        $region40: #{_lenet_forward_impl.1} parent=11 // pred_fallthru
          _
        // Predicated region
        $region41: #{_lenet_forward_impl.1} parent=11 // pred_check
          %p544 = pneg %p229
        $region42: #{_lenet_forward_impl.1} parent=11 // pred_check_branch
          %546 = sbr.rel (%p544) target = $region44
        $region43: #{_lenet_forward_impl.1} parent=11 // pred_region
          %s548 = ssub.s32 64, 64
          %549 = vsyncadd [#allocation18], %s548
          %s551 = sshll.u32 [#allocation17], 4
          %s552 = int_to_ptr.vmem [resolvable:$true] %s551
          %554 = dma.hbm_to_vmem [thread:$0]  %s8, 64, %s552, [#allocation18]
        $region44: #{_lenet_forward_impl.1} parent=11 // pred_fallthru
          _
        // Predicated region
        $region45: #{_lenet_forward_impl.1} parent=11 // pred_check
          %p555 = pneg %p250
        $region46: #{_lenet_forward_impl.1} parent=11 // pred_check_branch
          %557 = sbr.rel (%p555) target = $region48
        $region47: #{_lenet_forward_impl.1} parent=11 // pred_region
          %s559 = ssub.s32 128, 128
          %560 = vsyncadd [#allocation18], %s559
          %s562 = sshll.u32 [#allocation19], 4
          %s563 = int_to_ptr.vmem [resolvable:$true] %s562
          %565 = dma.hbm_to_vmem [thread:$0]  %s9, 128, %s563, [#allocation18]
        $region48: #{_lenet_forward_impl.1} parent=11 // pred_fallthru
          _
        // Predicated region
        $region49: #{_lenet_forward_impl.1} parent=11 // pred_check
          %p566 = pneg %p271
        $region50: #{_lenet_forward_impl.1} parent=11 // pred_check_branch
          %568 = sbr.rel (%p566) target = $region52
        $region51: #{_lenet_forward_impl.1} parent=11 // pred_region
          %s570 = ssub.s32 13312, 13312
          %571 = vsyncadd [#allocation21], %s570
          %s572 = sshll.u32 [#allocation20], 4
          %s573 = int_to_ptr.vmem [resolvable:$true] %s572
          %578 = dma.hbm_to_vmem [thread:$0]  %s10, 13312, %s573, [#allocation21], 256, 256, 16
        $region52: #{_lenet_forward_impl.1} parent=11 // pred_fallthru
          _
        // Predicated region
        $region53: #{_lenet_forward_impl.1} parent=11 // pred_check
          %p579 = pneg %p292
        $region54: #{_lenet_forward_impl.1} parent=11 // pred_check_branch
          %581 = sbr.rel (%p579) target = $region56
        $region55: #{_lenet_forward_impl.1} parent=11 // pred_region
          %s583 = ssub.s32 43008, 43008
          %584 = vsyncadd [#allocation21], %s583
          %s585 = sshll.u32 [#allocation22], 4
          %s586 = int_to_ptr.vmem [resolvable:$true] %s585
          %591 = dma.hbm_to_vmem [thread:$0]  %s11, 43008, %s586, [#allocation21], 512, 512, 32
        $region56: #{_lenet_forward_impl.1} parent=11 // pred_fallthru
          _
        // Predicated region
        $region57: #{_lenet_forward_impl.1} parent=11 // pred_check
          %p592 = pneg %p313
        $region58: #{_lenet_forward_impl.1} parent=11 // pred_check_branch
          %594 = sbr.rel (%p592) target = $region60
        $region59: #{_lenet_forward_impl.1} parent=11 // pred_region
          %s596 = ssub.s32 64, 64
          %597 = vsyncadd [#allocation24], %s596
          %s599 = sshll.u32 [#allocation23], 4
          %s600 = int_to_ptr.vmem [resolvable:$true] %s599
          %602 = dma.hbm_to_vmem [thread:$0]  %s12, 64, %s600, [#allocation24]
        $region60: #{_lenet_forward_impl.1} parent=11 // pred_fallthru
          _
        // Predicated region
        $region61: #{_lenet_forward_impl.1} parent=11 // pred_check
          %p603 = pneg %p334
        $region62: #{_lenet_forward_impl.1} parent=11 // pred_check_branch
          %605 = sbr.rel (%p603) target = $region64
        $region63: #{_lenet_forward_impl.1} parent=11 // pred_region
          %s607 = ssub.s32 64, 64
          %608 = vsyncadd [#allocation24], %s607
          %s610 = sshll.u32 [#allocation25], 4
          %s611 = int_to_ptr.vmem [resolvable:$true] %s610
          %613 = dma.hbm_to_vmem [thread:$0]  %s13, 64, %s611, [#allocation24]
        $region64: #{_lenet_forward_impl.1} parent=11 // pred_fallthru
          _
        // Predicated region
        $region65: #{_lenet_forward_impl.1} parent=11 // pred_check
          %p614 = pneg %p355
        $region66: #{_lenet_forward_impl.1} parent=11 // pred_check_branch
          %616 = sbr.rel (%p614) target = $region68
        $region67: #{_lenet_forward_impl.1} parent=11 // pred_region
          %s618 = ssub.s32 64, 64
          %619 = vsyncadd [#allocation27], %s618
          %s621 = sshll.u32 [#allocation26], 4
          %s622 = int_to_ptr.vmem [resolvable:$true] %s621
          %624 = dma.hbm_to_vmem [thread:$0]  %s14, 64, %s622, [#allocation27]
        $region68: #{_lenet_forward_impl.1} parent=11 // pred_fallthru
          _
        // Predicated region
        $region69: #{_lenet_forward_impl.1} parent=11 // pred_check
          %p625 = pneg %p376
        $region70: #{_lenet_forward_impl.1} parent=11 // pred_check_branch
          %627 = sbr.rel (%p625) target = $region72
        $region71: #{_lenet_forward_impl.1} parent=11 // pred_region
          _
        $region72: #{_lenet_forward_impl.1} parent=11 // pred_fallthru
          _
        // Predicated region
        $region73: #{_lenet_forward_impl.1} parent=11 // pred_check
          %p628 = pneg %p397
        $region74: #{_lenet_forward_impl.1} parent=11 // pred_check_branch
          %630 = sbr.rel (%p628) target = $region76
        $region75: #{_lenet_forward_impl.1} parent=11 // pred_region
          _
        $region76: #{_lenet_forward_impl.1} parent=11 // pred_fallthru
          _
        // Predicated region
        $region77: #{_lenet_forward_impl.1} parent=11 // pred_check
          %p631 = pneg %p418
        $region78: #{_lenet_forward_impl.1} parent=11 // pred_check_branch
          %633 = sbr.rel (%p631) target = $region80
        $region79: #{_lenet_forward_impl.1} parent=11 // pred_region
          %s635 = ssub.s32 16, 16
          %636 = vsyncadd [#allocation27], %s635
          %s638 = sshll.u32 [#allocation28], 4
          %s639 = int_to_ptr.vmem [resolvable:$true] %s638
          %641 = dma.hbm_to_vmem [thread:$0]  %s17, 16, %s639, [#allocation27]
        $region80: #{_lenet_forward_impl.1} parent=11 // pred_fallthru
          _
      $region12: #{_lenet_forward_impl.1} parent=5 // pred_fallthru
        _
      %p642 = scmp.lt.s32.totalorder %s35, 2
      // Predicated region
      $region81: #{_lenet_forward_impl.1} parent=5 // pred_check
        %p643 = pneg %p642
      $region82: #{_lenet_forward_impl.1} parent=5 // pred_check_branch
        %645 = sbr.rel (%p643) target = $region84
      $region83: #{_lenet_forward_impl.1} parent=5 // pred_region
        // Predicated region
        $region85: #{_lenet_forward_impl.1} parent=83 // pred_check
          %p646 = pneg %p55
        $region86: #{_lenet_forward_impl.1} parent=83 // pred_check_branch
          %648 = sbr.rel (%p646) target = $region88
        $region87: #{_lenet_forward_impl.1} parent=83 // pred_region
          %p649 = scmp.lt.s32.totalorder %s35, 1
          %s650 = scalar_select %p649, %s35, 1
          %s651 = smul.addr %s650, 4
          %s652 = smul.addr %s651, 8
          %s653 = scalar_lea.vmem %s0, %s652
        $region88: #{_lenet_forward_impl.1} parent=83 // pred_fallthru
          _
      $region84: #{_lenet_forward_impl.1} parent=5 // pred_fallthru
        _
      %p654 = scmp.le.s32.totalorder 1, %s35
      %p655 = scmp.lt.s32.totalorder %s35, 3
      %p656 = pnand %p654, %p655
      %p657 = pneg %p656
      // Predicated region
      $region89: #{_lenet_forward_impl.1} parent=5 // pred_check
        _
      $region90: #{_lenet_forward_impl.1} parent=5 // pred_check_branch
        %659 = sbr.rel (%p656) target = $region92
      $region91: #{_lenet_forward_impl.1} parent=5 // pred_region
        %s660 = ssub.s32 %s35, 1
        // Predicated region
        $region93: #{_lenet_forward_impl.1} parent=91 // pred_check
          %p661 = pneg %p82
        $region94: #{_lenet_forward_impl.1} parent=91 // pred_check_branch
          %663 = sbr.rel (%p661) target = $region96
        $region95: #{_lenet_forward_impl.1} parent=91 // pred_region
          %664 = dma.done [#allocation6], 10240
        $region96: #{_lenet_forward_impl.1} parent=91 // pred_fallthru
          _
        // Predicated region
        $region97: #{_lenet_forward_impl.1} parent=91 // pred_check
          %p665 = pneg %p103
        $region98: #{_lenet_forward_impl.1} parent=91 // pred_check_branch
          %667 = sbr.rel (%p665) target = $region100
        $region99: #{_lenet_forward_impl.1} parent=91 // pred_region
          %668 = dma.done [#allocation9], 64
        $region100: #{_lenet_forward_impl.1} parent=91 // pred_fallthru
          _
        // Predicated region
        $region101: #{_lenet_forward_impl.1} parent=91 // pred_check
          %p669 = pneg %p124
        $region102: #{_lenet_forward_impl.1} parent=91 // pred_check_branch
          %671 = sbr.rel (%p669) target = $region104
        $region103: #{_lenet_forward_impl.1} parent=91 // pred_region
          %672 = dma.done [#allocation9], 64
        $region104: #{_lenet_forward_impl.1} parent=91 // pred_fallthru
          _
        // Predicated region
        $region105: #{_lenet_forward_impl.1} parent=91 // pred_check
          %p673 = pneg %p145
        $region106: #{_lenet_forward_impl.1} parent=91 // pred_check_branch
          %675 = sbr.rel (%p673) target = $region108
        $region107: #{_lenet_forward_impl.1} parent=91 // pred_region
          %676 = dma.done [#allocation12], 256
        $region108: #{_lenet_forward_impl.1} parent=91 // pred_fallthru
          _
        // Predicated region
        $region109: #{_lenet_forward_impl.1} parent=91 // pred_check
          %p677 = pneg %p166
        $region110: #{_lenet_forward_impl.1} parent=91 // pred_check_branch
          %679 = sbr.rel (%p677) target = $region112
        $region111: #{_lenet_forward_impl.1} parent=91 // pred_region
          %680 = dma.done [#allocation12], 13824
        $region112: #{_lenet_forward_impl.1} parent=91 // pred_fallthru
          _
        // Predicated region
        $region113: #{_lenet_forward_impl.1} parent=91 // pred_check
          %p681 = pneg %p187
        $region114: #{_lenet_forward_impl.1} parent=91 // pred_check_branch
          %683 = sbr.rel (%p681) target = $region116
        $region115: #{_lenet_forward_impl.1} parent=91 // pred_region
          %684 = dma.done [#allocation15], 71680
        $region116: #{_lenet_forward_impl.1} parent=91 // pred_fallthru
          _
        // Predicated region
        $region117: #{_lenet_forward_impl.1} parent=91 // pred_check
          %p685 = pneg %p208
        $region118: #{_lenet_forward_impl.1} parent=91 // pred_check_branch
          %687 = sbr.rel (%p685) target = $region120
        $region119: #{_lenet_forward_impl.1} parent=91 // pred_region
          %688 = dma.done [#allocation15], 64
        $region120: #{_lenet_forward_impl.1} parent=91 // pred_fallthru
          _
        // Predicated region
        $region121: #{_lenet_forward_impl.1} parent=91 // pred_check
          %p689 = pneg %p229
        $region122: #{_lenet_forward_impl.1} parent=91 // pred_check_branch
          %691 = sbr.rel (%p689) target = $region124
        $region123: #{_lenet_forward_impl.1} parent=91 // pred_region
          %692 = dma.done [#allocation18], 64
        $region124: #{_lenet_forward_impl.1} parent=91 // pred_fallthru
          _
        // Predicated region
        $region125: #{_lenet_forward_impl.1} parent=91 // pred_check
          %p693 = pneg %p250
        $region126: #{_lenet_forward_impl.1} parent=91 // pred_check_branch
          %695 = sbr.rel (%p693) target = $region128
        $region127: #{_lenet_forward_impl.1} parent=91 // pred_region
          %696 = dma.done [#allocation18], 128
        $region128: #{_lenet_forward_impl.1} parent=91 // pred_fallthru
          _
        // Predicated region
        $region129: #{_lenet_forward_impl.1} parent=91 // pred_check
          %p697 = pneg %p271
        $region130: #{_lenet_forward_impl.1} parent=91 // pred_check_branch
          %699 = sbr.rel (%p697) target = $region132
        $region131: #{_lenet_forward_impl.1} parent=91 // pred_region
          %700 = dma.done [#allocation21], 13312
        $region132: #{_lenet_forward_impl.1} parent=91 // pred_fallthru
          _
        // Predicated region
        $region133: #{_lenet_forward_impl.1} parent=91 // pred_check
          %p701 = pneg %p292
        $region134: #{_lenet_forward_impl.1} parent=91 // pred_check_branch
          %703 = sbr.rel (%p701) target = $region136
        $region135: #{_lenet_forward_impl.1} parent=91 // pred_region
          %704 = dma.done [#allocation21], 43008
        $region136: #{_lenet_forward_impl.1} parent=91 // pred_fallthru
          _
        // Predicated region
        $region137: #{_lenet_forward_impl.1} parent=91 // pred_check
          %p705 = pneg %p313
        $region138: #{_lenet_forward_impl.1} parent=91 // pred_check_branch
          %707 = sbr.rel (%p705) target = $region140
        $region139: #{_lenet_forward_impl.1} parent=91 // pred_region
          %708 = dma.done [#allocation24], 64
        $region140: #{_lenet_forward_impl.1} parent=91 // pred_fallthru
          _
        // Predicated region
        $region141: #{_lenet_forward_impl.1} parent=91 // pred_check
          %p709 = pneg %p334
        $region142: #{_lenet_forward_impl.1} parent=91 // pred_check_branch
          %711 = sbr.rel (%p709) target = $region144
        $region143: #{_lenet_forward_impl.1} parent=91 // pred_region
          %712 = dma.done [#allocation24], 64
        $region144: #{_lenet_forward_impl.1} parent=91 // pred_fallthru
          _
        // Predicated region
        $region145: #{_lenet_forward_impl.1} parent=91 // pred_check
          %p713 = pneg %p355
        $region146: #{_lenet_forward_impl.1} parent=91 // pred_check_branch
          %715 = sbr.rel (%p713) target = $region148
        $region147: #{_lenet_forward_impl.1} parent=91 // pred_region
          %716 = dma.done [#allocation27], 64
        $region148: #{_lenet_forward_impl.1} parent=91 // pred_fallthru
          _
        // Predicated region
        $region149: #{_lenet_forward_impl.1} parent=91 // pred_check
          %p717 = pneg %p418
        $region150: #{_lenet_forward_impl.1} parent=91 // pred_check_branch
          %719 = sbr.rel (%p717) target = $region152
        $region151: #{_lenet_forward_impl.1} parent=91 // pred_region
          %720 = dma.done [#allocation27], 16
        $region152: #{_lenet_forward_impl.1} parent=91 // pred_fallthru
          _
        %p721 = scmp.lt.s32.totalorder %s40, 1
        %s722 = scalar_select %p721, %s40, 1
        %s723 = smul.addr %s722, 4
        %s724 = smul.addr %s723, 8
        %s725 = scalar_lea.vmem %s0, %s724
        %p726 = pneg %p61
        %p727 = pneg %p58
        %p728 = pneg %p82
        %p729 = pneg %p79
        %p730 = pneg %p103
        %p731 = pneg %p100
        %p732 = pneg %p124
        %p733 = pneg %p121
        %p734 = pneg %p145
        %p735 = pneg %p142
        %p736 = pneg %p166
        %p737 = pneg %p163
        %p738 = pneg %p187
        %p739 = pneg %p184
        %p740 = pneg %p208
        %p741 = pneg %p205
        %p742 = pneg %p229
        %p743 = pneg %p226
        %p744 = pneg %p250
        %p745 = pneg %p247
        %p746 = pneg %p271
        %p747 = pneg %p268
        %p748 = pneg %p292
        %p749 = pneg %p289
        %p750 = pneg %p313
        %p751 = pneg %p310
        %p752 = pneg %p334
        %p753 = pneg %p331
        %p754 = pneg %p355
        %p755 = pneg %p352
        %p756 = pneg %p376
        %p757 = pneg %p373
        %p758 = pneg %p397
        %p759 = pneg %p394
        %p760 = pneg %p418
        %p761 = pneg %p415
        %p762 = pneg %p444
        %p763 = pneg %p441
        %s764 = sand.u32 %s431, 1
        %s765 = scalar_lea.sflag [#allocation7], %s764
        %s766 = sand.u32 %s431, 1
        %s767 = scalar_lea.vmem [#allocation29], %s766
        %p768 = scmp.lt.s32.totalorder %s40, 1
        %s769 = scalar_select %p768, %s40, 1
        %s770 = smul.addr %s769, 4
        %s771 = smul.addr %s770, 8
        %s772 = scalar_lea.vmem %s0, %s771
        %v773 = vld [vmem:[%s772] sm:$0xff]
        %v774 = vld [vmem:[%s772 + $0x8] sm:$0xff]
        %v775 = vld [vmem:[%s772 + $0x10] sm:$0xff]
        %v776 = vld [vmem:[%s772 + $0x18] sm:$0xf]
        %vm777 = vcmask 228352
        %778 = vst.msk [vmem:[#allocation2] sm:$0xff] %vm777, 0.0
        %779 = vst.msk [vmem:[#allocation2 + $0x8] sm:$0xff] %vm777, 0.0
        %780 = vst.msk [vmem:[#allocation2 + $0x10] sm:$0xff] %vm777, 0.0
        %781 = vst.msk [vmem:[#allocation2 + $0x18] sm:$0xff] %vm777, 0.0
        %782 = vst.msk [vmem:[#allocation2 + $0x2] sm:$0xff] %vm777, %v773
        %783 = vst.msk [vmem:[#allocation2 + $0xa] sm:$0xff] %vm777, %v774
        %784 = vst.msk [vmem:[#allocation2 + $0x12] sm:$0xff] %vm777, %v775
        %vm785 = vcmask 224256
        %786 = vst.msk [vmem:[#allocation2 + $0x1a] sm:$0xf] %vm785, %v776
        %v787 = vld [vmem:[#allocation2] sm:$0xff]
        %v788 = vld [vmem:[#allocation2 + $0x8] sm:$0xff]
        %v789 = vld [vmem:[#allocation2 + $0x10] sm:$0xff]
        %v790 = vld [vmem:[#allocation2 + $0x18] sm:$0xf]
        %v791 = vld [vmem:[#allocation5] sm:$0xff]
        %v792 = vld [vmem:[#allocation5 + $0x8] sm:$0xff]
        %v793 = vld [vmem:[#allocation5 + $0x10] sm:$0xff]
        %v794 = vld [vmem:[#allocation5 + $0x18] sm:$0xff]
        %v795 = vld [vmem:[#allocation5 + $0x20] sm:$0xff]
        %v796 = vld [vmem:[#allocation5 + $0x28] sm:$0xff]
        %v797 = vld [vmem:[#allocation5 + $0x30] sm:$0xff]
        %v798 = vld [vmem:[#allocation5 + $0x38] sm:$0xff]
        %v799 = vld [vmem:[#allocation5 + $0x40] sm:$0xff]
        %v800 = vld [vmem:[#allocation5 + $0x48] sm:$0xff]
        %v801 = vld [vmem:[#allocation5 + $0x50] sm:$0xff]
        %v802 = vld [vmem:[#allocation5 + $0x58] sm:$0xff]
        %v803 = vld [vmem:[#allocation5 + $0x60] sm:$0xf]
        %v804 = vld [vmem:[#allocation5 + $0x68] sm:$0xf]
        %v805 = vld [vmem:[#allocation5 + $0x70] sm:$0xf]
        %v806 = vld [vmem:[#allocation5 + $0x78] sm:$0xf]
        %v807 = vld [vmem:[#allocation2 + $0x1] sm:$0xff]
        %v808 = vld [vmem:[#allocation2 + $0x9] sm:$0xff]
        %v809 = vld [vmem:[#allocation2 + $0x11] sm:$0xff]
        %v810 = vld [vmem:[#allocation2 + $0x19] sm:$0xf]
        %s811 = scalar_lea.vmem [#allocation5], 128
        %v812 = vld [vmem:[%s811] sm:$0xff]
        %v813 = vld [vmem:[%s811 + $0x8] sm:$0xff]
        %v814 = vld [vmem:[%s811 + $0x10] sm:$0xff]
        %v815 = vld [vmem:[%s811 + $0x18] sm:$0xff]
        %v816 = vld [vmem:[%s811 + $0x20] sm:$0xff]
        %v817 = vld [vmem:[%s811 + $0x28] sm:$0xff]
        %v818 = vld [vmem:[%s811 + $0x30] sm:$0xff]
        %v819 = vld [vmem:[%s811 + $0x38] sm:$0xff]
        %v820 = vld [vmem:[%s811 + $0x40] sm:$0xff]
        %v821 = vld [vmem:[%s811 + $0x48] sm:$0xff]
        %v822 = vld [vmem:[%s811 + $0x50] sm:$0xff]
        %v823 = vld [vmem:[%s811 + $0x58] sm:$0xff]
        %v824 = vld [vmem:[%s811 + $0x60] sm:$0xf]
        %v825 = vld [vmem:[%s811 + $0x68] sm:$0xf]
        %v826 = vld [vmem:[%s811 + $0x70] sm:$0xf]
        %v827 = vld [vmem:[%s811 + $0x78] sm:$0xf]
        %v829 = vsel %vm777, %v807, 0
        %v832 = vsel %vm777, %v808, 0
        %v835 = vsel %vm777, %v809, 0
        %v838 = vsel %vm777, %v810, 0
        %vm840 = vcmask 1043456
        %v842 = vsel %vm840, %v824, 0
        %v845 = vsel %vm840, %v825, 0
        %v848 = vsel %vm840, %v826, 0
        %v851 = vsel %vm840, %v827, 0
        %853 = vmatprep.subr.mxu0 0.0
        %854 = vmatpush1.msra.mxu0 0.0
        %855 = vmatprep.subr.mxu0 0.0
        %856 = vmatpush1.msra.mxu0 0.0
        %857 = vmatprep.subr.mxu0 0.0
        %858 = vmatpush1.msra.mxu0 0.0
        %859 = vmatprep.subr.mxu0 0.0
        %860 = vmatpush1.msra.mxu0 0.0
        %861 = vmatprep.subr.mxu0 0.0
        %862 = vmatpush1.msra.mxu0 0.0
        %863 = vmatprep.subr.mxu0 0.0
        %864 = vmatpush1.msra.mxu0 0.0
        %865 = vmatprep.subr.mxu0 0.0
        %866 = vmatpush1.msra.mxu0 0.0
        %867 = vmatprep.subr.mxu0 0.0
        %868 = vmatpush1.msra.mxu0 0.0
        %869 = vmatprep.subr.mxu0 0.0
        %870 = vmatpush1.msra.mxu0 0.0
        %871 = vmatprep.subr.mxu0 0.0
        %872 = vmatpush1.msra.mxu0 0.0
        %873 = vmatprep.subr.mxu0 0.0
        %874 = vmatpush1.msra.mxu0 0.0
        %875 = vmatprep.subr.mxu0 0.0
        %876 = vmatpush1.msra.mxu0 0.0
        %877 = vmatprep.subr.mxu0 %v845
        %878 = vmatpush1.msra.mxu0 %v842
        %879 = vmatprep.subr.mxu0 %v821
        %880 = vmatpush1.msra.mxu0 %v820
        %881 = vmatprep.subr.mxu0 %v817
        %882 = vmatpush1.msra.mxu0 %v816
        %883 = vmatprep.subr.mxu0 %v813
        %884 = vmatpush1.msra.mxu0 %v812
        %885 = vmatprep.subr.mxu0 0.0
        %886 = vmatpush2.msra.mxu0 0.0
        %887 = vmatprep.subr.mxu0 0.0
        %888 = vmatpush2.msra.mxu0 0.0
        %889 = vmatprep.subr.mxu0 0.0
        %890 = vmatpush2.msra.mxu0 0.0
        %891 = vmatprep.subr.mxu0 0.0
        %892 = vmatpush2.msra.mxu0 0.0
        %893 = vmatprep.subr.mxu0 0.0
        %894 = vmatpush2.msra.mxu0 0.0
        %895 = vmatprep.subr.mxu0 0.0
        %896 = vmatpush2.msra.mxu0 0.0
        %897 = vmatprep.subr.mxu0 0.0
        %898 = vmatpush2.msra.mxu0 0.0
        %899 = vmatprep.subr.mxu0 0.0
        %900 = vmatpush2.msra.mxu0 0.0
        %901 = vmatprep.subr.mxu0 0.0
        %902 = vmatpush2.msra.mxu0 0.0
        %903 = vmatprep.subr.mxu0 0.0
        %904 = vmatpush2.msra.mxu0 0.0
        %905 = vmatprep.subr.mxu0 0.0
        %906 = vmatpush2.msra.mxu0 0.0
        %907 = vmatprep.subr.mxu0 0.0
        %908 = vmatpush2.msra.mxu0 0.0
        %909 = vmatprep.subr.mxu0 0.0
        %910 = vmatpush2.msra.mxu0 0.0
        %911 = vmatprep.subr.mxu0 0.0
        %912 = vmatpush2.msra.mxu0 0.0
        %913 = vmatprep.subr.mxu0 0.0
        %914 = vmatpush2.msra.mxu0 0.0
        %915 = vmatprep.subr.mxu0 0.0
        %916 = vmatpush2.msra.mxu0 0.0
        %917 = vmatprep.mubr.f32.mxu0 0.0
        %918 = vmatmul.mubr.f32.gmra.mxu0 %v829
        %v919 = vpop.f32.mrf.mxu0
        %v920 = vadd.f32 0.0, %v919
        %v921 = vpop.f32.mrf.mxu0
        %v922 = vadd.f32 0.0, %v921
        %923 = vmatprep.mubr.f32.mxu0 0.0
        %924 = vmatmul.mubr.f32.gmra.mxu0 %v832
        %v925 = vpop.f32.mrf.mxu0
        %v926 = vadd.f32 0.0, %v925
        %v927 = vpop.f32.mrf.mxu0
        %v928 = vadd.f32 0.0, %v927
        %929 = vmatprep.mubr.f32.mxu0 0.0
        %930 = vmatmul.mubr.f32.gmra.mxu0 %v835
        %v931 = vpop.f32.mrf.mxu0
        %v932 = vadd.f32 0.0, %v931
        %v933 = vpop.f32.mrf.mxu0
        %v934 = vadd.f32 0.0, %v933
        %935 = vmatprep.mubr.f32.mxu0 0.0
        %936 = vmatmul.mubr.f32.gmra.mxu0 %v838
        %v937 = vpop.f32.mrf.mxu0
        %v938 = vadd.f32 0.0, %v937
        %v939 = vpop.f32.mrf.mxu0
        %v940 = vadd.f32 0.0, %v939
        %941 = vdwg.mxu0
        %942 = vmatprep.subr.mxu0 0.0
        %943 = vmatpush1.msra.mxu0 0.0
        %944 = vmatprep.subr.mxu0 0.0
        %945 = vmatpush1.msra.mxu0 0.0
        %946 = vmatprep.subr.mxu0 0.0
        %947 = vmatpush1.msra.mxu0 0.0
        %948 = vmatprep.subr.mxu0 0.0
        %949 = vmatpush1.msra.mxu0 0.0
        %950 = vmatprep.subr.mxu0 0.0
        %951 = vmatpush1.msra.mxu0 0.0
        %952 = vmatprep.subr.mxu0 0.0
        %953 = vmatpush1.msra.mxu0 0.0
        %954 = vmatprep.subr.mxu0 0.0
        %955 = vmatpush1.msra.mxu0 0.0
        %956 = vmatprep.subr.mxu0 0.0
        %957 = vmatpush1.msra.mxu0 0.0
        %958 = vmatprep.subr.mxu0 0.0
        %959 = vmatpush1.msra.mxu0 0.0
        %960 = vmatprep.subr.mxu0 0.0
        %961 = vmatpush1.msra.mxu0 0.0
        %962 = vmatprep.subr.mxu0 0.0
        %963 = vmatpush1.msra.mxu0 0.0
        %964 = vmatprep.subr.mxu0 0.0
        %965 = vmatpush1.msra.mxu0 0.0
        %966 = vmatprep.subr.mxu0 %v851
        %967 = vmatpush1.msra.mxu0 %v848
        %968 = vmatprep.subr.mxu0 %v823
        %969 = vmatpush1.msra.mxu0 %v822
        %970 = vmatprep.subr.mxu0 %v819
        %971 = vmatpush1.msra.mxu0 %v818
        %972 = vmatprep.subr.mxu0 %v815
        %973 = vmatpush1.msra.mxu0 %v814
        %974 = vmatprep.subr.mxu0 0.0
        %975 = vmatpush2.msra.mxu0 0.0
        %976 = vmatprep.subr.mxu0 0.0
        %977 = vmatpush2.msra.mxu0 0.0
        %978 = vmatprep.subr.mxu0 0.0
        %979 = vmatpush2.msra.mxu0 0.0
        %980 = vmatprep.subr.mxu0 0.0
        %981 = vmatpush2.msra.mxu0 0.0
        %982 = vmatprep.subr.mxu0 0.0
        %983 = vmatpush2.msra.mxu0 0.0
        %984 = vmatprep.subr.mxu0 0.0
        %985 = vmatpush2.msra.mxu0 0.0
        %986 = vmatprep.subr.mxu0 0.0
        %987 = vmatpush2.msra.mxu0 0.0
        %988 = vmatprep.subr.mxu0 0.0
        %989 = vmatpush2.msra.mxu0 0.0
        %990 = vmatprep.subr.mxu0 0.0
        %991 = vmatpush2.msra.mxu0 0.0
        %992 = vmatprep.subr.mxu0 0.0
        %993 = vmatpush2.msra.mxu0 0.0
        %994 = vmatprep.subr.mxu0 0.0
        %995 = vmatpush2.msra.mxu0 0.0
        %996 = vmatprep.subr.mxu0 0.0
        %997 = vmatpush2.msra.mxu0 0.0
        %998 = vmatprep.subr.mxu0 0.0
        %999 = vmatpush2.msra.mxu0 0.0
        %1000 = vmatprep.subr.mxu0 0.0
        %1001 = vmatpush2.msra.mxu0 0.0
        %1002 = vmatprep.subr.mxu0 0.0
        %1003 = vmatpush2.msra.mxu0 0.0
        %1004 = vmatprep.subr.mxu0 0.0
        %1005 = vmatpush2.msra.mxu0 0.0
        %1006 = vmatprep.mubr.f32.mxu0 0.0
        %1007 = vmatmul.mubr.f32.gmra.mxu0 %v829
        %v1008 = vpop.f32.mrf.mxu0
        %v1009 = vadd.f32 0.0, %v1008
        %v1010 = vpop.f32.mrf.mxu0
        %v1011 = vadd.f32 0.0, %v1010
        %1012 = vmatprep.mubr.f32.mxu0 0.0
        %1013 = vmatmul.mubr.f32.gmra.mxu0 %v832
        %v1014 = vpop.f32.mrf.mxu0
        %v1015 = vadd.f32 0.0, %v1014
        %v1016 = vpop.f32.mrf.mxu0
        %v1017 = vadd.f32 0.0, %v1016
        %1018 = vmatprep.mubr.f32.mxu0 0.0
        %1019 = vmatmul.mubr.f32.gmra.mxu0 %v835
        %v1020 = vpop.f32.mrf.mxu0
        %v1021 = vadd.f32 0.0, %v1020
        %v1022 = vpop.f32.mrf.mxu0
        %v1023 = vadd.f32 0.0, %v1022
        %1024 = vmatprep.mubr.f32.mxu0 0.0
        %1025 = vmatmul.mubr.f32.gmra.mxu0 %v838
        %v1026 = vpop.f32.mrf.mxu0
        %v1027 = vadd.f32 0.0, %v1026
        %v1028 = vpop.f32.mrf.mxu0
        %v1029 = vadd.f32 0.0, %v1028
        %1030 = vdwg.mxu0
        %v1032 = vsel %vm777, %v787, 0
        %v1035 = vsel %vm777, %v788, 0
        %v1038 = vsel %vm777, %v789, 0
        %v1041 = vsel %vm777, %v790, 0
        %v1044 = vsel %vm840, %v803, 0
        %v1047 = vsel %vm840, %v804, 0
        %v1050 = vsel %vm840, %v805, 0
        %v1053 = vsel %vm840, %v806, 0
        %1055 = vmatprep.subr.mxu0 0.0
        %1056 = vmatpush1.msra.mxu0 0.0
        %1057 = vmatprep.subr.mxu0 0.0
        %1058 = vmatpush1.msra.mxu0 0.0
        %1059 = vmatprep.subr.mxu0 0.0
        %1060 = vmatpush1.msra.mxu0 0.0
        %1061 = vmatprep.subr.mxu0 0.0
        %1062 = vmatpush1.msra.mxu0 0.0
        %1063 = vmatprep.subr.mxu0 0.0
        %1064 = vmatpush1.msra.mxu0 0.0
        %1065 = vmatprep.subr.mxu0 0.0
        %1066 = vmatpush1.msra.mxu0 0.0
        %1067 = vmatprep.subr.mxu0 0.0
        %1068 = vmatpush1.msra.mxu0 0.0
        %1069 = vmatprep.subr.mxu0 0.0
        %1070 = vmatpush1.msra.mxu0 0.0
        %1071 = vmatprep.subr.mxu0 0.0
        %1072 = vmatpush1.msra.mxu0 0.0
        %1073 = vmatprep.subr.mxu0 0.0
        %1074 = vmatpush1.msra.mxu0 0.0
        %1075 = vmatprep.subr.mxu0 0.0
        %1076 = vmatpush1.msra.mxu0 0.0
        %1077 = vmatprep.subr.mxu0 0.0
        %1078 = vmatpush1.msra.mxu0 0.0
        %1079 = vmatprep.subr.mxu0 %v1047
        %1080 = vmatpush1.msra.mxu0 %v1044
        %1081 = vmatprep.subr.mxu0 %v800
        %1082 = vmatpush1.msra.mxu0 %v799
        %1083 = vmatprep.subr.mxu0 %v796
        %1084 = vmatpush1.msra.mxu0 %v795
        %1085 = vmatprep.subr.mxu0 %v792
        %1086 = vmatpush1.msra.mxu0 %v791
        %1087 = vmatprep.subr.mxu0 0.0
        %1088 = vmatpush2.msra.mxu0 0.0
        %1089 = vmatprep.subr.mxu0 0.0
        %1090 = vmatpush2.msra.mxu0 0.0
        %1091 = vmatprep.subr.mxu0 0.0
        %1092 = vmatpush2.msra.mxu0 0.0
        %1093 = vmatprep.subr.mxu0 0.0
        %1094 = vmatpush2.msra.mxu0 0.0
        %1095 = vmatprep.subr.mxu0 0.0
        %1096 = vmatpush2.msra.mxu0 0.0
        %1097 = vmatprep.subr.mxu0 0.0
        %1098 = vmatpush2.msra.mxu0 0.0
        %1099 = vmatprep.subr.mxu0 0.0
        %1100 = vmatpush2.msra.mxu0 0.0
        %1101 = vmatprep.subr.mxu0 0.0
        %1102 = vmatpush2.msra.mxu0 0.0
        %1103 = vmatprep.subr.mxu0 0.0
        %1104 = vmatpush2.msra.mxu0 0.0
        %1105 = vmatprep.subr.mxu0 0.0
        %1106 = vmatpush2.msra.mxu0 0.0
        %1107 = vmatprep.subr.mxu0 0.0
        %1108 = vmatpush2.msra.mxu0 0.0
        %1109 = vmatprep.subr.mxu0 0.0
        %1110 = vmatpush2.msra.mxu0 0.0
        %1111 = vmatprep.subr.mxu0 0.0
        %1112 = vmatpush2.msra.mxu0 0.0
        %1113 = vmatprep.subr.mxu0 0.0
        %1114 = vmatpush2.msra.mxu0 0.0
        %1115 = vmatprep.subr.mxu0 0.0
        %1116 = vmatpush2.msra.mxu0 0.0
        %1117 = vmatprep.subr.mxu0 0.0
        %1118 = vmatpush2.msra.mxu0 0.0
        %1119 = vmatprep.mubr.f32.mxu0 0.0
        %1120 = vmatmul.mubr.f32.gmra.mxu0 %v1032
        %v1121 = vpop.f32.mrf.mxu0
        %v1122 = vadd.f32 %v920, %v1121
        %v1123 = vpop.f32.mrf.mxu0
        %v1124 = vadd.f32 %v922, %v1123
        %1125 = vmatprep.mubr.f32.mxu0 0.0
        %1126 = vmatmul.mubr.f32.gmra.mxu0 %v1035
        %v1127 = vpop.f32.mrf.mxu0
        %v1128 = vadd.f32 %v926, %v1127
        %v1129 = vpop.f32.mrf.mxu0
        %v1130 = vadd.f32 %v928, %v1129
        %1131 = vmatprep.mubr.f32.mxu0 0.0
        %1132 = vmatmul.mubr.f32.gmra.mxu0 %v1038
        %v1133 = vpop.f32.mrf.mxu0
        %v1134 = vadd.f32 %v932, %v1133
        %v1135 = vpop.f32.mrf.mxu0
        %v1136 = vadd.f32 %v934, %v1135
        %1137 = vmatprep.mubr.f32.mxu0 0.0
        %1138 = vmatmul.mubr.f32.gmra.mxu0 %v1041
        %v1139 = vpop.f32.mrf.mxu0
        %v1140 = vadd.f32 %v938, %v1139
        %v1141 = vpop.f32.mrf.mxu0
        %v1142 = vadd.f32 %v940, %v1141
        %1143 = vdwg.mxu0
        %1144 = vmatprep.subr.mxu0 0.0
        %1145 = vmatpush1.msra.mxu0 0.0
        %1146 = vmatprep.subr.mxu0 0.0
        %1147 = vmatpush1.msra.mxu0 0.0
        %1148 = vmatprep.subr.mxu0 0.0
        %1149 = vmatpush1.msra.mxu0 0.0
        %1150 = vmatprep.subr.mxu0 0.0
        %1151 = vmatpush1.msra.mxu0 0.0
        %1152 = vmatprep.subr.mxu0 0.0
        %1153 = vmatpush1.msra.mxu0 0.0
        %1154 = vmatprep.subr.mxu0 0.0
        %1155 = vmatpush1.msra.mxu0 0.0
        %1156 = vmatprep.subr.mxu0 0.0
        %1157 = vmatpush1.msra.mxu0 0.0
        %1158 = vmatprep.subr.mxu0 0.0
        %1159 = vmatpush1.msra.mxu0 0.0
        %1160 = vmatprep.subr.mxu0 0.0
        %1161 = vmatpush1.msra.mxu0 0.0
        %1162 = vmatprep.subr.mxu0 0.0
        %1163 = vmatpush1.msra.mxu0 0.0
        %1164 = vmatprep.subr.mxu0 0.0
        %1165 = vmatpush1.msra.mxu0 0.0
        %1166 = vmatprep.subr.mxu0 0.0
        %1167 = vmatpush1.msra.mxu0 0.0
        %1168 = vmatprep.subr.mxu0 %v1053
        %1169 = vmatpush1.msra.mxu0 %v1050
        %1170 = vmatprep.subr.mxu0 %v802
        %1171 = vmatpush1.msra.mxu0 %v801
        %1172 = vmatprep.subr.mxu0 %v798
        %1173 = vmatpush1.msra.mxu0 %v797
        %1174 = vmatprep.subr.mxu0 %v794
        %1175 = vmatpush1.msra.mxu0 %v793
        %1176 = vmatprep.subr.mxu0 0.0
        %1177 = vmatpush2.msra.mxu0 0.0
        %1178 = vmatprep.subr.mxu0 0.0
        %1179 = vmatpush2.msra.mxu0 0.0
        %1180 = vmatprep.subr.mxu0 0.0
        %1181 = vmatpush2.msra.mxu0 0.0
        %1182 = vmatprep.subr.mxu0 0.0
        %1183 = vmatpush2.msra.mxu0 0.0
        %1184 = vmatprep.subr.mxu0 0.0
        %1185 = vmatpush2.msra.mxu0 0.0
        %1186 = vmatprep.subr.mxu0 0.0
        %1187 = vmatpush2.msra.mxu0 0.0
        %1188 = vmatprep.subr.mxu0 0.0
        %1189 = vmatpush2.msra.mxu0 0.0
        %1190 = vmatprep.subr.mxu0 0.0
        %1191 = vmatpush2.msra.mxu0 0.0
        %1192 = vmatprep.subr.mxu0 0.0
        %1193 = vmatpush2.msra.mxu0 0.0
        %1194 = vmatprep.subr.mxu0 0.0
        %1195 = vmatpush2.msra.mxu0 0.0
        %1196 = vmatprep.subr.mxu0 0.0
        %1197 = vmatpush2.msra.mxu0 0.0
        %1198 = vmatprep.subr.mxu0 0.0
        %1199 = vmatpush2.msra.mxu0 0.0
        %1200 = vmatprep.subr.mxu0 0.0
        %1201 = vmatpush2.msra.mxu0 0.0
        %1202 = vmatprep.subr.mxu0 0.0
        %1203 = vmatpush2.msra.mxu0 0.0
        %1204 = vmatprep.subr.mxu0 0.0
        %1205 = vmatpush2.msra.mxu0 0.0
        %1206 = vmatprep.subr.mxu0 0.0
        %1207 = vmatpush2.msra.mxu0 0.0
        %1208 = vmatprep.mubr.f32.mxu0 0.0
        %1209 = vmatmul.mubr.f32.gmra.mxu0 %v1032
        %v1210 = vpop.f32.mrf.mxu0
        %v1211 = vadd.f32 %v1009, %v1210
        %v1212 = vpop.f32.mrf.mxu0
        %v1213 = vadd.f32 %v1011, %v1212
        %1214 = vmatprep.mubr.f32.mxu0 0.0
        %1215 = vmatmul.mubr.f32.gmra.mxu0 %v1035
        %v1216 = vpop.f32.mrf.mxu0
        %v1217 = vadd.f32 %v1015, %v1216
        %v1218 = vpop.f32.mrf.mxu0
        %v1219 = vadd.f32 %v1017, %v1218
        %1220 = vmatprep.mubr.f32.mxu0 0.0
        %1221 = vmatmul.mubr.f32.gmra.mxu0 %v1038
        %v1222 = vpop.f32.mrf.mxu0
        %v1223 = vadd.f32 %v1021, %v1222
        %v1224 = vpop.f32.mrf.mxu0
        %v1225 = vadd.f32 %v1023, %v1224
        %1226 = vmatprep.mubr.f32.mxu0 0.0
        %1227 = vmatmul.mubr.f32.gmra.mxu0 %v1041
        %v1228 = vpop.f32.mrf.mxu0
        %v1229 = vadd.f32 %v1027, %v1228
        %v1230 = vpop.f32.mrf.mxu0
        %v1231 = vadd.f32 %v1029, %v1230
        %1232 = vdwg.mxu0
        %v1233 = vld [vmem:[#allocation2 + $0x2] sm:$0xff]
        %v1234 = vld [vmem:[#allocation2 + $0xa] sm:$0xff]
        %v1235 = vld [vmem:[#allocation2 + $0x12] sm:$0xff]
        %v1236 = vld [vmem:[#allocation2 + $0x1a] sm:$0xf]
        %s1237 = scalar_lea.vmem [#allocation5], 256
        %v1238 = vld [vmem:[%s1237] sm:$0xff]
        %v1239 = vld [vmem:[%s1237 + $0x8] sm:$0xff]
        %v1240 = vld [vmem:[%s1237 + $0x10] sm:$0xff]
        %v1241 = vld [vmem:[%s1237 + $0x18] sm:$0xff]
        %v1242 = vld [vmem:[%s1237 + $0x20] sm:$0xff]
        %v1243 = vld [vmem:[%s1237 + $0x28] sm:$0xff]
        %v1244 = vld [vmem:[%s1237 + $0x30] sm:$0xff]
        %v1245 = vld [vmem:[%s1237 + $0x38] sm:$0xff]
        %v1246 = vld [vmem:[%s1237 + $0x40] sm:$0xff]
        %v1247 = vld [vmem:[%s1237 + $0x48] sm:$0xff]
        %v1248 = vld [vmem:[%s1237 + $0x50] sm:$0xff]
        %v1249 = vld [vmem:[%s1237 + $0x58] sm:$0xff]
        %v1250 = vld [vmem:[%s1237 + $0x60] sm:$0xf]
        %v1251 = vld [vmem:[%s1237 + $0x68] sm:$0xf]
        %v1252 = vld [vmem:[%s1237 + $0x70] sm:$0xf]
        %v1253 = vld [vmem:[%s1237 + $0x78] sm:$0xf]
        %v1255 = vsel %vm777, %v1233, 0
        %v1258 = vsel %vm777, %v1234, 0
        %v1261 = vsel %vm777, %v1235, 0
        %v1264 = vsel %vm777, %v1236, 0
        %v1267 = vsel %vm840, %v1250, 0
        %v1270 = vsel %vm840, %v1251, 0
        %v1273 = vsel %vm840, %v1252, 0
        %v1276 = vsel %vm840, %v1253, 0
        %1278 = vmatprep.subr.mxu0 0.0
        %1279 = vmatpush1.msra.mxu0 0.0
        %1280 = vmatprep.subr.mxu0 0.0
        %1281 = vmatpush1.msra.mxu0 0.0
        %1282 = vmatprep.subr.mxu0 0.0
        %1283 = vmatpush1.msra.mxu0 0.0
        %1284 = vmatprep.subr.mxu0 0.0
        %1285 = vmatpush1.msra.mxu0 0.0
        %1286 = vmatprep.subr.mxu0 0.0
        %1287 = vmatpush1.msra.mxu0 0.0
        %1288 = vmatprep.subr.mxu0 0.0
        %1289 = vmatpush1.msra.mxu0 0.0
        %1290 = vmatprep.subr.mxu0 0.0
        %1291 = vmatpush1.msra.mxu0 0.0
        %1292 = vmatprep.subr.mxu0 0.0
        %1293 = vmatpush1.msra.mxu0 0.0
        %1294 = vmatprep.subr.mxu0 0.0
        %1295 = vmatpush1.msra.mxu0 0.0
        %1296 = vmatprep.subr.mxu0 0.0
        %1297 = vmatpush1.msra.mxu0 0.0
        %1298 = vmatprep.subr.mxu0 0.0
        %1299 = vmatpush1.msra.mxu0 0.0
        %1300 = vmatprep.subr.mxu0 0.0
        %1301 = vmatpush1.msra.mxu0 0.0
        %1302 = vmatprep.subr.mxu0 %v1270
        %1303 = vmatpush1.msra.mxu0 %v1267
        %1304 = vmatprep.subr.mxu0 %v1247
        %1305 = vmatpush1.msra.mxu0 %v1246
        %1306 = vmatprep.subr.mxu0 %v1243
        %1307 = vmatpush1.msra.mxu0 %v1242
        %1308 = vmatprep.subr.mxu0 %v1239
        %1309 = vmatpush1.msra.mxu0 %v1238
        %1310 = vmatprep.subr.mxu0 0.0
        %1311 = vmatpush2.msra.mxu0 0.0
        %1312 = vmatprep.subr.mxu0 0.0
        %1313 = vmatpush2.msra.mxu0 0.0
        %1314 = vmatprep.subr.mxu0 0.0
        %1315 = vmatpush2.msra.mxu0 0.0
        %1316 = vmatprep.subr.mxu0 0.0
        %1317 = vmatpush2.msra.mxu0 0.0
        %1318 = vmatprep.subr.mxu0 0.0
        %1319 = vmatpush2.msra.mxu0 0.0
        %1320 = vmatprep.subr.mxu0 0.0
        %1321 = vmatpush2.msra.mxu0 0.0
        %1322 = vmatprep.subr.mxu0 0.0
        %1323 = vmatpush2.msra.mxu0 0.0
        %1324 = vmatprep.subr.mxu0 0.0
        %1325 = vmatpush2.msra.mxu0 0.0
        %1326 = vmatprep.subr.mxu0 0.0
        %1327 = vmatpush2.msra.mxu0 0.0
        %1328 = vmatprep.subr.mxu0 0.0
        %1329 = vmatpush2.msra.mxu0 0.0
        %1330 = vmatprep.subr.mxu0 0.0
        %1331 = vmatpush2.msra.mxu0 0.0
        %1332 = vmatprep.subr.mxu0 0.0
        %1333 = vmatpush2.msra.mxu0 0.0
        %1334 = vmatprep.subr.mxu0 0.0
        %1335 = vmatpush2.msra.mxu0 0.0
        %1336 = vmatprep.subr.mxu0 0.0
        %1337 = vmatpush2.msra.mxu0 0.0
        %1338 = vmatprep.subr.mxu0 0.0
        %1339 = vmatpush2.msra.mxu0 0.0
        %1340 = vmatprep.subr.mxu0 0.0
        %1341 = vmatpush2.msra.mxu0 0.0
        %1342 = vmatprep.mubr.f32.mxu0 0.0
        %1343 = vmatmul.mubr.f32.gmra.mxu0 %v1255
        %v1344 = vpop.f32.mrf.mxu0
        %v1345 = vadd.f32 0.0, %v1344
        %v1346 = vpop.f32.mrf.mxu0
        %v1347 = vadd.f32 0.0, %v1346
        %1348 = vmatprep.mubr.f32.mxu0 0.0
        %1349 = vmatmul.mubr.f32.gmra.mxu0 %v1258
        %v1350 = vpop.f32.mrf.mxu0
        %v1351 = vadd.f32 0.0, %v1350
        %v1352 = vpop.f32.mrf.mxu0
        %v1353 = vadd.f32 0.0, %v1352
        %1354 = vmatprep.mubr.f32.mxu0 0.0
        %1355 = vmatmul.mubr.f32.gmra.mxu0 %v1261
        %v1356 = vpop.f32.mrf.mxu0
        %v1357 = vadd.f32 0.0, %v1356
        %v1358 = vpop.f32.mrf.mxu0
        %v1359 = vadd.f32 0.0, %v1358
        %1360 = vmatprep.mubr.f32.mxu0 0.0
        %1361 = vmatmul.mubr.f32.gmra.mxu0 %v1264
        %v1362 = vpop.f32.mrf.mxu0
        %v1363 = vadd.f32 0.0, %v1362
        %v1364 = vpop.f32.mrf.mxu0
        %v1365 = vadd.f32 0.0, %v1364
        %1366 = vdwg.mxu0
        %1367 = vmatprep.subr.mxu0 0.0
        %1368 = vmatpush1.msra.mxu0 0.0
        %1369 = vmatprep.subr.mxu0 0.0
        %1370 = vmatpush1.msra.mxu0 0.0
        %1371 = vmatprep.subr.mxu0 0.0
        %1372 = vmatpush1.msra.mxu0 0.0
        %1373 = vmatprep.subr.mxu0 0.0
        %1374 = vmatpush1.msra.mxu0 0.0
        %1375 = vmatprep.subr.mxu0 0.0
        %1376 = vmatpush1.msra.mxu0 0.0
        %1377 = vmatprep.subr.mxu0 0.0
        %1378 = vmatpush1.msra.mxu0 0.0
        %1379 = vmatprep.subr.mxu0 0.0
        %1380 = vmatpush1.msra.mxu0 0.0
        %1381 = vmatprep.subr.mxu0 0.0
        %1382 = vmatpush1.msra.mxu0 0.0
        %1383 = vmatprep.subr.mxu0 0.0
        %1384 = vmatpush1.msra.mxu0 0.0
        %1385 = vmatprep.subr.mxu0 0.0
        %1386 = vmatpush1.msra.mxu0 0.0
        %1387 = vmatprep.subr.mxu0 0.0
        %1388 = vmatpush1.msra.mxu0 0.0
        %1389 = vmatprep.subr.mxu0 0.0
        %1390 = vmatpush1.msra.mxu0 0.0
        %1391 = vmatprep.subr.mxu0 %v1276
        %1392 = vmatpush1.msra.mxu0 %v1273
        %1393 = vmatprep.subr.mxu0 %v1249
        %1394 = vmatpush1.msra.mxu0 %v1248
        %1395 = vmatprep.subr.mxu0 %v1245
        %1396 = vmatpush1.msra.mxu0 %v1244
        %1397 = vmatprep.subr.mxu0 %v1241
        %1398 = vmatpush1.msra.mxu0 %v1240
        %1399 = vmatprep.subr.mxu0 0.0
        %1400 = vmatpush2.msra.mxu0 0.0
        %1401 = vmatprep.subr.mxu0 0.0
        %1402 = vmatpush2.msra.mxu0 0.0
        %1403 = vmatprep.subr.mxu0 0.0
        %1404 = vmatpush2.msra.mxu0 0.0
        %1405 = vmatprep.subr.mxu0 0.0
        %1406 = vmatpush2.msra.mxu0 0.0
        %1407 = vmatprep.subr.mxu0 0.0
        %1408 = vmatpush2.msra.mxu0 0.0
        %1409 = vmatprep.subr.mxu0 0.0
        %1410 = vmatpush2.msra.mxu0 0.0
        %1411 = vmatprep.subr.mxu0 0.0
        %1412 = vmatpush2.msra.mxu0 0.0
        %1413 = vmatprep.subr.mxu0 0.0
        %1414 = vmatpush2.msra.mxu0 0.0
        %1415 = vmatprep.subr.mxu0 0.0
        %1416 = vmatpush2.msra.mxu0 0.0
        %1417 = vmatprep.subr.mxu0 0.0
        %1418 = vmatpush2.msra.mxu0 0.0
        %1419 = vmatprep.subr.mxu0 0.0
        %1420 = vmatpush2.msra.mxu0 0.0
        %1421 = vmatprep.subr.mxu0 0.0
        %1422 = vmatpush2.msra.mxu0 0.0
        %1423 = vmatprep.subr.mxu0 0.0
        %1424 = vmatpush2.msra.mxu0 0.0
        %1425 = vmatprep.subr.mxu0 0.0
        %1426 = vmatpush2.msra.mxu0 0.0
        %1427 = vmatprep.subr.mxu0 0.0
        %1428 = vmatpush2.msra.mxu0 0.0
        %1429 = vmatprep.subr.mxu0 0.0
        %1430 = vmatpush2.msra.mxu0 0.0
        %1431 = vmatprep.mubr.f32.mxu0 0.0
        %1432 = vmatmul.mubr.f32.gmra.mxu0 %v1255
        %v1433 = vpop.f32.mrf.mxu0
        %v1434 = vadd.f32 0.0, %v1433
        %v1435 = vpop.f32.mrf.mxu0
        %v1436 = vadd.f32 0.0, %v1435
        %1437 = vmatprep.mubr.f32.mxu0 0.0
        %1438 = vmatmul.mubr.f32.gmra.mxu0 %v1258
        %v1439 = vpop.f32.mrf.mxu0
        %v1440 = vadd.f32 0.0, %v1439
        %v1441 = vpop.f32.mrf.mxu0
        %v1442 = vadd.f32 0.0, %v1441
        %1443 = vmatprep.mubr.f32.mxu0 0.0
        %1444 = vmatmul.mubr.f32.gmra.mxu0 %v1261
        %v1445 = vpop.f32.mrf.mxu0
        %v1446 = vadd.f32 0.0, %v1445
        %v1447 = vpop.f32.mrf.mxu0
        %v1448 = vadd.f32 0.0, %v1447
        %1449 = vmatprep.mubr.f32.mxu0 0.0
        %1450 = vmatmul.mubr.f32.gmra.mxu0 %v1264
        %v1451 = vpop.f32.mrf.mxu0
        %v1452 = vadd.f32 0.0, %v1451
        %v1453 = vpop.f32.mrf.mxu0
        %v1454 = vadd.f32 0.0, %v1453
        %1455 = vdwg.mxu0
        %v1456 = vadd.f32 %v1122, %v1345
        %v1457 = vadd.f32 %v1124, %v1347
        %v1458 = vadd.f32 %v1211, %v1434
        %v1459 = vadd.f32 %v1213, %v1436
        %v1460 = vadd.f32 %v1128, %v1351
        %v1461 = vadd.f32 %v1130, %v1353
        %v1462 = vadd.f32 %v1217, %v1440
        %v1463 = vadd.f32 %v1219, %v1442
        %v1464 = vadd.f32 %v1134, %v1357
        %v1465 = vadd.f32 %v1136, %v1359
        %v1466 = vadd.f32 %v1223, %v1446
        %v1467 = vadd.f32 %v1225, %v1448
        %v1468 = vadd.f32 %v1140, %v1363
        %v1469 = vadd.f32 %v1142, %v1365
        %v1470 = vadd.f32 %v1229, %v1452
        %v1471 = vadd.f32 %v1231, %v1454
        %v1472 = vld [vmem:[#allocation2 + $0x3] sm:$0xff]
        %v1473 = vld [vmem:[#allocation2 + $0xb] sm:$0xff]
        %v1474 = vld [vmem:[#allocation2 + $0x13] sm:$0xff]
        %v1475 = vld [vmem:[#allocation2 + $0x1b] sm:$0xf]
        %s1476 = scalar_lea.vmem [#allocation5], 384
        %v1477 = vld [vmem:[%s1476] sm:$0xff]
        %v1478 = vld [vmem:[%s1476 + $0x8] sm:$0xff]
        %v1479 = vld [vmem:[%s1476 + $0x10] sm:$0xff]
        %v1480 = vld [vmem:[%s1476 + $0x18] sm:$0xff]
        %v1481 = vld [vmem:[%s1476 + $0x20] sm:$0xff]
        %v1482 = vld [vmem:[%s1476 + $0x28] sm:$0xff]
        %v1483 = vld [vmem:[%s1476 + $0x30] sm:$0xff]
        %v1484 = vld [vmem:[%s1476 + $0x38] sm:$0xff]
        %v1485 = vld [vmem:[%s1476 + $0x40] sm:$0xff]
        %v1486 = vld [vmem:[%s1476 + $0x48] sm:$0xff]
        %v1487 = vld [vmem:[%s1476 + $0x50] sm:$0xff]
        %v1488 = vld [vmem:[%s1476 + $0x58] sm:$0xff]
        %v1489 = vld [vmem:[%s1476 + $0x60] sm:$0xf]
        %v1490 = vld [vmem:[%s1476 + $0x68] sm:$0xf]
        %v1491 = vld [vmem:[%s1476 + $0x70] sm:$0xf]
        %v1492 = vld [vmem:[%s1476 + $0x78] sm:$0xf]
        %v1494 = vsel %vm777, %v1472, 0
        %v1497 = vsel %vm777, %v1473, 0
        %v1500 = vsel %vm777, %v1474, 0
        %v1503 = vsel %vm777, %v1475, 0
        %v1506 = vsel %vm840, %v1489, 0
        %v1509 = vsel %vm840, %v1490, 0
        %v1512 = vsel %vm840, %v1491, 0
        %v1515 = vsel %vm840, %v1492, 0
        %1517 = vmatprep.subr.mxu0 0.0
        %1518 = vmatpush1.msra.mxu0 0.0
        %1519 = vmatprep.subr.mxu0 0.0
        %1520 = vmatpush1.msra.mxu0 0.0
        %1521 = vmatprep.subr.mxu0 0.0
        %1522 = vmatpush1.msra.mxu0 0.0
        %1523 = vmatprep.subr.mxu0 0.0
        %1524 = vmatpush1.msra.mxu0 0.0
        %1525 = vmatprep.subr.mxu0 0.0
        %1526 = vmatpush1.msra.mxu0 0.0
        %1527 = vmatprep.subr.mxu0 0.0
        %1528 = vmatpush1.msra.mxu0 0.0
        %1529 = vmatprep.subr.mxu0 0.0
        %1530 = vmatpush1.msra.mxu0 0.0
        %1531 = vmatprep.subr.mxu0 0.0
        %1532 = vmatpush1.msra.mxu0 0.0
        %1533 = vmatprep.subr.mxu0 0.0
        %1534 = vmatpush1.msra.mxu0 0.0
        %1535 = vmatprep.subr.mxu0 0.0
        %1536 = vmatpush1.msra.mxu0 0.0
        %1537 = vmatprep.subr.mxu0 0.0
        %1538 = vmatpush1.msra.mxu0 0.0
        %1539 = vmatprep.subr.mxu0 0.0
        %1540 = vmatpush1.msra.mxu0 0.0
        %1541 = vmatprep.subr.mxu0 %v1509
        %1542 = vmatpush1.msra.mxu0 %v1506
        %1543 = vmatprep.subr.mxu0 %v1486
        %1544 = vmatpush1.msra.mxu0 %v1485
        %1545 = vmatprep.subr.mxu0 %v1482
        %1546 = vmatpush1.msra.mxu0 %v1481
        %1547 = vmatprep.subr.mxu0 %v1478
        %1548 = vmatpush1.msra.mxu0 %v1477
        %1549 = vmatprep.subr.mxu0 0.0
        %1550 = vmatpush2.msra.mxu0 0.0
        %1551 = vmatprep.subr.mxu0 0.0
        %1552 = vmatpush2.msra.mxu0 0.0
        %1553 = vmatprep.subr.mxu0 0.0
        %1554 = vmatpush2.msra.mxu0 0.0
        %1555 = vmatprep.subr.mxu0 0.0
        %1556 = vmatpush2.msra.mxu0 0.0
        %1557 = vmatprep.subr.mxu0 0.0
        %1558 = vmatpush2.msra.mxu0 0.0
        %1559 = vmatprep.subr.mxu0 0.0
        %1560 = vmatpush2.msra.mxu0 0.0
        %1561 = vmatprep.subr.mxu0 0.0
        %1562 = vmatpush2.msra.mxu0 0.0
        %1563 = vmatprep.subr.mxu0 0.0
        %1564 = vmatpush2.msra.mxu0 0.0
        %1565 = vmatprep.subr.mxu0 0.0
        %1566 = vmatpush2.msra.mxu0 0.0
        %1567 = vmatprep.subr.mxu0 0.0
        %1568 = vmatpush2.msra.mxu0 0.0
        %1569 = vmatprep.subr.mxu0 0.0
        %1570 = vmatpush2.msra.mxu0 0.0
        %1571 = vmatprep.subr.mxu0 0.0
        %1572 = vmatpush2.msra.mxu0 0.0
        %1573 = vmatprep.subr.mxu0 0.0
        %1574 = vmatpush2.msra.mxu0 0.0
        %1575 = vmatprep.subr.mxu0 0.0
        %1576 = vmatpush2.msra.mxu0 0.0
        %1577 = vmatprep.subr.mxu0 0.0
        %1578 = vmatpush2.msra.mxu0 0.0
        %1579 = vmatprep.subr.mxu0 0.0
        %1580 = vmatpush2.msra.mxu0 0.0
        %1581 = vmatprep.mubr.f32.mxu0 0.0
        %1582 = vmatmul.mubr.f32.gmra.mxu0 %v1494
        %v1583 = vpop.f32.mrf.mxu0
        %v1584 = vadd.f32 0.0, %v1583
        %v1585 = vpop.f32.mrf.mxu0
        %v1586 = vadd.f32 0.0, %v1585
        %1587 = vmatprep.mubr.f32.mxu0 0.0
        %1588 = vmatmul.mubr.f32.gmra.mxu0 %v1497
        %v1589 = vpop.f32.mrf.mxu0
        %v1590 = vadd.f32 0.0, %v1589
        %v1591 = vpop.f32.mrf.mxu0
        %v1592 = vadd.f32 0.0, %v1591
        %1593 = vmatprep.mubr.f32.mxu0 0.0
        %1594 = vmatmul.mubr.f32.gmra.mxu0 %v1500
        %v1595 = vpop.f32.mrf.mxu0
        %v1596 = vadd.f32 0.0, %v1595
        %v1597 = vpop.f32.mrf.mxu0
        %v1598 = vadd.f32 0.0, %v1597
        %1599 = vmatprep.mubr.f32.mxu0 0.0
        %1600 = vmatmul.mubr.f32.gmra.mxu0 %v1503
        %v1601 = vpop.f32.mrf.mxu0
        %v1602 = vadd.f32 0.0, %v1601
        %v1603 = vpop.f32.mrf.mxu0
        %v1604 = vadd.f32 0.0, %v1603
        %1605 = vdwg.mxu0
        %1606 = vmatprep.subr.mxu0 0.0
        %1607 = vmatpush1.msra.mxu0 0.0
        %1608 = vmatprep.subr.mxu0 0.0
        %1609 = vmatpush1.msra.mxu0 0.0
        %1610 = vmatprep.subr.mxu0 0.0
        %1611 = vmatpush1.msra.mxu0 0.0
        %1612 = vmatprep.subr.mxu0 0.0
        %1613 = vmatpush1.msra.mxu0 0.0
        %1614 = vmatprep.subr.mxu0 0.0
        %1615 = vmatpush1.msra.mxu0 0.0
        %1616 = vmatprep.subr.mxu0 0.0
        %1617 = vmatpush1.msra.mxu0 0.0
        %1618 = vmatprep.subr.mxu0 0.0
        %1619 = vmatpush1.msra.mxu0 0.0
        %1620 = vmatprep.subr.mxu0 0.0
        %1621 = vmatpush1.msra.mxu0 0.0
        %1622 = vmatprep.subr.mxu0 0.0
        %1623 = vmatpush1.msra.mxu0 0.0
        %1624 = vmatprep.subr.mxu0 0.0
        %1625 = vmatpush1.msra.mxu0 0.0
        %1626 = vmatprep.subr.mxu0 0.0
        %1627 = vmatpush1.msra.mxu0 0.0
        %1628 = vmatprep.subr.mxu0 0.0
        %1629 = vmatpush1.msra.mxu0 0.0
        %1630 = vmatprep.subr.mxu0 %v1515
        %1631 = vmatpush1.msra.mxu0 %v1512
        %1632 = vmatprep.subr.mxu0 %v1488
        %1633 = vmatpush1.msra.mxu0 %v1487
        %1634 = vmatprep.subr.mxu0 %v1484
        %1635 = vmatpush1.msra.mxu0 %v1483
        %1636 = vmatprep.subr.mxu0 %v1480
        %1637 = vmatpush1.msra.mxu0 %v1479
        %1638 = vmatprep.subr.mxu0 0.0
        %1639 = vmatpush2.msra.mxu0 0.0
        %1640 = vmatprep.subr.mxu0 0.0
        %1641 = vmatpush2.msra.mxu0 0.0
        %1642 = vmatprep.subr.mxu0 0.0
        %1643 = vmatpush2.msra.mxu0 0.0
        %1644 = vmatprep.subr.mxu0 0.0
        %1645 = vmatpush2.msra.mxu0 0.0
        %1646 = vmatprep.subr.mxu0 0.0
        %1647 = vmatpush2.msra.mxu0 0.0
        %1648 = vmatprep.subr.mxu0 0.0
        %1649 = vmatpush2.msra.mxu0 0.0
        %1650 = vmatprep.subr.mxu0 0.0
        %1651 = vmatpush2.msra.mxu0 0.0
        %1652 = vmatprep.subr.mxu0 0.0
        %1653 = vmatpush2.msra.mxu0 0.0
        %1654 = vmatprep.subr.mxu0 0.0
        %1655 = vmatpush2.msra.mxu0 0.0
        %1656 = vmatprep.subr.mxu0 0.0
        %1657 = vmatpush2.msra.mxu0 0.0
        %1658 = vmatprep.subr.mxu0 0.0
        %1659 = vmatpush2.msra.mxu0 0.0
        %1660 = vmatprep.subr.mxu0 0.0
        %1661 = vmatpush2.msra.mxu0 0.0
        %1662 = vmatprep.subr.mxu0 0.0
        %1663 = vmatpush2.msra.mxu0 0.0
        %1664 = vmatprep.subr.mxu0 0.0
        %1665 = vmatpush2.msra.mxu0 0.0
        %1666 = vmatprep.subr.mxu0 0.0
        %1667 = vmatpush2.msra.mxu0 0.0
        %1668 = vmatprep.subr.mxu0 0.0
        %1669 = vmatpush2.msra.mxu0 0.0
        %1670 = vmatprep.mubr.f32.mxu0 0.0
        %1671 = vmatmul.mubr.f32.gmra.mxu0 %v1494
        %v1672 = vpop.f32.mrf.mxu0
        %v1673 = vadd.f32 0.0, %v1672
        %v1674 = vpop.f32.mrf.mxu0
        %v1675 = vadd.f32 0.0, %v1674
        %1676 = vmatprep.mubr.f32.mxu0 0.0
        %1677 = vmatmul.mubr.f32.gmra.mxu0 %v1497
        %v1678 = vpop.f32.mrf.mxu0
        %v1679 = vadd.f32 0.0, %v1678
        %v1680 = vpop.f32.mrf.mxu0
        %v1681 = vadd.f32 0.0, %v1680
        %1682 = vmatprep.mubr.f32.mxu0 0.0
        %1683 = vmatmul.mubr.f32.gmra.mxu0 %v1500
        %v1684 = vpop.f32.mrf.mxu0
        %v1685 = vadd.f32 0.0, %v1684
        %v1686 = vpop.f32.mrf.mxu0
        %v1687 = vadd.f32 0.0, %v1686
        %1688 = vmatprep.mubr.f32.mxu0 0.0
        %1689 = vmatmul.mubr.f32.gmra.mxu0 %v1503
        %v1690 = vpop.f32.mrf.mxu0
        %v1691 = vadd.f32 0.0, %v1690
        %v1692 = vpop.f32.mrf.mxu0
        %v1693 = vadd.f32 0.0, %v1692
        %1694 = vdwg.mxu0
        %v1695 = vadd.f32 %v1456, %v1584
        %v1696 = vadd.f32 %v1457, %v1586
        %v1697 = vadd.f32 %v1458, %v1673
        %v1698 = vadd.f32 %v1459, %v1675
        %v1699 = vadd.f32 %v1460, %v1590
        %v1700 = vadd.f32 %v1461, %v1592
        %v1701 = vadd.f32 %v1462, %v1679
        %v1702 = vadd.f32 %v1463, %v1681
        %v1703 = vadd.f32 %v1464, %v1596
        %v1704 = vadd.f32 %v1465, %v1598
        %v1705 = vadd.f32 %v1466, %v1685
        %v1706 = vadd.f32 %v1467, %v1687
        %v1707 = vadd.f32 %v1468, %v1602
        %v1708 = vadd.f32 %v1469, %v1604
        %v1709 = vadd.f32 %v1470, %v1691
        %v1710 = vadd.f32 %v1471, %v1693
        %v1711 = vld [vmem:[#allocation2 + $0x4] sm:$0xff]
        %v1712 = vld [vmem:[#allocation2 + $0xc] sm:$0xff]
        %v1713 = vld [vmem:[#allocation2 + $0x14] sm:$0xff]
        %v1714 = vld [vmem:[#allocation2 + $0x1c] sm:$0xf]
        %s1715 = scalar_lea.vmem [#allocation5], 512
        %v1716 = vld [vmem:[%s1715] sm:$0xff]
        %v1717 = vld [vmem:[%s1715 + $0x8] sm:$0xff]
        %v1718 = vld [vmem:[%s1715 + $0x10] sm:$0xff]
        %v1719 = vld [vmem:[%s1715 + $0x18] sm:$0xff]
        %v1720 = vld [vmem:[%s1715 + $0x20] sm:$0xff]
        %v1721 = vld [vmem:[%s1715 + $0x28] sm:$0xff]
        %v1722 = vld [vmem:[%s1715 + $0x30] sm:$0xff]
        %v1723 = vld [vmem:[%s1715 + $0x38] sm:$0xff]
        %v1724 = vld [vmem:[%s1715 + $0x40] sm:$0xff]
        %v1725 = vld [vmem:[%s1715 + $0x48] sm:$0xff]
        %v1726 = vld [vmem:[%s1715 + $0x50] sm:$0xff]
        %v1727 = vld [vmem:[%s1715 + $0x58] sm:$0xff]
        %v1728 = vld [vmem:[%s1715 + $0x60] sm:$0xf]
        %v1729 = vld [vmem:[%s1715 + $0x68] sm:$0xf]
        %v1730 = vld [vmem:[%s1715 + $0x70] sm:$0xf]
        %v1731 = vld [vmem:[%s1715 + $0x78] sm:$0xf]
        %v1733 = vsel %vm777, %v1711, 0
        %v1736 = vsel %vm777, %v1712, 0
        %v1739 = vsel %vm777, %v1713, 0
        %v1742 = vsel %vm777, %v1714, 0
        %v1745 = vsel %vm840, %v1728, 0
        %v1748 = vsel %vm840, %v1729, 0
        %v1751 = vsel %vm840, %v1730, 0
        %v1754 = vsel %vm840, %v1731, 0
        %1756 = vmatprep.subr.mxu0 0.0
        %1757 = vmatpush1.msra.mxu0 0.0
        %1758 = vmatprep.subr.mxu0 0.0
        %1759 = vmatpush1.msra.mxu0 0.0
        %1760 = vmatprep.subr.mxu0 0.0
        %1761 = vmatpush1.msra.mxu0 0.0
        %1762 = vmatprep.subr.mxu0 0.0
        %1763 = vmatpush1.msra.mxu0 0.0
        %1764 = vmatprep.subr.mxu0 0.0
        %1765 = vmatpush1.msra.mxu0 0.0
        %1766 = vmatprep.subr.mxu0 0.0
        %1767 = vmatpush1.msra.mxu0 0.0
        %1768 = vmatprep.subr.mxu0 0.0
        %1769 = vmatpush1.msra.mxu0 0.0
        %1770 = vmatprep.subr.mxu0 0.0
        %1771 = vmatpush1.msra.mxu0 0.0
        %1772 = vmatprep.subr.mxu0 0.0
        %1773 = vmatpush1.msra.mxu0 0.0
        %1774 = vmatprep.subr.mxu0 0.0
        %1775 = vmatpush1.msra.mxu0 0.0
        %1776 = vmatprep.subr.mxu0 0.0
        %1777 = vmatpush1.msra.mxu0 0.0
        %1778 = vmatprep.subr.mxu0 0.0
        %1779 = vmatpush1.msra.mxu0 0.0
        %1780 = vmatprep.subr.mxu0 %v1748
        %1781 = vmatpush1.msra.mxu0 %v1745
        %1782 = vmatprep.subr.mxu0 %v1725
        %1783 = vmatpush1.msra.mxu0 %v1724
        %1784 = vmatprep.subr.mxu0 %v1721
        %1785 = vmatpush1.msra.mxu0 %v1720
        %1786 = vmatprep.subr.mxu0 %v1717
        %1787 = vmatpush1.msra.mxu0 %v1716
        %1788 = vmatprep.subr.mxu0 0.0
        %1789 = vmatpush2.msra.mxu0 0.0
        %1790 = vmatprep.subr.mxu0 0.0
        %1791 = vmatpush2.msra.mxu0 0.0
        %1792 = vmatprep.subr.mxu0 0.0
        %1793 = vmatpush2.msra.mxu0 0.0
        %1794 = vmatprep.subr.mxu0 0.0
        %1795 = vmatpush2.msra.mxu0 0.0
        %1796 = vmatprep.subr.mxu0 0.0
        %1797 = vmatpush2.msra.mxu0 0.0
        %1798 = vmatprep.subr.mxu0 0.0
        %1799 = vmatpush2.msra.mxu0 0.0
        %1800 = vmatprep.subr.mxu0 0.0
        %1801 = vmatpush2.msra.mxu0 0.0
        %1802 = vmatprep.subr.mxu0 0.0
        %1803 = vmatpush2.msra.mxu0 0.0
        %1804 = vmatprep.subr.mxu0 0.0
        %1805 = vmatpush2.msra.mxu0 0.0
        %1806 = vmatprep.subr.mxu0 0.0
        %1807 = vmatpush2.msra.mxu0 0.0
        %1808 = vmatprep.subr.mxu0 0.0
        %1809 = vmatpush2.msra.mxu0 0.0
        %1810 = vmatprep.subr.mxu0 0.0
        %1811 = vmatpush2.msra.mxu0 0.0
        %1812 = vmatprep.subr.mxu0 0.0
        %1813 = vmatpush2.msra.mxu0 0.0
        %1814 = vmatprep.subr.mxu0 0.0
        %1815 = vmatpush2.msra.mxu0 0.0
        %1816 = vmatprep.subr.mxu0 0.0
        %1817 = vmatpush2.msra.mxu0 0.0
        %1818 = vmatprep.subr.mxu0 0.0
        %1819 = vmatpush2.msra.mxu0 0.0
        %1820 = vmatprep.mubr.f32.mxu0 0.0
        %1821 = vmatmul.mubr.f32.gmra.mxu0 %v1733
        %v1822 = vpop.f32.mrf.mxu0
        %v1823 = vadd.f32 0.0, %v1822
        %v1824 = vpop.f32.mrf.mxu0
        %v1825 = vadd.f32 0.0, %v1824
        %1826 = vmatprep.mubr.f32.mxu0 0.0
        %1827 = vmatmul.mubr.f32.gmra.mxu0 %v1736
        %v1828 = vpop.f32.mrf.mxu0
        %v1829 = vadd.f32 0.0, %v1828
        %v1830 = vpop.f32.mrf.mxu0
        %v1831 = vadd.f32 0.0, %v1830
        %1832 = vmatprep.mubr.f32.mxu0 0.0
        %1833 = vmatmul.mubr.f32.gmra.mxu0 %v1739
        %v1834 = vpop.f32.mrf.mxu0
        %v1835 = vadd.f32 0.0, %v1834
        %v1836 = vpop.f32.mrf.mxu0
        %v1837 = vadd.f32 0.0, %v1836
        %1838 = vmatprep.mubr.f32.mxu0 0.0
        %1839 = vmatmul.mubr.f32.gmra.mxu0 %v1742
        %v1840 = vpop.f32.mrf.mxu0
        %v1841 = vadd.f32 0.0, %v1840
        %v1842 = vpop.f32.mrf.mxu0
        %v1843 = vadd.f32 0.0, %v1842
        %1844 = vdwg.mxu0
        %1845 = vmatprep.subr.mxu0 0.0
        %1846 = vmatpush1.msra.mxu0 0.0
        %1847 = vmatprep.subr.mxu0 0.0
        %1848 = vmatpush1.msra.mxu0 0.0
        %1849 = vmatprep.subr.mxu0 0.0
        %1850 = vmatpush1.msra.mxu0 0.0
        %1851 = vmatprep.subr.mxu0 0.0
        %1852 = vmatpush1.msra.mxu0 0.0
        %1853 = vmatprep.subr.mxu0 0.0
        %1854 = vmatpush1.msra.mxu0 0.0
        %1855 = vmatprep.subr.mxu0 0.0
        %1856 = vmatpush1.msra.mxu0 0.0
        %1857 = vmatprep.subr.mxu0 0.0
        %1858 = vmatpush1.msra.mxu0 0.0
        %1859 = vmatprep.subr.mxu0 0.0
        %1860 = vmatpush1.msra.mxu0 0.0
        %1861 = vmatprep.subr.mxu0 0.0
        %1862 = vmatpush1.msra.mxu0 0.0
        %1863 = vmatprep.subr.mxu0 0.0
        %1864 = vmatpush1.msra.mxu0 0.0
        %1865 = vmatprep.subr.mxu0 0.0
        %1866 = vmatpush1.msra.mxu0 0.0
        %1867 = vmatprep.subr.mxu0 0.0
        %1868 = vmatpush1.msra.mxu0 0.0
        %1869 = vmatprep.subr.mxu0 %v1754
        %1870 = vmatpush1.msra.mxu0 %v1751
        %1871 = vmatprep.subr.mxu0 %v1727
        %1872 = vmatpush1.msra.mxu0 %v1726
        %1873 = vmatprep.subr.mxu0 %v1723
        %1874 = vmatpush1.msra.mxu0 %v1722
        %1875 = vmatprep.subr.mxu0 %v1719
        %1876 = vmatpush1.msra.mxu0 %v1718
        %1877 = vmatprep.subr.mxu0 0.0
        %1878 = vmatpush2.msra.mxu0 0.0
        %1879 = vmatprep.subr.mxu0 0.0
        %1880 = vmatpush2.msra.mxu0 0.0
        %1881 = vmatprep.subr.mxu0 0.0
        %1882 = vmatpush2.msra.mxu0 0.0
        %1883 = vmatprep.subr.mxu0 0.0
        %1884 = vmatpush2.msra.mxu0 0.0
        %1885 = vmatprep.subr.mxu0 0.0
        %1886 = vmatpush2.msra.mxu0 0.0
        %1887 = vmatprep.subr.mxu0 0.0
        %1888 = vmatpush2.msra.mxu0 0.0
        %1889 = vmatprep.subr.mxu0 0.0
        %1890 = vmatpush2.msra.mxu0 0.0
        %1891 = vmatprep.subr.mxu0 0.0
        %1892 = vmatpush2.msra.mxu0 0.0
        %1893 = vmatprep.subr.mxu0 0.0
        %1894 = vmatpush2.msra.mxu0 0.0
        %1895 = vmatprep.subr.mxu0 0.0
        %1896 = vmatpush2.msra.mxu0 0.0
        %1897 = vmatprep.subr.mxu0 0.0
        %1898 = vmatpush2.msra.mxu0 0.0
        %1899 = vmatprep.subr.mxu0 0.0
        %1900 = vmatpush2.msra.mxu0 0.0
        %1901 = vmatprep.subr.mxu0 0.0
        %1902 = vmatpush2.msra.mxu0 0.0
        %1903 = vmatprep.subr.mxu0 0.0
        %1904 = vmatpush2.msra.mxu0 0.0
        %1905 = vmatprep.subr.mxu0 0.0
        %1906 = vmatpush2.msra.mxu0 0.0
        %1907 = vmatprep.subr.mxu0 0.0
        %1908 = vmatpush2.msra.mxu0 0.0
        %1909 = vmatprep.mubr.f32.mxu0 0.0
        %1910 = vmatmul.mubr.f32.gmra.mxu0 %v1733
        %v1911 = vpop.f32.mrf.mxu0
        %v1912 = vadd.f32 0.0, %v1911
        %v1913 = vpop.f32.mrf.mxu0
        %v1914 = vadd.f32 0.0, %v1913
        %1915 = vmatprep.mubr.f32.mxu0 0.0
        %1916 = vmatmul.mubr.f32.gmra.mxu0 %v1736
        %v1917 = vpop.f32.mrf.mxu0
        %v1918 = vadd.f32 0.0, %v1917
        %v1919 = vpop.f32.mrf.mxu0
        %v1920 = vadd.f32 0.0, %v1919
        %1921 = vmatprep.mubr.f32.mxu0 0.0
        %1922 = vmatmul.mubr.f32.gmra.mxu0 %v1739
        %v1923 = vpop.f32.mrf.mxu0
        %v1924 = vadd.f32 0.0, %v1923
        %v1925 = vpop.f32.mrf.mxu0
        %v1926 = vadd.f32 0.0, %v1925
        %1927 = vmatprep.mubr.f32.mxu0 0.0
        %1928 = vmatmul.mubr.f32.gmra.mxu0 %v1742
        %v1929 = vpop.f32.mrf.mxu0
        %v1930 = vadd.f32 0.0, %v1929
        %v1931 = vpop.f32.mrf.mxu0
        %v1932 = vadd.f32 0.0, %v1931
        %1933 = vdwg.mxu0
        %v1934 = vadd.f32 %v1695, %v1823
        %v1935 = vadd.f32 %v1696, %v1825
        %v1936 = vadd.f32 %v1697, %v1912
        %v1937 = vadd.f32 %v1698, %v1914
        %v1938 = vadd.f32 %v1699, %v1829
        %v1939 = vadd.f32 %v1700, %v1831
        %v1940 = vadd.f32 %v1701, %v1918
        %v1941 = vadd.f32 %v1702, %v1920
        %v1942 = vadd.f32 %v1703, %v1835
        %v1943 = vadd.f32 %v1704, %v1837
        %v1944 = vadd.f32 %v1705, %v1924
        %v1945 = vadd.f32 %v1706, %v1926
        %v1946 = vadd.f32 %v1707, %v1841
        %v1947 = vadd.f32 %v1708, %v1843
        %v1948 = vadd.f32 %v1709, %v1930
        %v1949 = vadd.f32 %v1710, %v1932
        %v1950 = vld [vmem:[#allocation8] sm:$0xf]
        %v1952 = vlaneseq
        %v1953 = vshrl.u32 %v1952, 7
        %v1954 = vsub.s32 0, %v1953
        %v1955 = vrot.slane %v1950, %v1954
        %v1956 = vlaneseq
        %v1957 = vshrl.u32 %v1956, 7
        %v1958 = vsub.s32 1, %v1957
        %v1959 = vrot.slane %v1950, %v1958
        %v1960 = vlaneseq
        %v1961 = vshrl.u32 %v1960, 7
        %v1962 = vsub.s32 2, %v1961
        %v1963 = vrot.slane %v1950, %v1962
        %v1964 = vlaneseq
        %v1965 = vshrl.u32 %v1964, 7
        %v1966 = vsub.s32 3, %v1965
        %v1967 = vrot.slane %v1950, %v1966
        %v1972 = vmul.f32 %v1934, %v1955
        %v1973 = vmul.f32 %v1935, %v1959
        %v1974 = vmul.f32 %v1936, %v1963
        %v1975 = vmul.f32 %v1937, %v1967
        %v1976 = vmul.f32 %v1938, %v1955
        %v1977 = vmul.f32 %v1939, %v1959
        %v1978 = vmul.f32 %v1940, %v1963
        %v1979 = vmul.f32 %v1941, %v1967
        %v1980 = vmul.f32 %v1942, %v1955
        %v1981 = vmul.f32 %v1943, %v1959
        %v1982 = vmul.f32 %v1944, %v1963
        %v1983 = vmul.f32 %v1945, %v1967
        %v1984 = vmul.f32 %v1946, %v1955
        %v1985 = vmul.f32 %v1947, %v1959
        %v1986 = vmul.f32 %v1948, %v1963
        %v1987 = vmul.f32 %v1949, %v1967
        %v1988 = vld [vmem:[#allocation10] sm:$0xf]
        %v1990 = vlaneseq
        %v1991 = vshrl.u32 %v1990, 7
        %v1992 = vsub.s32 0, %v1991
        %v1993 = vrot.slane %v1988, %v1992
        %v1994 = vlaneseq
        %v1995 = vshrl.u32 %v1994, 7
        %v1996 = vsub.s32 1, %v1995
        %v1997 = vrot.slane %v1988, %v1996
        %v1998 = vlaneseq
        %v1999 = vshrl.u32 %v1998, 7
        %v2000 = vsub.s32 2, %v1999
        %v2001 = vrot.slane %v1988, %v2000
        %v2002 = vlaneseq
        %v2003 = vshrl.u32 %v2002, 7
        %v2004 = vsub.s32 3, %v2003
        %v2005 = vrot.slane %v1988, %v2004
        %v2010 = vadd.f32 %v1972, %v1993
        %v2011 = vadd.f32 %v1973, %v1997
        %v2012 = vadd.f32 %v1974, %v2001
        %v2013 = vadd.f32 %v1975, %v2005
        %v2014 = vadd.f32 %v1976, %v1993
        %v2015 = vadd.f32 %v1977, %v1997
        %v2016 = vadd.f32 %v1978, %v2001
        %v2017 = vadd.f32 %v1979, %v2005
        %v2018 = vadd.f32 %v1980, %v1993
        %v2019 = vadd.f32 %v1981, %v1997
        %v2020 = vadd.f32 %v1982, %v2001
        %v2021 = vadd.f32 %v1983, %v2005
        %v2022 = vadd.f32 %v1984, %v1993
        %v2023 = vadd.f32 %v1985, %v1997
        %v2024 = vadd.f32 %v1986, %v2001
        %v2025 = vadd.f32 %v1987, %v2005
        %v2026 = vmax.f32 %v2010, 0.0
        %v2027 = vmax.f32 %v2011, 0.0
        %v2028 = vmax.f32 %v2012, 0.0
        %v2029 = vmax.f32 %v2013, 0.0
        %v2030 = vmax.f32 %v2014, 0.0
        %v2031 = vmax.f32 %v2015, 0.0
        %v2032 = vmax.f32 %v2016, 0.0
        %v2033 = vmax.f32 %v2017, 0.0
        %v2034 = vmax.f32 %v2018, 0.0
        %v2035 = vmax.f32 %v2019, 0.0
        %v2036 = vmax.f32 %v2020, 0.0
        %v2037 = vmax.f32 %v2021, 0.0
        %v2038 = vmax.f32 %v2022, 0.0
        %v2039 = vmax.f32 %v2023, 0.0
        %v2040 = vmax.f32 %v2024, 0.0
        %v2041 = vmax.f32 %v2025, 0.0
        %vm2058 = vcmask 1046528
        %v2059 = vrot.slane %v2026, 1
        %v2060 = vrot.slane %v2030, 1
        %v2061 = vsel %vm2058, %v2059, %v2060
        %v2062 = vrot.slane %v2027, 1
        %v2063 = vrot.slane %v2031, 1
        %v2064 = vsel %vm2058, %v2062, %v2063
        %v2065 = vrot.slane %v2028, 1
        %v2066 = vrot.slane %v2032, 1
        %v2067 = vsel %vm2058, %v2065, %v2066
        %v2068 = vrot.slane %v2029, 1
        %v2069 = vrot.slane %v2033, 1
        %v2070 = vsel %vm2058, %v2068, %v2069
        %v2071 = vrot.slane %v2034, 1
        %v2072 = vsel %vm2058, %v2060, %v2071
        %v2073 = vrot.slane %v2035, 1
        %v2074 = vsel %vm2058, %v2063, %v2073
        %v2075 = vrot.slane %v2036, 1
        %v2076 = vsel %vm2058, %v2066, %v2075
        %v2077 = vrot.slane %v2037, 1
        %v2078 = vsel %vm2058, %v2069, %v2077
        %v2079 = vrot.slane %v2038, 1
        %v2080 = vsel %vm2058, %v2071, %v2079
        %v2081 = vrot.slane %v2039, 1
        %v2082 = vsel %vm2058, %v2073, %v2081
        %v2083 = vrot.slane %v2040, 1
        %v2084 = vsel %vm2058, %v2075, %v2083
        %v2085 = vrot.slane %v2041, 1
        %v2086 = vsel %vm2058, %v2077, %v2085
        %v2103 = vmax.f32 %v2026, %v2061
        %v2104 = vmax.f32 %v2027, %v2064
        %v2105 = vmax.f32 %v2028, %v2067
        %v2106 = vmax.f32 %v2029, %v2070
        %v2107 = vmax.f32 %v2030, %v2072
        %v2108 = vmax.f32 %v2031, %v2074
        %v2109 = vmax.f32 %v2032, %v2076
        %v2110 = vmax.f32 %v2033, %v2078
        %v2111 = vmax.f32 %v2034, %v2080
        %v2112 = vmax.f32 %v2035, %v2082
        %v2113 = vmax.f32 %v2036, %v2084
        %v2114 = vmax.f32 %v2037, %v2086
        %v2115 = vmax.f32 %v2038, %v2079
        %v2116 = vmax.f32 %v2039, %v2081
        %v2117 = vmax.f32 %v2040, %v2083
        %v2118 = vmax.f32 %v2041, %v2085
        %v2119 = vld [vmem:[#allocation11] sm:$0xff]
        %v2120 = vld [vmem:[#allocation11 + $0x8] sm:$0x3f]
        %vm2121 = vcmask 220160
        %v2123 = vsel %vm2121, %v2119, 0
        %v2126 = vsel %vm2121, %v2120, 0
        %vm2128 = vcmask 1042432
        %v2130 = vsel %vm2128, %v2115, 0
        %v2133 = vsel %vm2128, %v2116, 0
        %v2136 = vsel %vm2128, %v2117, 0
        %v2139 = vsel %vm2128, %v2118, 0
        %2141 = vmatprep.subr.mxu0 0.0
        %2142 = vmatpush1.msra.mxu0 0.0
        %2143 = vmatprep.subr.mxu0 0.0
        %2144 = vmatpush1.msra.mxu0 0.0
        %2145 = vmatprep.subr.mxu0 0.0
        %2146 = vmatpush1.msra.mxu0 0.0
        %2147 = vmatprep.subr.mxu0 0.0
        %2148 = vmatpush1.msra.mxu0 0.0
        %2149 = vmatprep.subr.mxu0 0.0
        %2150 = vmatpush1.msra.mxu0 0.0
        %2151 = vmatprep.subr.mxu0 0.0
        %2152 = vmatpush1.msra.mxu0 0.0
        %2153 = vmatprep.subr.mxu0 0.0
        %2154 = vmatpush1.msra.mxu0 0.0
        %2155 = vmatprep.subr.mxu0 0.0
        %2156 = vmatpush1.msra.mxu0 0.0
        %2157 = vmatprep.subr.mxu0 0.0
        %2158 = vmatpush1.msra.mxu0 0.0
        %2159 = vmatprep.subr.mxu0 0.0
        %2160 = vmatpush1.msra.mxu0 0.0
        %2161 = vmatprep.subr.mxu0 0.0
        %2162 = vmatpush1.msra.mxu0 0.0
        %2163 = vmatprep.subr.mxu0 0.0
        %2164 = vmatpush1.msra.mxu0 0.0
        %2165 = vmatprep.subr.mxu0 %v2133
        %2166 = vmatpush1.msra.mxu0 %v2130
        %2167 = vmatprep.subr.mxu0 %v2112
        %2168 = vmatpush1.msra.mxu0 %v2111
        %2169 = vmatprep.subr.mxu0 %v2108
        %2170 = vmatpush1.msra.mxu0 %v2107
        %2171 = vmatprep.subr.mxu0 %v2104
        %2172 = vmatpush1.msra.mxu0 %v2103
        %2173 = vmatprep.subr.mxu0 0.0
        %2174 = vmatpush2.msra.mxu0 0.0
        %2175 = vmatprep.subr.mxu0 0.0
        %2176 = vmatpush2.msra.mxu0 0.0
        %2177 = vmatprep.subr.mxu0 0.0
        %2178 = vmatpush2.msra.mxu0 0.0
        %2179 = vmatprep.subr.mxu0 0.0
        %2180 = vmatpush2.msra.mxu0 0.0
        %2181 = vmatprep.subr.mxu0 0.0
        %2182 = vmatpush2.msra.mxu0 0.0
        %2183 = vmatprep.subr.mxu0 0.0
        %2184 = vmatpush2.msra.mxu0 0.0
        %2185 = vmatprep.subr.mxu0 0.0
        %2186 = vmatpush2.msra.mxu0 0.0
        %2187 = vmatprep.subr.mxu0 0.0
        %2188 = vmatpush2.msra.mxu0 0.0
        %2189 = vmatprep.subr.mxu0 0.0
        %2190 = vmatpush2.msra.mxu0 0.0
        %2191 = vmatprep.subr.mxu0 0.0
        %2192 = vmatpush2.msra.mxu0 0.0
        %2193 = vmatprep.subr.mxu0 0.0
        %2194 = vmatpush2.msra.mxu0 0.0
        %2195 = vmatprep.subr.mxu0 0.0
        %2196 = vmatpush2.msra.mxu0 0.0
        %2197 = vmatprep.subr.mxu0 0.0
        %2198 = vmatpush2.msra.mxu0 0.0
        %2199 = vmatprep.subr.mxu0 0.0
        %2200 = vmatpush2.msra.mxu0 0.0
        %2201 = vmatprep.subr.mxu0 0.0
        %2202 = vmatpush2.msra.mxu0 0.0
        %2203 = vmatprep.subr.mxu0 0.0
        %2204 = vmatpush2.msra.mxu0 0.0
        %2205 = vmatprep.mubr.f32.mxu0 0.0
        %2206 = vmatmul.mubr.f32.gmra.mxu0 %v2123
        %v2207 = vpop.f32.mrf.mxu0
        %v2208 = vadd.f32 0.0, %v2207
        %v2209 = vpop.f32.mrf.mxu0
        %v2210 = vadd.f32 0.0, %v2209
        %2211 = vmatprep.mubr.f32.mxu0 0.0
        %2212 = vmatmul.mubr.f32.gmra.mxu0 %v2126
        %v2213 = vpop.f32.mrf.mxu0
        %v2214 = vadd.f32 0.0, %v2213
        %v2215 = vpop.f32.mrf.mxu0
        %v2216 = vadd.f32 0.0, %v2215
        %2217 = vdwg.mxu0
        %2218 = vmatprep.subr.mxu0 0.0
        %2219 = vmatpush1.msra.mxu0 0.0
        %2220 = vmatprep.subr.mxu0 0.0
        %2221 = vmatpush1.msra.mxu0 0.0
        %2222 = vmatprep.subr.mxu0 0.0
        %2223 = vmatpush1.msra.mxu0 0.0
        %2224 = vmatprep.subr.mxu0 0.0
        %2225 = vmatpush1.msra.mxu0 0.0
        %2226 = vmatprep.subr.mxu0 0.0
        %2227 = vmatpush1.msra.mxu0 0.0
        %2228 = vmatprep.subr.mxu0 0.0
        %2229 = vmatpush1.msra.mxu0 0.0
        %2230 = vmatprep.subr.mxu0 0.0
        %2231 = vmatpush1.msra.mxu0 0.0
        %2232 = vmatprep.subr.mxu0 0.0
        %2233 = vmatpush1.msra.mxu0 0.0
        %2234 = vmatprep.subr.mxu0 0.0
        %2235 = vmatpush1.msra.mxu0 0.0
        %2236 = vmatprep.subr.mxu0 0.0
        %2237 = vmatpush1.msra.mxu0 0.0
        %2238 = vmatprep.subr.mxu0 0.0
        %2239 = vmatpush1.msra.mxu0 0.0
        %2240 = vmatprep.subr.mxu0 0.0
        %2241 = vmatpush1.msra.mxu0 0.0
        %2242 = vmatprep.subr.mxu0 %v2139
        %2243 = vmatpush1.msra.mxu0 %v2136
        %2244 = vmatprep.subr.mxu0 %v2114
        %2245 = vmatpush1.msra.mxu0 %v2113
        %2246 = vmatprep.subr.mxu0 %v2110
        %2247 = vmatpush1.msra.mxu0 %v2109
        %2248 = vmatprep.subr.mxu0 %v2106
        %2249 = vmatpush1.msra.mxu0 %v2105
        %2250 = vmatprep.subr.mxu0 0.0
        %2251 = vmatpush2.msra.mxu0 0.0
        %2252 = vmatprep.subr.mxu0 0.0
        %2253 = vmatpush2.msra.mxu0 0.0
        %2254 = vmatprep.subr.mxu0 0.0
        %2255 = vmatpush2.msra.mxu0 0.0
        %2256 = vmatprep.subr.mxu0 0.0
        %2257 = vmatpush2.msra.mxu0 0.0
        %2258 = vmatprep.subr.mxu0 0.0
        %2259 = vmatpush2.msra.mxu0 0.0
        %2260 = vmatprep.subr.mxu0 0.0
        %2261 = vmatpush2.msra.mxu0 0.0
        %2262 = vmatprep.subr.mxu0 0.0
        %2263 = vmatpush2.msra.mxu0 0.0
        %2264 = vmatprep.subr.mxu0 0.0
        %2265 = vmatpush2.msra.mxu0 0.0
        %2266 = vmatprep.subr.mxu0 0.0
        %2267 = vmatpush2.msra.mxu0 0.0
        %2268 = vmatprep.subr.mxu0 0.0
        %2269 = vmatpush2.msra.mxu0 0.0
        %2270 = vmatprep.subr.mxu0 0.0
        %2271 = vmatpush2.msra.mxu0 0.0
        %2272 = vmatprep.subr.mxu0 0.0
        %2273 = vmatpush2.msra.mxu0 0.0
        %2274 = vmatprep.subr.mxu0 0.0
        %2275 = vmatpush2.msra.mxu0 0.0
        %2276 = vmatprep.subr.mxu0 0.0
        %2277 = vmatpush2.msra.mxu0 0.0
        %2278 = vmatprep.subr.mxu0 0.0
        %2279 = vmatpush2.msra.mxu0 0.0
        %2280 = vmatprep.subr.mxu0 0.0
        %2281 = vmatpush2.msra.mxu0 0.0
        %2282 = vmatprep.mubr.f32.mxu0 0.0
        %2283 = vmatmul.mubr.f32.gmra.mxu0 %v2123
        %v2284 = vpop.f32.mrf.mxu0
        %v2285 = vadd.f32 0.0, %v2284
        %v2286 = vpop.f32.mrf.mxu0
        %v2287 = vadd.f32 0.0, %v2286
        %2288 = vmatprep.mubr.f32.mxu0 0.0
        %2289 = vmatmul.mubr.f32.gmra.mxu0 %v2126
        %v2290 = vpop.f32.mrf.mxu0
        %v2291 = vadd.f32 0.0, %v2290
        %v2292 = vpop.f32.mrf.mxu0
        %v2293 = vadd.f32 0.0, %v2292
        %2294 = vdwg.mxu0
        %2303 = vrot.lane.b32.xlu0 %v2208, 112
        %v2304 = vpop.permute.xlu0 %2303
        %2305 = vrot.lane.b32.xlu0 %v2210, 112
        %v2306 = vpop.permute.xlu0 %2305
        %2307 = vrot.lane.b32.xlu0 %v2285, 112
        %v2308 = vpop.permute.xlu0 %2307
        %2309 = vrot.lane.b32.xlu0 %v2287, 112
        %v2310 = vpop.permute.xlu0 %2309
        %2311 = vrot.lane.b32.xlu0 %v2214, 112
        %v2312 = vpop.permute.xlu0 %2311
        %2313 = vrot.lane.b32.xlu0 %v2216, 112
        %v2314 = vpop.permute.xlu0 %2313
        %2315 = vrot.lane.b32.xlu0 %v2291, 112
        %v2316 = vpop.permute.xlu0 %2315
        %2317 = vrot.lane.b32.xlu0 %v2293, 112
        %v2318 = vpop.permute.xlu0 %2317
        %vm2319 = vcmask 916480
        %v2320 = vsel %vm2319, %v2304, %v2306
        %v2321 = vsel %vm2319, %v2306, %v2308
        %v2322 = vsel %vm2319, %v2308, %v2310
        %v2323 = vsel %vm2319, %v2312, %v2314
        %v2324 = vsel %vm2319, %v2314, %v2316
        %v2325 = vsel %vm2319, %v2316, %v2318
        %v2334 = vmax.f32 %v2208, %v2320
        %v2335 = vmax.f32 %v2210, %v2321
        %v2336 = vmax.f32 %v2285, %v2322
        %v2337 = vmax.f32 %v2287, %v2310
        %v2338 = vmax.f32 %v2214, %v2323
        %v2339 = vmax.f32 %v2216, %v2324
        %v2340 = vmax.f32 %v2291, %v2325
        %v2341 = vmax.f32 %v2293, %v2318
        %v2342 = vld [vmem:[#allocation13] sm:$0xff]
        %v2343 = vld [vmem:[#allocation13 + $0x8] sm:$0xff]
        %v2344 = vld [vmem:[#allocation13 + $0x10] sm:$0xff]
        %v2345 = vld [vmem:[#allocation13 + $0x18] sm:$0xff]
        %v2346 = vld [vmem:[#allocation13 + $0x20] sm:$0xff]
        %v2347 = vld [vmem:[#allocation13 + $0x28] sm:$0xff]
        %v2348 = vld [vmem:[#allocation13 + $0x30] sm:$0xff]
        %v2349 = vld [vmem:[#allocation13 + $0x38] sm:$0xff]
        %v2350 = vld [vmem:[#allocation13 + $0x40] sm:$0xff]
        %v2351 = vld [vmem:[#allocation13 + $0x48] sm:$0xff]
        %v2352 = vld [vmem:[#allocation13 + $0x50] sm:$0xff]
        %v2353 = vld [vmem:[#allocation13 + $0x58] sm:$0xff]
        %v2354 = vld [vmem:[#allocation13 + $0x60] sm:$0xff]
        %v2355 = vld [vmem:[#allocation13 + $0x68] sm:$0xff]
        %v2356 = vld [vmem:[#allocation13 + $0x70] sm:$0xff]
        %v2357 = vld [vmem:[#allocation13 + $0x78] sm:$0xff]
        %v2358 = vld [vmem:[#allocation13 + $0x80] sm:$0xff]
        %v2359 = vld [vmem:[#allocation13 + $0x88] sm:$0xff]
        %v2360 = vld [vmem:[#allocation13 + $0x90] sm:$0xff]
        %v2361 = vld [vmem:[#allocation13 + $0x98] sm:$0xff]
        %v2362 = vld [vmem:[#allocation13 + $0xa0] sm:$0xff]
        %v2363 = vld [vmem:[#allocation13 + $0xa8] sm:$0xff]
        %v2364 = vld [vmem:[#allocation13 + $0xb0] sm:$0xff]
        %v2365 = vld [vmem:[#allocation13 + $0xb8] sm:$0xff]
        %v2366 = vld [vmem:[#allocation13 + $0xc0] sm:$0xff]
        %v2367 = vld [vmem:[#allocation13 + $0xc8] sm:$0xff]
        %v2368 = vld [vmem:[#allocation13 + $0xd0] sm:$0xff]
        %v2369 = vld [vmem:[#allocation13 + $0xd8] sm:$0xff]
        %v2370 = vld [vmem:[#allocation13 + $0xe0] sm:$0xff]
        %v2371 = vld [vmem:[#allocation13 + $0xe8] sm:$0xff]
        %v2372 = vld [vmem:[#allocation13 + $0xf0] sm:$0xff]
        %v2373 = vld [vmem:[#allocation13 + $0xf8] sm:$0xff]
        %v2374 = vld [vmem:[#allocation13 + $0x100] sm:$0xff]
        %v2375 = vld [vmem:[#allocation13 + $0x108] sm:$0xff]
        %v2376 = vld [vmem:[#allocation13 + $0x110] sm:$0xff]
        %v2377 = vld [vmem:[#allocation13 + $0x118] sm:$0xff]
        %v2378 = vld [vmem:[#allocation13 + $0x120] sm:$0xff]
        %v2379 = vld [vmem:[#allocation13 + $0x128] sm:$0xff]
        %v2380 = vld [vmem:[#allocation13 + $0x130] sm:$0xff]
        %v2381 = vld [vmem:[#allocation13 + $0x138] sm:$0xff]
        %v2382 = vld [vmem:[#allocation13 + $0x140] sm:$0xff]
        %v2383 = vld [vmem:[#allocation13 + $0x148] sm:$0xff]
        %v2384 = vld [vmem:[#allocation13 + $0x150] sm:$0xff]
        %v2385 = vld [vmem:[#allocation13 + $0x158] sm:$0xff]
        %v2386 = vld [vmem:[#allocation13 + $0x160] sm:$0xff]
        %v2387 = vld [vmem:[#allocation13 + $0x168] sm:$0xff]
        %v2388 = vld [vmem:[#allocation13 + $0x170] sm:$0xff]
        %v2389 = vld [vmem:[#allocation13 + $0x178] sm:$0xff]
        %v2390 = vld [vmem:[#allocation13 + $0x180] sm:$0xff]
        %v2391 = vld [vmem:[#allocation13 + $0x188] sm:$0xff]
        %v2392 = vld [vmem:[#allocation13 + $0x190] sm:$0xff]
        %v2393 = vld [vmem:[#allocation13 + $0x198] sm:$0xff]
        %v2394 = vld [vmem:[#allocation13 + $0x1a0] sm:$0xff]
        %v2395 = vld [vmem:[#allocation13 + $0x1a8] sm:$0xff]
        %v2396 = vld [vmem:[#allocation13 + $0x1b0] sm:$0xff]
        %v2397 = vld [vmem:[#allocation13 + $0x1b8] sm:$0xff]
        %v2398 = vld [vmem:[#allocation13 + $0x1c0] sm:$0xff]
        %v2399 = vld [vmem:[#allocation13 + $0x1c8] sm:$0xff]
        %v2400 = vld [vmem:[#allocation13 + $0x1d0] sm:$0xff]
        %v2401 = vld [vmem:[#allocation13 + $0x1d8] sm:$0xff]
        %v2402 = vld [vmem:[#allocation13 + $0x1e0] sm:$0xff]
        %v2403 = vld [vmem:[#allocation13 + $0x1e8] sm:$0xff]
        %v2404 = vld [vmem:[#allocation13 + $0x1f0] sm:$0xff]
        %v2405 = vld [vmem:[#allocation13 + $0x1f8] sm:$0xff]
        %v2406 = vld [vmem:[#allocation13 + $0x200] sm:$0xff]
        %v2407 = vld [vmem:[#allocation13 + $0x208] sm:$0xff]
        %v2408 = vld [vmem:[#allocation13 + $0x210] sm:$0xff]
        %v2409 = vld [vmem:[#allocation13 + $0x218] sm:$0xff]
        %v2410 = vld [vmem:[#allocation13 + $0x220] sm:$0xff]
        %v2411 = vld [vmem:[#allocation13 + $0x228] sm:$0xff]
        %v2412 = vld [vmem:[#allocation13 + $0x230] sm:$0xff]
        %v2413 = vld [vmem:[#allocation13 + $0x238] sm:$0xff]
        %v2414 = vld [vmem:[#allocation13 + $0x240] sm:$0xff]
        %v2415 = vld [vmem:[#allocation13 + $0x248] sm:$0xff]
        %v2416 = vld [vmem:[#allocation13 + $0x250] sm:$0xff]
        %v2417 = vld [vmem:[#allocation13 + $0x258] sm:$0xff]
        %v2418 = vld [vmem:[#allocation13 + $0x260] sm:$0xff]
        %v2419 = vld [vmem:[#allocation13 + $0x268] sm:$0xff]
        %v2420 = vld [vmem:[#allocation13 + $0x270] sm:$0xff]
        %v2421 = vld [vmem:[#allocation13 + $0x278] sm:$0xff]
        %v2422 = vld [vmem:[#allocation13 + $0x280] sm:$0xff]
        %v2423 = vld [vmem:[#allocation13 + $0x288] sm:$0xff]
        %v2424 = vld [vmem:[#allocation13 + $0x290] sm:$0xff]
        %v2425 = vld [vmem:[#allocation13 + $0x298] sm:$0xff]
        %v2426 = vld [vmem:[#allocation13 + $0x2a0] sm:$0xff]
        %v2427 = vld [vmem:[#allocation13 + $0x2a8] sm:$0xff]
        %v2428 = vld [vmem:[#allocation13 + $0x2b0] sm:$0xff]
        %v2429 = vld [vmem:[#allocation13 + $0x2b8] sm:$0xff]
        %v2430 = vld [vmem:[#allocation13 + $0x2c0] sm:$0xff]
        %v2431 = vld [vmem:[#allocation13 + $0x2c8] sm:$0xff]
        %v2432 = vld [vmem:[#allocation13 + $0x2d0] sm:$0xff]
        %v2433 = vld [vmem:[#allocation13 + $0x2d8] sm:$0xff]
        %v2434 = vld [vmem:[#allocation13 + $0x2e0] sm:$0xff]
        %v2435 = vld [vmem:[#allocation13 + $0x2e8] sm:$0xff]
        %v2436 = vld [vmem:[#allocation13 + $0x2f0] sm:$0xff]
        %v2437 = vld [vmem:[#allocation13 + $0x2f8] sm:$0xff]
        %v2438 = vld [vmem:[#allocation13 + $0x300] sm:$0xff]
        %v2439 = vld [vmem:[#allocation13 + $0x308] sm:$0xff]
        %v2440 = vld [vmem:[#allocation13 + $0x310] sm:$0xff]
        %v2441 = vld [vmem:[#allocation13 + $0x318] sm:$0xff]
        %v2442 = vld [vmem:[#allocation13 + $0x320] sm:$0xff]
        %v2443 = vld [vmem:[#allocation13 + $0x328] sm:$0xff]
        %v2444 = vld [vmem:[#allocation13 + $0x330] sm:$0xff]
        %v2445 = vld [vmem:[#allocation13 + $0x338] sm:$0xff]
        %v2446 = vld [vmem:[#allocation13 + $0x340] sm:$0xff]
        %v2447 = vld [vmem:[#allocation13 + $0x348] sm:$0xff]
        %v2448 = vld [vmem:[#allocation13 + $0x350] sm:$0xff]
        %v2449 = vld [vmem:[#allocation13 + $0x358] sm:$0xff]
        %vm2450 = vcmask 392192
        %v2452 = vsel %vm2450, %v2337, 0
        %v2455 = vsel %vm2450, %v2341, 0
        %2457 = vmatprep.subr.mxu0 %v2373
        %2458 = vmatpush1.msra.mxu0 %v2372
        %2459 = vmatprep.subr.mxu0 %v2371
        %2460 = vmatpush1.msra.mxu0 %v2370
        %2461 = vmatprep.subr.mxu0 %v2369
        %2462 = vmatpush1.msra.mxu0 %v2368
        %2463 = vmatprep.subr.mxu0 %v2367
        %2464 = vmatpush1.msra.mxu0 %v2366
        %2465 = vmatprep.subr.mxu0 %v2365
        %2466 = vmatpush1.msra.mxu0 %v2364
        %2467 = vmatprep.subr.mxu0 %v2363
        %2468 = vmatpush1.msra.mxu0 %v2362
        %2469 = vmatprep.subr.mxu0 %v2361
        %2470 = vmatpush1.msra.mxu0 %v2360
        %2471 = vmatprep.subr.mxu0 %v2359
        %2472 = vmatpush1.msra.mxu0 %v2358
        %2473 = vmatprep.subr.mxu0 %v2357
        %2474 = vmatpush1.msra.mxu0 %v2356
        %2475 = vmatprep.subr.mxu0 %v2355
        %2476 = vmatpush1.msra.mxu0 %v2354
        %2477 = vmatprep.subr.mxu0 %v2353
        %2478 = vmatpush1.msra.mxu0 %v2352
        %2479 = vmatprep.subr.mxu0 %v2351
        %2480 = vmatpush1.msra.mxu0 %v2350
        %2481 = vmatprep.subr.mxu0 %v2349
        %2482 = vmatpush1.msra.mxu0 %v2348
        %2483 = vmatprep.subr.mxu0 %v2347
        %2484 = vmatpush1.msra.mxu0 %v2346
        %2485 = vmatprep.subr.mxu0 %v2345
        %2486 = vmatpush1.msra.mxu0 %v2344
        %2487 = vmatprep.subr.mxu0 %v2343
        %2488 = vmatpush1.msra.mxu0 %v2342
        %2489 = vmatprep.subr.mxu0 %v2405
        %2490 = vmatpush2.msra.mxu0 %v2404
        %2491 = vmatprep.subr.mxu0 %v2403
        %2492 = vmatpush2.msra.mxu0 %v2402
        %2493 = vmatprep.subr.mxu0 %v2401
        %2494 = vmatpush2.msra.mxu0 %v2400
        %2495 = vmatprep.subr.mxu0 %v2399
        %2496 = vmatpush2.msra.mxu0 %v2398
        %2497 = vmatprep.subr.mxu0 %v2397
        %2498 = vmatpush2.msra.mxu0 %v2396
        %2499 = vmatprep.subr.mxu0 %v2395
        %2500 = vmatpush2.msra.mxu0 %v2394
        %2501 = vmatprep.subr.mxu0 %v2393
        %2502 = vmatpush2.msra.mxu0 %v2392
        %2503 = vmatprep.subr.mxu0 %v2391
        %2504 = vmatpush2.msra.mxu0 %v2390
        %2505 = vmatprep.subr.mxu0 %v2389
        %2506 = vmatpush2.msra.mxu0 %v2388
        %2507 = vmatprep.subr.mxu0 %v2387
        %2508 = vmatpush2.msra.mxu0 %v2386
        %2509 = vmatprep.subr.mxu0 %v2385
        %2510 = vmatpush2.msra.mxu0 %v2384
        %2511 = vmatprep.subr.mxu0 %v2383
        %2512 = vmatpush2.msra.mxu0 %v2382
        %2513 = vmatprep.subr.mxu0 %v2381
        %2514 = vmatpush2.msra.mxu0 %v2380
        %2515 = vmatprep.subr.mxu0 %v2379
        %2516 = vmatpush2.msra.mxu0 %v2378
        %2517 = vmatprep.subr.mxu0 %v2377
        %2518 = vmatpush2.msra.mxu0 %v2376
        %2519 = vmatprep.subr.mxu0 %v2375
        %2520 = vmatpush2.msra.mxu0 %v2374
        %2521 = vmatprep.mubr.f32.mxu0 %v2335
        %2522 = vmatmul.mubr.f32.gmra.mxu0 %v2334
        %v2523 = vpop.f32.mrf.mxu0
        %v2524 = vadd.f32 0.0, %v2523
        %v2525 = vpop.f32.mrf.mxu0
        %v2526 = vadd.f32 0.0, %v2525
        %2527 = vmatprep.mubr.f32.mxu0 %v2339
        %2528 = vmatmul.mubr.f32.gmra.mxu0 %v2338
        %v2529 = vpop.f32.mrf.mxu0
        %v2530 = vadd.f32 0.0, %v2529
        %v2531 = vpop.f32.mrf.mxu0
        %v2532 = vadd.f32 0.0, %v2531
        %2533 = vdwg.mxu0
        %2534 = vmatprep.subr.mxu0 %v2437
        %2535 = vmatpush1.msra.mxu0 %v2436
        %2536 = vmatprep.subr.mxu0 %v2435
        %2537 = vmatpush1.msra.mxu0 %v2434
        %2538 = vmatprep.subr.mxu0 %v2433
        %2539 = vmatpush1.msra.mxu0 %v2432
        %2540 = vmatprep.subr.mxu0 %v2431
        %2541 = vmatpush1.msra.mxu0 %v2430
        %2542 = vmatprep.subr.mxu0 %v2429
        %2543 = vmatpush1.msra.mxu0 %v2428
        %2544 = vmatprep.subr.mxu0 %v2427
        %2545 = vmatpush1.msra.mxu0 %v2426
        %2546 = vmatprep.subr.mxu0 %v2425
        %2547 = vmatpush1.msra.mxu0 %v2424
        %2548 = vmatprep.subr.mxu0 %v2423
        %2549 = vmatpush1.msra.mxu0 %v2422
        %2550 = vmatprep.subr.mxu0 %v2421
        %2551 = vmatpush1.msra.mxu0 %v2420
        %2552 = vmatprep.subr.mxu0 %v2419
        %2553 = vmatpush1.msra.mxu0 %v2418
        %2554 = vmatprep.subr.mxu0 %v2417
        %2555 = vmatpush1.msra.mxu0 %v2416
        %2556 = vmatprep.subr.mxu0 %v2415
        %2557 = vmatpush1.msra.mxu0 %v2414
        %2558 = vmatprep.subr.mxu0 %v2413
        %2559 = vmatpush1.msra.mxu0 %v2412
        %2560 = vmatprep.subr.mxu0 %v2411
        %2561 = vmatpush1.msra.mxu0 %v2410
        %2562 = vmatprep.subr.mxu0 %v2409
        %2563 = vmatpush1.msra.mxu0 %v2408
        %2564 = vmatprep.subr.mxu0 %v2407
        %2565 = vmatpush1.msra.mxu0 %v2406
        %2566 = vmatprep.subr.mxu0 0.0
        %2567 = vmatpush2.msra.mxu0 0.0
        %2568 = vmatprep.subr.mxu0 0.0
        %2569 = vmatpush2.msra.mxu0 0.0
        %2570 = vmatprep.subr.mxu0 0.0
        %2571 = vmatpush2.msra.mxu0 0.0
        %2572 = vmatprep.subr.mxu0 0.0
        %2573 = vmatpush2.msra.mxu0 0.0
        %2574 = vmatprep.subr.mxu0 0.0
        %2575 = vmatpush2.msra.mxu0 0.0
        %2576 = vmatprep.subr.mxu0 0.0
        %2577 = vmatpush2.msra.mxu0 0.0
        %2578 = vmatprep.subr.mxu0 0.0
        %2579 = vmatpush2.msra.mxu0 0.0
        %2580 = vmatprep.subr.mxu0 0.0
        %2581 = vmatpush2.msra.mxu0 0.0
        %2582 = vmatprep.subr.mxu0 0.0
        %2583 = vmatpush2.msra.mxu0 0.0
        %2584 = vmatprep.subr.mxu0 0.0
        %2585 = vmatpush2.msra.mxu0 0.0
        %2586 = vmatprep.subr.mxu0 %v2449
        %2587 = vmatpush2.msra.mxu0 %v2448
        %2588 = vmatprep.subr.mxu0 %v2447
        %2589 = vmatpush2.msra.mxu0 %v2446
        %2590 = vmatprep.subr.mxu0 %v2445
        %2591 = vmatpush2.msra.mxu0 %v2444
        %2592 = vmatprep.subr.mxu0 %v2443
        %2593 = vmatpush2.msra.mxu0 %v2442
        %2594 = vmatprep.subr.mxu0 %v2441
        %2595 = vmatpush2.msra.mxu0 %v2440
        %2596 = vmatprep.subr.mxu0 %v2439
        %2597 = vmatpush2.msra.mxu0 %v2438
        %2598 = vmatprep.mubr.f32.mxu0 %v2452
        %2599 = vmatmul.mubr.f32.gmra.mxu0 %v2336
        %v2600 = vpop.f32.mrf.mxu0
        %v2601 = vadd.f32 %v2524, %v2600
        %v2602 = vpop.f32.mrf.mxu0
        %v2603 = vadd.f32 %v2526, %v2602
        %2604 = vmatprep.mubr.f32.mxu0 %v2455
        %2605 = vmatmul.mubr.f32.gmra.mxu0 %v2340
        %v2606 = vpop.f32.mrf.mxu0
        %v2607 = vadd.f32 %v2530, %v2606
        %v2608 = vpop.f32.mrf.mxu0
        %v2609 = vadd.f32 %v2532, %v2608
        %2610 = vdwg.mxu0
        %2611 = vst [vmem:[#allocation3] sm:$0xff] 0.0
        %vm2612 = vcmask 785408
        %2613 = vst.msk [vmem:[#allocation3 + $0x8] sm:$0xff] %vm2612, 0.0
        %2614 = vst [vmem:[#allocation3 + $0x10] sm:$0xff] 0.0
        %2615 = vst.msk [vmem:[#allocation3 + $0x18] sm:$0xff] %vm2612, 0.0
        %2616 = vst [vmem:[#allocation3 + $0x20] sm:$0x3] 0.0
        %vm2617 = vcmask 779264
        %2618 = vst.msk [vmem:[#allocation3 + $0x28] sm:$0x3] %vm2617, 0.0
        %vm2623 = vcmask 1041408
        %v2624 = vrot.slane %v2601, 6
        %v2625 = vrot.slane %v2603, 6
        %v2626 = vrot.slane %v2607, 6
        %v2627 = vsel %vm2623, %v2624, %v2626
        %v2628 = vrot.slane %v2609, 6
        %v2629 = vsel %vm2623, %v2625, %v2628
        %2634 = vst [vmem:[#allocation3] sm:$0xfc] %v2624
        %vm2635 = vcmask 785410
        %2636 = vst.msk [vmem:[#allocation3 + $0x8] sm:$0xfc] %vm2635, %v2625
        %2637 = vst [vmem:[#allocation3 + $0x10] sm:$0xff] %v2627
        %2638 = vst.msk [vmem:[#allocation3 + $0x18] sm:$0xff] %vm2612, %v2629
        %v2639 = vld [vmem:[#allocation3] sm:$0xff]
        %v2640 = vld [vmem:[#allocation3 + $0x8] sm:$0xff]
        %v2641 = vld [vmem:[#allocation3 + $0x10] sm:$0x3f]
        %v2642 = vld [vmem:[#allocation3 + $0x18] sm:$0x3f]
        %v2643 = vld [vmem:[#allocation14] sm:$0xff]
        %v2644 = vld [vmem:[#allocation14 + $0x8] sm:$0xff]
        %v2645 = vld [vmem:[#allocation14 + $0x10] sm:$0xff]
        %v2646 = vld [vmem:[#allocation14 + $0x18] sm:$0xff]
        %v2647 = vld [vmem:[#allocation14 + $0x20] sm:$0xff]
        %v2648 = vld [vmem:[#allocation14 + $0x28] sm:$0xff]
        %v2649 = vld [vmem:[#allocation14 + $0x30] sm:$0xff]
        %v2650 = vld [vmem:[#allocation14 + $0x38] sm:$0xff]
        %v2651 = vld [vmem:[#allocation14 + $0x40] sm:$0xff]
        %v2652 = vld [vmem:[#allocation14 + $0x48] sm:$0xff]
        %v2653 = vld [vmem:[#allocation14 + $0x50] sm:$0xff]
        %v2654 = vld [vmem:[#allocation14 + $0x58] sm:$0xff]
        %v2655 = vld [vmem:[#allocation14 + $0x60] sm:$0xff]
        %v2656 = vld [vmem:[#allocation14 + $0x68] sm:$0xff]
        %v2657 = vld [vmem:[#allocation14 + $0x70] sm:$0xff]
        %v2658 = vld [vmem:[#allocation14 + $0x78] sm:$0xff]
        %v2659 = vld [vmem:[#allocation14 + $0x80] sm:$0xff]
        %v2660 = vld [vmem:[#allocation14 + $0x88] sm:$0xff]
        %v2661 = vld [vmem:[#allocation14 + $0x90] sm:$0xff]
        %v2662 = vld [vmem:[#allocation14 + $0x98] sm:$0xff]
        %v2663 = vld [vmem:[#allocation14 + $0xa0] sm:$0xff]
        %v2664 = vld [vmem:[#allocation14 + $0xa8] sm:$0xff]
        %v2665 = vld [vmem:[#allocation14 + $0xb0] sm:$0xff]
        %v2666 = vld [vmem:[#allocation14 + $0xb8] sm:$0xff]
        %v2667 = vld [vmem:[#allocation14 + $0xc0] sm:$0xff]
        %v2668 = vld [vmem:[#allocation14 + $0xc8] sm:$0xff]
        %v2669 = vld [vmem:[#allocation14 + $0xd0] sm:$0xff]
        %v2670 = vld [vmem:[#allocation14 + $0xd8] sm:$0xff]
        %v2671 = vld [vmem:[#allocation14 + $0xe0] sm:$0xff]
        %v2672 = vld [vmem:[#allocation14 + $0xe8] sm:$0xff]
        %v2673 = vld [vmem:[#allocation14 + $0xf0] sm:$0xff]
        %v2674 = vld [vmem:[#allocation14 + $0xf8] sm:$0xff]
        %v2675 = vld [vmem:[#allocation14 + $0x100] sm:$0xff]
        %v2676 = vld [vmem:[#allocation14 + $0x108] sm:$0xff]
        %v2677 = vld [vmem:[#allocation14 + $0x110] sm:$0xff]
        %v2678 = vld [vmem:[#allocation14 + $0x118] sm:$0xff]
        %v2679 = vld [vmem:[#allocation14 + $0x120] sm:$0xff]
        %v2680 = vld [vmem:[#allocation14 + $0x128] sm:$0xff]
        %v2681 = vld [vmem:[#allocation14 + $0x130] sm:$0xff]
        %v2682 = vld [vmem:[#allocation14 + $0x138] sm:$0xff]
        %v2683 = vld [vmem:[#allocation14 + $0x140] sm:$0xff]
        %v2684 = vld [vmem:[#allocation14 + $0x148] sm:$0xff]
        %v2685 = vld [vmem:[#allocation14 + $0x150] sm:$0xff]
        %v2686 = vld [vmem:[#allocation14 + $0x158] sm:$0xff]
        %v2687 = vld [vmem:[#allocation14 + $0x160] sm:$0xff]
        %v2688 = vld [vmem:[#allocation14 + $0x168] sm:$0xff]
        %v2689 = vld [vmem:[#allocation14 + $0x170] sm:$0xff]
        %v2690 = vld [vmem:[#allocation14 + $0x178] sm:$0xff]
        %v2691 = vld [vmem:[#allocation14 + $0x180] sm:$0xff]
        %v2692 = vld [vmem:[#allocation14 + $0x188] sm:$0xff]
        %v2693 = vld [vmem:[#allocation14 + $0x190] sm:$0xff]
        %v2694 = vld [vmem:[#allocation14 + $0x198] sm:$0xff]
        %v2695 = vld [vmem:[#allocation14 + $0x1a0] sm:$0xff]
        %v2696 = vld [vmem:[#allocation14 + $0x1a8] sm:$0xff]
        %v2697 = vld [vmem:[#allocation14 + $0x1b0] sm:$0xff]
        %v2698 = vld [vmem:[#allocation14 + $0x1b8] sm:$0xff]
        %v2699 = vld [vmem:[#allocation14 + $0x1c0] sm:$0xff]
        %v2700 = vld [vmem:[#allocation14 + $0x1c8] sm:$0xff]
        %v2701 = vld [vmem:[#allocation14 + $0x1d0] sm:$0xff]
        %v2702 = vld [vmem:[#allocation14 + $0x1d8] sm:$0xff]
        %v2703 = vld [vmem:[#allocation14 + $0x1e0] sm:$0xff]
        %v2704 = vld [vmem:[#allocation14 + $0x1e8] sm:$0xff]
        %v2705 = vld [vmem:[#allocation14 + $0x1f0] sm:$0xff]
        %v2706 = vld [vmem:[#allocation14 + $0x1f8] sm:$0xff]
        %v2707 = vld [vmem:[#allocation14 + $0x200] sm:$0xff]
        %v2708 = vld [vmem:[#allocation14 + $0x208] sm:$0xff]
        %v2709 = vld [vmem:[#allocation14 + $0x210] sm:$0xff]
        %v2710 = vld [vmem:[#allocation14 + $0x218] sm:$0xff]
        %v2711 = vld [vmem:[#allocation14 + $0x220] sm:$0xff]
        %v2712 = vld [vmem:[#allocation14 + $0x228] sm:$0xff]
        %v2713 = vld [vmem:[#allocation14 + $0x230] sm:$0xff]
        %v2714 = vld [vmem:[#allocation14 + $0x238] sm:$0xff]
        %v2715 = vld [vmem:[#allocation14 + $0x240] sm:$0xff]
        %v2716 = vld [vmem:[#allocation14 + $0x248] sm:$0xff]
        %v2717 = vld [vmem:[#allocation14 + $0x250] sm:$0xff]
        %v2718 = vld [vmem:[#allocation14 + $0x258] sm:$0xff]
        %v2719 = vld [vmem:[#allocation14 + $0x260] sm:$0xff]
        %v2720 = vld [vmem:[#allocation14 + $0x268] sm:$0xff]
        %v2721 = vld [vmem:[#allocation14 + $0x270] sm:$0xff]
        %v2722 = vld [vmem:[#allocation14 + $0x278] sm:$0xff]
        %v2723 = vld [vmem:[#allocation14 + $0x280] sm:$0xff]
        %v2724 = vld [vmem:[#allocation14 + $0x288] sm:$0xff]
        %v2725 = vld [vmem:[#allocation14 + $0x290] sm:$0xff]
        %v2726 = vld [vmem:[#allocation14 + $0x298] sm:$0xff]
        %v2727 = vld [vmem:[#allocation14 + $0x2a0] sm:$0xff]
        %v2728 = vld [vmem:[#allocation14 + $0x2a8] sm:$0xff]
        %v2729 = vld [vmem:[#allocation14 + $0x2b0] sm:$0xff]
        %v2730 = vld [vmem:[#allocation14 + $0x2b8] sm:$0xff]
        %v2731 = vld [vmem:[#allocation14 + $0x2c0] sm:$0xff]
        %v2732 = vld [vmem:[#allocation14 + $0x2c8] sm:$0xff]
        %v2733 = vld [vmem:[#allocation14 + $0x2d0] sm:$0xff]
        %v2734 = vld [vmem:[#allocation14 + $0x2d8] sm:$0xff]
        %v2735 = vld [vmem:[#allocation14 + $0x2e0] sm:$0xff]
        %v2736 = vld [vmem:[#allocation14 + $0x2e8] sm:$0xff]
        %v2737 = vld [vmem:[#allocation14 + $0x2f0] sm:$0xff]
        %v2738 = vld [vmem:[#allocation14 + $0x2f8] sm:$0xff]
        %v2739 = vld [vmem:[#allocation14 + $0x300] sm:$0xff]
        %v2740 = vld [vmem:[#allocation14 + $0x308] sm:$0xff]
        %v2741 = vld [vmem:[#allocation14 + $0x310] sm:$0xff]
        %v2742 = vld [vmem:[#allocation14 + $0x318] sm:$0xff]
        %v2743 = vld [vmem:[#allocation14 + $0x320] sm:$0xff]
        %v2744 = vld [vmem:[#allocation14 + $0x328] sm:$0xff]
        %v2745 = vld [vmem:[#allocation14 + $0x330] sm:$0xff]
        %v2746 = vld [vmem:[#allocation14 + $0x338] sm:$0xff]
        %v2747 = vld [vmem:[#allocation14 + $0x340] sm:$0xff]
        %v2748 = vld [vmem:[#allocation14 + $0x348] sm:$0xff]
        %v2749 = vld [vmem:[#allocation14 + $0x350] sm:$0xff]
        %v2750 = vld [vmem:[#allocation14 + $0x358] sm:$0xff]
        %v2751 = vld [vmem:[#allocation14 + $0x360] sm:$0xff]
        %v2752 = vld [vmem:[#allocation14 + $0x368] sm:$0xff]
        %v2753 = vld [vmem:[#allocation14 + $0x370] sm:$0xff]
        %v2754 = vld [vmem:[#allocation14 + $0x378] sm:$0xff]
        %v2755 = vld [vmem:[#allocation3] sm:$0xfe]
        %v2756 = vld [vmem:[#allocation3 + $0x8] sm:$0xfe]
        %v2757 = vld [vmem:[#allocation3 + $0x10] sm:$0x7f]
        %v2758 = vld [vmem:[#allocation3 + $0x18] sm:$0x7f]
        %s2759 = scalar_lea.vmem [#allocation14], 896
        %v2760 = vld [vmem:[%s2759] sm:$0xff]
        %v2761 = vld [vmem:[%s2759 + $0x8] sm:$0xff]
        %v2762 = vld [vmem:[%s2759 + $0x10] sm:$0xff]
        %v2763 = vld [vmem:[%s2759 + $0x18] sm:$0xff]
        %v2764 = vld [vmem:[%s2759 + $0x20] sm:$0xff]
        %v2765 = vld [vmem:[%s2759 + $0x28] sm:$0xff]
        %v2766 = vld [vmem:[%s2759 + $0x30] sm:$0xff]
        %v2767 = vld [vmem:[%s2759 + $0x38] sm:$0xff]
        %v2768 = vld [vmem:[%s2759 + $0x40] sm:$0xff]
        %v2769 = vld [vmem:[%s2759 + $0x48] sm:$0xff]
        %v2770 = vld [vmem:[%s2759 + $0x50] sm:$0xff]
        %v2771 = vld [vmem:[%s2759 + $0x58] sm:$0xff]
        %v2772 = vld [vmem:[%s2759 + $0x60] sm:$0xff]
        %v2773 = vld [vmem:[%s2759 + $0x68] sm:$0xff]
        %v2774 = vld [vmem:[%s2759 + $0x70] sm:$0xff]
        %v2775 = vld [vmem:[%s2759 + $0x78] sm:$0xff]
        %v2776 = vld [vmem:[%s2759 + $0x80] sm:$0xff]
        %v2777 = vld [vmem:[%s2759 + $0x88] sm:$0xff]
        %v2778 = vld [vmem:[%s2759 + $0x90] sm:$0xff]
        %v2779 = vld [vmem:[%s2759 + $0x98] sm:$0xff]
        %v2780 = vld [vmem:[%s2759 + $0xa0] sm:$0xff]
        %v2781 = vld [vmem:[%s2759 + $0xa8] sm:$0xff]
        %v2782 = vld [vmem:[%s2759 + $0xb0] sm:$0xff]
        %v2783 = vld [vmem:[%s2759 + $0xb8] sm:$0xff]
        %v2784 = vld [vmem:[%s2759 + $0xc0] sm:$0xff]
        %v2785 = vld [vmem:[%s2759 + $0xc8] sm:$0xff]
        %v2786 = vld [vmem:[%s2759 + $0xd0] sm:$0xff]
        %v2787 = vld [vmem:[%s2759 + $0xd8] sm:$0xff]
        %v2788 = vld [vmem:[%s2759 + $0xe0] sm:$0xff]
        %v2789 = vld [vmem:[%s2759 + $0xe8] sm:$0xff]
        %v2790 = vld [vmem:[%s2759 + $0xf0] sm:$0xff]
        %v2791 = vld [vmem:[%s2759 + $0xf8] sm:$0xff]
        %v2792 = vld [vmem:[%s2759 + $0x100] sm:$0xff]
        %v2793 = vld [vmem:[%s2759 + $0x108] sm:$0xff]
        %v2794 = vld [vmem:[%s2759 + $0x110] sm:$0xff]
        %v2795 = vld [vmem:[%s2759 + $0x118] sm:$0xff]
        %v2796 = vld [vmem:[%s2759 + $0x120] sm:$0xff]
        %v2797 = vld [vmem:[%s2759 + $0x128] sm:$0xff]
        %v2798 = vld [vmem:[%s2759 + $0x130] sm:$0xff]
        %v2799 = vld [vmem:[%s2759 + $0x138] sm:$0xff]
        %v2800 = vld [vmem:[%s2759 + $0x140] sm:$0xff]
        %v2801 = vld [vmem:[%s2759 + $0x148] sm:$0xff]
        %v2802 = vld [vmem:[%s2759 + $0x150] sm:$0xff]
        %v2803 = vld [vmem:[%s2759 + $0x158] sm:$0xff]
        %v2804 = vld [vmem:[%s2759 + $0x160] sm:$0xff]
        %v2805 = vld [vmem:[%s2759 + $0x168] sm:$0xff]
        %v2806 = vld [vmem:[%s2759 + $0x170] sm:$0xff]
        %v2807 = vld [vmem:[%s2759 + $0x178] sm:$0xff]
        %v2808 = vld [vmem:[%s2759 + $0x180] sm:$0xff]
        %v2809 = vld [vmem:[%s2759 + $0x188] sm:$0xff]
        %v2810 = vld [vmem:[%s2759 + $0x190] sm:$0xff]
        %v2811 = vld [vmem:[%s2759 + $0x198] sm:$0xff]
        %v2812 = vld [vmem:[%s2759 + $0x1a0] sm:$0xff]
        %v2813 = vld [vmem:[%s2759 + $0x1a8] sm:$0xff]
        %v2814 = vld [vmem:[%s2759 + $0x1b0] sm:$0xff]
        %v2815 = vld [vmem:[%s2759 + $0x1b8] sm:$0xff]
        %v2816 = vld [vmem:[%s2759 + $0x1c0] sm:$0xff]
        %v2817 = vld [vmem:[%s2759 + $0x1c8] sm:$0xff]
        %v2818 = vld [vmem:[%s2759 + $0x1d0] sm:$0xff]
        %v2819 = vld [vmem:[%s2759 + $0x1d8] sm:$0xff]
        %v2820 = vld [vmem:[%s2759 + $0x1e0] sm:$0xff]
        %v2821 = vld [vmem:[%s2759 + $0x1e8] sm:$0xff]
        %v2822 = vld [vmem:[%s2759 + $0x1f0] sm:$0xff]
        %v2823 = vld [vmem:[%s2759 + $0x1f8] sm:$0xff]
        %v2824 = vld [vmem:[%s2759 + $0x200] sm:$0xff]
        %v2825 = vld [vmem:[%s2759 + $0x208] sm:$0xff]
        %v2826 = vld [vmem:[%s2759 + $0x210] sm:$0xff]
        %v2827 = vld [vmem:[%s2759 + $0x218] sm:$0xff]
        %v2828 = vld [vmem:[%s2759 + $0x220] sm:$0xff]
        %v2829 = vld [vmem:[%s2759 + $0x228] sm:$0xff]
        %v2830 = vld [vmem:[%s2759 + $0x230] sm:$0xff]
        %v2831 = vld [vmem:[%s2759 + $0x238] sm:$0xff]
        %v2832 = vld [vmem:[%s2759 + $0x240] sm:$0xff]
        %v2833 = vld [vmem:[%s2759 + $0x248] sm:$0xff]
        %v2834 = vld [vmem:[%s2759 + $0x250] sm:$0xff]
        %v2835 = vld [vmem:[%s2759 + $0x258] sm:$0xff]
        %v2836 = vld [vmem:[%s2759 + $0x260] sm:$0xff]
        %v2837 = vld [vmem:[%s2759 + $0x268] sm:$0xff]
        %v2838 = vld [vmem:[%s2759 + $0x270] sm:$0xff]
        %v2839 = vld [vmem:[%s2759 + $0x278] sm:$0xff]
        %v2840 = vld [vmem:[%s2759 + $0x280] sm:$0xff]
        %v2841 = vld [vmem:[%s2759 + $0x288] sm:$0xff]
        %v2842 = vld [vmem:[%s2759 + $0x290] sm:$0xff]
        %v2843 = vld [vmem:[%s2759 + $0x298] sm:$0xff]
        %v2844 = vld [vmem:[%s2759 + $0x2a0] sm:$0xff]
        %v2845 = vld [vmem:[%s2759 + $0x2a8] sm:$0xff]
        %v2846 = vld [vmem:[%s2759 + $0x2b0] sm:$0xff]
        %v2847 = vld [vmem:[%s2759 + $0x2b8] sm:$0xff]
        %v2848 = vld [vmem:[%s2759 + $0x2c0] sm:$0xff]
        %v2849 = vld [vmem:[%s2759 + $0x2c8] sm:$0xff]
        %v2850 = vld [vmem:[%s2759 + $0x2d0] sm:$0xff]
        %v2851 = vld [vmem:[%s2759 + $0x2d8] sm:$0xff]
        %v2852 = vld [vmem:[%s2759 + $0x2e0] sm:$0xff]
        %v2853 = vld [vmem:[%s2759 + $0x2e8] sm:$0xff]
        %v2854 = vld [vmem:[%s2759 + $0x2f0] sm:$0xff]
        %v2855 = vld [vmem:[%s2759 + $0x2f8] sm:$0xff]
        %v2856 = vld [vmem:[%s2759 + $0x300] sm:$0xff]
        %v2857 = vld [vmem:[%s2759 + $0x308] sm:$0xff]
        %v2858 = vld [vmem:[%s2759 + $0x310] sm:$0xff]
        %v2859 = vld [vmem:[%s2759 + $0x318] sm:$0xff]
        %v2860 = vld [vmem:[%s2759 + $0x320] sm:$0xff]
        %v2861 = vld [vmem:[%s2759 + $0x328] sm:$0xff]
        %v2862 = vld [vmem:[%s2759 + $0x330] sm:$0xff]
        %v2863 = vld [vmem:[%s2759 + $0x338] sm:$0xff]
        %v2864 = vld [vmem:[%s2759 + $0x340] sm:$0xff]
        %v2865 = vld [vmem:[%s2759 + $0x348] sm:$0xff]
        %v2866 = vld [vmem:[%s2759 + $0x350] sm:$0xff]
        %v2867 = vld [vmem:[%s2759 + $0x358] sm:$0xff]
        %v2868 = vld [vmem:[%s2759 + $0x360] sm:$0xff]
        %v2869 = vld [vmem:[%s2759 + $0x368] sm:$0xff]
        %v2870 = vld [vmem:[%s2759 + $0x370] sm:$0xff]
        %v2871 = vld [vmem:[%s2759 + $0x378] sm:$0xff]
        %v2876 = vrot.slane %v2755, 1
        %v2877 = vrot.slane %v2757, 1
        %v2878 = vsel %vm2058, %v2876, %v2877
        %v2879 = vrot.slane %v2756, 1
        %v2880 = vrot.slane %v2758, 1
        %v2881 = vsel %vm2058, %v2879, %v2880
        %v2884 = vsel %vm2612, %v2881, 0
        %v2886 = vsel %vm2612, %v2880, 0
        %2888 = vmatprep.subr.mxu0 %v2821
        %2889 = vmatpush1.msra.mxu0 %v2820
        %2890 = vmatprep.subr.mxu0 %v2817
        %2891 = vmatpush1.msra.mxu0 %v2816
        %2892 = vmatprep.subr.mxu0 %v2813
        %2893 = vmatpush1.msra.mxu0 %v2812
        %2894 = vmatprep.subr.mxu0 %v2809
        %2895 = vmatpush1.msra.mxu0 %v2808
        %2896 = vmatprep.subr.mxu0 %v2805
        %2897 = vmatpush1.msra.mxu0 %v2804
        %2898 = vmatprep.subr.mxu0 %v2801
        %2899 = vmatpush1.msra.mxu0 %v2800
        %2900 = vmatprep.subr.mxu0 %v2797
        %2901 = vmatpush1.msra.mxu0 %v2796
        %2902 = vmatprep.subr.mxu0 %v2793
        %2903 = vmatpush1.msra.mxu0 %v2792
        %2904 = vmatprep.subr.mxu0 %v2789
        %2905 = vmatpush1.msra.mxu0 %v2788
        %2906 = vmatprep.subr.mxu0 %v2785
        %2907 = vmatpush1.msra.mxu0 %v2784
        %2908 = vmatprep.subr.mxu0 %v2781
        %2909 = vmatpush1.msra.mxu0 %v2780
        %2910 = vmatprep.subr.mxu0 %v2777
        %2911 = vmatpush1.msra.mxu0 %v2776
        %2912 = vmatprep.subr.mxu0 %v2773
        %2913 = vmatpush1.msra.mxu0 %v2772
        %2914 = vmatprep.subr.mxu0 %v2769
        %2915 = vmatpush1.msra.mxu0 %v2768
        %2916 = vmatprep.subr.mxu0 %v2765
        %2917 = vmatpush1.msra.mxu0 %v2764
        %2918 = vmatprep.subr.mxu0 %v2761
        %2919 = vmatpush1.msra.mxu0 %v2760
        %2920 = vmatprep.subr.mxu0 0.0
        %2921 = vmatpush2.msra.mxu0 0.0
        %2922 = vmatprep.subr.mxu0 0.0
        %2923 = vmatpush2.msra.mxu0 0.0
        %2924 = vmatprep.subr.mxu0 0.0
        %2925 = vmatpush2.msra.mxu0 0.0
        %2926 = vmatprep.subr.mxu0 0.0
        %2927 = vmatpush2.msra.mxu0 0.0
        %2928 = vmatprep.subr.mxu0 %v2869
        %2929 = vmatpush2.msra.mxu0 %v2868
        %2930 = vmatprep.subr.mxu0 %v2865
        %2931 = vmatpush2.msra.mxu0 %v2864
        %2932 = vmatprep.subr.mxu0 %v2861
        %2933 = vmatpush2.msra.mxu0 %v2860
        %2934 = vmatprep.subr.mxu0 %v2857
        %2935 = vmatpush2.msra.mxu0 %v2856
        %2936 = vmatprep.subr.mxu0 %v2853
        %2937 = vmatpush2.msra.mxu0 %v2852
        %2938 = vmatprep.subr.mxu0 %v2849
        %2939 = vmatpush2.msra.mxu0 %v2848
        %2940 = vmatprep.subr.mxu0 %v2845
        %2941 = vmatpush2.msra.mxu0 %v2844
        %2942 = vmatprep.subr.mxu0 %v2841
        %2943 = vmatpush2.msra.mxu0 %v2840
        %2944 = vmatprep.subr.mxu0 %v2837
        %2945 = vmatpush2.msra.mxu0 %v2836
        %2946 = vmatprep.subr.mxu0 %v2833
        %2947 = vmatpush2.msra.mxu0 %v2832
        %2948 = vmatprep.subr.mxu0 %v2829
        %2949 = vmatpush2.msra.mxu0 %v2828
        %2950 = vmatprep.subr.mxu0 %v2825
        %2951 = vmatpush2.msra.mxu0 %v2824
        %2952 = vmatprep.mubr.f32.mxu0 %v2884
        %2953 = vmatmul.mubr.f32.gmra.mxu0 %v2878
        %v2954 = vpop.f32.mrf.mxu0
        %v2955 = vadd.f32 0.0, %v2954
        %v2956 = vpop.f32.mrf.mxu0
        %v2957 = vadd.f32 0.0, %v2956
        %2958 = vmatprep.mubr.f32.mxu0 %v2886
        %2959 = vmatmul.mubr.f32.gmra.mxu0 %v2877
        %v2960 = vpop.f32.mrf.mxu0
        %v2961 = vadd.f32 0.0, %v2960
        %v2962 = vpop.f32.mrf.mxu0
        %v2963 = vadd.f32 0.0, %v2962
        %2964 = vdwg.mxu0
        %2965 = vmatprep.subr.mxu0 %v2823
        %2966 = vmatpush1.msra.mxu0 %v2822
        %2967 = vmatprep.subr.mxu0 %v2819
        %2968 = vmatpush1.msra.mxu0 %v2818
        %2969 = vmatprep.subr.mxu0 %v2815
        %2970 = vmatpush1.msra.mxu0 %v2814
        %2971 = vmatprep.subr.mxu0 %v2811
        %2972 = vmatpush1.msra.mxu0 %v2810
        %2973 = vmatprep.subr.mxu0 %v2807
        %2974 = vmatpush1.msra.mxu0 %v2806
        %2975 = vmatprep.subr.mxu0 %v2803
        %2976 = vmatpush1.msra.mxu0 %v2802
        %2977 = vmatprep.subr.mxu0 %v2799
        %2978 = vmatpush1.msra.mxu0 %v2798
        %2979 = vmatprep.subr.mxu0 %v2795
        %2980 = vmatpush1.msra.mxu0 %v2794
        %2981 = vmatprep.subr.mxu0 %v2791
        %2982 = vmatpush1.msra.mxu0 %v2790
        %2983 = vmatprep.subr.mxu0 %v2787
        %2984 = vmatpush1.msra.mxu0 %v2786
        %2985 = vmatprep.subr.mxu0 %v2783
        %2986 = vmatpush1.msra.mxu0 %v2782
        %2987 = vmatprep.subr.mxu0 %v2779
        %2988 = vmatpush1.msra.mxu0 %v2778
        %2989 = vmatprep.subr.mxu0 %v2775
        %2990 = vmatpush1.msra.mxu0 %v2774
        %2991 = vmatprep.subr.mxu0 %v2771
        %2992 = vmatpush1.msra.mxu0 %v2770
        %2993 = vmatprep.subr.mxu0 %v2767
        %2994 = vmatpush1.msra.mxu0 %v2766
        %2995 = vmatprep.subr.mxu0 %v2763
        %2996 = vmatpush1.msra.mxu0 %v2762
        %2997 = vmatprep.subr.mxu0 0.0
        %2998 = vmatpush2.msra.mxu0 0.0
        %2999 = vmatprep.subr.mxu0 0.0
        %3000 = vmatpush2.msra.mxu0 0.0
        %3001 = vmatprep.subr.mxu0 0.0
        %3002 = vmatpush2.msra.mxu0 0.0
        %3003 = vmatprep.subr.mxu0 0.0
        %3004 = vmatpush2.msra.mxu0 0.0
        %3005 = vmatprep.subr.mxu0 %v2871
        %3006 = vmatpush2.msra.mxu0 %v2870
        %3007 = vmatprep.subr.mxu0 %v2867
        %3008 = vmatpush2.msra.mxu0 %v2866
        %3009 = vmatprep.subr.mxu0 %v2863
        %3010 = vmatpush2.msra.mxu0 %v2862
        %3011 = vmatprep.subr.mxu0 %v2859
        %3012 = vmatpush2.msra.mxu0 %v2858
        %3013 = vmatprep.subr.mxu0 %v2855
        %3014 = vmatpush2.msra.mxu0 %v2854
        %3015 = vmatprep.subr.mxu0 %v2851
        %3016 = vmatpush2.msra.mxu0 %v2850
        %3017 = vmatprep.subr.mxu0 %v2847
        %3018 = vmatpush2.msra.mxu0 %v2846
        %3019 = vmatprep.subr.mxu0 %v2843
        %3020 = vmatpush2.msra.mxu0 %v2842
        %3021 = vmatprep.subr.mxu0 %v2839
        %3022 = vmatpush2.msra.mxu0 %v2838
        %3023 = vmatprep.subr.mxu0 %v2835
        %3024 = vmatpush2.msra.mxu0 %v2834
        %3025 = vmatprep.subr.mxu0 %v2831
        %3026 = vmatpush2.msra.mxu0 %v2830
        %3027 = vmatprep.subr.mxu0 %v2827
        %3028 = vmatpush2.msra.mxu0 %v2826
        %3029 = vmatprep.mubr.f32.mxu0 %v2884
        %3030 = vmatmul.mubr.f32.gmra.mxu0 %v2878
        %v3031 = vpop.f32.mrf.mxu0
        %v3032 = vadd.f32 0.0, %v3031
        %v3033 = vpop.f32.mrf.mxu0
        %v3034 = vadd.f32 0.0, %v3033
        %3035 = vmatprep.mubr.f32.mxu0 %v2886
        %3036 = vmatmul.mubr.f32.gmra.mxu0 %v2877
        %v3037 = vpop.f32.mrf.mxu0
        %v3038 = vadd.f32 0.0, %v3037
        %v3039 = vpop.f32.mrf.mxu0
        %v3040 = vadd.f32 0.0, %v3039
        %3041 = vdwg.mxu0
        %v3043 = vsel %vm2612, %v2640, 0
        %v3046 = vsel %vm2612, %v2642, 0
        %3048 = vmatprep.subr.mxu0 %v2704
        %3049 = vmatpush1.msra.mxu0 %v2703
        %3050 = vmatprep.subr.mxu0 %v2700
        %3051 = vmatpush1.msra.mxu0 %v2699
        %3052 = vmatprep.subr.mxu0 %v2696
        %3053 = vmatpush1.msra.mxu0 %v2695
        %3054 = vmatprep.subr.mxu0 %v2692
        %3055 = vmatpush1.msra.mxu0 %v2691
        %3056 = vmatprep.subr.mxu0 %v2688
        %3057 = vmatpush1.msra.mxu0 %v2687
        %3058 = vmatprep.subr.mxu0 %v2684
        %3059 = vmatpush1.msra.mxu0 %v2683
        %3060 = vmatprep.subr.mxu0 %v2680
        %3061 = vmatpush1.msra.mxu0 %v2679
        %3062 = vmatprep.subr.mxu0 %v2676
        %3063 = vmatpush1.msra.mxu0 %v2675
        %3064 = vmatprep.subr.mxu0 %v2672
        %3065 = vmatpush1.msra.mxu0 %v2671
        %3066 = vmatprep.subr.mxu0 %v2668
        %3067 = vmatpush1.msra.mxu0 %v2667
        %3068 = vmatprep.subr.mxu0 %v2664
        %3069 = vmatpush1.msra.mxu0 %v2663
        %3070 = vmatprep.subr.mxu0 %v2660
        %3071 = vmatpush1.msra.mxu0 %v2659
        %3072 = vmatprep.subr.mxu0 %v2656
        %3073 = vmatpush1.msra.mxu0 %v2655
        %3074 = vmatprep.subr.mxu0 %v2652
        %3075 = vmatpush1.msra.mxu0 %v2651
        %3076 = vmatprep.subr.mxu0 %v2648
        %3077 = vmatpush1.msra.mxu0 %v2647
        %3078 = vmatprep.subr.mxu0 %v2644
        %3079 = vmatpush1.msra.mxu0 %v2643
        %3080 = vmatprep.subr.mxu0 0.0
        %3081 = vmatpush2.msra.mxu0 0.0
        %3082 = vmatprep.subr.mxu0 0.0
        %3083 = vmatpush2.msra.mxu0 0.0
        %3084 = vmatprep.subr.mxu0 0.0
        %3085 = vmatpush2.msra.mxu0 0.0
        %3086 = vmatprep.subr.mxu0 0.0
        %3087 = vmatpush2.msra.mxu0 0.0
        %3088 = vmatprep.subr.mxu0 %v2752
        %3089 = vmatpush2.msra.mxu0 %v2751
        %3090 = vmatprep.subr.mxu0 %v2748
        %3091 = vmatpush2.msra.mxu0 %v2747
        %3092 = vmatprep.subr.mxu0 %v2744
        %3093 = vmatpush2.msra.mxu0 %v2743
        %3094 = vmatprep.subr.mxu0 %v2740
        %3095 = vmatpush2.msra.mxu0 %v2739
        %3096 = vmatprep.subr.mxu0 %v2736
        %3097 = vmatpush2.msra.mxu0 %v2735
        %3098 = vmatprep.subr.mxu0 %v2732
        %3099 = vmatpush2.msra.mxu0 %v2731
        %3100 = vmatprep.subr.mxu0 %v2728
        %3101 = vmatpush2.msra.mxu0 %v2727
        %3102 = vmatprep.subr.mxu0 %v2724
        %3103 = vmatpush2.msra.mxu0 %v2723
        %3104 = vmatprep.subr.mxu0 %v2720
        %3105 = vmatpush2.msra.mxu0 %v2719
        %3106 = vmatprep.subr.mxu0 %v2716
        %3107 = vmatpush2.msra.mxu0 %v2715
        %3108 = vmatprep.subr.mxu0 %v2712
        %3109 = vmatpush2.msra.mxu0 %v2711
        %3110 = vmatprep.subr.mxu0 %v2708
        %3111 = vmatpush2.msra.mxu0 %v2707
        %3112 = vmatprep.mubr.f32.mxu0 %v3043
        %3113 = vmatmul.mubr.f32.gmra.mxu0 %v2639
        %v3114 = vpop.f32.mrf.mxu0
        %v3115 = vadd.f32 %v2955, %v3114
        %v3116 = vpop.f32.mrf.mxu0
        %v3117 = vadd.f32 %v2957, %v3116
        %3118 = vmatprep.mubr.f32.mxu0 %v3046
        %3119 = vmatmul.mubr.f32.gmra.mxu0 %v2641
        %v3120 = vpop.f32.mrf.mxu0
        %v3121 = vadd.f32 %v2961, %v3120
        %v3122 = vpop.f32.mrf.mxu0
        %v3123 = vadd.f32 %v2963, %v3122
        %3124 = vdwg.mxu0
        %3125 = vmatprep.subr.mxu0 %v2706
        %3126 = vmatpush1.msra.mxu0 %v2705
        %3127 = vmatprep.subr.mxu0 %v2702
        %3128 = vmatpush1.msra.mxu0 %v2701
        %3129 = vmatprep.subr.mxu0 %v2698
        %3130 = vmatpush1.msra.mxu0 %v2697
        %3131 = vmatprep.subr.mxu0 %v2694
        %3132 = vmatpush1.msra.mxu0 %v2693
        %3133 = vmatprep.subr.mxu0 %v2690
        %3134 = vmatpush1.msra.mxu0 %v2689
        %3135 = vmatprep.subr.mxu0 %v2686
        %3136 = vmatpush1.msra.mxu0 %v2685
        %3137 = vmatprep.subr.mxu0 %v2682
        %3138 = vmatpush1.msra.mxu0 %v2681
        %3139 = vmatprep.subr.mxu0 %v2678
        %3140 = vmatpush1.msra.mxu0 %v2677
        %3141 = vmatprep.subr.mxu0 %v2674
        %3142 = vmatpush1.msra.mxu0 %v2673
        %3143 = vmatprep.subr.mxu0 %v2670
        %3144 = vmatpush1.msra.mxu0 %v2669
        %3145 = vmatprep.subr.mxu0 %v2666
        %3146 = vmatpush1.msra.mxu0 %v2665
        %3147 = vmatprep.subr.mxu0 %v2662
        %3148 = vmatpush1.msra.mxu0 %v2661
        %3149 = vmatprep.subr.mxu0 %v2658
        %3150 = vmatpush1.msra.mxu0 %v2657
        %3151 = vmatprep.subr.mxu0 %v2654
        %3152 = vmatpush1.msra.mxu0 %v2653
        %3153 = vmatprep.subr.mxu0 %v2650
        %3154 = vmatpush1.msra.mxu0 %v2649
        %3155 = vmatprep.subr.mxu0 %v2646
        %3156 = vmatpush1.msra.mxu0 %v2645
        %3157 = vmatprep.subr.mxu0 0.0
        %3158 = vmatpush2.msra.mxu0 0.0
        %3159 = vmatprep.subr.mxu0 0.0
        %3160 = vmatpush2.msra.mxu0 0.0
        %3161 = vmatprep.subr.mxu0 0.0
        %3162 = vmatpush2.msra.mxu0 0.0
        %3163 = vmatprep.subr.mxu0 0.0
        %3164 = vmatpush2.msra.mxu0 0.0
        %3165 = vmatprep.subr.mxu0 %v2754
        %3166 = vmatpush2.msra.mxu0 %v2753
        %3167 = vmatprep.subr.mxu0 %v2750
        %3168 = vmatpush2.msra.mxu0 %v2749
        %3169 = vmatprep.subr.mxu0 %v2746
        %3170 = vmatpush2.msra.mxu0 %v2745
        %3171 = vmatprep.subr.mxu0 %v2742
        %3172 = vmatpush2.msra.mxu0 %v2741
        %3173 = vmatprep.subr.mxu0 %v2738
        %3174 = vmatpush2.msra.mxu0 %v2737
        %3175 = vmatprep.subr.mxu0 %v2734
        %3176 = vmatpush2.msra.mxu0 %v2733
        %3177 = vmatprep.subr.mxu0 %v2730
        %3178 = vmatpush2.msra.mxu0 %v2729
        %3179 = vmatprep.subr.mxu0 %v2726
        %3180 = vmatpush2.msra.mxu0 %v2725
        %3181 = vmatprep.subr.mxu0 %v2722
        %3182 = vmatpush2.msra.mxu0 %v2721
        %3183 = vmatprep.subr.mxu0 %v2718
        %3184 = vmatpush2.msra.mxu0 %v2717
        %3185 = vmatprep.subr.mxu0 %v2714
        %3186 = vmatpush2.msra.mxu0 %v2713
        %3187 = vmatprep.subr.mxu0 %v2710
        %3188 = vmatpush2.msra.mxu0 %v2709
        %3189 = vmatprep.mubr.f32.mxu0 %v3043
        %3190 = vmatmul.mubr.f32.gmra.mxu0 %v2639
        %v3191 = vpop.f32.mrf.mxu0
        %v3192 = vadd.f32 %v3032, %v3191
        %v3193 = vpop.f32.mrf.mxu0
        %v3194 = vadd.f32 %v3034, %v3193
        %3195 = vmatprep.mubr.f32.mxu0 %v3046
        %3196 = vmatmul.mubr.f32.gmra.mxu0 %v2641
        %v3197 = vpop.f32.mrf.mxu0
        %v3198 = vadd.f32 %v3038, %v3197
        %v3199 = vpop.f32.mrf.mxu0
        %v3200 = vadd.f32 %v3040, %v3199
        %3201 = vdwg.mxu0
        %v3202 = vld [vmem:[#allocation3] sm:$0xfc]
        %v3203 = vld [vmem:[#allocation3 + $0x8] sm:$0xfc]
        %v3204 = vld [vmem:[#allocation3 + $0x10] sm:$0xff]
        %v3205 = vld [vmem:[#allocation3 + $0x18] sm:$0xff]
        %s3206 = scalar_lea.vmem [#allocation14], 1792
        %v3207 = vld [vmem:[%s3206] sm:$0xff]
        %v3208 = vld [vmem:[%s3206 + $0x8] sm:$0xff]
        %v3209 = vld [vmem:[%s3206 + $0x10] sm:$0xff]
        %v3210 = vld [vmem:[%s3206 + $0x18] sm:$0xff]
        %v3211 = vld [vmem:[%s3206 + $0x20] sm:$0xff]
        %v3212 = vld [vmem:[%s3206 + $0x28] sm:$0xff]
        %v3213 = vld [vmem:[%s3206 + $0x30] sm:$0xff]
        %v3214 = vld [vmem:[%s3206 + $0x38] sm:$0xff]
        %v3215 = vld [vmem:[%s3206 + $0x40] sm:$0xff]
        %v3216 = vld [vmem:[%s3206 + $0x48] sm:$0xff]
        %v3217 = vld [vmem:[%s3206 + $0x50] sm:$0xff]
        %v3218 = vld [vmem:[%s3206 + $0x58] sm:$0xff]
        %v3219 = vld [vmem:[%s3206 + $0x60] sm:$0xff]
        %v3220 = vld [vmem:[%s3206 + $0x68] sm:$0xff]
        %v3221 = vld [vmem:[%s3206 + $0x70] sm:$0xff]
        %v3222 = vld [vmem:[%s3206 + $0x78] sm:$0xff]
        %v3223 = vld [vmem:[%s3206 + $0x80] sm:$0xff]
        %v3224 = vld [vmem:[%s3206 + $0x88] sm:$0xff]
        %v3225 = vld [vmem:[%s3206 + $0x90] sm:$0xff]
        %v3226 = vld [vmem:[%s3206 + $0x98] sm:$0xff]
        %v3227 = vld [vmem:[%s3206 + $0xa0] sm:$0xff]
        %v3228 = vld [vmem:[%s3206 + $0xa8] sm:$0xff]
        %v3229 = vld [vmem:[%s3206 + $0xb0] sm:$0xff]
        %v3230 = vld [vmem:[%s3206 + $0xb8] sm:$0xff]
        %v3231 = vld [vmem:[%s3206 + $0xc0] sm:$0xff]
        %v3232 = vld [vmem:[%s3206 + $0xc8] sm:$0xff]
        %v3233 = vld [vmem:[%s3206 + $0xd0] sm:$0xff]
        %v3234 = vld [vmem:[%s3206 + $0xd8] sm:$0xff]
        %v3235 = vld [vmem:[%s3206 + $0xe0] sm:$0xff]
        %v3236 = vld [vmem:[%s3206 + $0xe8] sm:$0xff]
        %v3237 = vld [vmem:[%s3206 + $0xf0] sm:$0xff]
        %v3238 = vld [vmem:[%s3206 + $0xf8] sm:$0xff]
        %v3239 = vld [vmem:[%s3206 + $0x100] sm:$0xff]
        %v3240 = vld [vmem:[%s3206 + $0x108] sm:$0xff]
        %v3241 = vld [vmem:[%s3206 + $0x110] sm:$0xff]
        %v3242 = vld [vmem:[%s3206 + $0x118] sm:$0xff]
        %v3243 = vld [vmem:[%s3206 + $0x120] sm:$0xff]
        %v3244 = vld [vmem:[%s3206 + $0x128] sm:$0xff]
        %v3245 = vld [vmem:[%s3206 + $0x130] sm:$0xff]
        %v3246 = vld [vmem:[%s3206 + $0x138] sm:$0xff]
        %v3247 = vld [vmem:[%s3206 + $0x140] sm:$0xff]
        %v3248 = vld [vmem:[%s3206 + $0x148] sm:$0xff]
        %v3249 = vld [vmem:[%s3206 + $0x150] sm:$0xff]
        %v3250 = vld [vmem:[%s3206 + $0x158] sm:$0xff]
        %v3251 = vld [vmem:[%s3206 + $0x160] sm:$0xff]
        %v3252 = vld [vmem:[%s3206 + $0x168] sm:$0xff]
        %v3253 = vld [vmem:[%s3206 + $0x170] sm:$0xff]
        %v3254 = vld [vmem:[%s3206 + $0x178] sm:$0xff]
        %v3255 = vld [vmem:[%s3206 + $0x180] sm:$0xff]
        %v3256 = vld [vmem:[%s3206 + $0x188] sm:$0xff]
        %v3257 = vld [vmem:[%s3206 + $0x190] sm:$0xff]
        %v3258 = vld [vmem:[%s3206 + $0x198] sm:$0xff]
        %v3259 = vld [vmem:[%s3206 + $0x1a0] sm:$0xff]
        %v3260 = vld [vmem:[%s3206 + $0x1a8] sm:$0xff]
        %v3261 = vld [vmem:[%s3206 + $0x1b0] sm:$0xff]
        %v3262 = vld [vmem:[%s3206 + $0x1b8] sm:$0xff]
        %v3263 = vld [vmem:[%s3206 + $0x1c0] sm:$0xff]
        %v3264 = vld [vmem:[%s3206 + $0x1c8] sm:$0xff]
        %v3265 = vld [vmem:[%s3206 + $0x1d0] sm:$0xff]
        %v3266 = vld [vmem:[%s3206 + $0x1d8] sm:$0xff]
        %v3267 = vld [vmem:[%s3206 + $0x1e0] sm:$0xff]
        %v3268 = vld [vmem:[%s3206 + $0x1e8] sm:$0xff]
        %v3269 = vld [vmem:[%s3206 + $0x1f0] sm:$0xff]
        %v3270 = vld [vmem:[%s3206 + $0x1f8] sm:$0xff]
        %v3271 = vld [vmem:[%s3206 + $0x200] sm:$0xff]
        %v3272 = vld [vmem:[%s3206 + $0x208] sm:$0xff]
        %v3273 = vld [vmem:[%s3206 + $0x210] sm:$0xff]
        %v3274 = vld [vmem:[%s3206 + $0x218] sm:$0xff]
        %v3275 = vld [vmem:[%s3206 + $0x220] sm:$0xff]
        %v3276 = vld [vmem:[%s3206 + $0x228] sm:$0xff]
        %v3277 = vld [vmem:[%s3206 + $0x230] sm:$0xff]
        %v3278 = vld [vmem:[%s3206 + $0x238] sm:$0xff]
        %v3279 = vld [vmem:[%s3206 + $0x240] sm:$0xff]
        %v3280 = vld [vmem:[%s3206 + $0x248] sm:$0xff]
        %v3281 = vld [vmem:[%s3206 + $0x250] sm:$0xff]
        %v3282 = vld [vmem:[%s3206 + $0x258] sm:$0xff]
        %v3283 = vld [vmem:[%s3206 + $0x260] sm:$0xff]
        %v3284 = vld [vmem:[%s3206 + $0x268] sm:$0xff]
        %v3285 = vld [vmem:[%s3206 + $0x270] sm:$0xff]
        %v3286 = vld [vmem:[%s3206 + $0x278] sm:$0xff]
        %v3287 = vld [vmem:[%s3206 + $0x280] sm:$0xff]
        %v3288 = vld [vmem:[%s3206 + $0x288] sm:$0xff]
        %v3289 = vld [vmem:[%s3206 + $0x290] sm:$0xff]
        %v3290 = vld [vmem:[%s3206 + $0x298] sm:$0xff]
        %v3291 = vld [vmem:[%s3206 + $0x2a0] sm:$0xff]
        %v3292 = vld [vmem:[%s3206 + $0x2a8] sm:$0xff]
        %v3293 = vld [vmem:[%s3206 + $0x2b0] sm:$0xff]
        %v3294 = vld [vmem:[%s3206 + $0x2b8] sm:$0xff]
        %v3295 = vld [vmem:[%s3206 + $0x2c0] sm:$0xff]
        %v3296 = vld [vmem:[%s3206 + $0x2c8] sm:$0xff]
        %v3297 = vld [vmem:[%s3206 + $0x2d0] sm:$0xff]
        %v3298 = vld [vmem:[%s3206 + $0x2d8] sm:$0xff]
        %v3299 = vld [vmem:[%s3206 + $0x2e0] sm:$0xff]
        %v3300 = vld [vmem:[%s3206 + $0x2e8] sm:$0xff]
        %v3301 = vld [vmem:[%s3206 + $0x2f0] sm:$0xff]
        %v3302 = vld [vmem:[%s3206 + $0x2f8] sm:$0xff]
        %v3303 = vld [vmem:[%s3206 + $0x300] sm:$0xff]
        %v3304 = vld [vmem:[%s3206 + $0x308] sm:$0xff]
        %v3305 = vld [vmem:[%s3206 + $0x310] sm:$0xff]
        %v3306 = vld [vmem:[%s3206 + $0x318] sm:$0xff]
        %v3307 = vld [vmem:[%s3206 + $0x320] sm:$0xff]
        %v3308 = vld [vmem:[%s3206 + $0x328] sm:$0xff]
        %v3309 = vld [vmem:[%s3206 + $0x330] sm:$0xff]
        %v3310 = vld [vmem:[%s3206 + $0x338] sm:$0xff]
        %v3311 = vld [vmem:[%s3206 + $0x340] sm:$0xff]
        %v3312 = vld [vmem:[%s3206 + $0x348] sm:$0xff]
        %v3313 = vld [vmem:[%s3206 + $0x350] sm:$0xff]
        %v3314 = vld [vmem:[%s3206 + $0x358] sm:$0xff]
        %v3315 = vld [vmem:[%s3206 + $0x360] sm:$0xff]
        %v3316 = vld [vmem:[%s3206 + $0x368] sm:$0xff]
        %v3317 = vld [vmem:[%s3206 + $0x370] sm:$0xff]
        %v3318 = vld [vmem:[%s3206 + $0x378] sm:$0xff]
        %vm3323 = vcmask 1045504
        %v3324 = vrot.slane %v3202, 2
        %v3325 = vrot.slane %v3204, 2
        %v3326 = vsel %vm3323, %v3324, %v3325
        %v3327 = vrot.slane %v3203, 2
        %v3328 = vrot.slane %v3205, 2
        %v3329 = vsel %vm3323, %v3327, %v3328
        %v3332 = vsel %vm2612, %v3329, 0
        %v3334 = vsel %vm2612, %v3328, 0
        %3336 = vmatprep.subr.mxu0 %v3268
        %3337 = vmatpush1.msra.mxu0 %v3267
        %3338 = vmatprep.subr.mxu0 %v3264
        %3339 = vmatpush1.msra.mxu0 %v3263
        %3340 = vmatprep.subr.mxu0 %v3260
        %3341 = vmatpush1.msra.mxu0 %v3259
        %3342 = vmatprep.subr.mxu0 %v3256
        %3343 = vmatpush1.msra.mxu0 %v3255
        %3344 = vmatprep.subr.mxu0 %v3252
        %3345 = vmatpush1.msra.mxu0 %v3251
        %3346 = vmatprep.subr.mxu0 %v3248
        %3347 = vmatpush1.msra.mxu0 %v3247
        %3348 = vmatprep.subr.mxu0 %v3244
        %3349 = vmatpush1.msra.mxu0 %v3243
        %3350 = vmatprep.subr.mxu0 %v3240
        %3351 = vmatpush1.msra.mxu0 %v3239
        %3352 = vmatprep.subr.mxu0 %v3236
        %3353 = vmatpush1.msra.mxu0 %v3235
        %3354 = vmatprep.subr.mxu0 %v3232
        %3355 = vmatpush1.msra.mxu0 %v3231
        %3356 = vmatprep.subr.mxu0 %v3228
        %3357 = vmatpush1.msra.mxu0 %v3227
        %3358 = vmatprep.subr.mxu0 %v3224
        %3359 = vmatpush1.msra.mxu0 %v3223
        %3360 = vmatprep.subr.mxu0 %v3220
        %3361 = vmatpush1.msra.mxu0 %v3219
        %3362 = vmatprep.subr.mxu0 %v3216
        %3363 = vmatpush1.msra.mxu0 %v3215
        %3364 = vmatprep.subr.mxu0 %v3212
        %3365 = vmatpush1.msra.mxu0 %v3211
        %3366 = vmatprep.subr.mxu0 %v3208
        %3367 = vmatpush1.msra.mxu0 %v3207
        %3368 = vmatprep.subr.mxu0 0.0
        %3369 = vmatpush2.msra.mxu0 0.0
        %3370 = vmatprep.subr.mxu0 0.0
        %3371 = vmatpush2.msra.mxu0 0.0
        %3372 = vmatprep.subr.mxu0 0.0
        %3373 = vmatpush2.msra.mxu0 0.0
        %3374 = vmatprep.subr.mxu0 0.0
        %3375 = vmatpush2.msra.mxu0 0.0
        %3376 = vmatprep.subr.mxu0 %v3316
        %3377 = vmatpush2.msra.mxu0 %v3315
        %3378 = vmatprep.subr.mxu0 %v3312
        %3379 = vmatpush2.msra.mxu0 %v3311
        %3380 = vmatprep.subr.mxu0 %v3308
        %3381 = vmatpush2.msra.mxu0 %v3307
        %3382 = vmatprep.subr.mxu0 %v3304
        %3383 = vmatpush2.msra.mxu0 %v3303
        %3384 = vmatprep.subr.mxu0 %v3300
        %3385 = vmatpush2.msra.mxu0 %v3299
        %3386 = vmatprep.subr.mxu0 %v3296
        %3387 = vmatpush2.msra.mxu0 %v3295
        %3388 = vmatprep.subr.mxu0 %v3292
        %3389 = vmatpush2.msra.mxu0 %v3291
        %3390 = vmatprep.subr.mxu0 %v3288
        %3391 = vmatpush2.msra.mxu0 %v3287
        %3392 = vmatprep.subr.mxu0 %v3284
        %3393 = vmatpush2.msra.mxu0 %v3283
        %3394 = vmatprep.subr.mxu0 %v3280
        %3395 = vmatpush2.msra.mxu0 %v3279
        %3396 = vmatprep.subr.mxu0 %v3276
        %3397 = vmatpush2.msra.mxu0 %v3275
        %3398 = vmatprep.subr.mxu0 %v3272
        %3399 = vmatpush2.msra.mxu0 %v3271
        %3400 = vmatprep.mubr.f32.mxu0 %v3332
        %3401 = vmatmul.mubr.f32.gmra.mxu0 %v3326
        %v3402 = vpop.f32.mrf.mxu0
        %v3403 = vadd.f32 0.0, %v3402
        %v3404 = vpop.f32.mrf.mxu0
        %v3405 = vadd.f32 0.0, %v3404
        %3406 = vmatprep.mubr.f32.mxu0 %v3334
        %3407 = vmatmul.mubr.f32.gmra.mxu0 %v3325
        %v3408 = vpop.f32.mrf.mxu0
        %v3409 = vadd.f32 0.0, %v3408
        %v3410 = vpop.f32.mrf.mxu0
        %v3411 = vadd.f32 0.0, %v3410
        %3412 = vdwg.mxu0
        %3413 = vmatprep.subr.mxu0 %v3270
        %3414 = vmatpush1.msra.mxu0 %v3269
        %3415 = vmatprep.subr.mxu0 %v3266
        %3416 = vmatpush1.msra.mxu0 %v3265
        %3417 = vmatprep.subr.mxu0 %v3262
        %3418 = vmatpush1.msra.mxu0 %v3261
        %3419 = vmatprep.subr.mxu0 %v3258
        %3420 = vmatpush1.msra.mxu0 %v3257
        %3421 = vmatprep.subr.mxu0 %v3254
        %3422 = vmatpush1.msra.mxu0 %v3253
        %3423 = vmatprep.subr.mxu0 %v3250
        %3424 = vmatpush1.msra.mxu0 %v3249
        %3425 = vmatprep.subr.mxu0 %v3246
        %3426 = vmatpush1.msra.mxu0 %v3245
        %3427 = vmatprep.subr.mxu0 %v3242
        %3428 = vmatpush1.msra.mxu0 %v3241
        %3429 = vmatprep.subr.mxu0 %v3238
        %3430 = vmatpush1.msra.mxu0 %v3237
        %3431 = vmatprep.subr.mxu0 %v3234
        %3432 = vmatpush1.msra.mxu0 %v3233
        %3433 = vmatprep.subr.mxu0 %v3230
        %3434 = vmatpush1.msra.mxu0 %v3229
        %3435 = vmatprep.subr.mxu0 %v3226
        %3436 = vmatpush1.msra.mxu0 %v3225
        %3437 = vmatprep.subr.mxu0 %v3222
        %3438 = vmatpush1.msra.mxu0 %v3221
        %3439 = vmatprep.subr.mxu0 %v3218
        %3440 = vmatpush1.msra.mxu0 %v3217
        %3441 = vmatprep.subr.mxu0 %v3214
        %3442 = vmatpush1.msra.mxu0 %v3213
        %3443 = vmatprep.subr.mxu0 %v3210
        %3444 = vmatpush1.msra.mxu0 %v3209
        %3445 = vmatprep.subr.mxu0 0.0
        %3446 = vmatpush2.msra.mxu0 0.0
        %3447 = vmatprep.subr.mxu0 0.0
        %3448 = vmatpush2.msra.mxu0 0.0
        %3449 = vmatprep.subr.mxu0 0.0
        %3450 = vmatpush2.msra.mxu0 0.0
        %3451 = vmatprep.subr.mxu0 0.0
        %3452 = vmatpush2.msra.mxu0 0.0
        %3453 = vmatprep.subr.mxu0 %v3318
        %3454 = vmatpush2.msra.mxu0 %v3317
        %3455 = vmatprep.subr.mxu0 %v3314
        %3456 = vmatpush2.msra.mxu0 %v3313
        %3457 = vmatprep.subr.mxu0 %v3310
        %3458 = vmatpush2.msra.mxu0 %v3309
        %3459 = vmatprep.subr.mxu0 %v3306
        %3460 = vmatpush2.msra.mxu0 %v3305
        %3461 = vmatprep.subr.mxu0 %v3302
        %3462 = vmatpush2.msra.mxu0 %v3301
        %3463 = vmatprep.subr.mxu0 %v3298
        %3464 = vmatpush2.msra.mxu0 %v3297
        %3465 = vmatprep.subr.mxu0 %v3294
        %3466 = vmatpush2.msra.mxu0 %v3293
        %3467 = vmatprep.subr.mxu0 %v3290
        %3468 = vmatpush2.msra.mxu0 %v3289
        %3469 = vmatprep.subr.mxu0 %v3286
        %3470 = vmatpush2.msra.mxu0 %v3285
        %3471 = vmatprep.subr.mxu0 %v3282
        %3472 = vmatpush2.msra.mxu0 %v3281
        %3473 = vmatprep.subr.mxu0 %v3278
        %3474 = vmatpush2.msra.mxu0 %v3277
        %3475 = vmatprep.subr.mxu0 %v3274
        %3476 = vmatpush2.msra.mxu0 %v3273
        %3477 = vmatprep.mubr.f32.mxu0 %v3332
        %3478 = vmatmul.mubr.f32.gmra.mxu0 %v3326
        %v3479 = vpop.f32.mrf.mxu0
        %v3480 = vadd.f32 0.0, %v3479
        %v3481 = vpop.f32.mrf.mxu0
        %v3482 = vadd.f32 0.0, %v3481
        %3483 = vmatprep.mubr.f32.mxu0 %v3334
        %3484 = vmatmul.mubr.f32.gmra.mxu0 %v3325
        %v3485 = vpop.f32.mrf.mxu0
        %v3486 = vadd.f32 0.0, %v3485
        %v3487 = vpop.f32.mrf.mxu0
        %v3488 = vadd.f32 0.0, %v3487
        %3489 = vdwg.mxu0
        %v3490 = vadd.f32 %v3115, %v3403
        %v3491 = vadd.f32 %v3117, %v3405
        %v3492 = vadd.f32 %v3192, %v3480
        %v3493 = vadd.f32 %v3194, %v3482
        %v3494 = vadd.f32 %v3121, %v3409
        %v3495 = vadd.f32 %v3123, %v3411
        %v3496 = vadd.f32 %v3198, %v3486
        %v3497 = vadd.f32 %v3200, %v3488
        %v3498 = vld [vmem:[#allocation3] sm:$0xf8]
        %v3499 = vld [vmem:[#allocation3 + $0x8] sm:$0xf8]
        %v3500 = vld [vmem:[#allocation3 + $0x10] sm:$0xff]
        %v3501 = vld [vmem:[#allocation3 + $0x18] sm:$0xff]
        %v3502 = vld [vmem:[#allocation3 + $0x20] sm:$0x1]
        %v3503 = vld [vmem:[#allocation3 + $0x28] sm:$0x1]
        %s3504 = scalar_lea.vmem [#allocation14], 2688
        %v3505 = vld [vmem:[%s3504] sm:$0xff]
        %v3506 = vld [vmem:[%s3504 + $0x8] sm:$0xff]
        %v3507 = vld [vmem:[%s3504 + $0x10] sm:$0xff]
        %v3508 = vld [vmem:[%s3504 + $0x18] sm:$0xff]
        %v3509 = vld [vmem:[%s3504 + $0x20] sm:$0xff]
        %v3510 = vld [vmem:[%s3504 + $0x28] sm:$0xff]
        %v3511 = vld [vmem:[%s3504 + $0x30] sm:$0xff]
        %v3512 = vld [vmem:[%s3504 + $0x38] sm:$0xff]
        %v3513 = vld [vmem:[%s3504 + $0x40] sm:$0xff]
        %v3514 = vld [vmem:[%s3504 + $0x48] sm:$0xff]
        %v3515 = vld [vmem:[%s3504 + $0x50] sm:$0xff]
        %v3516 = vld [vmem:[%s3504 + $0x58] sm:$0xff]
        %v3517 = vld [vmem:[%s3504 + $0x60] sm:$0xff]
        %v3518 = vld [vmem:[%s3504 + $0x68] sm:$0xff]
        %v3519 = vld [vmem:[%s3504 + $0x70] sm:$0xff]
        %v3520 = vld [vmem:[%s3504 + $0x78] sm:$0xff]
        %v3521 = vld [vmem:[%s3504 + $0x80] sm:$0xff]
        %v3522 = vld [vmem:[%s3504 + $0x88] sm:$0xff]
        %v3523 = vld [vmem:[%s3504 + $0x90] sm:$0xff]
        %v3524 = vld [vmem:[%s3504 + $0x98] sm:$0xff]
        %v3525 = vld [vmem:[%s3504 + $0xa0] sm:$0xff]
        %v3526 = vld [vmem:[%s3504 + $0xa8] sm:$0xff]
        %v3527 = vld [vmem:[%s3504 + $0xb0] sm:$0xff]
        %v3528 = vld [vmem:[%s3504 + $0xb8] sm:$0xff]
        %v3529 = vld [vmem:[%s3504 + $0xc0] sm:$0xff]
        %v3530 = vld [vmem:[%s3504 + $0xc8] sm:$0xff]
        %v3531 = vld [vmem:[%s3504 + $0xd0] sm:$0xff]
        %v3532 = vld [vmem:[%s3504 + $0xd8] sm:$0xff]
        %v3533 = vld [vmem:[%s3504 + $0xe0] sm:$0xff]
        %v3534 = vld [vmem:[%s3504 + $0xe8] sm:$0xff]
        %v3535 = vld [vmem:[%s3504 + $0xf0] sm:$0xff]
        %v3536 = vld [vmem:[%s3504 + $0xf8] sm:$0xff]
        %v3537 = vld [vmem:[%s3504 + $0x100] sm:$0xff]
        %v3538 = vld [vmem:[%s3504 + $0x108] sm:$0xff]
        %v3539 = vld [vmem:[%s3504 + $0x110] sm:$0xff]
        %v3540 = vld [vmem:[%s3504 + $0x118] sm:$0xff]
        %v3541 = vld [vmem:[%s3504 + $0x120] sm:$0xff]
        %v3542 = vld [vmem:[%s3504 + $0x128] sm:$0xff]
        %v3543 = vld [vmem:[%s3504 + $0x130] sm:$0xff]
        %v3544 = vld [vmem:[%s3504 + $0x138] sm:$0xff]
        %v3545 = vld [vmem:[%s3504 + $0x140] sm:$0xff]
        %v3546 = vld [vmem:[%s3504 + $0x148] sm:$0xff]
        %v3547 = vld [vmem:[%s3504 + $0x150] sm:$0xff]
        %v3548 = vld [vmem:[%s3504 + $0x158] sm:$0xff]
        %v3549 = vld [vmem:[%s3504 + $0x160] sm:$0xff]
        %v3550 = vld [vmem:[%s3504 + $0x168] sm:$0xff]
        %v3551 = vld [vmem:[%s3504 + $0x170] sm:$0xff]
        %v3552 = vld [vmem:[%s3504 + $0x178] sm:$0xff]
        %v3553 = vld [vmem:[%s3504 + $0x180] sm:$0xff]
        %v3554 = vld [vmem:[%s3504 + $0x188] sm:$0xff]
        %v3555 = vld [vmem:[%s3504 + $0x190] sm:$0xff]
        %v3556 = vld [vmem:[%s3504 + $0x198] sm:$0xff]
        %v3557 = vld [vmem:[%s3504 + $0x1a0] sm:$0xff]
        %v3558 = vld [vmem:[%s3504 + $0x1a8] sm:$0xff]
        %v3559 = vld [vmem:[%s3504 + $0x1b0] sm:$0xff]
        %v3560 = vld [vmem:[%s3504 + $0x1b8] sm:$0xff]
        %v3561 = vld [vmem:[%s3504 + $0x1c0] sm:$0xff]
        %v3562 = vld [vmem:[%s3504 + $0x1c8] sm:$0xff]
        %v3563 = vld [vmem:[%s3504 + $0x1d0] sm:$0xff]
        %v3564 = vld [vmem:[%s3504 + $0x1d8] sm:$0xff]
        %v3565 = vld [vmem:[%s3504 + $0x1e0] sm:$0xff]
        %v3566 = vld [vmem:[%s3504 + $0x1e8] sm:$0xff]
        %v3567 = vld [vmem:[%s3504 + $0x1f0] sm:$0xff]
        %v3568 = vld [vmem:[%s3504 + $0x1f8] sm:$0xff]
        %v3569 = vld [vmem:[%s3504 + $0x200] sm:$0xff]
        %v3570 = vld [vmem:[%s3504 + $0x208] sm:$0xff]
        %v3571 = vld [vmem:[%s3504 + $0x210] sm:$0xff]
        %v3572 = vld [vmem:[%s3504 + $0x218] sm:$0xff]
        %v3573 = vld [vmem:[%s3504 + $0x220] sm:$0xff]
        %v3574 = vld [vmem:[%s3504 + $0x228] sm:$0xff]
        %v3575 = vld [vmem:[%s3504 + $0x230] sm:$0xff]
        %v3576 = vld [vmem:[%s3504 + $0x238] sm:$0xff]
        %v3577 = vld [vmem:[%s3504 + $0x240] sm:$0xff]
        %v3578 = vld [vmem:[%s3504 + $0x248] sm:$0xff]
        %v3579 = vld [vmem:[%s3504 + $0x250] sm:$0xff]
        %v3580 = vld [vmem:[%s3504 + $0x258] sm:$0xff]
        %v3581 = vld [vmem:[%s3504 + $0x260] sm:$0xff]
        %v3582 = vld [vmem:[%s3504 + $0x268] sm:$0xff]
        %v3583 = vld [vmem:[%s3504 + $0x270] sm:$0xff]
        %v3584 = vld [vmem:[%s3504 + $0x278] sm:$0xff]
        %v3585 = vld [vmem:[%s3504 + $0x280] sm:$0xff]
        %v3586 = vld [vmem:[%s3504 + $0x288] sm:$0xff]
        %v3587 = vld [vmem:[%s3504 + $0x290] sm:$0xff]
        %v3588 = vld [vmem:[%s3504 + $0x298] sm:$0xff]
        %v3589 = vld [vmem:[%s3504 + $0x2a0] sm:$0xff]
        %v3590 = vld [vmem:[%s3504 + $0x2a8] sm:$0xff]
        %v3591 = vld [vmem:[%s3504 + $0x2b0] sm:$0xff]
        %v3592 = vld [vmem:[%s3504 + $0x2b8] sm:$0xff]
        %v3593 = vld [vmem:[%s3504 + $0x2c0] sm:$0xff]
        %v3594 = vld [vmem:[%s3504 + $0x2c8] sm:$0xff]
        %v3595 = vld [vmem:[%s3504 + $0x2d0] sm:$0xff]
        %v3596 = vld [vmem:[%s3504 + $0x2d8] sm:$0xff]
        %v3597 = vld [vmem:[%s3504 + $0x2e0] sm:$0xff]
        %v3598 = vld [vmem:[%s3504 + $0x2e8] sm:$0xff]
        %v3599 = vld [vmem:[%s3504 + $0x2f0] sm:$0xff]
        %v3600 = vld [vmem:[%s3504 + $0x2f8] sm:$0xff]
        %v3601 = vld [vmem:[%s3504 + $0x300] sm:$0xff]
        %v3602 = vld [vmem:[%s3504 + $0x308] sm:$0xff]
        %v3603 = vld [vmem:[%s3504 + $0x310] sm:$0xff]
        %v3604 = vld [vmem:[%s3504 + $0x318] sm:$0xff]
        %v3605 = vld [vmem:[%s3504 + $0x320] sm:$0xff]
        %v3606 = vld [vmem:[%s3504 + $0x328] sm:$0xff]
        %v3607 = vld [vmem:[%s3504 + $0x330] sm:$0xff]
        %v3608 = vld [vmem:[%s3504 + $0x338] sm:$0xff]
        %v3609 = vld [vmem:[%s3504 + $0x340] sm:$0xff]
        %v3610 = vld [vmem:[%s3504 + $0x348] sm:$0xff]
        %v3611 = vld [vmem:[%s3504 + $0x350] sm:$0xff]
        %v3612 = vld [vmem:[%s3504 + $0x358] sm:$0xff]
        %v3613 = vld [vmem:[%s3504 + $0x360] sm:$0xff]
        %v3614 = vld [vmem:[%s3504 + $0x368] sm:$0xff]
        %v3615 = vld [vmem:[%s3504 + $0x370] sm:$0xff]
        %v3616 = vld [vmem:[%s3504 + $0x378] sm:$0xff]
        %vm3623 = vcmask 1044480
        %v3624 = vrot.slane %v3498, 3
        %v3625 = vrot.slane %v3500, 3
        %v3626 = vsel %vm3623, %v3624, %v3625
        %v3627 = vrot.slane %v3499, 3
        %v3628 = vrot.slane %v3501, 3
        %v3629 = vsel %vm3623, %v3627, %v3628
        %v3630 = vrot.slane %v3502, 3
        %v3631 = vsel %vm3623, %v3625, %v3630
        %v3632 = vrot.slane %v3503, 3
        %v3633 = vsel %vm3623, %v3628, %v3632
        %v3636 = vsel %vm2612, %v3629, 0
        %v3638 = vsel %vm2612, %v3633, 0
        %3640 = vmatprep.subr.mxu0 %v3566
        %3641 = vmatpush1.msra.mxu0 %v3565
        %3642 = vmatprep.subr.mxu0 %v3562
        %3643 = vmatpush1.msra.mxu0 %v3561
        %3644 = vmatprep.subr.mxu0 %v3558
        %3645 = vmatpush1.msra.mxu0 %v3557
        %3646 = vmatprep.subr.mxu0 %v3554
        %3647 = vmatpush1.msra.mxu0 %v3553
        %3648 = vmatprep.subr.mxu0 %v3550
        %3649 = vmatpush1.msra.mxu0 %v3549
        %3650 = vmatprep.subr.mxu0 %v3546
        %3651 = vmatpush1.msra.mxu0 %v3545
        %3652 = vmatprep.subr.mxu0 %v3542
        %3653 = vmatpush1.msra.mxu0 %v3541
        %3654 = vmatprep.subr.mxu0 %v3538
        %3655 = vmatpush1.msra.mxu0 %v3537
        %3656 = vmatprep.subr.mxu0 %v3534
        %3657 = vmatpush1.msra.mxu0 %v3533
        %3658 = vmatprep.subr.mxu0 %v3530
        %3659 = vmatpush1.msra.mxu0 %v3529
        %3660 = vmatprep.subr.mxu0 %v3526
        %3661 = vmatpush1.msra.mxu0 %v3525
        %3662 = vmatprep.subr.mxu0 %v3522
        %3663 = vmatpush1.msra.mxu0 %v3521
        %3664 = vmatprep.subr.mxu0 %v3518
        %3665 = vmatpush1.msra.mxu0 %v3517
        %3666 = vmatprep.subr.mxu0 %v3514
        %3667 = vmatpush1.msra.mxu0 %v3513
        %3668 = vmatprep.subr.mxu0 %v3510
        %3669 = vmatpush1.msra.mxu0 %v3509
        %3670 = vmatprep.subr.mxu0 %v3506
        %3671 = vmatpush1.msra.mxu0 %v3505
        %3672 = vmatprep.subr.mxu0 0.0
        %3673 = vmatpush2.msra.mxu0 0.0
        %3674 = vmatprep.subr.mxu0 0.0
        %3675 = vmatpush2.msra.mxu0 0.0
        %3676 = vmatprep.subr.mxu0 0.0
        %3677 = vmatpush2.msra.mxu0 0.0
        %3678 = vmatprep.subr.mxu0 0.0
        %3679 = vmatpush2.msra.mxu0 0.0
        %3680 = vmatprep.subr.mxu0 %v3614
        %3681 = vmatpush2.msra.mxu0 %v3613
        %3682 = vmatprep.subr.mxu0 %v3610
        %3683 = vmatpush2.msra.mxu0 %v3609
        %3684 = vmatprep.subr.mxu0 %v3606
        %3685 = vmatpush2.msra.mxu0 %v3605
        %3686 = vmatprep.subr.mxu0 %v3602
        %3687 = vmatpush2.msra.mxu0 %v3601
        %3688 = vmatprep.subr.mxu0 %v3598
        %3689 = vmatpush2.msra.mxu0 %v3597
        %3690 = vmatprep.subr.mxu0 %v3594
        %3691 = vmatpush2.msra.mxu0 %v3593
        %3692 = vmatprep.subr.mxu0 %v3590
        %3693 = vmatpush2.msra.mxu0 %v3589
        %3694 = vmatprep.subr.mxu0 %v3586
        %3695 = vmatpush2.msra.mxu0 %v3585
        %3696 = vmatprep.subr.mxu0 %v3582
        %3697 = vmatpush2.msra.mxu0 %v3581
        %3698 = vmatprep.subr.mxu0 %v3578
        %3699 = vmatpush2.msra.mxu0 %v3577
        %3700 = vmatprep.subr.mxu0 %v3574
        %3701 = vmatpush2.msra.mxu0 %v3573
        %3702 = vmatprep.subr.mxu0 %v3570
        %3703 = vmatpush2.msra.mxu0 %v3569
        %3704 = vmatprep.mubr.f32.mxu0 %v3636
        %3705 = vmatmul.mubr.f32.gmra.mxu0 %v3626
        %v3706 = vpop.f32.mrf.mxu0
        %v3707 = vadd.f32 0.0, %v3706
        %v3708 = vpop.f32.mrf.mxu0
        %v3709 = vadd.f32 0.0, %v3708
        %3710 = vmatprep.mubr.f32.mxu0 %v3638
        %3711 = vmatmul.mubr.f32.gmra.mxu0 %v3631
        %v3712 = vpop.f32.mrf.mxu0
        %v3713 = vadd.f32 0.0, %v3712
        %v3714 = vpop.f32.mrf.mxu0
        %v3715 = vadd.f32 0.0, %v3714
        %3716 = vdwg.mxu0
        %3717 = vmatprep.subr.mxu0 %v3568
        %3718 = vmatpush1.msra.mxu0 %v3567
        %3719 = vmatprep.subr.mxu0 %v3564
        %3720 = vmatpush1.msra.mxu0 %v3563
        %3721 = vmatprep.subr.mxu0 %v3560
        %3722 = vmatpush1.msra.mxu0 %v3559
        %3723 = vmatprep.subr.mxu0 %v3556
        %3724 = vmatpush1.msra.mxu0 %v3555
        %3725 = vmatprep.subr.mxu0 %v3552
        %3726 = vmatpush1.msra.mxu0 %v3551
        %3727 = vmatprep.subr.mxu0 %v3548
        %3728 = vmatpush1.msra.mxu0 %v3547
        %3729 = vmatprep.subr.mxu0 %v3544
        %3730 = vmatpush1.msra.mxu0 %v3543
        %3731 = vmatprep.subr.mxu0 %v3540
        %3732 = vmatpush1.msra.mxu0 %v3539
        %3733 = vmatprep.subr.mxu0 %v3536
        %3734 = vmatpush1.msra.mxu0 %v3535
        %3735 = vmatprep.subr.mxu0 %v3532
        %3736 = vmatpush1.msra.mxu0 %v3531
        %3737 = vmatprep.subr.mxu0 %v3528
        %3738 = vmatpush1.msra.mxu0 %v3527
        %3739 = vmatprep.subr.mxu0 %v3524
        %3740 = vmatpush1.msra.mxu0 %v3523
        %3741 = vmatprep.subr.mxu0 %v3520
        %3742 = vmatpush1.msra.mxu0 %v3519
        %3743 = vmatprep.subr.mxu0 %v3516
        %3744 = vmatpush1.msra.mxu0 %v3515
        %3745 = vmatprep.subr.mxu0 %v3512
        %3746 = vmatpush1.msra.mxu0 %v3511
        %3747 = vmatprep.subr.mxu0 %v3508
        %3748 = vmatpush1.msra.mxu0 %v3507
        %3749 = vmatprep.subr.mxu0 0.0
        %3750 = vmatpush2.msra.mxu0 0.0
        %3751 = vmatprep.subr.mxu0 0.0
        %3752 = vmatpush2.msra.mxu0 0.0
        %3753 = vmatprep.subr.mxu0 0.0
        %3754 = vmatpush2.msra.mxu0 0.0
        %3755 = vmatprep.subr.mxu0 0.0
        %3756 = vmatpush2.msra.mxu0 0.0
        %3757 = vmatprep.subr.mxu0 %v3616
        %3758 = vmatpush2.msra.mxu0 %v3615
        %3759 = vmatprep.subr.mxu0 %v3612
        %3760 = vmatpush2.msra.mxu0 %v3611
        %3761 = vmatprep.subr.mxu0 %v3608
        %3762 = vmatpush2.msra.mxu0 %v3607
        %3763 = vmatprep.subr.mxu0 %v3604
        %3764 = vmatpush2.msra.mxu0 %v3603
        %3765 = vmatprep.subr.mxu0 %v3600
        %3766 = vmatpush2.msra.mxu0 %v3599
        %3767 = vmatprep.subr.mxu0 %v3596
        %3768 = vmatpush2.msra.mxu0 %v3595
        %3769 = vmatprep.subr.mxu0 %v3592
        %3770 = vmatpush2.msra.mxu0 %v3591
        %3771 = vmatprep.subr.mxu0 %v3588
        %3772 = vmatpush2.msra.mxu0 %v3587
        %3773 = vmatprep.subr.mxu0 %v3584
        %3774 = vmatpush2.msra.mxu0 %v3583
        %3775 = vmatprep.subr.mxu0 %v3580
        %3776 = vmatpush2.msra.mxu0 %v3579
        %3777 = vmatprep.subr.mxu0 %v3576
        %3778 = vmatpush2.msra.mxu0 %v3575
        %3779 = vmatprep.subr.mxu0 %v3572
        %3780 = vmatpush2.msra.mxu0 %v3571
        %3781 = vmatprep.mubr.f32.mxu0 %v3636
        %3782 = vmatmul.mubr.f32.gmra.mxu0 %v3626
        %v3783 = vpop.f32.mrf.mxu0
        %v3784 = vadd.f32 0.0, %v3783
        %v3785 = vpop.f32.mrf.mxu0
        %v3786 = vadd.f32 0.0, %v3785
        %3787 = vmatprep.mubr.f32.mxu0 %v3638
        %3788 = vmatmul.mubr.f32.gmra.mxu0 %v3631
        %v3789 = vpop.f32.mrf.mxu0
        %v3790 = vadd.f32 0.0, %v3789
        %v3791 = vpop.f32.mrf.mxu0
        %v3792 = vadd.f32 0.0, %v3791
        %3793 = vdwg.mxu0
        %v3794 = vadd.f32 %v3490, %v3707
        %v3795 = vadd.f32 %v3491, %v3709
        %v3796 = vadd.f32 %v3492, %v3784
        %v3797 = vadd.f32 %v3493, %v3786
        %v3798 = vadd.f32 %v3494, %v3713
        %v3799 = vadd.f32 %v3495, %v3715
        %v3800 = vadd.f32 %v3496, %v3790
        %v3801 = vadd.f32 %v3497, %v3792
        %v3802 = vld [vmem:[#allocation3] sm:$0xf0]
        %v3803 = vld [vmem:[#allocation3 + $0x8] sm:$0xf0]
        %v3804 = vld [vmem:[#allocation3 + $0x20] sm:$0x3]
        %v3805 = vld [vmem:[#allocation3 + $0x28] sm:$0x3]
        %s3806 = scalar_lea.vmem [#allocation14], 3584
        %v3807 = vld [vmem:[%s3806] sm:$0xff]
        %v3808 = vld [vmem:[%s3806 + $0x8] sm:$0xff]
        %v3809 = vld [vmem:[%s3806 + $0x10] sm:$0xff]
        %v3810 = vld [vmem:[%s3806 + $0x18] sm:$0xff]
        %v3811 = vld [vmem:[%s3806 + $0x20] sm:$0xff]
        %v3812 = vld [vmem:[%s3806 + $0x28] sm:$0xff]
        %v3813 = vld [vmem:[%s3806 + $0x30] sm:$0xff]
        %v3814 = vld [vmem:[%s3806 + $0x38] sm:$0xff]
        %v3815 = vld [vmem:[%s3806 + $0x40] sm:$0xff]
        %v3816 = vld [vmem:[%s3806 + $0x48] sm:$0xff]
        %v3817 = vld [vmem:[%s3806 + $0x50] sm:$0xff]
        %v3818 = vld [vmem:[%s3806 + $0x58] sm:$0xff]
        %v3819 = vld [vmem:[%s3806 + $0x60] sm:$0xff]
        %v3820 = vld [vmem:[%s3806 + $0x68] sm:$0xff]
        %v3821 = vld [vmem:[%s3806 + $0x70] sm:$0xff]
        %v3822 = vld [vmem:[%s3806 + $0x78] sm:$0xff]
        %v3823 = vld [vmem:[%s3806 + $0x80] sm:$0xff]
        %v3824 = vld [vmem:[%s3806 + $0x88] sm:$0xff]
        %v3825 = vld [vmem:[%s3806 + $0x90] sm:$0xff]
        %v3826 = vld [vmem:[%s3806 + $0x98] sm:$0xff]
        %v3827 = vld [vmem:[%s3806 + $0xa0] sm:$0xff]
        %v3828 = vld [vmem:[%s3806 + $0xa8] sm:$0xff]
        %v3829 = vld [vmem:[%s3806 + $0xb0] sm:$0xff]
        %v3830 = vld [vmem:[%s3806 + $0xb8] sm:$0xff]
        %v3831 = vld [vmem:[%s3806 + $0xc0] sm:$0xff]
        %v3832 = vld [vmem:[%s3806 + $0xc8] sm:$0xff]
        %v3833 = vld [vmem:[%s3806 + $0xd0] sm:$0xff]
        %v3834 = vld [vmem:[%s3806 + $0xd8] sm:$0xff]
        %v3835 = vld [vmem:[%s3806 + $0xe0] sm:$0xff]
        %v3836 = vld [vmem:[%s3806 + $0xe8] sm:$0xff]
        %v3837 = vld [vmem:[%s3806 + $0xf0] sm:$0xff]
        %v3838 = vld [vmem:[%s3806 + $0xf8] sm:$0xff]
        %v3839 = vld [vmem:[%s3806 + $0x100] sm:$0xff]
        %v3840 = vld [vmem:[%s3806 + $0x108] sm:$0xff]
        %v3841 = vld [vmem:[%s3806 + $0x110] sm:$0xff]
        %v3842 = vld [vmem:[%s3806 + $0x118] sm:$0xff]
        %v3843 = vld [vmem:[%s3806 + $0x120] sm:$0xff]
        %v3844 = vld [vmem:[%s3806 + $0x128] sm:$0xff]
        %v3845 = vld [vmem:[%s3806 + $0x130] sm:$0xff]
        %v3846 = vld [vmem:[%s3806 + $0x138] sm:$0xff]
        %v3847 = vld [vmem:[%s3806 + $0x140] sm:$0xff]
        %v3848 = vld [vmem:[%s3806 + $0x148] sm:$0xff]
        %v3849 = vld [vmem:[%s3806 + $0x150] sm:$0xff]
        %v3850 = vld [vmem:[%s3806 + $0x158] sm:$0xff]
        %v3851 = vld [vmem:[%s3806 + $0x160] sm:$0xff]
        %v3852 = vld [vmem:[%s3806 + $0x168] sm:$0xff]
        %v3853 = vld [vmem:[%s3806 + $0x170] sm:$0xff]
        %v3854 = vld [vmem:[%s3806 + $0x178] sm:$0xff]
        %v3855 = vld [vmem:[%s3806 + $0x180] sm:$0xff]
        %v3856 = vld [vmem:[%s3806 + $0x188] sm:$0xff]
        %v3857 = vld [vmem:[%s3806 + $0x190] sm:$0xff]
        %v3858 = vld [vmem:[%s3806 + $0x198] sm:$0xff]
        %v3859 = vld [vmem:[%s3806 + $0x1a0] sm:$0xff]
        %v3860 = vld [vmem:[%s3806 + $0x1a8] sm:$0xff]
        %v3861 = vld [vmem:[%s3806 + $0x1b0] sm:$0xff]
        %v3862 = vld [vmem:[%s3806 + $0x1b8] sm:$0xff]
        %v3863 = vld [vmem:[%s3806 + $0x1c0] sm:$0xff]
        %v3864 = vld [vmem:[%s3806 + $0x1c8] sm:$0xff]
        %v3865 = vld [vmem:[%s3806 + $0x1d0] sm:$0xff]
        %v3866 = vld [vmem:[%s3806 + $0x1d8] sm:$0xff]
        %v3867 = vld [vmem:[%s3806 + $0x1e0] sm:$0xff]
        %v3868 = vld [vmem:[%s3806 + $0x1e8] sm:$0xff]
        %v3869 = vld [vmem:[%s3806 + $0x1f0] sm:$0xff]
        %v3870 = vld [vmem:[%s3806 + $0x1f8] sm:$0xff]
        %v3871 = vld [vmem:[%s3806 + $0x200] sm:$0xff]
        %v3872 = vld [vmem:[%s3806 + $0x208] sm:$0xff]
        %v3873 = vld [vmem:[%s3806 + $0x210] sm:$0xff]
        %v3874 = vld [vmem:[%s3806 + $0x218] sm:$0xff]
        %v3875 = vld [vmem:[%s3806 + $0x220] sm:$0xff]
        %v3876 = vld [vmem:[%s3806 + $0x228] sm:$0xff]
        %v3877 = vld [vmem:[%s3806 + $0x230] sm:$0xff]
        %v3878 = vld [vmem:[%s3806 + $0x238] sm:$0xff]
        %v3879 = vld [vmem:[%s3806 + $0x240] sm:$0xff]
        %v3880 = vld [vmem:[%s3806 + $0x248] sm:$0xff]
        %v3881 = vld [vmem:[%s3806 + $0x250] sm:$0xff]
        %v3882 = vld [vmem:[%s3806 + $0x258] sm:$0xff]
        %v3883 = vld [vmem:[%s3806 + $0x260] sm:$0xff]
        %v3884 = vld [vmem:[%s3806 + $0x268] sm:$0xff]
        %v3885 = vld [vmem:[%s3806 + $0x270] sm:$0xff]
        %v3886 = vld [vmem:[%s3806 + $0x278] sm:$0xff]
        %v3887 = vld [vmem:[%s3806 + $0x280] sm:$0xff]
        %v3888 = vld [vmem:[%s3806 + $0x288] sm:$0xff]
        %v3889 = vld [vmem:[%s3806 + $0x290] sm:$0xff]
        %v3890 = vld [vmem:[%s3806 + $0x298] sm:$0xff]
        %v3891 = vld [vmem:[%s3806 + $0x2a0] sm:$0xff]
        %v3892 = vld [vmem:[%s3806 + $0x2a8] sm:$0xff]
        %v3893 = vld [vmem:[%s3806 + $0x2b0] sm:$0xff]
        %v3894 = vld [vmem:[%s3806 + $0x2b8] sm:$0xff]
        %v3895 = vld [vmem:[%s3806 + $0x2c0] sm:$0xff]
        %v3896 = vld [vmem:[%s3806 + $0x2c8] sm:$0xff]
        %v3897 = vld [vmem:[%s3806 + $0x2d0] sm:$0xff]
        %v3898 = vld [vmem:[%s3806 + $0x2d8] sm:$0xff]
        %v3899 = vld [vmem:[%s3806 + $0x2e0] sm:$0xff]
        %v3900 = vld [vmem:[%s3806 + $0x2e8] sm:$0xff]
        %v3901 = vld [vmem:[%s3806 + $0x2f0] sm:$0xff]
        %v3902 = vld [vmem:[%s3806 + $0x2f8] sm:$0xff]
        %v3903 = vld [vmem:[%s3806 + $0x300] sm:$0xff]
        %v3904 = vld [vmem:[%s3806 + $0x308] sm:$0xff]
        %v3905 = vld [vmem:[%s3806 + $0x310] sm:$0xff]
        %v3906 = vld [vmem:[%s3806 + $0x318] sm:$0xff]
        %v3907 = vld [vmem:[%s3806 + $0x320] sm:$0xff]
        %v3908 = vld [vmem:[%s3806 + $0x328] sm:$0xff]
        %v3909 = vld [vmem:[%s3806 + $0x330] sm:$0xff]
        %v3910 = vld [vmem:[%s3806 + $0x338] sm:$0xff]
        %v3911 = vld [vmem:[%s3806 + $0x340] sm:$0xff]
        %v3912 = vld [vmem:[%s3806 + $0x348] sm:$0xff]
        %v3913 = vld [vmem:[%s3806 + $0x350] sm:$0xff]
        %v3914 = vld [vmem:[%s3806 + $0x358] sm:$0xff]
        %v3915 = vld [vmem:[%s3806 + $0x360] sm:$0xff]
        %v3916 = vld [vmem:[%s3806 + $0x368] sm:$0xff]
        %v3917 = vld [vmem:[%s3806 + $0x370] sm:$0xff]
        %v3918 = vld [vmem:[%s3806 + $0x378] sm:$0xff]
        %v3923 = vrot.slane %v3802, 4
        %v3924 = vrot.slane %v3500, 4
        %v3925 = vsel %vm840, %v3923, %v3924
        %v3926 = vrot.slane %v3803, 4
        %v3927 = vrot.slane %v3501, 4
        %v3928 = vsel %vm840, %v3926, %v3927
        %v3929 = vrot.slane %v3804, 4
        %v3930 = vsel %vm840, %v3924, %v3929
        %v3931 = vrot.slane %v3805, 4
        %v3932 = vsel %vm840, %v3927, %v3931
        %v3935 = vsel %vm2612, %v3928, 0
        %v3937 = vsel %vm2612, %v3932, 0
        %3939 = vmatprep.subr.mxu0 %v3868
        %3940 = vmatpush1.msra.mxu0 %v3867
        %3941 = vmatprep.subr.mxu0 %v3864
        %3942 = vmatpush1.msra.mxu0 %v3863
        %3943 = vmatprep.subr.mxu0 %v3860
        %3944 = vmatpush1.msra.mxu0 %v3859
        %3945 = vmatprep.subr.mxu0 %v3856
        %3946 = vmatpush1.msra.mxu0 %v3855
        %3947 = vmatprep.subr.mxu0 %v3852
        %3948 = vmatpush1.msra.mxu0 %v3851
        %3949 = vmatprep.subr.mxu0 %v3848
        %3950 = vmatpush1.msra.mxu0 %v3847
        %3951 = vmatprep.subr.mxu0 %v3844
        %3952 = vmatpush1.msra.mxu0 %v3843
        %3953 = vmatprep.subr.mxu0 %v3840
        %3954 = vmatpush1.msra.mxu0 %v3839
        %3955 = vmatprep.subr.mxu0 %v3836
        %3956 = vmatpush1.msra.mxu0 %v3835
        %3957 = vmatprep.subr.mxu0 %v3832
        %3958 = vmatpush1.msra.mxu0 %v3831
        %3959 = vmatprep.subr.mxu0 %v3828
        %3960 = vmatpush1.msra.mxu0 %v3827
        %3961 = vmatprep.subr.mxu0 %v3824
        %3962 = vmatpush1.msra.mxu0 %v3823
        %3963 = vmatprep.subr.mxu0 %v3820
        %3964 = vmatpush1.msra.mxu0 %v3819
        %3965 = vmatprep.subr.mxu0 %v3816
        %3966 = vmatpush1.msra.mxu0 %v3815
        %3967 = vmatprep.subr.mxu0 %v3812
        %3968 = vmatpush1.msra.mxu0 %v3811
        %3969 = vmatprep.subr.mxu0 %v3808
        %3970 = vmatpush1.msra.mxu0 %v3807
        %3971 = vmatprep.subr.mxu0 0.0
        %3972 = vmatpush2.msra.mxu0 0.0
        %3973 = vmatprep.subr.mxu0 0.0
        %3974 = vmatpush2.msra.mxu0 0.0
        %3975 = vmatprep.subr.mxu0 0.0
        %3976 = vmatpush2.msra.mxu0 0.0
        %3977 = vmatprep.subr.mxu0 0.0
        %3978 = vmatpush2.msra.mxu0 0.0
        %3979 = vmatprep.subr.mxu0 %v3916
        %3980 = vmatpush2.msra.mxu0 %v3915
        %3981 = vmatprep.subr.mxu0 %v3912
        %3982 = vmatpush2.msra.mxu0 %v3911
        %3983 = vmatprep.subr.mxu0 %v3908
        %3984 = vmatpush2.msra.mxu0 %v3907
        %3985 = vmatprep.subr.mxu0 %v3904
        %3986 = vmatpush2.msra.mxu0 %v3903
        %3987 = vmatprep.subr.mxu0 %v3900
        %3988 = vmatpush2.msra.mxu0 %v3899
        %3989 = vmatprep.subr.mxu0 %v3896
        %3990 = vmatpush2.msra.mxu0 %v3895
        %3991 = vmatprep.subr.mxu0 %v3892
        %3992 = vmatpush2.msra.mxu0 %v3891
        %3993 = vmatprep.subr.mxu0 %v3888
        %3994 = vmatpush2.msra.mxu0 %v3887
        %3995 = vmatprep.subr.mxu0 %v3884
        %3996 = vmatpush2.msra.mxu0 %v3883
        %3997 = vmatprep.subr.mxu0 %v3880
        %3998 = vmatpush2.msra.mxu0 %v3879
        %3999 = vmatprep.subr.mxu0 %v3876
        %4000 = vmatpush2.msra.mxu0 %v3875
        %4001 = vmatprep.subr.mxu0 %v3872
        %4002 = vmatpush2.msra.mxu0 %v3871
        %4003 = vmatprep.mubr.f32.mxu0 %v3935
        %4004 = vmatmul.mubr.f32.gmra.mxu0 %v3925
        %v4005 = vpop.f32.mrf.mxu0
        %v4006 = vadd.f32 0.0, %v4005
        %v4007 = vpop.f32.mrf.mxu0
        %v4008 = vadd.f32 0.0, %v4007
        %4009 = vmatprep.mubr.f32.mxu0 %v3937
        %4010 = vmatmul.mubr.f32.gmra.mxu0 %v3930
        %v4011 = vpop.f32.mrf.mxu0
        %v4012 = vadd.f32 0.0, %v4011
        %v4013 = vpop.f32.mrf.mxu0
        %v4014 = vadd.f32 0.0, %v4013
        %4015 = vdwg.mxu0
        %4016 = vmatprep.subr.mxu0 %v3870
        %4017 = vmatpush1.msra.mxu0 %v3869
        %4018 = vmatprep.subr.mxu0 %v3866
        %4019 = vmatpush1.msra.mxu0 %v3865
        %4020 = vmatprep.subr.mxu0 %v3862
        %4021 = vmatpush1.msra.mxu0 %v3861
        %4022 = vmatprep.subr.mxu0 %v3858
        %4023 = vmatpush1.msra.mxu0 %v3857
        %4024 = vmatprep.subr.mxu0 %v3854
        %4025 = vmatpush1.msra.mxu0 %v3853
        %4026 = vmatprep.subr.mxu0 %v3850
        %4027 = vmatpush1.msra.mxu0 %v3849
        %4028 = vmatprep.subr.mxu0 %v3846
        %4029 = vmatpush1.msra.mxu0 %v3845
        %4030 = vmatprep.subr.mxu0 %v3842
        %4031 = vmatpush1.msra.mxu0 %v3841
        %4032 = vmatprep.subr.mxu0 %v3838
        %4033 = vmatpush1.msra.mxu0 %v3837
        %4034 = vmatprep.subr.mxu0 %v3834
        %4035 = vmatpush1.msra.mxu0 %v3833
        %4036 = vmatprep.subr.mxu0 %v3830
        %4037 = vmatpush1.msra.mxu0 %v3829
        %4038 = vmatprep.subr.mxu0 %v3826
        %4039 = vmatpush1.msra.mxu0 %v3825
        %4040 = vmatprep.subr.mxu0 %v3822
        %4041 = vmatpush1.msra.mxu0 %v3821
        %4042 = vmatprep.subr.mxu0 %v3818
        %4043 = vmatpush1.msra.mxu0 %v3817
        %4044 = vmatprep.subr.mxu0 %v3814
        %4045 = vmatpush1.msra.mxu0 %v3813
        %4046 = vmatprep.subr.mxu0 %v3810
        %4047 = vmatpush1.msra.mxu0 %v3809
        %4048 = vmatprep.subr.mxu0 0.0
        %4049 = vmatpush2.msra.mxu0 0.0
        %4050 = vmatprep.subr.mxu0 0.0
        %4051 = vmatpush2.msra.mxu0 0.0
        %4052 = vmatprep.subr.mxu0 0.0
        %4053 = vmatpush2.msra.mxu0 0.0
        %4054 = vmatprep.subr.mxu0 0.0
        %4055 = vmatpush2.msra.mxu0 0.0
        %4056 = vmatprep.subr.mxu0 %v3918
        %4057 = vmatpush2.msra.mxu0 %v3917
        %4058 = vmatprep.subr.mxu0 %v3914
        %4059 = vmatpush2.msra.mxu0 %v3913
        %4060 = vmatprep.subr.mxu0 %v3910
        %4061 = vmatpush2.msra.mxu0 %v3909
        %4062 = vmatprep.subr.mxu0 %v3906
        %4063 = vmatpush2.msra.mxu0 %v3905
        %4064 = vmatprep.subr.mxu0 %v3902
        %4065 = vmatpush2.msra.mxu0 %v3901
        %4066 = vmatprep.subr.mxu0 %v3898
        %4067 = vmatpush2.msra.mxu0 %v3897
        %4068 = vmatprep.subr.mxu0 %v3894
        %4069 = vmatpush2.msra.mxu0 %v3893
        %4070 = vmatprep.subr.mxu0 %v3890
        %4071 = vmatpush2.msra.mxu0 %v3889
        %4072 = vmatprep.subr.mxu0 %v3886
        %4073 = vmatpush2.msra.mxu0 %v3885
        %4074 = vmatprep.subr.mxu0 %v3882
        %4075 = vmatpush2.msra.mxu0 %v3881
        %4076 = vmatprep.subr.mxu0 %v3878
        %4077 = vmatpush2.msra.mxu0 %v3877
        %4078 = vmatprep.subr.mxu0 %v3874
        %4079 = vmatpush2.msra.mxu0 %v3873
        %4080 = vmatprep.mubr.f32.mxu0 %v3935
        %4081 = vmatmul.mubr.f32.gmra.mxu0 %v3925
        %v4082 = vpop.f32.mrf.mxu0
        %v4083 = vadd.f32 0.0, %v4082
        %v4084 = vpop.f32.mrf.mxu0
        %v4085 = vadd.f32 0.0, %v4084
        %4086 = vmatprep.mubr.f32.mxu0 %v3937
        %4087 = vmatmul.mubr.f32.gmra.mxu0 %v3930
        %v4088 = vpop.f32.mrf.mxu0
        %v4089 = vadd.f32 0.0, %v4088
        %v4090 = vpop.f32.mrf.mxu0
        %v4091 = vadd.f32 0.0, %v4090
        %4092 = vdwg.mxu0
        %v4093 = vadd.f32 %v3794, %v4006
        %v4094 = vadd.f32 %v3795, %v4008
        %v4095 = vadd.f32 %v3796, %v4083
        %v4096 = vadd.f32 %v3797, %v4085
        %v4097 = vadd.f32 %v3798, %v4012
        %v4098 = vadd.f32 %v3799, %v4014
        %v4099 = vadd.f32 %v3800, %v4089
        %v4100 = vadd.f32 %v3801, %v4091
        %v4101 = vld [vmem:[#allocation16] sm:$0xf]
        %v4103 = vlaneseq
        %v4104 = vshrl.u32 %v4103, 7
        %v4105 = vsub.s32 0, %v4104
        %v4106 = vrot.slane %v4101, %v4105
        %v4107 = vlaneseq
        %v4108 = vshrl.u32 %v4107, 7
        %v4109 = vsub.s32 1, %v4108
        %v4110 = vrot.slane %v4101, %v4109
        %v4111 = vlaneseq
        %v4112 = vshrl.u32 %v4111, 7
        %v4113 = vsub.s32 2, %v4112
        %v4114 = vrot.slane %v4101, %v4113
        %v4115 = vlaneseq
        %v4116 = vshrl.u32 %v4115, 7
        %v4117 = vsub.s32 3, %v4116
        %v4118 = vrot.slane %v4101, %v4117
        %v4123 = vmul.f32 %v4093, %v4106
        %v4124 = vmul.f32 %v4094, %v4110
        %v4125 = vmul.f32 %v4095, %v4114
        %v4126 = vmul.f32 %v4096, %v4118
        %v4127 = vmul.f32 %v4097, %v4106
        %v4128 = vmul.f32 %v4098, %v4110
        %v4129 = vmul.f32 %v4099, %v4114
        %v4130 = vmul.f32 %v4100, %v4118
        %v4131 = vld [vmem:[#allocation17] sm:$0xf]
        %v4133 = vlaneseq
        %v4134 = vshrl.u32 %v4133, 7
        %v4135 = vsub.s32 0, %v4134
        %v4136 = vrot.slane %v4131, %v4135
        %v4137 = vlaneseq
        %v4138 = vshrl.u32 %v4137, 7
        %v4139 = vsub.s32 1, %v4138
        %v4140 = vrot.slane %v4131, %v4139
        %v4141 = vlaneseq
        %v4142 = vshrl.u32 %v4141, 7
        %v4143 = vsub.s32 2, %v4142
        %v4144 = vrot.slane %v4131, %v4143
        %v4145 = vlaneseq
        %v4146 = vshrl.u32 %v4145, 7
        %v4147 = vsub.s32 3, %v4146
        %v4148 = vrot.slane %v4131, %v4147
        %v4153 = vadd.f32 %v4123, %v4136
        %v4154 = vadd.f32 %v4124, %v4140
        %v4155 = vadd.f32 %v4125, %v4144
        %v4156 = vadd.f32 %v4126, %v4148
        %v4157 = vadd.f32 %v4127, %v4136
        %v4158 = vadd.f32 %v4128, %v4140
        %v4159 = vadd.f32 %v4129, %v4144
        %v4160 = vadd.f32 %v4130, %v4148
        %v4161 = vmax.f32 %v4153, 0.0
        %v4162 = vmax.f32 %v4154, 0.0
        %v4163 = vmax.f32 %v4155, 0.0
        %v4164 = vmax.f32 %v4156, 0.0
        %v4165 = vmax.f32 %v4157, 0.0
        %v4166 = vmax.f32 %v4158, 0.0
        %v4167 = vmax.f32 %v4159, 0.0
        %v4168 = vmax.f32 %v4160, 0.0
        %v4177 = vrot.slane %v4161, 1
        %v4178 = vrot.slane %v4165, 1
        %v4179 = vsel %vm2058, %v4177, %v4178
        %v4180 = vrot.slane %v4162, 1
        %v4181 = vrot.slane %v4166, 1
        %v4182 = vsel %vm2058, %v4180, %v4181
        %v4183 = vrot.slane %v4163, 1
        %v4184 = vrot.slane %v4167, 1
        %v4185 = vsel %vm2058, %v4183, %v4184
        %v4186 = vrot.slane %v4164, 1
        %v4187 = vrot.slane %v4168, 1
        %v4188 = vsel %vm2058, %v4186, %v4187
        %v4197 = vmax.f32 %v4161, %v4179
        %v4198 = vmax.f32 %v4162, %v4182
        %v4199 = vmax.f32 %v4163, %v4185
        %v4200 = vmax.f32 %v4164, %v4188
        %v4201 = vmax.f32 %v4165, %v4178
        %v4202 = vmax.f32 %v4166, %v4181
        %v4203 = vmax.f32 %v4167, %v4184
        %v4204 = vmax.f32 %v4168, %v4187
        %v4205 = vld [vmem:[#allocation19] sm:$0x7f]
        %vm4206 = vcmask 105472
        %v4208 = vsel %vm4206, %v4205, 0
        %v4211 = vsel %vm3623, %v4201, 0
        %v4214 = vsel %vm3623, %v4202, 0
        %v4217 = vsel %vm3623, %v4203, 0
        %v4220 = vsel %vm3623, %v4204, 0
        %4222 = vmatprep.subr.mxu0 0.0
        %4223 = vmatpush1.msra.mxu0 0.0
        %4224 = vmatprep.subr.mxu0 0.0
        %4225 = vmatpush1.msra.mxu0 0.0
        %4226 = vmatprep.subr.mxu0 0.0
        %4227 = vmatpush1.msra.mxu0 0.0
        %4228 = vmatprep.subr.mxu0 0.0
        %4229 = vmatpush1.msra.mxu0 0.0
        %4230 = vmatprep.subr.mxu0 0.0
        %4231 = vmatpush1.msra.mxu0 0.0
        %4232 = vmatprep.subr.mxu0 0.0
        %4233 = vmatpush1.msra.mxu0 0.0
        %4234 = vmatprep.subr.mxu0 0.0
        %4235 = vmatpush1.msra.mxu0 0.0
        %4236 = vmatprep.subr.mxu0 0.0
        %4237 = vmatpush1.msra.mxu0 0.0
        %4238 = vmatprep.subr.mxu0 0.0
        %4239 = vmatpush1.msra.mxu0 0.0
        %4240 = vmatprep.subr.mxu0 0.0
        %4241 = vmatpush1.msra.mxu0 0.0
        %4242 = vmatprep.subr.mxu0 0.0
        %4243 = vmatpush1.msra.mxu0 0.0
        %4244 = vmatprep.subr.mxu0 0.0
        %4245 = vmatpush1.msra.mxu0 0.0
        %4246 = vmatprep.subr.mxu0 0.0
        %4247 = vmatpush1.msra.mxu0 0.0
        %4248 = vmatprep.subr.mxu0 0.0
        %4249 = vmatpush1.msra.mxu0 0.0
        %4250 = vmatprep.subr.mxu0 %v4214
        %4251 = vmatpush1.msra.mxu0 %v4211
        %4252 = vmatprep.subr.mxu0 %v4198
        %4253 = vmatpush1.msra.mxu0 %v4197
        %4254 = vmatprep.subr.mxu0 0.0
        %4255 = vmatpush2.msra.mxu0 0.0
        %4256 = vmatprep.subr.mxu0 0.0
        %4257 = vmatpush2.msra.mxu0 0.0
        %4258 = vmatprep.subr.mxu0 0.0
        %4259 = vmatpush2.msra.mxu0 0.0
        %4260 = vmatprep.subr.mxu0 0.0
        %4261 = vmatpush2.msra.mxu0 0.0
        %4262 = vmatprep.subr.mxu0 0.0
        %4263 = vmatpush2.msra.mxu0 0.0
        %4264 = vmatprep.subr.mxu0 0.0
        %4265 = vmatpush2.msra.mxu0 0.0
        %4266 = vmatprep.subr.mxu0 0.0
        %4267 = vmatpush2.msra.mxu0 0.0
        %4268 = vmatprep.subr.mxu0 0.0
        %4269 = vmatpush2.msra.mxu0 0.0
        %4270 = vmatprep.subr.mxu0 0.0
        %4271 = vmatpush2.msra.mxu0 0.0
        %4272 = vmatprep.subr.mxu0 0.0
        %4273 = vmatpush2.msra.mxu0 0.0
        %4274 = vmatprep.subr.mxu0 0.0
        %4275 = vmatpush2.msra.mxu0 0.0
        %4276 = vmatprep.subr.mxu0 0.0
        %4277 = vmatpush2.msra.mxu0 0.0
        %4278 = vmatprep.subr.mxu0 0.0
        %4279 = vmatpush2.msra.mxu0 0.0
        %4280 = vmatprep.subr.mxu0 0.0
        %4281 = vmatpush2.msra.mxu0 0.0
        %4282 = vmatprep.subr.mxu0 0.0
        %4283 = vmatpush2.msra.mxu0 0.0
        %4284 = vmatprep.subr.mxu0 0.0
        %4285 = vmatpush2.msra.mxu0 0.0
        %4286 = vmatprep.mubr.f32.mxu0 0.0
        %4287 = vmatmul.mubr.f32.gmra.mxu0 %v4208
        %v4288 = vpop.f32.mrf.mxu0
        %v4289 = vadd.f32 0.0, %v4288
        %v4290 = vpop.f32.mrf.mxu0
        %v4291 = vadd.f32 0.0, %v4290
        %4292 = vdwg.mxu0
        %4293 = vmatprep.subr.mxu0 0.0
        %4294 = vmatpush1.msra.mxu0 0.0
        %4295 = vmatprep.subr.mxu0 0.0
        %4296 = vmatpush1.msra.mxu0 0.0
        %4297 = vmatprep.subr.mxu0 0.0
        %4298 = vmatpush1.msra.mxu0 0.0
        %4299 = vmatprep.subr.mxu0 0.0
        %4300 = vmatpush1.msra.mxu0 0.0
        %4301 = vmatprep.subr.mxu0 0.0
        %4302 = vmatpush1.msra.mxu0 0.0
        %4303 = vmatprep.subr.mxu0 0.0
        %4304 = vmatpush1.msra.mxu0 0.0
        %4305 = vmatprep.subr.mxu0 0.0
        %4306 = vmatpush1.msra.mxu0 0.0
        %4307 = vmatprep.subr.mxu0 0.0
        %4308 = vmatpush1.msra.mxu0 0.0
        %4309 = vmatprep.subr.mxu0 0.0
        %4310 = vmatpush1.msra.mxu0 0.0
        %4311 = vmatprep.subr.mxu0 0.0
        %4312 = vmatpush1.msra.mxu0 0.0
        %4313 = vmatprep.subr.mxu0 0.0
        %4314 = vmatpush1.msra.mxu0 0.0
        %4315 = vmatprep.subr.mxu0 0.0
        %4316 = vmatpush1.msra.mxu0 0.0
        %4317 = vmatprep.subr.mxu0 0.0
        %4318 = vmatpush1.msra.mxu0 0.0
        %4319 = vmatprep.subr.mxu0 0.0
        %4320 = vmatpush1.msra.mxu0 0.0
        %4321 = vmatprep.subr.mxu0 %v4220
        %4322 = vmatpush1.msra.mxu0 %v4217
        %4323 = vmatprep.subr.mxu0 %v4200
        %4324 = vmatpush1.msra.mxu0 %v4199
        %4325 = vmatprep.subr.mxu0 0.0
        %4326 = vmatpush2.msra.mxu0 0.0
        %4327 = vmatprep.subr.mxu0 0.0
        %4328 = vmatpush2.msra.mxu0 0.0
        %4329 = vmatprep.subr.mxu0 0.0
        %4330 = vmatpush2.msra.mxu0 0.0
        %4331 = vmatprep.subr.mxu0 0.0
        %4332 = vmatpush2.msra.mxu0 0.0
        %4333 = vmatprep.subr.mxu0 0.0
        %4334 = vmatpush2.msra.mxu0 0.0
        %4335 = vmatprep.subr.mxu0 0.0
        %4336 = vmatpush2.msra.mxu0 0.0
        %4337 = vmatprep.subr.mxu0 0.0
        %4338 = vmatpush2.msra.mxu0 0.0
        %4339 = vmatprep.subr.mxu0 0.0
        %4340 = vmatpush2.msra.mxu0 0.0
        %4341 = vmatprep.subr.mxu0 0.0
        %4342 = vmatpush2.msra.mxu0 0.0
        %4343 = vmatprep.subr.mxu0 0.0
        %4344 = vmatpush2.msra.mxu0 0.0
        %4345 = vmatprep.subr.mxu0 0.0
        %4346 = vmatpush2.msra.mxu0 0.0
        %4347 = vmatprep.subr.mxu0 0.0
        %4348 = vmatpush2.msra.mxu0 0.0
        %4349 = vmatprep.subr.mxu0 0.0
        %4350 = vmatpush2.msra.mxu0 0.0
        %4351 = vmatprep.subr.mxu0 0.0
        %4352 = vmatpush2.msra.mxu0 0.0
        %4353 = vmatprep.subr.mxu0 0.0
        %4354 = vmatpush2.msra.mxu0 0.0
        %4355 = vmatprep.subr.mxu0 0.0
        %4356 = vmatpush2.msra.mxu0 0.0
        %4357 = vmatprep.mubr.f32.mxu0 0.0
        %4358 = vmatmul.mubr.f32.gmra.mxu0 %v4208
        %v4359 = vpop.f32.mrf.mxu0
        %v4360 = vadd.f32 0.0, %v4359
        %v4361 = vpop.f32.mrf.mxu0
        %v4362 = vadd.f32 0.0, %v4361
        %4363 = vdwg.mxu0
        %4368 = vrot.lane.b32.xlu0 %v4289, 96
        %v4369 = vpop.permute.xlu0 %4368
        %4370 = vrot.lane.b32.xlu0 %v4291, 96
        %v4371 = vpop.permute.xlu0 %4370
        %4372 = vrot.lane.b32.xlu0 %v4360, 96
        %v4373 = vpop.permute.xlu0 %4372
        %4374 = vrot.lane.b32.xlu0 %v4362, 96
        %v4375 = vpop.permute.xlu0 %4374
        %v4376 = vsel %vm2612, %v4369, %v4371
        %v4377 = vsel %vm2612, %v4371, %v4373
        %v4378 = vsel %vm2612, %v4373, %v4375
        %v4383 = vmax.f32 %v4289, %v4376
        %v4384 = vmax.f32 %v4291, %v4377
        %v4385 = vmax.f32 %v4360, %v4378
        %v4386 = vmax.f32 %v4362, %v4375
        %v4387 = vld [vmem:[#allocation20] sm:$0xff]
        %v4388 = vld [vmem:[#allocation20 + $0x8] sm:$0xff]
        %v4389 = vld [vmem:[#allocation20 + $0x10] sm:$0xff]
        %v4390 = vld [vmem:[#allocation20 + $0x18] sm:$0xff]
        %v4391 = vld [vmem:[#allocation20 + $0x20] sm:$0xff]
        %v4392 = vld [vmem:[#allocation20 + $0x28] sm:$0xff]
        %v4393 = vld [vmem:[#allocation20 + $0x30] sm:$0xff]
        %v4394 = vld [vmem:[#allocation20 + $0x38] sm:$0xff]
        %v4395 = vld [vmem:[#allocation20 + $0x40] sm:$0xff]
        %v4396 = vld [vmem:[#allocation20 + $0x48] sm:$0xff]
        %v4397 = vld [vmem:[#allocation20 + $0x50] sm:$0xff]
        %v4398 = vld [vmem:[#allocation20 + $0x58] sm:$0xff]
        %v4399 = vld [vmem:[#allocation20 + $0x60] sm:$0xff]
        %v4400 = vld [vmem:[#allocation20 + $0x68] sm:$0xff]
        %v4401 = vld [vmem:[#allocation20 + $0x70] sm:$0xff]
        %v4402 = vld [vmem:[#allocation20 + $0x78] sm:$0xff]
        %v4403 = vld [vmem:[#allocation20 + $0x80] sm:$0xff]
        %v4404 = vld [vmem:[#allocation20 + $0x88] sm:$0xff]
        %v4405 = vld [vmem:[#allocation20 + $0x90] sm:$0xff]
        %v4406 = vld [vmem:[#allocation20 + $0x98] sm:$0xff]
        %v4407 = vld [vmem:[#allocation20 + $0xa0] sm:$0xff]
        %v4408 = vld [vmem:[#allocation20 + $0xa8] sm:$0xff]
        %v4409 = vld [vmem:[#allocation20 + $0xb0] sm:$0xff]
        %v4410 = vld [vmem:[#allocation20 + $0xb8] sm:$0xff]
        %v4411 = vld [vmem:[#allocation20 + $0xc0] sm:$0xff]
        %v4412 = vld [vmem:[#allocation20 + $0xc8] sm:$0xff]
        %v4413 = vld [vmem:[#allocation20 + $0xd0] sm:$0xff]
        %v4414 = vld [vmem:[#allocation20 + $0xd8] sm:$0xff]
        %v4415 = vld [vmem:[#allocation20 + $0xe0] sm:$0xff]
        %v4416 = vld [vmem:[#allocation20 + $0xe8] sm:$0xff]
        %v4417 = vld [vmem:[#allocation20 + $0xf0] sm:$0xff]
        %v4418 = vld [vmem:[#allocation20 + $0xf8] sm:$0xff]
        %v4419 = vld [vmem:[#allocation20 + $0x100] sm:$0xff]
        %v4420 = vld [vmem:[#allocation20 + $0x108] sm:$0xff]
        %v4421 = vld [vmem:[#allocation20 + $0x110] sm:$0xff]
        %v4422 = vld [vmem:[#allocation20 + $0x118] sm:$0xff]
        %v4423 = vld [vmem:[#allocation20 + $0x120] sm:$0xff]
        %v4424 = vld [vmem:[#allocation20 + $0x128] sm:$0xff]
        %v4425 = vld [vmem:[#allocation20 + $0x130] sm:$0xff]
        %v4426 = vld [vmem:[#allocation20 + $0x138] sm:$0xff]
        %v4427 = vld [vmem:[#allocation20 + $0x140] sm:$0xff]
        %v4428 = vld [vmem:[#allocation20 + $0x148] sm:$0xff]
        %v4429 = vld [vmem:[#allocation20 + $0x150] sm:$0xff]
        %v4430 = vld [vmem:[#allocation20 + $0x158] sm:$0xff]
        %v4431 = vld [vmem:[#allocation20 + $0x160] sm:$0xff]
        %v4432 = vld [vmem:[#allocation20 + $0x168] sm:$0xff]
        %v4433 = vld [vmem:[#allocation20 + $0x170] sm:$0xff]
        %v4434 = vld [vmem:[#allocation20 + $0x178] sm:$0xff]
        %v4435 = vld [vmem:[#allocation20 + $0x180] sm:$0xff]
        %v4436 = vld [vmem:[#allocation20 + $0x188] sm:$0xff]
        %v4437 = vld [vmem:[#allocation20 + $0x190] sm:$0xff]
        %v4438 = vld [vmem:[#allocation20 + $0x198] sm:$0xff]
        %v4439 = vld [vmem:[#allocation20 + $0x1a0] sm:$0xff]
        %v4440 = vld [vmem:[#allocation20 + $0x1a8] sm:$0xff]
        %v4441 = vld [vmem:[#allocation20 + $0x1b0] sm:$0xff]
        %v4442 = vld [vmem:[#allocation20 + $0x1b8] sm:$0xff]
        %v4443 = vld [vmem:[#allocation20 + $0x1c0] sm:$0xff]
        %v4444 = vld [vmem:[#allocation20 + $0x1c8] sm:$0xff]
        %v4445 = vld [vmem:[#allocation20 + $0x1d0] sm:$0xff]
        %v4446 = vld [vmem:[#allocation20 + $0x1d8] sm:$0xff]
        %v4447 = vld [vmem:[#allocation20 + $0x1e0] sm:$0xff]
        %v4448 = vld [vmem:[#allocation20 + $0x1e8] sm:$0xff]
        %v4449 = vld [vmem:[#allocation20 + $0x1f0] sm:$0xff]
        %v4450 = vld [vmem:[#allocation20 + $0x1f8] sm:$0xff]
        %v4451 = vld [vmem:[#allocation20 + $0x200] sm:$0xff]
        %v4452 = vld [vmem:[#allocation20 + $0x208] sm:$0xff]
        %v4453 = vld [vmem:[#allocation20 + $0x210] sm:$0xff]
        %v4454 = vld [vmem:[#allocation20 + $0x218] sm:$0xff]
        %v4455 = vld [vmem:[#allocation20 + $0x220] sm:$0xff]
        %v4456 = vld [vmem:[#allocation20 + $0x228] sm:$0xff]
        %v4457 = vld [vmem:[#allocation20 + $0x230] sm:$0xff]
        %v4458 = vld [vmem:[#allocation20 + $0x238] sm:$0xff]
        %v4459 = vld [vmem:[#allocation20 + $0x240] sm:$0xff]
        %v4460 = vld [vmem:[#allocation20 + $0x248] sm:$0xff]
        %v4461 = vld [vmem:[#allocation20 + $0x250] sm:$0xff]
        %v4462 = vld [vmem:[#allocation20 + $0x258] sm:$0xff]
        %v4463 = vld [vmem:[#allocation20 + $0x260] sm:$0xff]
        %v4464 = vld [vmem:[#allocation20 + $0x268] sm:$0xff]
        %v4465 = vld [vmem:[#allocation20 + $0x270] sm:$0xff]
        %v4466 = vld [vmem:[#allocation20 + $0x278] sm:$0xff]
        %v4467 = vld [vmem:[#allocation20 + $0x280] sm:$0xff]
        %v4468 = vld [vmem:[#allocation20 + $0x288] sm:$0xff]
        %v4469 = vld [vmem:[#allocation20 + $0x290] sm:$0xff]
        %v4470 = vld [vmem:[#allocation20 + $0x298] sm:$0xff]
        %v4471 = vld [vmem:[#allocation20 + $0x2a0] sm:$0xff]
        %v4472 = vld [vmem:[#allocation20 + $0x2a8] sm:$0xff]
        %v4473 = vld [vmem:[#allocation20 + $0x2b0] sm:$0xff]
        %v4474 = vld [vmem:[#allocation20 + $0x2b8] sm:$0xff]
        %v4475 = vld [vmem:[#allocation20 + $0x2c0] sm:$0xff]
        %v4476 = vld [vmem:[#allocation20 + $0x2c8] sm:$0xff]
        %v4477 = vld [vmem:[#allocation20 + $0x2d0] sm:$0xff]
        %v4478 = vld [vmem:[#allocation20 + $0x2d8] sm:$0xff]
        %v4479 = vld [vmem:[#allocation20 + $0x2e0] sm:$0xff]
        %v4480 = vld [vmem:[#allocation20 + $0x2e8] sm:$0xff]
        %v4481 = vld [vmem:[#allocation20 + $0x2f0] sm:$0xff]
        %v4482 = vld [vmem:[#allocation20 + $0x2f8] sm:$0xff]
        %v4483 = vld [vmem:[#allocation20 + $0x300] sm:$0xff]
        %v4484 = vld [vmem:[#allocation20 + $0x308] sm:$0xff]
        %v4485 = vld [vmem:[#allocation20 + $0x310] sm:$0xff]
        %v4486 = vld [vmem:[#allocation20 + $0x318] sm:$0xff]
        %v4487 = vld [vmem:[#allocation20 + $0x320] sm:$0xff]
        %v4488 = vld [vmem:[#allocation20 + $0x328] sm:$0xff]
        %v4489 = vld [vmem:[#allocation20 + $0x330] sm:$0xff]
        %v4490 = vld [vmem:[#allocation20 + $0x338] sm:$0xff]
        %vm4491 = vcmask 261120
        %v4493 = vsel %vm4491, %v4386, 0
        %4495 = vmatprep.subr.mxu0 %v4418
        %4496 = vmatpush1.msra.mxu0 %v4417
        %4497 = vmatprep.subr.mxu0 %v4416
        %4498 = vmatpush1.msra.mxu0 %v4415
        %4499 = vmatprep.subr.mxu0 %v4414
        %4500 = vmatpush1.msra.mxu0 %v4413
        %4501 = vmatprep.subr.mxu0 %v4412
        %4502 = vmatpush1.msra.mxu0 %v4411
        %4503 = vmatprep.subr.mxu0 %v4410
        %4504 = vmatpush1.msra.mxu0 %v4409
        %4505 = vmatprep.subr.mxu0 %v4408
        %4506 = vmatpush1.msra.mxu0 %v4407
        %4507 = vmatprep.subr.mxu0 %v4406
        %4508 = vmatpush1.msra.mxu0 %v4405
        %4509 = vmatprep.subr.mxu0 %v4404
        %4510 = vmatpush1.msra.mxu0 %v4403
        %4511 = vmatprep.subr.mxu0 %v4402
        %4512 = vmatpush1.msra.mxu0 %v4401
        %4513 = vmatprep.subr.mxu0 %v4400
        %4514 = vmatpush1.msra.mxu0 %v4399
        %4515 = vmatprep.subr.mxu0 %v4398
        %4516 = vmatpush1.msra.mxu0 %v4397
        %4517 = vmatprep.subr.mxu0 %v4396
        %4518 = vmatpush1.msra.mxu0 %v4395
        %4519 = vmatprep.subr.mxu0 %v4394
        %4520 = vmatpush1.msra.mxu0 %v4393
        %4521 = vmatprep.subr.mxu0 %v4392
        %4522 = vmatpush1.msra.mxu0 %v4391
        %4523 = vmatprep.subr.mxu0 %v4390
        %4524 = vmatpush1.msra.mxu0 %v4389
        %4525 = vmatprep.subr.mxu0 %v4388
        %4526 = vmatpush1.msra.mxu0 %v4387
        %4527 = vmatprep.subr.mxu0 %v4450
        %4528 = vmatpush2.msra.mxu0 %v4449
        %4529 = vmatprep.subr.mxu0 %v4448
        %4530 = vmatpush2.msra.mxu0 %v4447
        %4531 = vmatprep.subr.mxu0 %v4446
        %4532 = vmatpush2.msra.mxu0 %v4445
        %4533 = vmatprep.subr.mxu0 %v4444
        %4534 = vmatpush2.msra.mxu0 %v4443
        %4535 = vmatprep.subr.mxu0 %v4442
        %4536 = vmatpush2.msra.mxu0 %v4441
        %4537 = vmatprep.subr.mxu0 %v4440
        %4538 = vmatpush2.msra.mxu0 %v4439
        %4539 = vmatprep.subr.mxu0 %v4438
        %4540 = vmatpush2.msra.mxu0 %v4437
        %4541 = vmatprep.subr.mxu0 %v4436
        %4542 = vmatpush2.msra.mxu0 %v4435
        %4543 = vmatprep.subr.mxu0 %v4434
        %4544 = vmatpush2.msra.mxu0 %v4433
        %4545 = vmatprep.subr.mxu0 %v4432
        %4546 = vmatpush2.msra.mxu0 %v4431
        %4547 = vmatprep.subr.mxu0 %v4430
        %4548 = vmatpush2.msra.mxu0 %v4429
        %4549 = vmatprep.subr.mxu0 %v4428
        %4550 = vmatpush2.msra.mxu0 %v4427
        %4551 = vmatprep.subr.mxu0 %v4426
        %4552 = vmatpush2.msra.mxu0 %v4425
        %4553 = vmatprep.subr.mxu0 %v4424
        %4554 = vmatpush2.msra.mxu0 %v4423
        %4555 = vmatprep.subr.mxu0 %v4422
        %4556 = vmatpush2.msra.mxu0 %v4421
        %4557 = vmatprep.subr.mxu0 %v4420
        %4558 = vmatpush2.msra.mxu0 %v4419
        %4559 = vmatprep.mubr.f32.mxu0 %v4384
        %4560 = vmatmul.mubr.f32.gmra.mxu0 %v4383
        %v4561 = vpop.f32.mrf.mxu0
        %v4562 = vadd.f32 0.0, %v4561
        %v4563 = vpop.f32.mrf.mxu0
        %v4564 = vadd.f32 0.0, %v4563
        %4565 = vdwg.mxu0
        %4566 = vmatprep.subr.mxu0 %v4482
        %4567 = vmatpush1.msra.mxu0 %v4481
        %4568 = vmatprep.subr.mxu0 %v4480
        %4569 = vmatpush1.msra.mxu0 %v4479
        %4570 = vmatprep.subr.mxu0 %v4478
        %4571 = vmatpush1.msra.mxu0 %v4477
        %4572 = vmatprep.subr.mxu0 %v4476
        %4573 = vmatpush1.msra.mxu0 %v4475
        %4574 = vmatprep.subr.mxu0 %v4474
        %4575 = vmatpush1.msra.mxu0 %v4473
        %4576 = vmatprep.subr.mxu0 %v4472
        %4577 = vmatpush1.msra.mxu0 %v4471
        %4578 = vmatprep.subr.mxu0 %v4470
        %4579 = vmatpush1.msra.mxu0 %v4469
        %4580 = vmatprep.subr.mxu0 %v4468
        %4581 = vmatpush1.msra.mxu0 %v4467
        %4582 = vmatprep.subr.mxu0 %v4466
        %4583 = vmatpush1.msra.mxu0 %v4465
        %4584 = vmatprep.subr.mxu0 %v4464
        %4585 = vmatpush1.msra.mxu0 %v4463
        %4586 = vmatprep.subr.mxu0 %v4462
        %4587 = vmatpush1.msra.mxu0 %v4461
        %4588 = vmatprep.subr.mxu0 %v4460
        %4589 = vmatpush1.msra.mxu0 %v4459
        %4590 = vmatprep.subr.mxu0 %v4458
        %4591 = vmatpush1.msra.mxu0 %v4457
        %4592 = vmatprep.subr.mxu0 %v4456
        %4593 = vmatpush1.msra.mxu0 %v4455
        %4594 = vmatprep.subr.mxu0 %v4454
        %4595 = vmatpush1.msra.mxu0 %v4453
        %4596 = vmatprep.subr.mxu0 %v4452
        %4597 = vmatpush1.msra.mxu0 %v4451
        %4598 = vmatprep.subr.mxu0 0.0
        %4599 = vmatpush2.msra.mxu0 0.0
        %4600 = vmatprep.subr.mxu0 0.0
        %4601 = vmatpush2.msra.mxu0 0.0
        %4602 = vmatprep.subr.mxu0 0.0
        %4603 = vmatpush2.msra.mxu0 0.0
        %4604 = vmatprep.subr.mxu0 0.0
        %4605 = vmatpush2.msra.mxu0 0.0
        %4606 = vmatprep.subr.mxu0 0.0
        %4607 = vmatpush2.msra.mxu0 0.0
        %4608 = vmatprep.subr.mxu0 0.0
        %4609 = vmatpush2.msra.mxu0 0.0
        %4610 = vmatprep.subr.mxu0 0.0
        %4611 = vmatpush2.msra.mxu0 0.0
        %4612 = vmatprep.subr.mxu0 0.0
        %4613 = vmatpush2.msra.mxu0 0.0
        %4614 = vmatprep.subr.mxu0 0.0
        %4615 = vmatpush2.msra.mxu0 0.0
        %4616 = vmatprep.subr.mxu0 0.0
        %4617 = vmatpush2.msra.mxu0 0.0
        %4618 = vmatprep.subr.mxu0 0.0
        %4619 = vmatpush2.msra.mxu0 0.0
        %4620 = vmatprep.subr.mxu0 0.0
        %4621 = vmatpush2.msra.mxu0 0.0
        %4622 = vmatprep.subr.mxu0 %v4490
        %4623 = vmatpush2.msra.mxu0 %v4489
        %4624 = vmatprep.subr.mxu0 %v4488
        %4625 = vmatpush2.msra.mxu0 %v4487
        %4626 = vmatprep.subr.mxu0 %v4486
        %4627 = vmatpush2.msra.mxu0 %v4485
        %4628 = vmatprep.subr.mxu0 %v4484
        %4629 = vmatpush2.msra.mxu0 %v4483
        %4630 = vmatprep.mubr.f32.mxu0 %v4493
        %4631 = vmatmul.mubr.f32.gmra.mxu0 %v4385
        %v4632 = vpop.f32.mrf.mxu0
        %v4633 = vadd.f32 %v4562, %v4632
        %v4634 = vpop.f32.mrf.mxu0
        %v4635 = vadd.f32 %v4564, %v4634
        %4636 = vdwg.mxu0
        %4637 = vst [vmem:[#allocation4] sm:$0xff] 0.0
        %4638 = vst.msk [vmem:[#allocation4 + $0x8] sm:$0xff] %vm2612, 0.0
        %4639 = vst [vmem:[#allocation4 + $0x10] sm:$0x1] 0.0
        %vm4640 = vcmask 778240
        %4641 = vst.msk [vmem:[#allocation4 + $0x18] sm:$0x1] %vm4640, 0.0
        %v4644 = vrot.slane %v4633, 7
        %v4645 = vrot.slane %v4635, 7
        %4648 = vst [vmem:[#allocation4] sm:$0xfe] %v4644
        %vm4649 = vcmask 785409
        %4650 = vst.msk [vmem:[#allocation4 + $0x8] sm:$0xfe] %vm4649, %v4645
        %v4651 = vld [vmem:[#allocation4] sm:$0x7f]
        %v4652 = vld [vmem:[#allocation4 + $0x8] sm:$0x7f]
        %v4653 = vld [vmem:[#allocation22] sm:$0xff]
        %v4654 = vld [vmem:[#allocation22 + $0x8] sm:$0xff]
        %v4655 = vld [vmem:[#allocation22 + $0x10] sm:$0xff]
        %v4656 = vld [vmem:[#allocation22 + $0x18] sm:$0xff]
        %v4657 = vld [vmem:[#allocation22 + $0x20] sm:$0xff]
        %v4658 = vld [vmem:[#allocation22 + $0x28] sm:$0xff]
        %v4659 = vld [vmem:[#allocation22 + $0x30] sm:$0xff]
        %v4660 = vld [vmem:[#allocation22 + $0x38] sm:$0xff]
        %v4661 = vld [vmem:[#allocation22 + $0x40] sm:$0xff]
        %v4662 = vld [vmem:[#allocation22 + $0x48] sm:$0xff]
        %v4663 = vld [vmem:[#allocation22 + $0x50] sm:$0xff]
        %v4664 = vld [vmem:[#allocation22 + $0x58] sm:$0xff]
        %v4665 = vld [vmem:[#allocation22 + $0x60] sm:$0xff]
        %v4666 = vld [vmem:[#allocation22 + $0x68] sm:$0xff]
        %v4667 = vld [vmem:[#allocation22 + $0x70] sm:$0xff]
        %v4668 = vld [vmem:[#allocation22 + $0x78] sm:$0xff]
        %v4669 = vld [vmem:[#allocation22 + $0x80] sm:$0xff]
        %v4670 = vld [vmem:[#allocation22 + $0x88] sm:$0xff]
        %v4671 = vld [vmem:[#allocation22 + $0x90] sm:$0xff]
        %v4672 = vld [vmem:[#allocation22 + $0x98] sm:$0xff]
        %v4673 = vld [vmem:[#allocation22 + $0xa0] sm:$0xff]
        %v4674 = vld [vmem:[#allocation22 + $0xa8] sm:$0xff]
        %v4675 = vld [vmem:[#allocation22 + $0xb0] sm:$0xff]
        %v4676 = vld [vmem:[#allocation22 + $0xb8] sm:$0xff]
        %v4677 = vld [vmem:[#allocation22 + $0xc0] sm:$0xff]
        %v4678 = vld [vmem:[#allocation22 + $0xc8] sm:$0xff]
        %v4679 = vld [vmem:[#allocation22 + $0xd0] sm:$0xff]
        %v4680 = vld [vmem:[#allocation22 + $0xd8] sm:$0xff]
        %v4681 = vld [vmem:[#allocation22 + $0xe0] sm:$0xff]
        %v4682 = vld [vmem:[#allocation22 + $0xe8] sm:$0xff]
        %v4683 = vld [vmem:[#allocation22 + $0xf0] sm:$0xff]
        %v4684 = vld [vmem:[#allocation22 + $0xf8] sm:$0xff]
        %v4685 = vld [vmem:[#allocation22 + $0x100] sm:$0xff]
        %v4686 = vld [vmem:[#allocation22 + $0x108] sm:$0xff]
        %v4687 = vld [vmem:[#allocation22 + $0x110] sm:$0xff]
        %v4688 = vld [vmem:[#allocation22 + $0x118] sm:$0xff]
        %v4689 = vld [vmem:[#allocation22 + $0x120] sm:$0xff]
        %v4690 = vld [vmem:[#allocation22 + $0x128] sm:$0xff]
        %v4691 = vld [vmem:[#allocation22 + $0x130] sm:$0xff]
        %v4692 = vld [vmem:[#allocation22 + $0x138] sm:$0xff]
        %v4693 = vld [vmem:[#allocation22 + $0x140] sm:$0xff]
        %v4694 = vld [vmem:[#allocation22 + $0x148] sm:$0xff]
        %v4695 = vld [vmem:[#allocation22 + $0x150] sm:$0xff]
        %v4696 = vld [vmem:[#allocation22 + $0x158] sm:$0xff]
        %v4697 = vld [vmem:[#allocation22 + $0x160] sm:$0xff]
        %v4698 = vld [vmem:[#allocation22 + $0x168] sm:$0xff]
        %v4699 = vld [vmem:[#allocation22 + $0x170] sm:$0xff]
        %v4700 = vld [vmem:[#allocation22 + $0x178] sm:$0xff]
        %v4701 = vld [vmem:[#allocation22 + $0x180] sm:$0xff]
        %v4702 = vld [vmem:[#allocation22 + $0x188] sm:$0xff]
        %v4703 = vld [vmem:[#allocation22 + $0x190] sm:$0xff]
        %v4704 = vld [vmem:[#allocation22 + $0x198] sm:$0xff]
        %v4705 = vld [vmem:[#allocation22 + $0x1a0] sm:$0xff]
        %v4706 = vld [vmem:[#allocation22 + $0x1a8] sm:$0xff]
        %v4707 = vld [vmem:[#allocation22 + $0x1b0] sm:$0xff]
        %v4708 = vld [vmem:[#allocation22 + $0x1b8] sm:$0xff]
        %v4709 = vld [vmem:[#allocation22 + $0x1c0] sm:$0xff]
        %v4710 = vld [vmem:[#allocation22 + $0x1c8] sm:$0xff]
        %v4711 = vld [vmem:[#allocation22 + $0x1d0] sm:$0xff]
        %v4712 = vld [vmem:[#allocation22 + $0x1d8] sm:$0xff]
        %v4713 = vld [vmem:[#allocation22 + $0x1e0] sm:$0xff]
        %v4714 = vld [vmem:[#allocation22 + $0x1e8] sm:$0xff]
        %v4715 = vld [vmem:[#allocation22 + $0x1f0] sm:$0xff]
        %v4716 = vld [vmem:[#allocation22 + $0x1f8] sm:$0xff]
        %v4717 = vld [vmem:[#allocation22 + $0x200] sm:$0xff]
        %v4718 = vld [vmem:[#allocation22 + $0x208] sm:$0xff]
        %v4719 = vld [vmem:[#allocation22 + $0x210] sm:$0xff]
        %v4720 = vld [vmem:[#allocation22 + $0x218] sm:$0xff]
        %v4721 = vld [vmem:[#allocation22 + $0x220] sm:$0xff]
        %v4722 = vld [vmem:[#allocation22 + $0x228] sm:$0xff]
        %v4723 = vld [vmem:[#allocation22 + $0x230] sm:$0xff]
        %v4724 = vld [vmem:[#allocation22 + $0x238] sm:$0xff]
        %v4725 = vld [vmem:[#allocation22 + $0x240] sm:$0xff]
        %v4726 = vld [vmem:[#allocation22 + $0x248] sm:$0xff]
        %v4727 = vld [vmem:[#allocation22 + $0x250] sm:$0xff]
        %v4728 = vld [vmem:[#allocation22 + $0x258] sm:$0xff]
        %v4729 = vld [vmem:[#allocation22 + $0x260] sm:$0xff]
        %v4730 = vld [vmem:[#allocation22 + $0x268] sm:$0xff]
        %v4731 = vld [vmem:[#allocation22 + $0x270] sm:$0xff]
        %v4732 = vld [vmem:[#allocation22 + $0x278] sm:$0xff]
        %v4733 = vld [vmem:[#allocation22 + $0x280] sm:$0xff]
        %v4734 = vld [vmem:[#allocation22 + $0x288] sm:$0xff]
        %v4735 = vld [vmem:[#allocation22 + $0x290] sm:$0xff]
        %v4736 = vld [vmem:[#allocation22 + $0x298] sm:$0xff]
        %v4737 = vld [vmem:[#allocation22 + $0x2a0] sm:$0xff]
        %v4738 = vld [vmem:[#allocation22 + $0x2a8] sm:$0xff]
        %v4739 = vld [vmem:[#allocation22 + $0x2b0] sm:$0xff]
        %v4740 = vld [vmem:[#allocation22 + $0x2b8] sm:$0xff]
        %v4741 = vld [vmem:[#allocation22 + $0x2c0] sm:$0xff]
        %v4742 = vld [vmem:[#allocation22 + $0x2c8] sm:$0xff]
        %v4743 = vld [vmem:[#allocation22 + $0x2d0] sm:$0xff]
        %v4744 = vld [vmem:[#allocation22 + $0x2d8] sm:$0xff]
        %v4745 = vld [vmem:[#allocation22 + $0x2e0] sm:$0xff]
        %v4746 = vld [vmem:[#allocation22 + $0x2e8] sm:$0xff]
        %v4747 = vld [vmem:[#allocation22 + $0x2f0] sm:$0xff]
        %v4748 = vld [vmem:[#allocation22 + $0x2f8] sm:$0xff]
        %v4749 = vld [vmem:[#allocation22 + $0x300] sm:$0xff]
        %v4750 = vld [vmem:[#allocation22 + $0x308] sm:$0xff]
        %v4751 = vld [vmem:[#allocation22 + $0x310] sm:$0xff]
        %v4752 = vld [vmem:[#allocation22 + $0x318] sm:$0xff]
        %v4753 = vld [vmem:[#allocation22 + $0x320] sm:$0xff]
        %v4754 = vld [vmem:[#allocation22 + $0x328] sm:$0xff]
        %v4755 = vld [vmem:[#allocation22 + $0x330] sm:$0xff]
        %v4756 = vld [vmem:[#allocation22 + $0x338] sm:$0xff]
        %v4757 = vld [vmem:[#allocation22 + $0x340] sm:$0xff]
        %v4758 = vld [vmem:[#allocation22 + $0x348] sm:$0xff]
        %v4759 = vld [vmem:[#allocation22 + $0x350] sm:$0xff]
        %v4760 = vld [vmem:[#allocation22 + $0x358] sm:$0xff]
        %v4761 = vld [vmem:[#allocation22 + $0x360] sm:$0xff]
        %v4762 = vld [vmem:[#allocation22 + $0x368] sm:$0xff]
        %v4763 = vld [vmem:[#allocation22 + $0x370] sm:$0xff]
        %v4764 = vld [vmem:[#allocation22 + $0x378] sm:$0xff]
        %v4765 = vld [vmem:[#allocation4] sm:$0xfe]
        %v4766 = vld [vmem:[#allocation4 + $0x8] sm:$0xfe]
        %s4767 = scalar_lea.vmem [#allocation22], 896
        %v4768 = vld [vmem:[%s4767] sm:$0xff]
        %v4769 = vld [vmem:[%s4767 + $0x8] sm:$0xff]
        %v4770 = vld [vmem:[%s4767 + $0x10] sm:$0xff]
        %v4771 = vld [vmem:[%s4767 + $0x18] sm:$0xff]
        %v4772 = vld [vmem:[%s4767 + $0x20] sm:$0xff]
        %v4773 = vld [vmem:[%s4767 + $0x28] sm:$0xff]
        %v4774 = vld [vmem:[%s4767 + $0x30] sm:$0xff]
        %v4775 = vld [vmem:[%s4767 + $0x38] sm:$0xff]
        %v4776 = vld [vmem:[%s4767 + $0x40] sm:$0xff]
        %v4777 = vld [vmem:[%s4767 + $0x48] sm:$0xff]
        %v4778 = vld [vmem:[%s4767 + $0x50] sm:$0xff]
        %v4779 = vld [vmem:[%s4767 + $0x58] sm:$0xff]
        %v4780 = vld [vmem:[%s4767 + $0x60] sm:$0xff]
        %v4781 = vld [vmem:[%s4767 + $0x68] sm:$0xff]
        %v4782 = vld [vmem:[%s4767 + $0x70] sm:$0xff]
        %v4783 = vld [vmem:[%s4767 + $0x78] sm:$0xff]
        %v4784 = vld [vmem:[%s4767 + $0x80] sm:$0xff]
        %v4785 = vld [vmem:[%s4767 + $0x88] sm:$0xff]
        %v4786 = vld [vmem:[%s4767 + $0x90] sm:$0xff]
        %v4787 = vld [vmem:[%s4767 + $0x98] sm:$0xff]
        %v4788 = vld [vmem:[%s4767 + $0xa0] sm:$0xff]
        %v4789 = vld [vmem:[%s4767 + $0xa8] sm:$0xff]
        %v4790 = vld [vmem:[%s4767 + $0xb0] sm:$0xff]
        %v4791 = vld [vmem:[%s4767 + $0xb8] sm:$0xff]
        %v4792 = vld [vmem:[%s4767 + $0xc0] sm:$0xff]
        %v4793 = vld [vmem:[%s4767 + $0xc8] sm:$0xff]
        %v4794 = vld [vmem:[%s4767 + $0xd0] sm:$0xff]
        %v4795 = vld [vmem:[%s4767 + $0xd8] sm:$0xff]
        %v4796 = vld [vmem:[%s4767 + $0xe0] sm:$0xff]
        %v4797 = vld [vmem:[%s4767 + $0xe8] sm:$0xff]
        %v4798 = vld [vmem:[%s4767 + $0xf0] sm:$0xff]
        %v4799 = vld [vmem:[%s4767 + $0xf8] sm:$0xff]
        %v4800 = vld [vmem:[%s4767 + $0x100] sm:$0xff]
        %v4801 = vld [vmem:[%s4767 + $0x108] sm:$0xff]
        %v4802 = vld [vmem:[%s4767 + $0x110] sm:$0xff]
        %v4803 = vld [vmem:[%s4767 + $0x118] sm:$0xff]
        %v4804 = vld [vmem:[%s4767 + $0x120] sm:$0xff]
        %v4805 = vld [vmem:[%s4767 + $0x128] sm:$0xff]
        %v4806 = vld [vmem:[%s4767 + $0x130] sm:$0xff]
        %v4807 = vld [vmem:[%s4767 + $0x138] sm:$0xff]
        %v4808 = vld [vmem:[%s4767 + $0x140] sm:$0xff]
        %v4809 = vld [vmem:[%s4767 + $0x148] sm:$0xff]
        %v4810 = vld [vmem:[%s4767 + $0x150] sm:$0xff]
        %v4811 = vld [vmem:[%s4767 + $0x158] sm:$0xff]
        %v4812 = vld [vmem:[%s4767 + $0x160] sm:$0xff]
        %v4813 = vld [vmem:[%s4767 + $0x168] sm:$0xff]
        %v4814 = vld [vmem:[%s4767 + $0x170] sm:$0xff]
        %v4815 = vld [vmem:[%s4767 + $0x178] sm:$0xff]
        %v4816 = vld [vmem:[%s4767 + $0x180] sm:$0xff]
        %v4817 = vld [vmem:[%s4767 + $0x188] sm:$0xff]
        %v4818 = vld [vmem:[%s4767 + $0x190] sm:$0xff]
        %v4819 = vld [vmem:[%s4767 + $0x198] sm:$0xff]
        %v4820 = vld [vmem:[%s4767 + $0x1a0] sm:$0xff]
        %v4821 = vld [vmem:[%s4767 + $0x1a8] sm:$0xff]
        %v4822 = vld [vmem:[%s4767 + $0x1b0] sm:$0xff]
        %v4823 = vld [vmem:[%s4767 + $0x1b8] sm:$0xff]
        %v4824 = vld [vmem:[%s4767 + $0x1c0] sm:$0xff]
        %v4825 = vld [vmem:[%s4767 + $0x1c8] sm:$0xff]
        %v4826 = vld [vmem:[%s4767 + $0x1d0] sm:$0xff]
        %v4827 = vld [vmem:[%s4767 + $0x1d8] sm:$0xff]
        %v4828 = vld [vmem:[%s4767 + $0x1e0] sm:$0xff]
        %v4829 = vld [vmem:[%s4767 + $0x1e8] sm:$0xff]
        %v4830 = vld [vmem:[%s4767 + $0x1f0] sm:$0xff]
        %v4831 = vld [vmem:[%s4767 + $0x1f8] sm:$0xff]
        %v4832 = vld [vmem:[%s4767 + $0x200] sm:$0xff]
        %v4833 = vld [vmem:[%s4767 + $0x208] sm:$0xff]
        %v4834 = vld [vmem:[%s4767 + $0x210] sm:$0xff]
        %v4835 = vld [vmem:[%s4767 + $0x218] sm:$0xff]
        %v4836 = vld [vmem:[%s4767 + $0x220] sm:$0xff]
        %v4837 = vld [vmem:[%s4767 + $0x228] sm:$0xff]
        %v4838 = vld [vmem:[%s4767 + $0x230] sm:$0xff]
        %v4839 = vld [vmem:[%s4767 + $0x238] sm:$0xff]
        %v4840 = vld [vmem:[%s4767 + $0x240] sm:$0xff]
        %v4841 = vld [vmem:[%s4767 + $0x248] sm:$0xff]
        %v4842 = vld [vmem:[%s4767 + $0x250] sm:$0xff]
        %v4843 = vld [vmem:[%s4767 + $0x258] sm:$0xff]
        %v4844 = vld [vmem:[%s4767 + $0x260] sm:$0xff]
        %v4845 = vld [vmem:[%s4767 + $0x268] sm:$0xff]
        %v4846 = vld [vmem:[%s4767 + $0x270] sm:$0xff]
        %v4847 = vld [vmem:[%s4767 + $0x278] sm:$0xff]
        %v4848 = vld [vmem:[%s4767 + $0x280] sm:$0xff]
        %v4849 = vld [vmem:[%s4767 + $0x288] sm:$0xff]
        %v4850 = vld [vmem:[%s4767 + $0x290] sm:$0xff]
        %v4851 = vld [vmem:[%s4767 + $0x298] sm:$0xff]
        %v4852 = vld [vmem:[%s4767 + $0x2a0] sm:$0xff]
        %v4853 = vld [vmem:[%s4767 + $0x2a8] sm:$0xff]
        %v4854 = vld [vmem:[%s4767 + $0x2b0] sm:$0xff]
        %v4855 = vld [vmem:[%s4767 + $0x2b8] sm:$0xff]
        %v4856 = vld [vmem:[%s4767 + $0x2c0] sm:$0xff]
        %v4857 = vld [vmem:[%s4767 + $0x2c8] sm:$0xff]
        %v4858 = vld [vmem:[%s4767 + $0x2d0] sm:$0xff]
        %v4859 = vld [vmem:[%s4767 + $0x2d8] sm:$0xff]
        %v4860 = vld [vmem:[%s4767 + $0x2e0] sm:$0xff]
        %v4861 = vld [vmem:[%s4767 + $0x2e8] sm:$0xff]
        %v4862 = vld [vmem:[%s4767 + $0x2f0] sm:$0xff]
        %v4863 = vld [vmem:[%s4767 + $0x2f8] sm:$0xff]
        %v4864 = vld [vmem:[%s4767 + $0x300] sm:$0xff]
        %v4865 = vld [vmem:[%s4767 + $0x308] sm:$0xff]
        %v4866 = vld [vmem:[%s4767 + $0x310] sm:$0xff]
        %v4867 = vld [vmem:[%s4767 + $0x318] sm:$0xff]
        %v4868 = vld [vmem:[%s4767 + $0x320] sm:$0xff]
        %v4869 = vld [vmem:[%s4767 + $0x328] sm:$0xff]
        %v4870 = vld [vmem:[%s4767 + $0x330] sm:$0xff]
        %v4871 = vld [vmem:[%s4767 + $0x338] sm:$0xff]
        %v4872 = vld [vmem:[%s4767 + $0x340] sm:$0xff]
        %v4873 = vld [vmem:[%s4767 + $0x348] sm:$0xff]
        %v4874 = vld [vmem:[%s4767 + $0x350] sm:$0xff]
        %v4875 = vld [vmem:[%s4767 + $0x358] sm:$0xff]
        %v4876 = vld [vmem:[%s4767 + $0x360] sm:$0xff]
        %v4877 = vld [vmem:[%s4767 + $0x368] sm:$0xff]
        %v4878 = vld [vmem:[%s4767 + $0x370] sm:$0xff]
        %v4879 = vld [vmem:[%s4767 + $0x378] sm:$0xff]
        %v4882 = vrot.slane %v4765, 1
        %v4883 = vrot.slane %v4766, 1
        %v4885 = vsel %vm2612, %v4883, 0
        %4887 = vmatprep.subr.mxu0 %v4829
        %4888 = vmatpush1.msra.mxu0 %v4828
        %4889 = vmatprep.subr.mxu0 %v4825
        %4890 = vmatpush1.msra.mxu0 %v4824
        %4891 = vmatprep.subr.mxu0 %v4821
        %4892 = vmatpush1.msra.mxu0 %v4820
        %4893 = vmatprep.subr.mxu0 %v4817
        %4894 = vmatpush1.msra.mxu0 %v4816
        %4895 = vmatprep.subr.mxu0 %v4813
        %4896 = vmatpush1.msra.mxu0 %v4812
        %4897 = vmatprep.subr.mxu0 %v4809
        %4898 = vmatpush1.msra.mxu0 %v4808
        %4899 = vmatprep.subr.mxu0 %v4805
        %4900 = vmatpush1.msra.mxu0 %v4804
        %4901 = vmatprep.subr.mxu0 %v4801
        %4902 = vmatpush1.msra.mxu0 %v4800
        %4903 = vmatprep.subr.mxu0 %v4797
        %4904 = vmatpush1.msra.mxu0 %v4796
        %4905 = vmatprep.subr.mxu0 %v4793
        %4906 = vmatpush1.msra.mxu0 %v4792
        %4907 = vmatprep.subr.mxu0 %v4789
        %4908 = vmatpush1.msra.mxu0 %v4788
        %4909 = vmatprep.subr.mxu0 %v4785
        %4910 = vmatpush1.msra.mxu0 %v4784
        %4911 = vmatprep.subr.mxu0 %v4781
        %4912 = vmatpush1.msra.mxu0 %v4780
        %4913 = vmatprep.subr.mxu0 %v4777
        %4914 = vmatpush1.msra.mxu0 %v4776
        %4915 = vmatprep.subr.mxu0 %v4773
        %4916 = vmatpush1.msra.mxu0 %v4772
        %4917 = vmatprep.subr.mxu0 %v4769
        %4918 = vmatpush1.msra.mxu0 %v4768
        %4919 = vmatprep.subr.mxu0 0.0
        %4920 = vmatpush2.msra.mxu0 0.0
        %4921 = vmatprep.subr.mxu0 0.0
        %4922 = vmatpush2.msra.mxu0 0.0
        %4923 = vmatprep.subr.mxu0 0.0
        %4924 = vmatpush2.msra.mxu0 0.0
        %4925 = vmatprep.subr.mxu0 0.0
        %4926 = vmatpush2.msra.mxu0 0.0
        %4927 = vmatprep.subr.mxu0 %v4877
        %4928 = vmatpush2.msra.mxu0 %v4876
        %4929 = vmatprep.subr.mxu0 %v4873
        %4930 = vmatpush2.msra.mxu0 %v4872
        %4931 = vmatprep.subr.mxu0 %v4869
        %4932 = vmatpush2.msra.mxu0 %v4868
        %4933 = vmatprep.subr.mxu0 %v4865
        %4934 = vmatpush2.msra.mxu0 %v4864
        %4935 = vmatprep.subr.mxu0 %v4861
        %4936 = vmatpush2.msra.mxu0 %v4860
        %4937 = vmatprep.subr.mxu0 %v4857
        %4938 = vmatpush2.msra.mxu0 %v4856
        %4939 = vmatprep.subr.mxu0 %v4853
        %4940 = vmatpush2.msra.mxu0 %v4852
        %4941 = vmatprep.subr.mxu0 %v4849
        %4942 = vmatpush2.msra.mxu0 %v4848
        %4943 = vmatprep.subr.mxu0 %v4845
        %4944 = vmatpush2.msra.mxu0 %v4844
        %4945 = vmatprep.subr.mxu0 %v4841
        %4946 = vmatpush2.msra.mxu0 %v4840
        %4947 = vmatprep.subr.mxu0 %v4837
        %4948 = vmatpush2.msra.mxu0 %v4836
        %4949 = vmatprep.subr.mxu0 %v4833
        %4950 = vmatpush2.msra.mxu0 %v4832
        %4951 = vmatprep.mubr.f32.mxu0 %v4885
        %4952 = vmatmul.mubr.f32.gmra.mxu0 %v4882
        %v4953 = vpop.f32.mrf.mxu0
        %v4954 = vadd.f32 0.0, %v4953
        %v4955 = vpop.f32.mrf.mxu0
        %v4956 = vadd.f32 0.0, %v4955
        %4957 = vdwg.mxu0
        %4958 = vmatprep.subr.mxu0 %v4831
        %4959 = vmatpush1.msra.mxu0 %v4830
        %4960 = vmatprep.subr.mxu0 %v4827
        %4961 = vmatpush1.msra.mxu0 %v4826
        %4962 = vmatprep.subr.mxu0 %v4823
        %4963 = vmatpush1.msra.mxu0 %v4822
        %4964 = vmatprep.subr.mxu0 %v4819
        %4965 = vmatpush1.msra.mxu0 %v4818
        %4966 = vmatprep.subr.mxu0 %v4815
        %4967 = vmatpush1.msra.mxu0 %v4814
        %4968 = vmatprep.subr.mxu0 %v4811
        %4969 = vmatpush1.msra.mxu0 %v4810
        %4970 = vmatprep.subr.mxu0 %v4807
        %4971 = vmatpush1.msra.mxu0 %v4806
        %4972 = vmatprep.subr.mxu0 %v4803
        %4973 = vmatpush1.msra.mxu0 %v4802
        %4974 = vmatprep.subr.mxu0 %v4799
        %4975 = vmatpush1.msra.mxu0 %v4798
        %4976 = vmatprep.subr.mxu0 %v4795
        %4977 = vmatpush1.msra.mxu0 %v4794
        %4978 = vmatprep.subr.mxu0 %v4791
        %4979 = vmatpush1.msra.mxu0 %v4790
        %4980 = vmatprep.subr.mxu0 %v4787
        %4981 = vmatpush1.msra.mxu0 %v4786
        %4982 = vmatprep.subr.mxu0 %v4783
        %4983 = vmatpush1.msra.mxu0 %v4782
        %4984 = vmatprep.subr.mxu0 %v4779
        %4985 = vmatpush1.msra.mxu0 %v4778
        %4986 = vmatprep.subr.mxu0 %v4775
        %4987 = vmatpush1.msra.mxu0 %v4774
        %4988 = vmatprep.subr.mxu0 %v4771
        %4989 = vmatpush1.msra.mxu0 %v4770
        %4990 = vmatprep.subr.mxu0 0.0
        %4991 = vmatpush2.msra.mxu0 0.0
        %4992 = vmatprep.subr.mxu0 0.0
        %4993 = vmatpush2.msra.mxu0 0.0
        %4994 = vmatprep.subr.mxu0 0.0
        %4995 = vmatpush2.msra.mxu0 0.0
        %4996 = vmatprep.subr.mxu0 0.0
        %4997 = vmatpush2.msra.mxu0 0.0
        %4998 = vmatprep.subr.mxu0 %v4879
        %4999 = vmatpush2.msra.mxu0 %v4878
        %5000 = vmatprep.subr.mxu0 %v4875
        %5001 = vmatpush2.msra.mxu0 %v4874
        %5002 = vmatprep.subr.mxu0 %v4871
        %5003 = vmatpush2.msra.mxu0 %v4870
        %5004 = vmatprep.subr.mxu0 %v4867
        %5005 = vmatpush2.msra.mxu0 %v4866
        %5006 = vmatprep.subr.mxu0 %v4863
        %5007 = vmatpush2.msra.mxu0 %v4862
        %5008 = vmatprep.subr.mxu0 %v4859
        %5009 = vmatpush2.msra.mxu0 %v4858
        %5010 = vmatprep.subr.mxu0 %v4855
        %5011 = vmatpush2.msra.mxu0 %v4854
        %5012 = vmatprep.subr.mxu0 %v4851
        %5013 = vmatpush2.msra.mxu0 %v4850
        %5014 = vmatprep.subr.mxu0 %v4847
        %5015 = vmatpush2.msra.mxu0 %v4846
        %5016 = vmatprep.subr.mxu0 %v4843
        %5017 = vmatpush2.msra.mxu0 %v4842
        %5018 = vmatprep.subr.mxu0 %v4839
        %5019 = vmatpush2.msra.mxu0 %v4838
        %5020 = vmatprep.subr.mxu0 %v4835
        %5021 = vmatpush2.msra.mxu0 %v4834
        %5022 = vmatprep.mubr.f32.mxu0 %v4885
        %5023 = vmatmul.mubr.f32.gmra.mxu0 %v4882
        %v5024 = vpop.f32.mrf.mxu0
        %v5025 = vadd.f32 0.0, %v5024
        %v5026 = vpop.f32.mrf.mxu0
        %v5027 = vadd.f32 0.0, %v5026
        %5028 = vdwg.mxu0
        %v5030 = vsel %vm2612, %v4652, 0
        %5032 = vmatprep.subr.mxu0 %v4714
        %5033 = vmatpush1.msra.mxu0 %v4713
        %5034 = vmatprep.subr.mxu0 %v4710
        %5035 = vmatpush1.msra.mxu0 %v4709
        %5036 = vmatprep.subr.mxu0 %v4706
        %5037 = vmatpush1.msra.mxu0 %v4705
        %5038 = vmatprep.subr.mxu0 %v4702
        %5039 = vmatpush1.msra.mxu0 %v4701
        %5040 = vmatprep.subr.mxu0 %v4698
        %5041 = vmatpush1.msra.mxu0 %v4697
        %5042 = vmatprep.subr.mxu0 %v4694
        %5043 = vmatpush1.msra.mxu0 %v4693
        %5044 = vmatprep.subr.mxu0 %v4690
        %5045 = vmatpush1.msra.mxu0 %v4689
        %5046 = vmatprep.subr.mxu0 %v4686
        %5047 = vmatpush1.msra.mxu0 %v4685
        %5048 = vmatprep.subr.mxu0 %v4682
        %5049 = vmatpush1.msra.mxu0 %v4681
        %5050 = vmatprep.subr.mxu0 %v4678
        %5051 = vmatpush1.msra.mxu0 %v4677
        %5052 = vmatprep.subr.mxu0 %v4674
        %5053 = vmatpush1.msra.mxu0 %v4673
        %5054 = vmatprep.subr.mxu0 %v4670
        %5055 = vmatpush1.msra.mxu0 %v4669
        %5056 = vmatprep.subr.mxu0 %v4666
        %5057 = vmatpush1.msra.mxu0 %v4665
        %5058 = vmatprep.subr.mxu0 %v4662
        %5059 = vmatpush1.msra.mxu0 %v4661
        %5060 = vmatprep.subr.mxu0 %v4658
        %5061 = vmatpush1.msra.mxu0 %v4657
        %5062 = vmatprep.subr.mxu0 %v4654
        %5063 = vmatpush1.msra.mxu0 %v4653
        %5064 = vmatprep.subr.mxu0 0.0
        %5065 = vmatpush2.msra.mxu0 0.0
        %5066 = vmatprep.subr.mxu0 0.0
        %5067 = vmatpush2.msra.mxu0 0.0
        %5068 = vmatprep.subr.mxu0 0.0
        %5069 = vmatpush2.msra.mxu0 0.0
        %5070 = vmatprep.subr.mxu0 0.0
        %5071 = vmatpush2.msra.mxu0 0.0
        %5072 = vmatprep.subr.mxu0 %v4762
        %5073 = vmatpush2.msra.mxu0 %v4761
        %5074 = vmatprep.subr.mxu0 %v4758
        %5075 = vmatpush2.msra.mxu0 %v4757
        %5076 = vmatprep.subr.mxu0 %v4754
        %5077 = vmatpush2.msra.mxu0 %v4753
        %5078 = vmatprep.subr.mxu0 %v4750
        %5079 = vmatpush2.msra.mxu0 %v4749
        %5080 = vmatprep.subr.mxu0 %v4746
        %5081 = vmatpush2.msra.mxu0 %v4745
        %5082 = vmatprep.subr.mxu0 %v4742
        %5083 = vmatpush2.msra.mxu0 %v4741
        %5084 = vmatprep.subr.mxu0 %v4738
        %5085 = vmatpush2.msra.mxu0 %v4737
        %5086 = vmatprep.subr.mxu0 %v4734
        %5087 = vmatpush2.msra.mxu0 %v4733
        %5088 = vmatprep.subr.mxu0 %v4730
        %5089 = vmatpush2.msra.mxu0 %v4729
        %5090 = vmatprep.subr.mxu0 %v4726
        %5091 = vmatpush2.msra.mxu0 %v4725
        %5092 = vmatprep.subr.mxu0 %v4722
        %5093 = vmatpush2.msra.mxu0 %v4721
        %5094 = vmatprep.subr.mxu0 %v4718
        %5095 = vmatpush2.msra.mxu0 %v4717
        %5096 = vmatprep.mubr.f32.mxu0 %v5030
        %5097 = vmatmul.mubr.f32.gmra.mxu0 %v4651
        %v5098 = vpop.f32.mrf.mxu0
        %v5099 = vadd.f32 %v4954, %v5098
        %v5100 = vpop.f32.mrf.mxu0
        %v5101 = vadd.f32 %v4956, %v5100
        %5102 = vdwg.mxu0
        %5103 = vmatprep.subr.mxu0 %v4716
        %5104 = vmatpush1.msra.mxu0 %v4715
        %5105 = vmatprep.subr.mxu0 %v4712
        %5106 = vmatpush1.msra.mxu0 %v4711
        %5107 = vmatprep.subr.mxu0 %v4708
        %5108 = vmatpush1.msra.mxu0 %v4707
        %5109 = vmatprep.subr.mxu0 %v4704
        %5110 = vmatpush1.msra.mxu0 %v4703
        %5111 = vmatprep.subr.mxu0 %v4700
        %5112 = vmatpush1.msra.mxu0 %v4699
        %5113 = vmatprep.subr.mxu0 %v4696
        %5114 = vmatpush1.msra.mxu0 %v4695
        %5115 = vmatprep.subr.mxu0 %v4692
        %5116 = vmatpush1.msra.mxu0 %v4691
        %5117 = vmatprep.subr.mxu0 %v4688
        %5118 = vmatpush1.msra.mxu0 %v4687
        %5119 = vmatprep.subr.mxu0 %v4684
        %5120 = vmatpush1.msra.mxu0 %v4683
        %5121 = vmatprep.subr.mxu0 %v4680
        %5122 = vmatpush1.msra.mxu0 %v4679
        %5123 = vmatprep.subr.mxu0 %v4676
        %5124 = vmatpush1.msra.mxu0 %v4675
        %5125 = vmatprep.subr.mxu0 %v4672
        %5126 = vmatpush1.msra.mxu0 %v4671
        %5127 = vmatprep.subr.mxu0 %v4668
        %5128 = vmatpush1.msra.mxu0 %v4667
        %5129 = vmatprep.subr.mxu0 %v4664
        %5130 = vmatpush1.msra.mxu0 %v4663
        %5131 = vmatprep.subr.mxu0 %v4660
        %5132 = vmatpush1.msra.mxu0 %v4659
        %5133 = vmatprep.subr.mxu0 %v4656
        %5134 = vmatpush1.msra.mxu0 %v4655
        %5135 = vmatprep.subr.mxu0 0.0
        %5136 = vmatpush2.msra.mxu0 0.0
        %5137 = vmatprep.subr.mxu0 0.0
        %5138 = vmatpush2.msra.mxu0 0.0
        %5139 = vmatprep.subr.mxu0 0.0
        %5140 = vmatpush2.msra.mxu0 0.0
        %5141 = vmatprep.subr.mxu0 0.0
        %5142 = vmatpush2.msra.mxu0 0.0
        %5143 = vmatprep.subr.mxu0 %v4764
        %5144 = vmatpush2.msra.mxu0 %v4763
        %5145 = vmatprep.subr.mxu0 %v4760
        %5146 = vmatpush2.msra.mxu0 %v4759
        %5147 = vmatprep.subr.mxu0 %v4756
        %5148 = vmatpush2.msra.mxu0 %v4755
        %5149 = vmatprep.subr.mxu0 %v4752
        %5150 = vmatpush2.msra.mxu0 %v4751
        %5151 = vmatprep.subr.mxu0 %v4748
        %5152 = vmatpush2.msra.mxu0 %v4747
        %5153 = vmatprep.subr.mxu0 %v4744
        %5154 = vmatpush2.msra.mxu0 %v4743
        %5155 = vmatprep.subr.mxu0 %v4740
        %5156 = vmatpush2.msra.mxu0 %v4739
        %5157 = vmatprep.subr.mxu0 %v4736
        %5158 = vmatpush2.msra.mxu0 %v4735
        %5159 = vmatprep.subr.mxu0 %v4732
        %5160 = vmatpush2.msra.mxu0 %v4731
        %5161 = vmatprep.subr.mxu0 %v4728
        %5162 = vmatpush2.msra.mxu0 %v4727
        %5163 = vmatprep.subr.mxu0 %v4724
        %5164 = vmatpush2.msra.mxu0 %v4723
        %5165 = vmatprep.subr.mxu0 %v4720
        %5166 = vmatpush2.msra.mxu0 %v4719
        %5167 = vmatprep.mubr.f32.mxu0 %v5030
        %5168 = vmatmul.mubr.f32.gmra.mxu0 %v4651
        %v5169 = vpop.f32.mrf.mxu0
        %v5170 = vadd.f32 %v5025, %v5169
        %v5171 = vpop.f32.mrf.mxu0
        %v5172 = vadd.f32 %v5027, %v5171
        %5173 = vdwg.mxu0
        %v5174 = vld [vmem:[#allocation4] sm:$0xfc]
        %v5175 = vld [vmem:[#allocation4 + $0x8] sm:$0xfc]
        %v5176 = vld [vmem:[#allocation4 + $0x10] sm:$0x1]
        %v5177 = vld [vmem:[#allocation4 + $0x18] sm:$0x1]
        %s5178 = scalar_lea.vmem [#allocation22], 1792
        %v5179 = vld [vmem:[%s5178] sm:$0xff]
        %v5180 = vld [vmem:[%s5178 + $0x8] sm:$0xff]
        %v5181 = vld [vmem:[%s5178 + $0x10] sm:$0xff]
        %v5182 = vld [vmem:[%s5178 + $0x18] sm:$0xff]
        %v5183 = vld [vmem:[%s5178 + $0x20] sm:$0xff]
        %v5184 = vld [vmem:[%s5178 + $0x28] sm:$0xff]
        %v5185 = vld [vmem:[%s5178 + $0x30] sm:$0xff]
        %v5186 = vld [vmem:[%s5178 + $0x38] sm:$0xff]
        %v5187 = vld [vmem:[%s5178 + $0x40] sm:$0xff]
        %v5188 = vld [vmem:[%s5178 + $0x48] sm:$0xff]
        %v5189 = vld [vmem:[%s5178 + $0x50] sm:$0xff]
        %v5190 = vld [vmem:[%s5178 + $0x58] sm:$0xff]
        %v5191 = vld [vmem:[%s5178 + $0x60] sm:$0xff]
        %v5192 = vld [vmem:[%s5178 + $0x68] sm:$0xff]
        %v5193 = vld [vmem:[%s5178 + $0x70] sm:$0xff]
        %v5194 = vld [vmem:[%s5178 + $0x78] sm:$0xff]
        %v5195 = vld [vmem:[%s5178 + $0x80] sm:$0xff]
        %v5196 = vld [vmem:[%s5178 + $0x88] sm:$0xff]
        %v5197 = vld [vmem:[%s5178 + $0x90] sm:$0xff]
        %v5198 = vld [vmem:[%s5178 + $0x98] sm:$0xff]
        %v5199 = vld [vmem:[%s5178 + $0xa0] sm:$0xff]
        %v5200 = vld [vmem:[%s5178 + $0xa8] sm:$0xff]
        %v5201 = vld [vmem:[%s5178 + $0xb0] sm:$0xff]
        %v5202 = vld [vmem:[%s5178 + $0xb8] sm:$0xff]
        %v5203 = vld [vmem:[%s5178 + $0xc0] sm:$0xff]
        %v5204 = vld [vmem:[%s5178 + $0xc8] sm:$0xff]
        %v5205 = vld [vmem:[%s5178 + $0xd0] sm:$0xff]
        %v5206 = vld [vmem:[%s5178 + $0xd8] sm:$0xff]
        %v5207 = vld [vmem:[%s5178 + $0xe0] sm:$0xff]
        %v5208 = vld [vmem:[%s5178 + $0xe8] sm:$0xff]
        %v5209 = vld [vmem:[%s5178 + $0xf0] sm:$0xff]
        %v5210 = vld [vmem:[%s5178 + $0xf8] sm:$0xff]
        %v5211 = vld [vmem:[%s5178 + $0x100] sm:$0xff]
        %v5212 = vld [vmem:[%s5178 + $0x108] sm:$0xff]
        %v5213 = vld [vmem:[%s5178 + $0x110] sm:$0xff]
        %v5214 = vld [vmem:[%s5178 + $0x118] sm:$0xff]
        %v5215 = vld [vmem:[%s5178 + $0x120] sm:$0xff]
        %v5216 = vld [vmem:[%s5178 + $0x128] sm:$0xff]
        %v5217 = vld [vmem:[%s5178 + $0x130] sm:$0xff]
        %v5218 = vld [vmem:[%s5178 + $0x138] sm:$0xff]
        %v5219 = vld [vmem:[%s5178 + $0x140] sm:$0xff]
        %v5220 = vld [vmem:[%s5178 + $0x148] sm:$0xff]
        %v5221 = vld [vmem:[%s5178 + $0x150] sm:$0xff]
        %v5222 = vld [vmem:[%s5178 + $0x158] sm:$0xff]
        %v5223 = vld [vmem:[%s5178 + $0x160] sm:$0xff]
        %v5224 = vld [vmem:[%s5178 + $0x168] sm:$0xff]
        %v5225 = vld [vmem:[%s5178 + $0x170] sm:$0xff]
        %v5226 = vld [vmem:[%s5178 + $0x178] sm:$0xff]
        %v5227 = vld [vmem:[%s5178 + $0x180] sm:$0xff]
        %v5228 = vld [vmem:[%s5178 + $0x188] sm:$0xff]
        %v5229 = vld [vmem:[%s5178 + $0x190] sm:$0xff]
        %v5230 = vld [vmem:[%s5178 + $0x198] sm:$0xff]
        %v5231 = vld [vmem:[%s5178 + $0x1a0] sm:$0xff]
        %v5232 = vld [vmem:[%s5178 + $0x1a8] sm:$0xff]
        %v5233 = vld [vmem:[%s5178 + $0x1b0] sm:$0xff]
        %v5234 = vld [vmem:[%s5178 + $0x1b8] sm:$0xff]
        %v5235 = vld [vmem:[%s5178 + $0x1c0] sm:$0xff]
        %v5236 = vld [vmem:[%s5178 + $0x1c8] sm:$0xff]
        %v5237 = vld [vmem:[%s5178 + $0x1d0] sm:$0xff]
        %v5238 = vld [vmem:[%s5178 + $0x1d8] sm:$0xff]
        %v5239 = vld [vmem:[%s5178 + $0x1e0] sm:$0xff]
        %v5240 = vld [vmem:[%s5178 + $0x1e8] sm:$0xff]
        %v5241 = vld [vmem:[%s5178 + $0x1f0] sm:$0xff]
        %v5242 = vld [vmem:[%s5178 + $0x1f8] sm:$0xff]
        %v5243 = vld [vmem:[%s5178 + $0x200] sm:$0xff]
        %v5244 = vld [vmem:[%s5178 + $0x208] sm:$0xff]
        %v5245 = vld [vmem:[%s5178 + $0x210] sm:$0xff]
        %v5246 = vld [vmem:[%s5178 + $0x218] sm:$0xff]
        %v5247 = vld [vmem:[%s5178 + $0x220] sm:$0xff]
        %v5248 = vld [vmem:[%s5178 + $0x228] sm:$0xff]
        %v5249 = vld [vmem:[%s5178 + $0x230] sm:$0xff]
        %v5250 = vld [vmem:[%s5178 + $0x238] sm:$0xff]
        %v5251 = vld [vmem:[%s5178 + $0x240] sm:$0xff]
        %v5252 = vld [vmem:[%s5178 + $0x248] sm:$0xff]
        %v5253 = vld [vmem:[%s5178 + $0x250] sm:$0xff]
        %v5254 = vld [vmem:[%s5178 + $0x258] sm:$0xff]
        %v5255 = vld [vmem:[%s5178 + $0x260] sm:$0xff]
        %v5256 = vld [vmem:[%s5178 + $0x268] sm:$0xff]
        %v5257 = vld [vmem:[%s5178 + $0x270] sm:$0xff]
        %v5258 = vld [vmem:[%s5178 + $0x278] sm:$0xff]
        %v5259 = vld [vmem:[%s5178 + $0x280] sm:$0xff]
        %v5260 = vld [vmem:[%s5178 + $0x288] sm:$0xff]
        %v5261 = vld [vmem:[%s5178 + $0x290] sm:$0xff]
        %v5262 = vld [vmem:[%s5178 + $0x298] sm:$0xff]
        %v5263 = vld [vmem:[%s5178 + $0x2a0] sm:$0xff]
        %v5264 = vld [vmem:[%s5178 + $0x2a8] sm:$0xff]
        %v5265 = vld [vmem:[%s5178 + $0x2b0] sm:$0xff]
        %v5266 = vld [vmem:[%s5178 + $0x2b8] sm:$0xff]
        %v5267 = vld [vmem:[%s5178 + $0x2c0] sm:$0xff]
        %v5268 = vld [vmem:[%s5178 + $0x2c8] sm:$0xff]
        %v5269 = vld [vmem:[%s5178 + $0x2d0] sm:$0xff]
        %v5270 = vld [vmem:[%s5178 + $0x2d8] sm:$0xff]
        %v5271 = vld [vmem:[%s5178 + $0x2e0] sm:$0xff]
        %v5272 = vld [vmem:[%s5178 + $0x2e8] sm:$0xff]
        %v5273 = vld [vmem:[%s5178 + $0x2f0] sm:$0xff]
        %v5274 = vld [vmem:[%s5178 + $0x2f8] sm:$0xff]
        %v5275 = vld [vmem:[%s5178 + $0x300] sm:$0xff]
        %v5276 = vld [vmem:[%s5178 + $0x308] sm:$0xff]
        %v5277 = vld [vmem:[%s5178 + $0x310] sm:$0xff]
        %v5278 = vld [vmem:[%s5178 + $0x318] sm:$0xff]
        %v5279 = vld [vmem:[%s5178 + $0x320] sm:$0xff]
        %v5280 = vld [vmem:[%s5178 + $0x328] sm:$0xff]
        %v5281 = vld [vmem:[%s5178 + $0x330] sm:$0xff]
        %v5282 = vld [vmem:[%s5178 + $0x338] sm:$0xff]
        %v5283 = vld [vmem:[%s5178 + $0x340] sm:$0xff]
        %v5284 = vld [vmem:[%s5178 + $0x348] sm:$0xff]
        %v5285 = vld [vmem:[%s5178 + $0x350] sm:$0xff]
        %v5286 = vld [vmem:[%s5178 + $0x358] sm:$0xff]
        %v5287 = vld [vmem:[%s5178 + $0x360] sm:$0xff]
        %v5288 = vld [vmem:[%s5178 + $0x368] sm:$0xff]
        %v5289 = vld [vmem:[%s5178 + $0x370] sm:$0xff]
        %v5290 = vld [vmem:[%s5178 + $0x378] sm:$0xff]
        %v5295 = vrot.slane %v5174, 2
        %v5296 = vrot.slane %v5176, 2
        %v5297 = vsel %vm3323, %v5295, %v5296
        %v5298 = vrot.slane %v5175, 2
        %v5299 = vrot.slane %v5177, 2
        %v5300 = vsel %vm3323, %v5298, %v5299
        %v5302 = vsel %vm2612, %v5300, 0
        %5304 = vmatprep.subr.mxu0 %v5240
        %5305 = vmatpush1.msra.mxu0 %v5239
        %5306 = vmatprep.subr.mxu0 %v5236
        %5307 = vmatpush1.msra.mxu0 %v5235
        %5308 = vmatprep.subr.mxu0 %v5232
        %5309 = vmatpush1.msra.mxu0 %v5231
        %5310 = vmatprep.subr.mxu0 %v5228
        %5311 = vmatpush1.msra.mxu0 %v5227
        %5312 = vmatprep.subr.mxu0 %v5224
        %5313 = vmatpush1.msra.mxu0 %v5223
        %5314 = vmatprep.subr.mxu0 %v5220
        %5315 = vmatpush1.msra.mxu0 %v5219
        %5316 = vmatprep.subr.mxu0 %v5216
        %5317 = vmatpush1.msra.mxu0 %v5215
        %5318 = vmatprep.subr.mxu0 %v5212
        %5319 = vmatpush1.msra.mxu0 %v5211
        %5320 = vmatprep.subr.mxu0 %v5208
        %5321 = vmatpush1.msra.mxu0 %v5207
        %5322 = vmatprep.subr.mxu0 %v5204
        %5323 = vmatpush1.msra.mxu0 %v5203
        %5324 = vmatprep.subr.mxu0 %v5200
        %5325 = vmatpush1.msra.mxu0 %v5199
        %5326 = vmatprep.subr.mxu0 %v5196
        %5327 = vmatpush1.msra.mxu0 %v5195
        %5328 = vmatprep.subr.mxu0 %v5192
        %5329 = vmatpush1.msra.mxu0 %v5191
        %5330 = vmatprep.subr.mxu0 %v5188
        %5331 = vmatpush1.msra.mxu0 %v5187
        %5332 = vmatprep.subr.mxu0 %v5184
        %5333 = vmatpush1.msra.mxu0 %v5183
        %5334 = vmatprep.subr.mxu0 %v5180
        %5335 = vmatpush1.msra.mxu0 %v5179
        %5336 = vmatprep.subr.mxu0 0.0
        %5337 = vmatpush2.msra.mxu0 0.0
        %5338 = vmatprep.subr.mxu0 0.0
        %5339 = vmatpush2.msra.mxu0 0.0
        %5340 = vmatprep.subr.mxu0 0.0
        %5341 = vmatpush2.msra.mxu0 0.0
        %5342 = vmatprep.subr.mxu0 0.0
        %5343 = vmatpush2.msra.mxu0 0.0
        %5344 = vmatprep.subr.mxu0 %v5288
        %5345 = vmatpush2.msra.mxu0 %v5287
        %5346 = vmatprep.subr.mxu0 %v5284
        %5347 = vmatpush2.msra.mxu0 %v5283
        %5348 = vmatprep.subr.mxu0 %v5280
        %5349 = vmatpush2.msra.mxu0 %v5279
        %5350 = vmatprep.subr.mxu0 %v5276
        %5351 = vmatpush2.msra.mxu0 %v5275
        %5352 = vmatprep.subr.mxu0 %v5272
        %5353 = vmatpush2.msra.mxu0 %v5271
        %5354 = vmatprep.subr.mxu0 %v5268
        %5355 = vmatpush2.msra.mxu0 %v5267
        %5356 = vmatprep.subr.mxu0 %v5264
        %5357 = vmatpush2.msra.mxu0 %v5263
        %5358 = vmatprep.subr.mxu0 %v5260
        %5359 = vmatpush2.msra.mxu0 %v5259
        %5360 = vmatprep.subr.mxu0 %v5256
        %5361 = vmatpush2.msra.mxu0 %v5255
        %5362 = vmatprep.subr.mxu0 %v5252
        %5363 = vmatpush2.msra.mxu0 %v5251
        %5364 = vmatprep.subr.mxu0 %v5248
        %5365 = vmatpush2.msra.mxu0 %v5247
        %5366 = vmatprep.subr.mxu0 %v5244
        %5367 = vmatpush2.msra.mxu0 %v5243
        %5368 = vmatprep.mubr.f32.mxu0 %v5302
        %5369 = vmatmul.mubr.f32.gmra.mxu0 %v5297
        %v5370 = vpop.f32.mrf.mxu0
        %v5371 = vadd.f32 0.0, %v5370
        %v5372 = vpop.f32.mrf.mxu0
        %v5373 = vadd.f32 0.0, %v5372
        %5374 = vdwg.mxu0
        %5375 = vmatprep.subr.mxu0 %v5242
        %5376 = vmatpush1.msra.mxu0 %v5241
        %5377 = vmatprep.subr.mxu0 %v5238
        %5378 = vmatpush1.msra.mxu0 %v5237
        %5379 = vmatprep.subr.mxu0 %v5234
        %5380 = vmatpush1.msra.mxu0 %v5233
        %5381 = vmatprep.subr.mxu0 %v5230
        %5382 = vmatpush1.msra.mxu0 %v5229
        %5383 = vmatprep.subr.mxu0 %v5226
        %5384 = vmatpush1.msra.mxu0 %v5225
        %5385 = vmatprep.subr.mxu0 %v5222
        %5386 = vmatpush1.msra.mxu0 %v5221
        %5387 = vmatprep.subr.mxu0 %v5218
        %5388 = vmatpush1.msra.mxu0 %v5217
        %5389 = vmatprep.subr.mxu0 %v5214
        %5390 = vmatpush1.msra.mxu0 %v5213
        %5391 = vmatprep.subr.mxu0 %v5210
        %5392 = vmatpush1.msra.mxu0 %v5209
        %5393 = vmatprep.subr.mxu0 %v5206
        %5394 = vmatpush1.msra.mxu0 %v5205
        %5395 = vmatprep.subr.mxu0 %v5202
        %5396 = vmatpush1.msra.mxu0 %v5201
        %5397 = vmatprep.subr.mxu0 %v5198
        %5398 = vmatpush1.msra.mxu0 %v5197
        %5399 = vmatprep.subr.mxu0 %v5194
        %5400 = vmatpush1.msra.mxu0 %v5193
        %5401 = vmatprep.subr.mxu0 %v5190
        %5402 = vmatpush1.msra.mxu0 %v5189
        %5403 = vmatprep.subr.mxu0 %v5186
        %5404 = vmatpush1.msra.mxu0 %v5185
        %5405 = vmatprep.subr.mxu0 %v5182
        %5406 = vmatpush1.msra.mxu0 %v5181
        %5407 = vmatprep.subr.mxu0 0.0
        %5408 = vmatpush2.msra.mxu0 0.0
        %5409 = vmatprep.subr.mxu0 0.0
        %5410 = vmatpush2.msra.mxu0 0.0
        %5411 = vmatprep.subr.mxu0 0.0
        %5412 = vmatpush2.msra.mxu0 0.0
        %5413 = vmatprep.subr.mxu0 0.0
        %5414 = vmatpush2.msra.mxu0 0.0
        %5415 = vmatprep.subr.mxu0 %v5290
        %5416 = vmatpush2.msra.mxu0 %v5289
        %5417 = vmatprep.subr.mxu0 %v5286
        %5418 = vmatpush2.msra.mxu0 %v5285
        %5419 = vmatprep.subr.mxu0 %v5282
        %5420 = vmatpush2.msra.mxu0 %v5281
        %5421 = vmatprep.subr.mxu0 %v5278
        %5422 = vmatpush2.msra.mxu0 %v5277
        %5423 = vmatprep.subr.mxu0 %v5274
        %5424 = vmatpush2.msra.mxu0 %v5273
        %5425 = vmatprep.subr.mxu0 %v5270
        %5426 = vmatpush2.msra.mxu0 %v5269
        %5427 = vmatprep.subr.mxu0 %v5266
        %5428 = vmatpush2.msra.mxu0 %v5265
        %5429 = vmatprep.subr.mxu0 %v5262
        %5430 = vmatpush2.msra.mxu0 %v5261
        %5431 = vmatprep.subr.mxu0 %v5258
        %5432 = vmatpush2.msra.mxu0 %v5257
        %5433 = vmatprep.subr.mxu0 %v5254
        %5434 = vmatpush2.msra.mxu0 %v5253
        %5435 = vmatprep.subr.mxu0 %v5250
        %5436 = vmatpush2.msra.mxu0 %v5249
        %5437 = vmatprep.subr.mxu0 %v5246
        %5438 = vmatpush2.msra.mxu0 %v5245
        %5439 = vmatprep.mubr.f32.mxu0 %v5302
        %5440 = vmatmul.mubr.f32.gmra.mxu0 %v5297
        %v5441 = vpop.f32.mrf.mxu0
        %v5442 = vadd.f32 0.0, %v5441
        %v5443 = vpop.f32.mrf.mxu0
        %v5444 = vadd.f32 0.0, %v5443
        %5445 = vdwg.mxu0
        %v5446 = vadd.f32 %v5099, %v5371
        %v5447 = vadd.f32 %v5101, %v5373
        %v5448 = vadd.f32 %v5170, %v5442
        %v5449 = vadd.f32 %v5172, %v5444
        %v5450 = vld [vmem:[#allocation23] sm:$0xf]
        %v5452 = vlaneseq
        %v5453 = vshrl.u32 %v5452, 7
        %v5454 = vsub.s32 0, %v5453
        %v5455 = vrot.slane %v5450, %v5454
        %v5456 = vlaneseq
        %v5457 = vshrl.u32 %v5456, 7
        %v5458 = vsub.s32 1, %v5457
        %v5459 = vrot.slane %v5450, %v5458
        %v5460 = vlaneseq
        %v5461 = vshrl.u32 %v5460, 7
        %v5462 = vsub.s32 2, %v5461
        %v5463 = vrot.slane %v5450, %v5462
        %v5464 = vlaneseq
        %v5465 = vshrl.u32 %v5464, 7
        %v5466 = vsub.s32 3, %v5465
        %v5467 = vrot.slane %v5450, %v5466
        %v5472 = vmul.f32 %v5446, %v5455
        %v5473 = vmul.f32 %v5447, %v5459
        %v5474 = vmul.f32 %v5448, %v5463
        %v5475 = vmul.f32 %v5449, %v5467
        %v5476 = vld [vmem:[#allocation25] sm:$0xf]
        %v5478 = vlaneseq
        %v5479 = vshrl.u32 %v5478, 7
        %v5480 = vsub.s32 0, %v5479
        %v5481 = vrot.slane %v5476, %v5480
        %v5482 = vlaneseq
        %v5483 = vshrl.u32 %v5482, 7
        %v5484 = vsub.s32 1, %v5483
        %v5485 = vrot.slane %v5476, %v5484
        %v5486 = vlaneseq
        %v5487 = vshrl.u32 %v5486, 7
        %v5488 = vsub.s32 2, %v5487
        %v5489 = vrot.slane %v5476, %v5488
        %v5490 = vlaneseq
        %v5491 = vshrl.u32 %v5490, 7
        %v5492 = vsub.s32 3, %v5491
        %v5493 = vrot.slane %v5476, %v5492
        %v5498 = vadd.f32 %v5472, %v5481
        %v5499 = vadd.f32 %v5473, %v5485
        %v5500 = vadd.f32 %v5474, %v5489
        %v5501 = vadd.f32 %v5475, %v5493
        %v5502 = vmax.f32 %v5498, 0.0
        %v5503 = vmax.f32 %v5499, 0.0
        %v5504 = vmax.f32 %v5500, 0.0
        %v5505 = vmax.f32 %v5501, 0.0
        %v5510 = vrot.slane %v5502, 1
        %v5511 = vrot.slane %v5503, 1
        %v5512 = vrot.slane %v5504, 1
        %v5513 = vrot.slane %v5505, 1
        %v5518 = vmax.f32 %v5502, %v5510
        %v5519 = vmax.f32 %v5503, %v5511
        %v5520 = vmax.f32 %v5504, %v5512
        %v5521 = vmax.f32 %v5505, %v5513
        %v5522 = vld [vmem:[#allocation26] sm:$0x7]
        %vm5523 = vcmask 48128
        %v5525 = vsel %vm5523, %v5522, 0
        %v5528 = vsel %vm3323, %v5518, 0
        %v5531 = vsel %vm3323, %v5519, 0
        %v5534 = vsel %vm3323, %v5520, 0
        %v5537 = vsel %vm3323, %v5521, 0
        %5539 = vmatprep.subr.mxu0 0.0
        %5540 = vmatpush1.msra.mxu0 0.0
        %5541 = vmatprep.subr.mxu0 0.0
        %5542 = vmatpush1.msra.mxu0 0.0
        %5543 = vmatprep.subr.mxu0 0.0
        %5544 = vmatpush1.msra.mxu0 0.0
        %5545 = vmatprep.subr.mxu0 0.0
        %5546 = vmatpush1.msra.mxu0 0.0
        %5547 = vmatprep.subr.mxu0 0.0
        %5548 = vmatpush1.msra.mxu0 0.0
        %5549 = vmatprep.subr.mxu0 0.0
        %5550 = vmatpush1.msra.mxu0 0.0
        %5551 = vmatprep.subr.mxu0 0.0
        %5552 = vmatpush1.msra.mxu0 0.0
        %5553 = vmatprep.subr.mxu0 0.0
        %5554 = vmatpush1.msra.mxu0 0.0
        %5555 = vmatprep.subr.mxu0 0.0
        %5556 = vmatpush1.msra.mxu0 0.0
        %5557 = vmatprep.subr.mxu0 0.0
        %5558 = vmatpush1.msra.mxu0 0.0
        %5559 = vmatprep.subr.mxu0 0.0
        %5560 = vmatpush1.msra.mxu0 0.0
        %5561 = vmatprep.subr.mxu0 0.0
        %5562 = vmatpush1.msra.mxu0 0.0
        %5563 = vmatprep.subr.mxu0 0.0
        %5564 = vmatpush1.msra.mxu0 0.0
        %5565 = vmatprep.subr.mxu0 0.0
        %5566 = vmatpush1.msra.mxu0 0.0
        %5567 = vmatprep.subr.mxu0 0.0
        %5568 = vmatpush1.msra.mxu0 0.0
        %5569 = vmatprep.subr.mxu0 %v5531
        %5570 = vmatpush1.msra.mxu0 %v5528
        %5571 = vmatprep.subr.mxu0 0.0
        %5572 = vmatpush2.msra.mxu0 0.0
        %5573 = vmatprep.subr.mxu0 0.0
        %5574 = vmatpush2.msra.mxu0 0.0
        %5575 = vmatprep.subr.mxu0 0.0
        %5576 = vmatpush2.msra.mxu0 0.0
        %5577 = vmatprep.subr.mxu0 0.0
        %5578 = vmatpush2.msra.mxu0 0.0
        %5579 = vmatprep.subr.mxu0 0.0
        %5580 = vmatpush2.msra.mxu0 0.0
        %5581 = vmatprep.subr.mxu0 0.0
        %5582 = vmatpush2.msra.mxu0 0.0
        %5583 = vmatprep.subr.mxu0 0.0
        %5584 = vmatpush2.msra.mxu0 0.0
        %5585 = vmatprep.subr.mxu0 0.0
        %5586 = vmatpush2.msra.mxu0 0.0
        %5587 = vmatprep.subr.mxu0 0.0
        %5588 = vmatpush2.msra.mxu0 0.0
        %5589 = vmatprep.subr.mxu0 0.0
        %5590 = vmatpush2.msra.mxu0 0.0
        %5591 = vmatprep.subr.mxu0 0.0
        %5592 = vmatpush2.msra.mxu0 0.0
        %5593 = vmatprep.subr.mxu0 0.0
        %5594 = vmatpush2.msra.mxu0 0.0
        %5595 = vmatprep.subr.mxu0 0.0
        %5596 = vmatpush2.msra.mxu0 0.0
        %5597 = vmatprep.subr.mxu0 0.0
        %5598 = vmatpush2.msra.mxu0 0.0
        %5599 = vmatprep.subr.mxu0 0.0
        %5600 = vmatpush2.msra.mxu0 0.0
        %5601 = vmatprep.subr.mxu0 0.0
        %5602 = vmatpush2.msra.mxu0 0.0
        %5603 = vmatprep.mubr.f32.mxu0 0.0
        %5604 = vmatmul.mubr.f32.gmra.mxu0 %v5525
        %v5605 = vpop.f32.mrf.mxu0
        %v5606 = vadd.f32 0.0, %v5605
        %v5607 = vpop.f32.mrf.mxu0
        %v5608 = vadd.f32 0.0, %v5607
        %5609 = vdwg.mxu0
        %5610 = vmatprep.subr.mxu0 0.0
        %5611 = vmatpush1.msra.mxu0 0.0
        %5612 = vmatprep.subr.mxu0 0.0
        %5613 = vmatpush1.msra.mxu0 0.0
        %5614 = vmatprep.subr.mxu0 0.0
        %5615 = vmatpush1.msra.mxu0 0.0
        %5616 = vmatprep.subr.mxu0 0.0
        %5617 = vmatpush1.msra.mxu0 0.0
        %5618 = vmatprep.subr.mxu0 0.0
        %5619 = vmatpush1.msra.mxu0 0.0
        %5620 = vmatprep.subr.mxu0 0.0
        %5621 = vmatpush1.msra.mxu0 0.0
        %5622 = vmatprep.subr.mxu0 0.0
        %5623 = vmatpush1.msra.mxu0 0.0
        %5624 = vmatprep.subr.mxu0 0.0
        %5625 = vmatpush1.msra.mxu0 0.0
        %5626 = vmatprep.subr.mxu0 0.0
        %5627 = vmatpush1.msra.mxu0 0.0
        %5628 = vmatprep.subr.mxu0 0.0
        %5629 = vmatpush1.msra.mxu0 0.0
        %5630 = vmatprep.subr.mxu0 0.0
        %5631 = vmatpush1.msra.mxu0 0.0
        %5632 = vmatprep.subr.mxu0 0.0
        %5633 = vmatpush1.msra.mxu0 0.0
        %5634 = vmatprep.subr.mxu0 0.0
        %5635 = vmatpush1.msra.mxu0 0.0
        %5636 = vmatprep.subr.mxu0 0.0
        %5637 = vmatpush1.msra.mxu0 0.0
        %5638 = vmatprep.subr.mxu0 0.0
        %5639 = vmatpush1.msra.mxu0 0.0
        %5640 = vmatprep.subr.mxu0 %v5537
        %5641 = vmatpush1.msra.mxu0 %v5534
        %5642 = vmatprep.subr.mxu0 0.0
        %5643 = vmatpush2.msra.mxu0 0.0
        %5644 = vmatprep.subr.mxu0 0.0
        %5645 = vmatpush2.msra.mxu0 0.0
        %5646 = vmatprep.subr.mxu0 0.0
        %5647 = vmatpush2.msra.mxu0 0.0
        %5648 = vmatprep.subr.mxu0 0.0
        %5649 = vmatpush2.msra.mxu0 0.0
        %5650 = vmatprep.subr.mxu0 0.0
        %5651 = vmatpush2.msra.mxu0 0.0
        %5652 = vmatprep.subr.mxu0 0.0
        %5653 = vmatpush2.msra.mxu0 0.0
        %5654 = vmatprep.subr.mxu0 0.0
        %5655 = vmatpush2.msra.mxu0 0.0
        %5656 = vmatprep.subr.mxu0 0.0
        %5657 = vmatpush2.msra.mxu0 0.0
        %5658 = vmatprep.subr.mxu0 0.0
        %5659 = vmatpush2.msra.mxu0 0.0
        %5660 = vmatprep.subr.mxu0 0.0
        %5661 = vmatpush2.msra.mxu0 0.0
        %5662 = vmatprep.subr.mxu0 0.0
        %5663 = vmatpush2.msra.mxu0 0.0
        %5664 = vmatprep.subr.mxu0 0.0
        %5665 = vmatpush2.msra.mxu0 0.0
        %5666 = vmatprep.subr.mxu0 0.0
        %5667 = vmatpush2.msra.mxu0 0.0
        %5668 = vmatprep.subr.mxu0 0.0
        %5669 = vmatpush2.msra.mxu0 0.0
        %5670 = vmatprep.subr.mxu0 0.0
        %5671 = vmatpush2.msra.mxu0 0.0
        %5672 = vmatprep.subr.mxu0 0.0
        %5673 = vmatpush2.msra.mxu0 0.0
        %5674 = vmatprep.mubr.f32.mxu0 0.0
        %5675 = vmatmul.mubr.f32.gmra.mxu0 %v5525
        %v5676 = vpop.f32.mrf.mxu0
        %v5677 = vadd.f32 0.0, %v5676
        %v5678 = vpop.f32.mrf.mxu0
        %v5679 = vadd.f32 0.0, %v5678
        %5680 = vdwg.mxu0
        %5685 = vrot.lane.b32.xlu0 %v5606, 64
        %v5686 = vpop.permute.xlu0 %5685
        %5687 = vrot.lane.b32.xlu0 %v5608, 64
        %v5688 = vpop.permute.xlu0 %5687
        %5689 = vrot.lane.b32.xlu0 %v5677, 64
        %v5690 = vpop.permute.xlu0 %5689
        %5691 = vrot.lane.b32.xlu0 %v5679, 64
        %v5692 = vpop.permute.xlu0 %5691
        %vm5693 = vcmask 523264
        %v5694 = vsel %vm5693, %v5686, %v5688
        %v5695 = vsel %vm5693, %v5688, %v5690
        %v5696 = vsel %vm5693, %v5690, %v5692
        %v5700 = vmax.f32 %v5606, %v5694
        %v5701 = vmax.f32 %v5608, %v5695
        %v5702 = vmax.f32 %v5677, %v5696
        %v5703 = vld [vmem:[%s15] sm:$0xff]
        %v5704 = vld [vmem:[%s15 + $0x8] sm:$0xff]
        %v5705 = vld [vmem:[%s15 + $0x10] sm:$0xff]
        %v5706 = vld [vmem:[%s15 + $0x18] sm:$0xff]
        %v5707 = vld [vmem:[%s15 + $0x20] sm:$0xff]
        %v5708 = vld [vmem:[%s15 + $0x28] sm:$0xff]
        %v5709 = vld [vmem:[%s15 + $0x30] sm:$0xff]
        %v5710 = vld [vmem:[%s15 + $0x38] sm:$0xff]
        %v5711 = vld [vmem:[%s15 + $0x40] sm:$0xff]
        %v5712 = vld [vmem:[%s15 + $0x48] sm:$0xff]
        %v5713 = vld [vmem:[%s15 + $0x50] sm:$0xff]
        %v5714 = vld [vmem:[%s15 + $0x58] sm:$0xff]
        %v5715 = vld [vmem:[%s15 + $0x60] sm:$0xff]
        %v5716 = vld [vmem:[%s15 + $0x68] sm:$0xff]
        %v5717 = vld [vmem:[%s15 + $0x70] sm:$0xff]
        %v5718 = vld [vmem:[%s15 + $0x78] sm:$0xff]
        %v5719 = vld [vmem:[%s15 + $0x80] sm:$0xff]
        %v5720 = vld [vmem:[%s15 + $0x88] sm:$0xff]
        %v5721 = vld [vmem:[%s15 + $0x90] sm:$0xff]
        %v5722 = vld [vmem:[%s15 + $0x98] sm:$0xff]
        %v5723 = vld [vmem:[%s15 + $0xa0] sm:$0xff]
        %v5724 = vld [vmem:[%s15 + $0xa8] sm:$0xff]
        %v5725 = vld [vmem:[%s15 + $0xb0] sm:$0xff]
        %v5726 = vld [vmem:[%s15 + $0xb8] sm:$0xff]
        %v5727 = vld [vmem:[%s15 + $0xc0] sm:$0xff]
        %v5728 = vld [vmem:[%s15 + $0xc8] sm:$0xff]
        %v5729 = vld [vmem:[%s15 + $0xd0] sm:$0xff]
        %v5730 = vld [vmem:[%s15 + $0xd8] sm:$0xff]
        %v5731 = vld [vmem:[%s15 + $0xe0] sm:$0xff]
        %v5732 = vld [vmem:[%s15 + $0xe8] sm:$0xff]
        %v5733 = vld [vmem:[%s15 + $0xf0] sm:$0xff]
        %v5734 = vld [vmem:[%s15 + $0xf8] sm:$0xff]
        %v5735 = vld [vmem:[%s15 + $0x100] sm:$0xff]
        %v5736 = vld [vmem:[%s15 + $0x108] sm:$0xff]
        %v5737 = vld [vmem:[%s15 + $0x110] sm:$0xff]
        %v5738 = vld [vmem:[%s15 + $0x118] sm:$0xff]
        %v5739 = vld [vmem:[%s15 + $0x120] sm:$0xff]
        %v5740 = vld [vmem:[%s15 + $0x128] sm:$0xff]
        %v5741 = vld [vmem:[%s15 + $0x130] sm:$0xff]
        %v5742 = vld [vmem:[%s15 + $0x138] sm:$0xff]
        %v5743 = vld [vmem:[%s15 + $0x140] sm:$0xff]
        %v5744 = vld [vmem:[%s15 + $0x148] sm:$0xff]
        %v5745 = vld [vmem:[%s15 + $0x150] sm:$0xff]
        %v5746 = vld [vmem:[%s15 + $0x158] sm:$0xff]
        %v5747 = vld [vmem:[%s15 + $0x160] sm:$0xff]
        %v5748 = vld [vmem:[%s15 + $0x168] sm:$0xff]
        %v5749 = vld [vmem:[%s15 + $0x170] sm:$0xff]
        %v5750 = vld [vmem:[%s15 + $0x178] sm:$0xff]
        %v5751 = vld [vmem:[%s15 + $0x180] sm:$0xff]
        %v5752 = vld [vmem:[%s15 + $0x188] sm:$0xff]
        %v5753 = vld [vmem:[%s15 + $0x190] sm:$0xff]
        %v5754 = vld [vmem:[%s15 + $0x198] sm:$0xff]
        %v5755 = vld [vmem:[%s15 + $0x1a0] sm:$0xff]
        %v5756 = vld [vmem:[%s15 + $0x1a8] sm:$0xff]
        %v5757 = vld [vmem:[%s15 + $0x1b0] sm:$0xff]
        %v5758 = vld [vmem:[%s15 + $0x1b8] sm:$0xff]
        %v5759 = vld [vmem:[%s15 + $0x1c0] sm:$0xff]
        %v5760 = vld [vmem:[%s15 + $0x1c8] sm:$0xff]
        %v5761 = vld [vmem:[%s15 + $0x1d0] sm:$0xff]
        %v5762 = vld [vmem:[%s15 + $0x1d8] sm:$0xff]
        %v5763 = vld [vmem:[%s15 + $0x1e0] sm:$0xff]
        %v5764 = vld [vmem:[%s15 + $0x1e8] sm:$0xff]
        %v5765 = vld [vmem:[%s15 + $0x1f0] sm:$0xff]
        %v5766 = vld [vmem:[%s15 + $0x1f8] sm:$0xff]
        %v5767 = vld [vmem:[%s15 + $0x200] sm:$0xff]
        %v5768 = vld [vmem:[%s15 + $0x208] sm:$0xff]
        %v5769 = vld [vmem:[%s15 + $0x210] sm:$0xff]
        %v5770 = vld [vmem:[%s15 + $0x218] sm:$0xff]
        %v5771 = vld [vmem:[%s15 + $0x220] sm:$0xff]
        %v5772 = vld [vmem:[%s15 + $0x228] sm:$0xff]
        %v5773 = vld [vmem:[%s15 + $0x230] sm:$0xff]
        %v5774 = vld [vmem:[%s15 + $0x238] sm:$0xff]
        %v5775 = vld [vmem:[%s15 + $0x240] sm:$0xff]
        %v5776 = vld [vmem:[%s15 + $0x248] sm:$0xff]
        %v5777 = vld [vmem:[%s15 + $0x250] sm:$0xff]
        %v5778 = vld [vmem:[%s15 + $0x258] sm:$0xff]
        %v5779 = vld [vmem:[%s15 + $0x260] sm:$0xff]
        %v5780 = vld [vmem:[%s15 + $0x268] sm:$0xff]
        %v5781 = vld [vmem:[%s15 + $0x270] sm:$0xff]
        %v5782 = vld [vmem:[%s15 + $0x278] sm:$0xff]
        %v5783 = vld [vmem:[%s15 + $0x280] sm:$0xff]
        %v5784 = vld [vmem:[%s15 + $0x288] sm:$0xff]
        %v5785 = vld [vmem:[%s15 + $0x290] sm:$0xff]
        %v5786 = vld [vmem:[%s15 + $0x298] sm:$0xff]
        %v5787 = vld [vmem:[%s15 + $0x2a0] sm:$0xff]
        %v5788 = vld [vmem:[%s15 + $0x2a8] sm:$0xff]
        %v5789 = vld [vmem:[%s15 + $0x2b0] sm:$0xff]
        %v5790 = vld [vmem:[%s15 + $0x2b8] sm:$0xff]
        %v5791 = vld [vmem:[%s15 + $0x2c0] sm:$0xff]
        %v5792 = vld [vmem:[%s15 + $0x2c8] sm:$0xff]
        %v5793 = vld [vmem:[%s15 + $0x2d0] sm:$0xff]
        %v5794 = vld [vmem:[%s15 + $0x2d8] sm:$0xff]
        %v5795 = vld [vmem:[%s15 + $0x2e0] sm:$0xff]
        %v5796 = vld [vmem:[%s15 + $0x2e8] sm:$0xff]
        %v5797 = vld [vmem:[%s15 + $0x2f0] sm:$0xff]
        %v5798 = vld [vmem:[%s15 + $0x2f8] sm:$0xff]
        %5799 = vmatprep.subr.mxu0 %v5734
        %5800 = vmatpush1.msra.mxu0 %v5733
        %5801 = vmatprep.subr.mxu0 %v5732
        %5802 = vmatpush1.msra.mxu0 %v5731
        %5803 = vmatprep.subr.mxu0 %v5730
        %5804 = vmatpush1.msra.mxu0 %v5729
        %5805 = vmatprep.subr.mxu0 %v5728
        %5806 = vmatpush1.msra.mxu0 %v5727
        %5807 = vmatprep.subr.mxu0 %v5726
        %5808 = vmatpush1.msra.mxu0 %v5725
        %5809 = vmatprep.subr.mxu0 %v5724
        %5810 = vmatpush1.msra.mxu0 %v5723
        %5811 = vmatprep.subr.mxu0 %v5722
        %5812 = vmatpush1.msra.mxu0 %v5721
        %5813 = vmatprep.subr.mxu0 %v5720
        %5814 = vmatpush1.msra.mxu0 %v5719
        %5815 = vmatprep.subr.mxu0 %v5718
        %5816 = vmatpush1.msra.mxu0 %v5717
        %5817 = vmatprep.subr.mxu0 %v5716
        %5818 = vmatpush1.msra.mxu0 %v5715
        %5819 = vmatprep.subr.mxu0 %v5714
        %5820 = vmatpush1.msra.mxu0 %v5713
        %5821 = vmatprep.subr.mxu0 %v5712
        %5822 = vmatpush1.msra.mxu0 %v5711
        %5823 = vmatprep.subr.mxu0 %v5710
        %5824 = vmatpush1.msra.mxu0 %v5709
        %5825 = vmatprep.subr.mxu0 %v5708
        %5826 = vmatpush1.msra.mxu0 %v5707
        %5827 = vmatprep.subr.mxu0 %v5706
        %5828 = vmatpush1.msra.mxu0 %v5705
        %5829 = vmatprep.subr.mxu0 %v5704
        %5830 = vmatpush1.msra.mxu0 %v5703
        %5831 = vmatprep.subr.mxu0 %v5766
        %5832 = vmatpush2.msra.mxu0 %v5765
        %5833 = vmatprep.subr.mxu0 %v5764
        %5834 = vmatpush2.msra.mxu0 %v5763
        %5835 = vmatprep.subr.mxu0 %v5762
        %5836 = vmatpush2.msra.mxu0 %v5761
        %5837 = vmatprep.subr.mxu0 %v5760
        %5838 = vmatpush2.msra.mxu0 %v5759
        %5839 = vmatprep.subr.mxu0 %v5758
        %5840 = vmatpush2.msra.mxu0 %v5757
        %5841 = vmatprep.subr.mxu0 %v5756
        %5842 = vmatpush2.msra.mxu0 %v5755
        %5843 = vmatprep.subr.mxu0 %v5754
        %5844 = vmatpush2.msra.mxu0 %v5753
        %5845 = vmatprep.subr.mxu0 %v5752
        %5846 = vmatpush2.msra.mxu0 %v5751
        %5847 = vmatprep.subr.mxu0 %v5750
        %5848 = vmatpush2.msra.mxu0 %v5749
        %5849 = vmatprep.subr.mxu0 %v5748
        %5850 = vmatpush2.msra.mxu0 %v5747
        %5851 = vmatprep.subr.mxu0 %v5746
        %5852 = vmatpush2.msra.mxu0 %v5745
        %5853 = vmatprep.subr.mxu0 %v5744
        %5854 = vmatpush2.msra.mxu0 %v5743
        %5855 = vmatprep.subr.mxu0 %v5742
        %5856 = vmatpush2.msra.mxu0 %v5741
        %5857 = vmatprep.subr.mxu0 %v5740
        %5858 = vmatpush2.msra.mxu0 %v5739
        %5859 = vmatprep.subr.mxu0 %v5738
        %5860 = vmatpush2.msra.mxu0 %v5737
        %5861 = vmatprep.subr.mxu0 %v5736
        %5862 = vmatpush2.msra.mxu0 %v5735
        %5863 = vmatprep.mubr.f32.mxu0 %v5701
        %5864 = vmatmul.mubr.f32.gmra.mxu0 %v5700
        %v5865 = vpop.f32.mrf.mxu0
        %v5866 = vadd.f32 0.0, %v5865
        %v5867 = vpop.f32.mrf.mxu0
        %v5868 = vadd.f32 0.0, %v5867
        %5869 = vdwg.mxu0
        %5870 = vmatprep.subr.mxu0 %v5798
        %5871 = vmatpush1.msra.mxu0 %v5797
        %5872 = vmatprep.subr.mxu0 %v5796
        %5873 = vmatpush1.msra.mxu0 %v5795
        %5874 = vmatprep.subr.mxu0 %v5794
        %5875 = vmatpush1.msra.mxu0 %v5793
        %5876 = vmatprep.subr.mxu0 %v5792
        %5877 = vmatpush1.msra.mxu0 %v5791
        %5878 = vmatprep.subr.mxu0 %v5790
        %5879 = vmatpush1.msra.mxu0 %v5789
        %5880 = vmatprep.subr.mxu0 %v5788
        %5881 = vmatpush1.msra.mxu0 %v5787
        %5882 = vmatprep.subr.mxu0 %v5786
        %5883 = vmatpush1.msra.mxu0 %v5785
        %5884 = vmatprep.subr.mxu0 %v5784
        %5885 = vmatpush1.msra.mxu0 %v5783
        %5886 = vmatprep.subr.mxu0 %v5782
        %5887 = vmatpush1.msra.mxu0 %v5781
        %5888 = vmatprep.subr.mxu0 %v5780
        %5889 = vmatpush1.msra.mxu0 %v5779
        %5890 = vmatprep.subr.mxu0 %v5778
        %5891 = vmatpush1.msra.mxu0 %v5777
        %5892 = vmatprep.subr.mxu0 %v5776
        %5893 = vmatpush1.msra.mxu0 %v5775
        %5894 = vmatprep.subr.mxu0 %v5774
        %5895 = vmatpush1.msra.mxu0 %v5773
        %5896 = vmatprep.subr.mxu0 %v5772
        %5897 = vmatpush1.msra.mxu0 %v5771
        %5898 = vmatprep.subr.mxu0 %v5770
        %5899 = vmatpush1.msra.mxu0 %v5769
        %5900 = vmatprep.subr.mxu0 %v5768
        %5901 = vmatpush1.msra.mxu0 %v5767
        %5902 = vmatprep.subr.mxu0 0.0
        %5903 = vmatpush2.msra.mxu0 0.0
        %5904 = vmatprep.subr.mxu0 0.0
        %5905 = vmatpush2.msra.mxu0 0.0
        %5906 = vmatprep.subr.mxu0 0.0
        %5907 = vmatpush2.msra.mxu0 0.0
        %5908 = vmatprep.subr.mxu0 0.0
        %5909 = vmatpush2.msra.mxu0 0.0
        %5910 = vmatprep.subr.mxu0 0.0
        %5911 = vmatpush2.msra.mxu0 0.0
        %5912 = vmatprep.subr.mxu0 0.0
        %5913 = vmatpush2.msra.mxu0 0.0
        %5914 = vmatprep.subr.mxu0 0.0
        %5915 = vmatpush2.msra.mxu0 0.0
        %5916 = vmatprep.subr.mxu0 0.0
        %5917 = vmatpush2.msra.mxu0 0.0
        %5918 = vmatprep.subr.mxu0 0.0
        %5919 = vmatpush2.msra.mxu0 0.0
        %5920 = vmatprep.subr.mxu0 0.0
        %5921 = vmatpush2.msra.mxu0 0.0
        %5922 = vmatprep.subr.mxu0 0.0
        %5923 = vmatpush2.msra.mxu0 0.0
        %5924 = vmatprep.subr.mxu0 0.0
        %5925 = vmatpush2.msra.mxu0 0.0
        %5926 = vmatprep.subr.mxu0 0.0
        %5927 = vmatpush2.msra.mxu0 0.0
        %5928 = vmatprep.subr.mxu0 0.0
        %5929 = vmatpush2.msra.mxu0 0.0
        %5930 = vmatprep.subr.mxu0 0.0
        %5931 = vmatpush2.msra.mxu0 0.0
        %5932 = vmatprep.subr.mxu0 0.0
        %5933 = vmatpush2.msra.mxu0 0.0
        %5934 = vmatprep.mubr.f32.mxu0 0.0
        %5935 = vmatmul.mubr.f32.gmra.mxu0 %v5702
        %v5936 = vpop.f32.mrf.mxu0
        %v5937 = vadd.f32 %v5866, %v5936
        %v5938 = vpop.f32.mrf.mxu0
        %v5939 = vadd.f32 %v5868, %v5938
        %5940 = vdwg.mxu0
        %v5941 = vld [vmem:[#allocation28] sm:$0x1]
        %v5942 = vld [vmem:[%s16] sm:$0xff]
        %v5943 = vld [vmem:[%s16 + $0x8] sm:$0xff]
        %v5944 = vld [vmem:[%s16 + $0x10] sm:$0xff]
        %v5945 = vld [vmem:[%s16 + $0x18] sm:$0xff]
        %v5946 = vld [vmem:[%s16 + $0x20] sm:$0xff]
        %v5947 = vld [vmem:[%s16 + $0x28] sm:$0xff]
        %v5948 = vld [vmem:[%s16 + $0x30] sm:$0xff]
        %v5949 = vld [vmem:[%s16 + $0x38] sm:$0xff]
        %v5950 = vld [vmem:[%s16 + $0x40] sm:$0xff]
        %v5951 = vld [vmem:[%s16 + $0x48] sm:$0xff]
        %v5952 = vld [vmem:[%s16 + $0x50] sm:$0xff]
        %v5953 = vld [vmem:[%s16 + $0x58] sm:$0xff]
        %v5954 = vld [vmem:[%s16 + $0x60] sm:$0xff]
        %v5955 = vld [vmem:[%s16 + $0x68] sm:$0xff]
        %v5956 = vld [vmem:[%s16 + $0x70] sm:$0xff]
        %v5957 = vld [vmem:[%s16 + $0x78] sm:$0xff]
        %v5958 = vld [vmem:[%s16 + $0x80] sm:$0xff]
        %v5959 = vld [vmem:[%s16 + $0x88] sm:$0xff]
        %v5960 = vld [vmem:[%s16 + $0x90] sm:$0xff]
        %v5961 = vld [vmem:[%s16 + $0x98] sm:$0xff]
        %v5962 = vld [vmem:[%s16 + $0xa0] sm:$0xff]
        %v5963 = vld [vmem:[%s16 + $0xa8] sm:$0xff]
        %v5964 = vld [vmem:[%s16 + $0xb0] sm:$0xff]
        %v5965 = vld [vmem:[%s16 + $0xb8] sm:$0xff]
        %v5967 = vsel %vm5693, %v5939, 0
        %5969 = vmatprep.subr.mxu0 0.0
        %5970 = vmatpush1.msra.mxu0 %v5957
        %5971 = vmatprep.subr.mxu0 0.0
        %5972 = vmatpush1.msra.mxu0 %v5956
        %5973 = vmatprep.subr.mxu0 0.0
        %5974 = vmatpush1.msra.mxu0 %v5955
        %5975 = vmatprep.subr.mxu0 0.0
        %5976 = vmatpush1.msra.mxu0 %v5954
        %5977 = vmatprep.subr.mxu0 0.0
        %5978 = vmatpush1.msra.mxu0 %v5953
        %5979 = vmatprep.subr.mxu0 0.0
        %5980 = vmatpush1.msra.mxu0 %v5952
        %5981 = vmatprep.subr.mxu0 0.0
        %5982 = vmatpush1.msra.mxu0 %v5951
        %5983 = vmatprep.subr.mxu0 0.0
        %5984 = vmatpush1.msra.mxu0 %v5950
        %5985 = vmatprep.subr.mxu0 0.0
        %5986 = vmatpush1.msra.mxu0 %v5949
        %5987 = vmatprep.subr.mxu0 0.0
        %5988 = vmatpush1.msra.mxu0 %v5948
        %5989 = vmatprep.subr.mxu0 0.0
        %5990 = vmatpush1.msra.mxu0 %v5947
        %5991 = vmatprep.subr.mxu0 0.0
        %5992 = vmatpush1.msra.mxu0 %v5946
        %5993 = vmatprep.subr.mxu0 0.0
        %5994 = vmatpush1.msra.mxu0 %v5945
        %5995 = vmatprep.subr.mxu0 0.0
        %5996 = vmatpush1.msra.mxu0 %v5944
        %5997 = vmatprep.subr.mxu0 0.0
        %5998 = vmatpush1.msra.mxu0 %v5943
        %5999 = vmatprep.subr.mxu0 0.0
        %6000 = vmatpush1.msra.mxu0 %v5942
        %6001 = vmatprep.subr.mxu0 0.0
        %6002 = vmatpush2.msra.mxu0 0.0
        %6003 = vmatprep.subr.mxu0 0.0
        %6004 = vmatpush2.msra.mxu0 0.0
        %6005 = vmatprep.subr.mxu0 0.0
        %6006 = vmatpush2.msra.mxu0 0.0
        %6007 = vmatprep.subr.mxu0 0.0
        %6008 = vmatpush2.msra.mxu0 0.0
        %6009 = vmatprep.subr.mxu0 0.0
        %6010 = vmatpush2.msra.mxu0 0.0
        %6011 = vmatprep.subr.mxu0 0.0
        %6012 = vmatpush2.msra.mxu0 0.0
        %6013 = vmatprep.subr.mxu0 0.0
        %6014 = vmatpush2.msra.mxu0 0.0
        %6015 = vmatprep.subr.mxu0 0.0
        %6016 = vmatpush2.msra.mxu0 0.0
        %6017 = vmatprep.subr.mxu0 0.0
        %6018 = vmatpush2.msra.mxu0 %v5965
        %6019 = vmatprep.subr.mxu0 0.0
        %6020 = vmatpush2.msra.mxu0 %v5964
        %6021 = vmatprep.subr.mxu0 0.0
        %6022 = vmatpush2.msra.mxu0 %v5963
        %6023 = vmatprep.subr.mxu0 0.0
        %6024 = vmatpush2.msra.mxu0 %v5962
        %6025 = vmatprep.subr.mxu0 0.0
        %6026 = vmatpush2.msra.mxu0 %v5961
        %6027 = vmatprep.subr.mxu0 0.0
        %6028 = vmatpush2.msra.mxu0 %v5960
        %6029 = vmatprep.subr.mxu0 0.0
        %6030 = vmatpush2.msra.mxu0 %v5959
        %6031 = vmatprep.subr.mxu0 0.0
        %6032 = vmatpush2.msra.mxu0 %v5958
        %6033 = vmatprep.mubr.f32.mxu0 %v5967
        %6034 = vmatmul.mubr.f32.gmra.mxu0 %v5937
        %v6035 = vpop.f32.mrf.mxu0
        %v6036 = vadd.f32 0.0, %v6035
        %v6037 = vpop.f32.mrf.mxu0
        %6038 = vdwg.mxu0
        %v6039 = vadd.f32 %v5941, %v6036
        %s6040 = scalar_lea.vmem %s16, 192
        %v6041 = vld [vmem:[%s6040] sm:$0xff]
        %v6042 = vld [vmem:[%s6040 + $0x8] sm:$0xff]
        %v6043 = vld [vmem:[%s6040 + $0x10] sm:$0xff]
        %v6044 = vld [vmem:[%s6040 + $0x18] sm:$0xff]
        %v6045 = vld [vmem:[%s6040 + $0x20] sm:$0xff]
        %v6046 = vld [vmem:[%s6040 + $0x28] sm:$0xff]
        %v6047 = vld [vmem:[%s6040 + $0x30] sm:$0xff]
        %v6048 = vld [vmem:[%s6040 + $0x38] sm:$0xff]
        %v6049 = vld [vmem:[%s6040 + $0x40] sm:$0xff]
        %v6050 = vld [vmem:[%s6040 + $0x48] sm:$0xff]
        %v6051 = vld [vmem:[%s6040 + $0x50] sm:$0xff]
        %v6052 = vld [vmem:[%s6040 + $0x58] sm:$0xff]
        %v6053 = vld [vmem:[%s6040 + $0x60] sm:$0xff]
        %v6054 = vld [vmem:[%s6040 + $0x68] sm:$0xff]
        %v6055 = vld [vmem:[%s6040 + $0x70] sm:$0xff]
        %v6056 = vld [vmem:[%s6040 + $0x78] sm:$0xff]
        %v6057 = vld [vmem:[%s6040 + $0x80] sm:$0xff]
        %v6058 = vld [vmem:[%s6040 + $0x88] sm:$0xff]
        %v6059 = vld [vmem:[%s6040 + $0x90] sm:$0xff]
        %v6060 = vld [vmem:[%s6040 + $0x98] sm:$0xff]
        %v6061 = vld [vmem:[%s6040 + $0xa0] sm:$0xff]
        %v6062 = vld [vmem:[%s6040 + $0xa8] sm:$0xff]
        %v6063 = vld [vmem:[%s6040 + $0xb0] sm:$0xff]
        %v6064 = vld [vmem:[%s6040 + $0xb8] sm:$0xff]
        %v6066 = vrot.slane %v5937, 1
        %v6067 = vrot.slane %v5939, 1
        %v6069 = vsel %vm5693, %v6067, 0
        %6071 = vmatprep.subr.mxu0 0.0
        %6072 = vmatpush1.msra.mxu0 %v6056
        %6073 = vmatprep.subr.mxu0 0.0
        %6074 = vmatpush1.msra.mxu0 %v6055
        %6075 = vmatprep.subr.mxu0 0.0
        %6076 = vmatpush1.msra.mxu0 %v6054
        %6077 = vmatprep.subr.mxu0 0.0
        %6078 = vmatpush1.msra.mxu0 %v6053
        %6079 = vmatprep.subr.mxu0 0.0
        %6080 = vmatpush1.msra.mxu0 %v6052
        %6081 = vmatprep.subr.mxu0 0.0
        %6082 = vmatpush1.msra.mxu0 %v6051
        %6083 = vmatprep.subr.mxu0 0.0
        %6084 = vmatpush1.msra.mxu0 %v6050
        %6085 = vmatprep.subr.mxu0 0.0
        %6086 = vmatpush1.msra.mxu0 %v6049
        %6087 = vmatprep.subr.mxu0 0.0
        %6088 = vmatpush1.msra.mxu0 %v6048
        %6089 = vmatprep.subr.mxu0 0.0
        %6090 = vmatpush1.msra.mxu0 %v6047
        %6091 = vmatprep.subr.mxu0 0.0
        %6092 = vmatpush1.msra.mxu0 %v6046
        %6093 = vmatprep.subr.mxu0 0.0
        %6094 = vmatpush1.msra.mxu0 %v6045
        %6095 = vmatprep.subr.mxu0 0.0
        %6096 = vmatpush1.msra.mxu0 %v6044
        %6097 = vmatprep.subr.mxu0 0.0
        %6098 = vmatpush1.msra.mxu0 %v6043
        %6099 = vmatprep.subr.mxu0 0.0
        %6100 = vmatpush1.msra.mxu0 %v6042
        %6101 = vmatprep.subr.mxu0 0.0
        %6102 = vmatpush1.msra.mxu0 %v6041
        %6103 = vmatprep.subr.mxu0 0.0
        %6104 = vmatpush2.msra.mxu0 0.0
        %6105 = vmatprep.subr.mxu0 0.0
        %6106 = vmatpush2.msra.mxu0 0.0
        %6107 = vmatprep.subr.mxu0 0.0
        %6108 = vmatpush2.msra.mxu0 0.0
        %6109 = vmatprep.subr.mxu0 0.0
        %6110 = vmatpush2.msra.mxu0 0.0
        %6111 = vmatprep.subr.mxu0 0.0
        %6112 = vmatpush2.msra.mxu0 0.0
        %6113 = vmatprep.subr.mxu0 0.0
        %6114 = vmatpush2.msra.mxu0 0.0
        %6115 = vmatprep.subr.mxu0 0.0
        %6116 = vmatpush2.msra.mxu0 0.0
        %6117 = vmatprep.subr.mxu0 0.0
        %6118 = vmatpush2.msra.mxu0 0.0
        %6119 = vmatprep.subr.mxu0 0.0
        %6120 = vmatpush2.msra.mxu0 %v6064
        %6121 = vmatprep.subr.mxu0 0.0
        %6122 = vmatpush2.msra.mxu0 %v6063
        %6123 = vmatprep.subr.mxu0 0.0
        %6124 = vmatpush2.msra.mxu0 %v6062
        %6125 = vmatprep.subr.mxu0 0.0
        %6126 = vmatpush2.msra.mxu0 %v6061
        %6127 = vmatprep.subr.mxu0 0.0
        %6128 = vmatpush2.msra.mxu0 %v6060
        %6129 = vmatprep.subr.mxu0 0.0
        %6130 = vmatpush2.msra.mxu0 %v6059
        %6131 = vmatprep.subr.mxu0 0.0
        %6132 = vmatpush2.msra.mxu0 %v6058
        %6133 = vmatprep.subr.mxu0 0.0
        %6134 = vmatpush2.msra.mxu0 %v6057
        %6135 = vmatprep.mubr.f32.mxu0 %v6069
        %6136 = vmatmul.mubr.f32.gmra.mxu0 %v6066
        %v6137 = vpop.f32.mrf.mxu0
        %v6138 = vadd.f32 0.0, %v6137
        %v6139 = vpop.f32.mrf.mxu0
        %6140 = vdwg.mxu0
        %v6141 = vadd.f32 %v6039, %v6138
        %s6142 = scalar_lea.vmem %s16, 384
        %v6143 = vld [vmem:[%s6142] sm:$0xff]
        %v6144 = vld [vmem:[%s6142 + $0x8] sm:$0xff]
        %v6145 = vld [vmem:[%s6142 + $0x10] sm:$0xff]
        %v6146 = vld [vmem:[%s6142 + $0x18] sm:$0xff]
        %v6147 = vld [vmem:[%s6142 + $0x20] sm:$0xff]
        %v6148 = vld [vmem:[%s6142 + $0x28] sm:$0xff]
        %v6149 = vld [vmem:[%s6142 + $0x30] sm:$0xff]
        %v6150 = vld [vmem:[%s6142 + $0x38] sm:$0xff]
        %v6151 = vld [vmem:[%s6142 + $0x40] sm:$0xff]
        %v6152 = vld [vmem:[%s6142 + $0x48] sm:$0xff]
        %v6153 = vld [vmem:[%s6142 + $0x50] sm:$0xff]
        %v6154 = vld [vmem:[%s6142 + $0x58] sm:$0xff]
        %v6155 = vld [vmem:[%s6142 + $0x60] sm:$0xff]
        %v6156 = vld [vmem:[%s6142 + $0x68] sm:$0xff]
        %v6157 = vld [vmem:[%s6142 + $0x70] sm:$0xff]
        %v6158 = vld [vmem:[%s6142 + $0x78] sm:$0xff]
        %v6159 = vld [vmem:[%s6142 + $0x80] sm:$0xff]
        %v6160 = vld [vmem:[%s6142 + $0x88] sm:$0xff]
        %v6161 = vld [vmem:[%s6142 + $0x90] sm:$0xff]
        %v6162 = vld [vmem:[%s6142 + $0x98] sm:$0xff]
        %v6163 = vld [vmem:[%s6142 + $0xa0] sm:$0xff]
        %v6164 = vld [vmem:[%s6142 + $0xa8] sm:$0xff]
        %v6165 = vld [vmem:[%s6142 + $0xb0] sm:$0xff]
        %v6166 = vld [vmem:[%s6142 + $0xb8] sm:$0xff]
        %v6167 = vrot.slane %v5937, 2
        %v6168 = vrot.slane %v5939, 2
        %v6170 = vsel %vm5693, %v6168, 0
        %6172 = vmatprep.subr.mxu0 0.0
        %6173 = vmatpush1.msra.mxu0 %v6158
        %6174 = vmatprep.subr.mxu0 0.0
        %6175 = vmatpush1.msra.mxu0 %v6157
        %6176 = vmatprep.subr.mxu0 0.0
        %6177 = vmatpush1.msra.mxu0 %v6156
        %6178 = vmatprep.subr.mxu0 0.0
        %6179 = vmatpush1.msra.mxu0 %v6155
        %6180 = vmatprep.subr.mxu0 0.0
        %6181 = vmatpush1.msra.mxu0 %v6154
        %6182 = vmatprep.subr.mxu0 0.0
        %6183 = vmatpush1.msra.mxu0 %v6153
        %6184 = vmatprep.subr.mxu0 0.0
        %6185 = vmatpush1.msra.mxu0 %v6152
        %6186 = vmatprep.subr.mxu0 0.0
        %6187 = vmatpush1.msra.mxu0 %v6151
        %6188 = vmatprep.subr.mxu0 0.0
        %6189 = vmatpush1.msra.mxu0 %v6150
        %6190 = vmatprep.subr.mxu0 0.0
        %6191 = vmatpush1.msra.mxu0 %v6149
        %6192 = vmatprep.subr.mxu0 0.0
        %6193 = vmatpush1.msra.mxu0 %v6148
        %6194 = vmatprep.subr.mxu0 0.0
        %6195 = vmatpush1.msra.mxu0 %v6147
        %6196 = vmatprep.subr.mxu0 0.0
        %6197 = vmatpush1.msra.mxu0 %v6146
        %6198 = vmatprep.subr.mxu0 0.0
        %6199 = vmatpush1.msra.mxu0 %v6145
        %6200 = vmatprep.subr.mxu0 0.0
        %6201 = vmatpush1.msra.mxu0 %v6144
        %6202 = vmatprep.subr.mxu0 0.0
        %6203 = vmatpush1.msra.mxu0 %v6143
        %6204 = vmatprep.subr.mxu0 0.0
        %6205 = vmatpush2.msra.mxu0 0.0
        %6206 = vmatprep.subr.mxu0 0.0
        %6207 = vmatpush2.msra.mxu0 0.0
        %6208 = vmatprep.subr.mxu0 0.0
        %6209 = vmatpush2.msra.mxu0 0.0
        %6210 = vmatprep.subr.mxu0 0.0
        %6211 = vmatpush2.msra.mxu0 0.0
        %6212 = vmatprep.subr.mxu0 0.0
        %6213 = vmatpush2.msra.mxu0 0.0
        %6214 = vmatprep.subr.mxu0 0.0
        %6215 = vmatpush2.msra.mxu0 0.0
        %6216 = vmatprep.subr.mxu0 0.0
        %6217 = vmatpush2.msra.mxu0 0.0
        %6218 = vmatprep.subr.mxu0 0.0
        %6219 = vmatpush2.msra.mxu0 0.0
        %6220 = vmatprep.subr.mxu0 0.0
        %6221 = vmatpush2.msra.mxu0 %v6166
        %6222 = vmatprep.subr.mxu0 0.0
        %6223 = vmatpush2.msra.mxu0 %v6165
        %6224 = vmatprep.subr.mxu0 0.0
        %6225 = vmatpush2.msra.mxu0 %v6164
        %6226 = vmatprep.subr.mxu0 0.0
        %6227 = vmatpush2.msra.mxu0 %v6163
        %6228 = vmatprep.subr.mxu0 0.0
        %6229 = vmatpush2.msra.mxu0 %v6162
        %6230 = vmatprep.subr.mxu0 0.0
        %6231 = vmatpush2.msra.mxu0 %v6161
        %6232 = vmatprep.subr.mxu0 0.0
        %6233 = vmatpush2.msra.mxu0 %v6160
        %6234 = vmatprep.subr.mxu0 0.0
        %6235 = vmatpush2.msra.mxu0 %v6159
        %6236 = vmatprep.mubr.f32.mxu0 %v6170
        %6237 = vmatmul.mubr.f32.gmra.mxu0 %v6167
        %v6238 = vpop.f32.mrf.mxu0
        %v6239 = vadd.f32 0.0, %v6238
        %v6240 = vpop.f32.mrf.mxu0
        %6241 = vdwg.mxu0
        %v6242 = vadd.f32 %v6141, %v6239
        %vm6243 = vcmask 73728
        %6244 = vst.msk [vmem:[%s767] sm:$0x1] %vm6243, %v6242
        %s6245 = sand.u32 %s431, 1
        %s6246 = scalar_lea.sflag [#allocation7], %s6245
        %s6247 = sand.u32 %s431, 1
        %s6248 = scalar_lea.vmem [#allocation29], %s6247
        // Predicated region
        $region153: #{_lenet_forward_impl.1} parent=91 // pred_check
          %p6249 = pneg %p441
        $region154: #{_lenet_forward_impl.1} parent=91 // pred_check_branch
          %6251 = sbr.rel (%p6249) target = $region156
        $region155: #{_lenet_forward_impl.1} parent=91 // pred_region
          %s6253 = ssub.s32 16, 16
          %6254 = vsyncadd %s6246, %s6253
          %s6255 = smul.addr %s40, 16
          %s6256 = scalar_lea.hbm %s18, %s6255
          %s6258 = sshll.u32 %s6248, 4
          %s6259 = int_to_ptr.vmem [resolvable:$true] %s6258
          %6261 = dma.vmem_to_hbm [thread:$0]  %s6259, 16, %s6256, %s6246
        $region156: #{_lenet_forward_impl.1} parent=91 // pred_fallthru
          _
      $region92: #{_lenet_forward_impl.1} parent=5 // pred_fallthru
        _
      %p6262 = scmp.le.s32.totalorder 2, %s35
      // Predicated region
      $region157: #{_lenet_forward_impl.1} parent=5 // pred_check
        %p6263 = pneg %p6262
      $region158: #{_lenet_forward_impl.1} parent=5 // pred_check_branch
        %6265 = sbr.rel (%p6263) target = $region160
      $region159: #{_lenet_forward_impl.1} parent=5 // pred_region
        %s6266 = ssub.s32 %s35, 2
        // Predicated region
        $region161: #{_lenet_forward_impl.1} parent=159 // pred_check
          %p6267 = pneg %p447
        $region162: #{_lenet_forward_impl.1} parent=159 // pred_check_branch
          %6269 = sbr.rel (%p6267) target = $region164
        $region163: #{_lenet_forward_impl.1} parent=159 // pred_region
          %s6270 = sand.u32 %s432, 1
          %s6271 = scalar_lea.sflag [#allocation7], %s6270
          %s6272 = sand.u32 %s432, 1
          %s6273 = scalar_lea.vmem [#allocation29], %s6272
          %6274 = dma.done %s6271, 16
        $region164: #{_lenet_forward_impl.1} parent=159 // pred_fallthru
          _
      $region160: #{_lenet_forward_impl.1} parent=5 // pred_fallthru
        _
    $region6: #{_lenet_forward_impl.1} parent=1 // loop_footer
      %s39 = sadd.s32 1, %s35
    $region7: #{_lenet_forward_impl.1} parent=1 // loop_footer_branch
      %34 = sbr.rel target = $region3
    $region8: #{_lenet_forward_impl.1} parent=1 // loop_exit
      _
    %6275 = vsyncpa [#allocation6], 1
    %s6276 = scalar_lea.sflag [#allocation6], 1
    %6277 = vsyncpa %s6276, 1
    %6278 = vsyncpa [#allocation9], 1
    %6279 = vsyncpa [#allocation12], 1
    %6280 = vsyncpa [#allocation15], 1
    %6281 = vsyncpa [#allocation18], 1
    %6282 = vsyncpa [#allocation21], 1
    %6283 = vsyncpa [#allocation24], 1
    %6284 = vsyncpa [#allocation27], 1
    %6285 = vsyncpa [#allocation7], 1
    %s6286 = scalar_lea.sflag [#allocation7], 1
    %6287 = vsyncpa %s6286, 1

</llo_original>
